<compile_context>
chip_gen: v7x
topology: tpu7x:2x2x1
jax: 0.10.0
libtpu: 0.0.40
codegen_flags: <defaults>
</compile_context>

<pallas_src>
import functools

import jax
import jax.numpy as jnp
from jax.experimental import pallas as pl
from jax.experimental.pallas import tpu as pltpu

EPS = 1e-6       # Norm eps from the reference implementation
NEG_INF = -1e9   # masked_fill value from the reference implementation

# Row indices inside the packed (16, D) "small parameter" array.
_N1A, _N1B, _N2A, _N2B, _N3A, _N3B = 0, 1, 2, 3, 4, 5
_A1_BQ, _A1_BK, _A1_BV, _A1_BO = 6, 7, 8, 9
_A2_BQ, _A2_BK, _A2_BV, _A2_BO = 10, 11, 12, 13
_FF_B2 = 14  # row 15 is zero padding (keeps the packed array at 16 rows)


# ---------------------------------------------------------------------------
# In-kernel building blocks (operate on a single batch element / query tile)
# ---------------------------------------------------------------------------
def _layernorm(x, alpha, bias):
    # Matches: alpha * (x - mean) / (x.std(unbiased) + eps) + bias
    mean = jnp.mean(x, axis=-1, keepdims=True)
    d = x - mean
    var = jnp.sum(d * d, axis=-1, keepdims=True) * (1.0 / (x.shape[-1] - 1))
    inv = pl.reciprocal(jnp.sqrt(var) + EPS, approx=True)   # EUP slot -> ~free
    return alpha * d * inv + bias


def _split_heads(x, heads, d_k):
    # (S, heads*d_k) -> (heads, S, d_k) via static lane slices + leading-axis stack
    # (avoids an in-kernel minor-dim reshape).
    return jnp.stack([x[:, h * d_k:(h + 1) * d_k] for h in range(heads)], axis=0)


def _attention(q_in, k_bf, v_bf, bias, wq, wo, bq, bo, heads, d_k):
    # q_in: (Sq, D) f32 (already layer-normed).
    # k_bf / v_bf: (Sk, D) bf16 cached projections (bias already folded in).
    # bias: (Sq, Sk) f32 additive mask. wq/wo: bf16; bq/bo: f32 (1, D) rows.
    bf16, f32 = jnp.bfloat16, jnp.float32

    q = jnp.dot(q_in.astype(bf16), wq, preferred_element_type=f32) + bq
    qh = _split_heads(q.astype(bf16), heads, d_k)   # (H, Sq, dk)
    kh = _split_heads(k_bf, heads, d_k)             # (H, Sk, dk)
    vh = _split_heads(v_bf, heads, d_k)             # (H, Sk, dk)

    scale = 1.0 / jnp.sqrt(jnp.float32(d_k))
    # TODO(synk): for very long S, replace the full (H, Sq, Sk) score matrix with a
    # flash-style online-softmax loop over K/V tiles to bound the VMEM working set.
    s = jax.lax.dot_general(qh, kh, (((2,), (2,)), ((0,), (0,))),
                            preferred_element_type=f32) * scale
    s = s + bias[None, :, :]                        # additive mask shared by all heads
    s = s - jnp.max(s, axis=-1, keepdims=True)      # stable softmax
    p = jnp.exp(s)
    p = p * pl.reciprocal(jnp.sum(p, axis=-1, keepdims=True), approx=True)
    o = jax.lax.dot_general(p.astype(bf16), vh, (((2,), (1,)), ((0,), (0,))),
                            preferred_element_type=f32)
    concat = jnp.concatenate([o[h] for h in range(heads)], axis=-1)   # (Sq, D)
    return jnp.dot(concat.astype(bf16), wo, preferred_element_type=f32) + bo


# ---------------------------------------------------------------------------
# Pallas kernel: grid = (batch, query tile); K/V caches built at q-tile 0
# ---------------------------------------------------------------------------
def decoder_layer_kernel(
    x_ref, e_ref, la_ref, trg_ref, vec_ref, attw_ref, ffw1_ref, ffb1_ref, ffw2_ref,
    o_ref,
    k1_ref, v1_ref, k2_ref, v2_ref,
    *, heads, d_k, tq,
):
    f32, bf16 = jnp.float32, jnp.bfloat16
    qi = pl.program_id(1)

    def vec(i):                              # (1, D) f32 row of the packed small params
        return vec_ref[i:i + 1, :]

    # ---- once per batch element: cache self/cross K,V projections in bf16 VMEM ----
    @pl.when(qi == 0)
    def _():
        xf = x_ref[...].astype(f32)                                        # (S, D)
        kv_in = _layernorm(xf, vec(_N1A), vec(_N1B)).astype(bf16)
        k1_ref[...] = (jnp.dot(kv_in, attw_ref[1], preferred_element_type=f32)
                       + vec(_A1_BK)).astype(bf16)
        v1_ref[...] = (jnp.dot(kv_in, attw_ref[2], preferred_element_type=f32)
                       + vec(_A1_BV)).astype(bf16)
        e = e_ref[...]                                                     # (Se, D) bf16
        k2_ref[...] = (jnp.dot(e, attw_ref[5], preferred_element_type=f32)
                       + vec(_A2_BK)).astype(bf16)
        v2_ref[...] = (jnp.dot(e, attw_ref[6], preferred_element_type=f32)
                       + vec(_A2_BV)).astype(bf16)

    # ---- this step's query tile (sliced from the single full-sequence input) ----
    row0 = pl.multiple_of(qi * tq, 8)
    x = x_ref[pl.ds(row0, tq), :].astype(f32)                              # (TQ, D)

    la_bias = la_ref[...].astype(f32)                                      # (TQ, S)
    trg_bias = trg_ref[...].astype(f32)                                    # (TQ, Se)

    # --- self attention sub-layer ---
    q_in = _layernorm(x, vec(_N1A), vec(_N1B))
    x = x + _attention(q_in, k1_ref[...], v1_ref[...], la_bias,
                       attw_ref[0], attw_ref[3], vec(_A1_BQ), vec(_A1_BO),
                       heads, d_k)

    # --- cross attention sub-layer ---
    x2 = _layernorm(x, vec(_N2A), vec(_N2B))
    x = x + _attention(x2, k2_ref[...], v2_ref[...], trg_bias,
                       attw_ref[4], attw_ref[7], vec(_A2_BQ), vec(_A2_BO),
                       heads, d_k)

    # --- feed-forward sub-layer ---
    # TODO(synk): int8 (v5e/v6e) or fp8 (v7x) weight quantization for attn/FFN matmuls.
    x2 = _layernorm(x, vec(_N3A), vec(_N3B))
    h = jnp.maximum(
        jnp.dot(x2.astype(bf16), ffw1_ref[...], preferred_element_type=f32)
        + ffb1_ref[...], 0.0)
    x = x + jnp.dot(h.astype(bf16), ffw2_ref[...], preferred_element_type=f32) + vec(_FF_B2)

    # TODO(synk): dropout_1/2/3 are identity here (inference / eval mode).
    o_ref[...] = x.astype(o_ref.dtype)


# ---------------------------------------------------------------------------
# Wrapper
# ---------------------------------------------------------------------------
def _tpu_vmem_capacity_bytes():
    try:
        cap = getattr(pltpu.get_tpu_info(), "vmem_capacity_bytes", None)
        if cap:
            return int(cap)
    except Exception:
        pass
    return 64 * 1024 * 1024   # conservative default (v7x per-core VMEM)


def _choose_tq(S, cap):
    # Query-tile size: full S for short sequences, else the largest multiple-of-8
    # divisor of S up to `cap` (bounds the per-step working set / VMEM footprint).
    if S <= cap:
        return S
    for t in range(cap - cap % 8, 7, -8):
        if S % t == 0:
            return t
    # TODO(synk): pad S (or use a cdiv grid + masked tail) for awkward sequence lengths.
    return S


def decoder_layer(x, e_outputs, look_ahead_mask, trg_mask, params, heads):
    B, S, D = x.shape
    Se = e_outputs.shape[1]
    assert D % heads == 0
    d_k = D // heads
    d_ff = params["ff_w1"].shape[1]

    # Generation-dependent tiling / VMEM budget (128 MiB on v5e/v6e, 64 MiB on v7x).
    vmem_cap = _tpu_vmem_capacity_bytes()
    vmem_limit = int(min((vmem_cap * 7) // 8, 100 * 1024 * 1024))
    tq_cap = 512 if vmem_cap >= (96 << 20) else 256
    TQ = _choose_tq(S, tq_cap)
    n_qt = S // TQ

    # ---- pack the 15 tiny (1, D) params into one (16, D) f32 array ----
    vec_names = ["n1a", "n1b", "n2a", "n2b", "n3a", "n3b",
                 "a1_bq", "a1_bk", "a1_bv", "a1_bo",
                 "a2_bq", "a2_bk", "a2_bv", "a2_bo", "ff_b2"]
    vecs = jnp.concatenate(
        [params[k].reshape(1, D).astype(jnp.float32) for k in vec_names]
        + [jnp.zeros((1, D), jnp.float32)], axis=0)                       # (16, D)

    # ---- stack the 8 attention weight matrices, bf16 (halves DMA / VMEM) ----
    attw_names = ["a1_wq", "a1_wk", "a1_wv", "a1_wo",
                  "a2_wq", "a2_wk", "a2_wv", "a2_wo"]
    attw = jnp.stack([params[k].astype(jnp.bfloat16) for k in attw_names], axis=0)

    ff_w1 = params["ff_w1"].astype(jnp.bfloat16)
    ff_b1 = params["ff_b1"].reshape(1, d_ff).astype(jnp.float32)
    ff_w2 = params["ff_w2"].astype(jnp.bfloat16)

    # Pre-convert masks to additive biases (0 keep / -1e9 mask) in bf16: the ==0
    # test happens here in the caller's dtype, so it stays exact.
    la_bias = jnp.where(look_ahead_mask == 0, NEG_INF, 0.0).astype(jnp.bfloat16)
    trg_bias = jnp.where(trg_mask == 0, NEG_INF, 0.0).astype(jnp.bfloat16)

    # Activations shipped in bf16 (residual re-upcast to f32 in-kernel).
    x_bf = x.astype(jnp.bfloat16)
    e_bf = e_outputs.astype(jnp.bfloat16)

    kernel = functools.partial(decoder_layer_kernel, heads=heads, d_k=d_k, tq=TQ)

    def run(single_buffer):
        if single_buffer:
            def inv(bs, im):   # grid-invariant / per-batch-only inputs: single buffer
                return pl.BlockSpec(bs, im, pipeline_mode=pl.Buffered(1))
        else:
            def inv(bs, im):
                return pl.BlockSpec(bs, im)

        in_specs = [
            inv((None, S, D), lambda b, q: (b, 0, 0)),             # x (full, bf16)
            inv((None, Se, D), lambda b, q: (b, 0, 0)),            # e_outputs (bf16)
            pl.BlockSpec((None, TQ, S), lambda b, q: (b, q, 0)),   # look-ahead bias rows
            pl.BlockSpec((None, TQ, Se), lambda b, q: (b, q, 0)),  # trg bias rows
            inv((16, D), lambda b, q: (0, 0)),                     # packed norm/bias vecs
            inv((8, D, D), lambda b, q: (0, 0, 0)),                # stacked attn weights
            inv((D, d_ff), lambda b, q: (0, 0)),                   # ff_w1
            inv((1, d_ff), lambda b, q: (0, 0)),                   # ff_b1
            inv((d_ff, D), lambda b, q: (0, 0)),                   # ff_w2
        ]
        out_specs = pl.BlockSpec((None, TQ, D), lambda b, q: (b, q, 0))
        scratch = [
            pltpu.VMEM((S, D), jnp.bfloat16),    # self-attn K cache
            pltpu.VMEM((S, D), jnp.bfloat16),    # self-attn V cache
            pltpu.VMEM((Se, D), jnp.bfloat16),   # cross-attn K cache
            pltpu.VMEM((Se, D), jnp.bfloat16),   # cross-attn V cache
        ]
        # TODO(synk): on v7x with B == 1, add an explicit 2-way core split of the
        # query tiles so both TensorCores stay busy.
        return pl.pallas_call(
            kernel,
            out_shape=jax.ShapeDtypeStruct((B, S, D), jnp.float32),
            grid=(B, n_qt),
            in_specs=in_specs,
            out_specs=out_specs,
            scratch_shapes=scratch,
            compiler_params=pltpu.CompilerParams(
                # q tiles reuse the per-batch K/V caches -> "arbitrary";
                # batch elements are independent -> "parallel" (megacore).
                dimension_semantics=("parallel", "arbitrary"),
                vmem_limit_bytes=vmem_limit),
        )(x_bf, e_bf, la_bias, trg_bias, vecs, attw, ff_w1, ff_b1, ff_w2)

    if hasattr(pl, "Buffered"):
        try:
            return run(True)
        except Exception:
            pass   # pipeline_mode unsupported in this jax version -> default buffering
    return run(False)


# ---------------------------------------------------------------------------
# Pure-JAX reference (mirrors the PyTorch forward in eval mode, f32 everywhere)
# ---------------------------------------------------------------------------
def decoder_layer_ref(x, e, la_mask, trg_mask, p, heads):
    D = x.shape[-1]
    d_k = D // heads

    def norm(x, a, b):
        mean = x.mean(-1, keepdims=True)
        d = x - mean
        var = (d * d).sum(-1, keepdims=True) / (D - 1)
        return a * d / (jnp.sqrt(var) + EPS) + b

    def mha(q_in, k_in, v_in, mask, wq, bq, wk, bk, wv, bv, wo, bo):
        B_, Sq, _ = q_in.shape
        Sk = k_in.shape[1]
        q = (q_in @ wq + bq).reshape(B_, Sq, heads, d_k).transpose(0, 2, 1, 3)
        k = (k_in @ wk + bk).reshape(B_, Sk, heads, d_k).transpose(0, 2, 1, 3)
        v = (v_in @ wv + bv).reshape(B_, Sk, heads, d_k).transpose(0, 2, 1, 3)
        s = jnp.einsum("bhqd,bhkd->bhqk", q, k) / jnp.sqrt(jnp.float32(d_k))
        s = jnp.where(mask[:, None, :, :] == 0.0, -1e9, s)
        a = jax.nn.softmax(s, axis=-1)
        o = jnp.einsum("bhqk,bhkd->bhqd", a, v).transpose(0, 2, 1, 3)
        return o.reshape(B_, Sq, heads * d_k) @ wo + bo

    x2 = norm(x, p["n1a"], p["n1b"])
    x = x + mha(x2, x2, x2, la_mask, p["a1_wq"], p["a1_bq"], p["a1_wk"], p["a1_bk"],
                p["a1_wv"], p["a1_bv"], p["a1_wo"], p["a1_bo"])
    x2 = norm(x, p["n2a"], p["n2b"])
    x = x + mha(x2, e, e, trg_mask, p["a2_wq"], p["a2_bq"], p["a2_wk"], p["a2_bk"],
                p["a2_wv"], p["a2_bv"], p["a2_wo"], p["a2_bo"])
    x2 = norm(x, p["n3a"], p["n3b"])
    h = jnp.maximum(x2 @ p["ff_w1"] + p["ff_b1"], 0.0)
    return x + h @ p["ff_w2"] + p["ff_b2"]


# ---------------------------------------------------------------------------
# Deterministic parameter init + demo
# ---------------------------------------------------------------------------
def init_params(key, d_model, d_ff):
    kit = iter(jax.random.split(key, 32))

    def mat(din, dout):
        return 0.05 * jax.random.normal(next(kit), (din, dout), jnp.float32)

    def row(d, scale=0.02):
        return scale * jax.random.normal(next(kit), (1, d), jnp.float32)

    p = {}
    for i in (1, 2, 3):
        p[f"n{i}a"] = 1.0 + row(d_model, 0.1)
        p[f"n{i}b"] = row(d_model, 0.1)
    for a in ("a1", "a2"):
        for w in ("wq", "wk", "wv", "wo"):
            p[f"{a}_{w}"] = mat(d_model, d_model)
        for b in ("bq", "bk", "bv", "bo"):
            p[f"{a}_{b}"] = row(d_model)
    p["ff_w1"] = mat(d_model, d_ff)
    p["ff_b1"] = row(d_ff)
    p["ff_w2"] = mat(d_ff, d_model)
    p["ff_b2"] = row(d_model)
    return p


if __name__ == "__main__":
    # Small shapes, but lane-dense (D multiple of 128) as recommended.
    B, S, Se, D, HEADS, D_FF = 2, 8, 8, 128, 4, 256

    key = jax.random.PRNGKey(0)
    k_x, k_e, k_p = jax.random.split(key, 3)

    x = jax.random.normal(k_x, (B, S, D), jnp.float32)
    e_outputs = jax.random.normal(k_e, (B, Se, D), jnp.float32)
    # causal look-ahead mask for self-attention, all-ones padding mask for cross-attention
    look_ahead_mask = jnp.broadcast_to(
        jnp.tril(jnp.ones((S, S), jnp.float32)), (B, S, S))
    trg_mask = jnp.ones((B, S, Se), jnp.float32)

    params = init_params(k_p, D, D_FF)

    out = decoder_layer(x, e_outputs, look_ahead_mask, trg_mask, params, HEADS)
    out = jax.block_until_ready(out)

    ref = decoder_layer_ref(x, e_outputs, look_ahead_mask, trg_mask, params, HEADS)
    assert out.shape == (B, S, D)
    # bf16 activations/matmul operands + approx reciprocals -> compare against the
    # f32 reference with a correspondingly looser tolerance.
    max_err = float(jnp.max(jnp.abs(out - ref)))
    assert jnp.allclose(out, ref, atol=5e-2, rtol=5e-2), (
        f"mismatch vs pure-JAX reference (max abs diff {max_err})")

    print("KERNEL_OK")
</pallas_src>

<mosaic_0001>
module attributes {stable_mosaic.version = 11 : i64} {
  func.func @decoder_layer_kernel(%arg0: i32, %arg1: i32, %arg2: memref<1x8x128xbf16, #tpu.memory_space<vmem>>, %arg3: memref<1x8x128xbf16, #tpu.memory_space<vmem>>, %arg4: memref<1x8x8xbf16, #tpu.memory_space<vmem>>, %arg5: memref<1x8x8xbf16, #tpu.memory_space<vmem>>, %arg6: memref<16x128xf32, #tpu.memory_space<vmem>>, %arg7: memref<8x128x128xbf16, #tpu.memory_space<vmem>>, %arg8: memref<128x256xbf16, #tpu.memory_space<vmem>>, %arg9: memref<1x256xf32, #tpu.memory_space<vmem>>, %arg10: memref<256x128xbf16, #tpu.memory_space<vmem>>, %arg11: memref<1x8x128xf32, #tpu.memory_space<vmem>>, %arg12: memref<8x128xbf16, #tpu.memory_space<vmem>>, %arg13: memref<8x128xbf16, #tpu.memory_space<vmem>>, %arg14: memref<8x128xbf16, #tpu.memory_space<vmem>>, %arg15: memref<8x128xbf16, #tpu.memory_space<vmem>>) attributes {dimension_semantics = [#tpu.dimension_semantics<parallel>, #tpu.dimension_semantics<arbitrary>], iteration_bounds = array<i64: 2, 1>, scalar_prefetch = 0 : i64, scratch_operands = 4 : i64, tpu.core_type = #tpu.core_type<tc>, window_params = [{pipeline_mode = #tpu.pipeline_mode<synchronous>, transform_indices = @transform_0, window_bounds = array<i64: 1, 8, 128>}, {pipeline_mode = #tpu.pipeline_mode<synchronous>, transform_indices = @transform_1, window_bounds = array<i64: 1, 8, 128>}, {transform_indices = @transform_2, window_bounds = array<i64: 1, 8, 8>}, {transform_indices = @transform_3, window_bounds = array<i64: 1, 8, 8>}, {pipeline_mode = #tpu.pipeline_mode<synchronous>, transform_indices = @transform_4, window_bounds = array<i64: 16, 128>}, {pipeline_mode = #tpu.pipeline_mode<synchronous>, transform_indices = @transform_5, window_bounds = array<i64: 8, 128, 128>}, {pipeline_mode = #tpu.pipeline_mode<synchronous>, transform_indices = @transform_6, window_bounds = array<i64: 128, 256>}, {pipeline_mode = #tpu.pipeline_mode<synchronous>, transform_indices = @transform_7, window_bounds = array<i64: 1, 256>}, {pipeline_mode = #tpu.pipeline_mode<synchronous>, transform_indices = @transform_8, window_bounds = array<i64: 256, 128>}, {transform_indices = @transform_9, window_bounds = array<i64: 1, 8, 128>}]} {
    %c0_i32 = arith.constant 0 : i32
    %0 = arith.cmpi eq, %arg1, %c0_i32 : i32
    %1 = arith.extui %0 : i1 to i32
    %c0_i32_0 = arith.constant 0 : i32
    %2 = arith.cmpi ne, %1, %c0_i32_0 : i32
    scf.if %2 {
      %c0_81 = arith.constant 0 : index
      %c0_82 = arith.constant 0 : index
      %c0_83 = arith.constant 0 : index
      %250 = vector.load %arg2[%c0_81, %c0_82, %c0_83] : memref<1x8x128xbf16, #tpu.memory_space<vmem>>, vector<1x8x128xbf16>
      %251 = vector.shape_cast %250 : vector<1x8x128xbf16> to vector<8x128xbf16>
      %252 = arith.extf %251 : vector<8x128xbf16> to vector<8x128xf32>
      %c0_84 = arith.constant 0 : index
      %c0_85 = arith.constant 0 : index
      %253 = vector.load %arg6[%c0_84, %c0_85] : memref<16x128xf32, #tpu.memory_space<vmem>>, vector<1x128xf32>
      %c1_86 = arith.constant 1 : index
      %c0_87 = arith.constant 0 : index
      %254 = vector.load %arg6[%c1_86, %c0_87] : memref<16x128xf32, #tpu.memory_space<vmem>>, vector<1x128xf32>
      %cst_88 = arith.constant dense<0.000000e+00> : vector<8xf32>
      %255 = vector.multi_reduction <add>, %252, %cst_88 [1] : vector<8x128xf32> to vector<8xf32>
      %256 = vector.shape_cast %255 : vector<8xf32> to vector<8x1xf32>
      %cst_89 = arith.constant 1.280000e+02 : f32
      %257 = vector.broadcast %cst_89 : f32 to vector<8x1xf32>
      %258 = arith.divf %256, %257 : vector<8x1xf32>
      %259 = vector.broadcast %258 : vector<8x1xf32> to vector<8x128xf32>
      %260 = arith.subf %252, %259 : vector<8x128xf32>
      %261 = arith.mulf %260, %260 : vector<8x128xf32>
      %cst_90 = arith.constant dense<0.000000e+00> : vector<8xf32>
      %262 = vector.multi_reduction <add>, %261, %cst_90 [1] : vector<8x128xf32> to vector<8xf32>
      %263 = vector.shape_cast %262 : vector<8xf32> to vector<8x1xf32>
      %cst_91 = arith.constant 0.00787401571 : f32
      %264 = vector.broadcast %cst_91 : f32 to vector<8x1xf32>
      %265 = arith.mulf %263, %264 : vector<8x1xf32>
      %266 = math.sqrt %265 : vector<8x1xf32>
      %cst_92 = arith.constant 9.99999997E-7 : f32
      %267 = vector.broadcast %cst_92 : f32 to vector<8x1xf32>
      %268 = arith.addf %266, %267 : vector<8x1xf32>
      %269 = tpu.reciprocal %268 {approx = true} : vector<8x1xf32> -> vector<8x1xf32>
      %270 = vector.broadcast %253 : vector<1x128xf32> to vector<8x128xf32>
      %271 = arith.mulf %270, %260 : vector<8x128xf32>
      %272 = vector.broadcast %269 : vector<8x1xf32> to vector<8x128xf32>
      %273 = arith.mulf %271, %272 : vector<8x128xf32>
      %274 = vector.broadcast %254 : vector<1x128xf32> to vector<8x128xf32>
      %275 = arith.addf %273, %274 : vector<8x128xf32>
      %276 = arith.truncf %275 : vector<8x128xf32> to vector<8x128xbf16>
      %c1_93 = arith.constant 1 : index
      %c0_94 = arith.constant 0 : index
      %c0_95 = arith.constant 0 : index
      %277 = vector.load %arg7[%c1_93, %c0_94, %c0_95] : memref<8x128x128xbf16, #tpu.memory_space<vmem>>, vector<1x128x128xbf16>
      %278 = vector.shape_cast %277 : vector<1x128x128xbf16> to vector<128x128xbf16>
      %cst_96 = arith.constant dense<0.000000e+00> : vector<8x128xf32>
      %279 = tpu.matmul %276, %278, %cst_96 {dimension_numbers = #tpu.dot_dimension_numbers<[1], [0], [0], [1], [0, 0, 1, 1], [], []>} : vector<8x128xbf16>, vector<128x128xbf16>, vector<8x128xf32> -> vector<8x128xf32>
      %c7_97 = arith.constant 7 : index
      %c0_98 = arith.constant 0 : index
      %280 = vector.load %arg6[%c7_97, %c0_98] : memref<16x128xf32, #tpu.memory_space<vmem>>, vector<1x128xf32>
      %281 = vector.broadcast %280 : vector<1x128xf32> to vector<8x128xf32>
      %282 = arith.addf %279, %281 : vector<8x128xf32>
      %283 = arith.truncf %282 : vector<8x128xf32> to vector<8x128xbf16>
      %c0_99 = arith.constant 0 : index
      %c0_100 = arith.constant 0 : index
      %284 = vector.load %arg12[%c0_99, %c0_100] : memref<8x128xbf16, #tpu.memory_space<vmem>>, vector<8x128xbf16>
      tpu.vector_store %arg12[%c0_99, %c0_100], %283 {strides = array<i32>} : memref<8x128xbf16, #tpu.memory_space<vmem>>, vector<8x128xbf16>,
      %c2_101 = arith.constant 2 : index
      %c0_102 = arith.constant 0 : index
      %c0_103 = arith.constant 0 : index
      %285 = vector.load %arg7[%c2_101, %c0_102, %c0_103] : memref<8x128x128xbf16, #tpu.memory_space<vmem>>, vector<1x128x128xbf16>
      %286 = vector.shape_cast %285 : vector<1x128x128xbf16> to vector<128x128xbf16>
      %cst_104 = arith.constant dense<0.000000e+00> : vector<8x128xf32>
      %287 = tpu.matmul %276, %286, %cst_104 {dimension_numbers = #tpu.dot_dimension_numbers<[1], [0], [0], [1], [0, 0, 1, 1], [], []>} : vector<8x128xbf16>, vector<128x128xbf16>, vector<8x128xf32> -> vector<8x128xf32>
      %c8 = arith.constant 8 : index
      %c0_105 = arith.constant 0 : index
      %288 = vector.load %arg6[%c8, %c0_105] : memref<16x128xf32, #tpu.memory_space<vmem>>, vector<1x128xf32>
      %289 = vector.broadcast %288 : vector<1x128xf32> to vector<8x128xf32>
      %290 = arith.addf %287, %289 : vector<8x128xf32>
      %291 = arith.truncf %290 : vector<8x128xf32> to vector<8x128xbf16>
      %c0_106 = arith.constant 0 : index
      %c0_107 = arith.constant 0 : index
      %292 = vector.load %arg13[%c0_106, %c0_107] : memref<8x128xbf16, #tpu.memory_space<vmem>>, vector<8x128xbf16>
      tpu.vector_store %arg13[%c0_106, %c0_107], %291 {strides = array<i32>} : memref<8x128xbf16, #tpu.memory_space<vmem>>, vector<8x128xbf16>,
      %c0_108 = arith.constant 0 : index
      %c0_109 = arith.constant 0 : index
      %c0_110 = arith.constant 0 : index
      %293 = vector.load %arg3[%c0_108, %c0_109, %c0_110] : memref<1x8x128xbf16, #tpu.memory_space<vmem>>, vector<1x8x128xbf16>
      %294 = vector.shape_cast %293 : vector<1x8x128xbf16> to vector<8x128xbf16>
      %c5_111 = arith.constant 5 : index
      %c0_112 = arith.constant 0 : index
      %c0_113 = arith.constant 0 : index
      %295 = vector.load %arg7[%c5_111, %c0_112, %c0_113] : memref<8x128x128xbf16, #tpu.memory_space<vmem>>, vector<1x128x128xbf16>
      %296 = vector.shape_cast %295 : vector<1x128x128xbf16> to vector<128x128xbf16>
      %cst_114 = arith.constant dense<0.000000e+00> : vector<8x128xf32>
      %297 = tpu.matmul %294, %296, %cst_114 {dimension_numbers = #tpu.dot_dimension_numbers<[1], [0], [0], [1], [0, 0, 1, 1], [], []>} : vector<8x128xbf16>, vector<128x128xbf16>, vector<8x128xf32> -> vector<8x128xf32>
      %c11 = arith.constant 11 : index
      %c0_115 = arith.constant 0 : index
      %298 = vector.load %arg6[%c11, %c0_115] : memref<16x128xf32, #tpu.memory_space<vmem>>, vector<1x128xf32>
      %299 = vector.broadcast %298 : vector<1x128xf32> to vector<8x128xf32>
      %300 = arith.addf %297, %299 : vector<8x128xf32>
      %301 = arith.truncf %300 : vector<8x128xf32> to vector<8x128xbf16>
      %c0_116 = arith.constant 0 : index
      %c0_117 = arith.constant 0 : index
      %302 = vector.load %arg14[%c0_116, %c0_117] : memref<8x128xbf16, #tpu.memory_space<vmem>>, vector<8x128xbf16>
      tpu.vector_store %arg14[%c0_116, %c0_117], %301 {strides = array<i32>} : memref<8x128xbf16, #tpu.memory_space<vmem>>, vector<8x128xbf16>,
      %c6_118 = arith.constant 6 : index
      %c0_119 = arith.constant 0 : index
      %c0_120 = arith.constant 0 : index
      %303 = vector.load %arg7[%c6_118, %c0_119, %c0_120] : memref<8x128x128xbf16, #tpu.memory_space<vmem>>, vector<1x128x128xbf16>
      %304 = vector.shape_cast %303 : vector<1x128x128xbf16> to vector<128x128xbf16>
      %cst_121 = arith.constant dense<0.000000e+00> : vector<8x128xf32>
      %305 = tpu.matmul %294, %304, %cst_121 {dimension_numbers = #tpu.dot_dimension_numbers<[1], [0], [0], [1], [0, 0, 1, 1], [], []>} : vector<8x128xbf16>, vector<128x128xbf16>, vector<8x128xf32> -> vector<8x128xf32>
      %c12 = arith.constant 12 : index
      %c0_122 = arith.constant 0 : index
      %306 = vector.load %arg6[%c12, %c0_122] : memref<16x128xf32, #tpu.memory_space<vmem>>, vector<1x128xf32>
      %307 = vector.broadcast %306 : vector<1x128xf32> to vector<8x128xf32>
      %308 = arith.addf %305, %307 : vector<8x128xf32>
      %309 = arith.truncf %308 : vector<8x128xf32> to vector<8x128xbf16>
      %c0_123 = arith.constant 0 : index
      %c0_124 = arith.constant 0 : index
      %310 = vector.load %arg15[%c0_123, %c0_124] : memref<8x128xbf16, #tpu.memory_space<vmem>>, vector<8x128xbf16>
      tpu.vector_store %arg15[%c0_123, %c0_124], %309 {strides = array<i32>} : memref<8x128xbf16, #tpu.memory_space<vmem>>, vector<8x128xbf16>,
    } else {
    }
    %c8_i32 = arith.constant 8 : i32
    %3 = arith.muli %arg1, %c8_i32 : i32
    %4 = tpu.assume_multiple %3, 8 : i32
    %c0 = arith.constant 0 : index
    %5 = arith.index_cast %4 : i32 to index
    %c0_1 = arith.constant 0 : index
    %6 = vector.load %arg2[%c0, %5, %c0_1] : memref<1x8x128xbf16, #tpu.memory_space<vmem>>, vector<1x8x128xbf16>
    %7 = vector.shape_cast %6 : vector<1x8x128xbf16> to vector<8x128xbf16>
    %8 = arith.extf %7 : vector<8x128xbf16> to vector<8x128xf32>
    %c0_2 = arith.constant 0 : index
    %c0_3 = arith.constant 0 : index
    %c0_4 = arith.constant 0 : index
    %9 = vector.load %arg4[%c0_2, %c0_3, %c0_4] : memref<1x8x8xbf16, #tpu.memory_space<vmem>>, vector<1x8x8xbf16>
    %10 = vector.shape_cast %9 : vector<1x8x8xbf16> to vector<8x8xbf16>
    %11 = arith.extf %10 : vector<8x8xbf16> to vector<8x8xf32>
    %c0_5 = arith.constant 0 : index
    %c0_6 = arith.constant 0 : index
    %c0_7 = arith.constant 0 : index
    %12 = vector.load %arg5[%c0_5, %c0_6, %c0_7] : memref<1x8x8xbf16, #tpu.memory_space<vmem>>, vector<1x8x8xbf16>
    %13 = vector.shape_cast %12 : vector<1x8x8xbf16> to vector<8x8xbf16>
    %14 = arith.extf %13 : vector<8x8xbf16> to vector<8x8xf32>
    %c0_8 = arith.constant 0 : index
    %c0_9 = arith.constant 0 : index
    %15 = vector.load %arg6[%c0_8, %c0_9] : memref<16x128xf32, #tpu.memory_space<vmem>>, vector<1x128xf32>
    %c1 = arith.constant 1 : index
    %c0_10 = arith.constant 0 : index
    %16 = vector.load %arg6[%c1, %c0_10] : memref<16x128xf32, #tpu.memory_space<vmem>>, vector<1x128xf32>
    %cst = arith.constant dense<0.000000e+00> : vector<8xf32>
    %17 = vector.multi_reduction <add>, %8, %cst [1] : vector<8x128xf32> to vector<8xf32>
    %18 = vector.shape_cast %17 : vector<8xf32> to vector<8x1xf32>
    %cst_11 = arith.constant 1.280000e+02 : f32
    %19 = vector.broadcast %cst_11 : f32 to vector<8x1xf32>
    %20 = arith.divf %18, %19 : vector<8x1xf32>
    %21 = vector.broadcast %20 : vector<8x1xf32> to vector<8x128xf32>
    %22 = arith.subf %8, %21 : vector<8x128xf32>
    %23 = arith.mulf %22, %22 : vector<8x128xf32>
    %cst_12 = arith.constant dense<0.000000e+00> : vector<8xf32>
    %24 = vector.multi_reduction <add>, %23, %cst_12 [1] : vector<8x128xf32> to vector<8xf32>
    %25 = vector.shape_cast %24 : vector<8xf32> to vector<8x1xf32>
    %cst_13 = arith.constant 0.00787401571 : f32
    %26 = vector.broadcast %cst_13 : f32 to vector<8x1xf32>
    %27 = arith.mulf %25, %26 : vector<8x1xf32>
    %28 = math.sqrt %27 : vector<8x1xf32>
    %cst_14 = arith.constant 9.99999997E-7 : f32
    %29 = vector.broadcast %cst_14 : f32 to vector<8x1xf32>
    %30 = arith.addf %28, %29 : vector<8x1xf32>
    %31 = tpu.reciprocal %30 {approx = true} : vector<8x1xf32> -> vector<8x1xf32>
    %32 = vector.broadcast %15 : vector<1x128xf32> to vector<8x128xf32>
    %33 = arith.mulf %32, %22 : vector<8x128xf32>
    %34 = vector.broadcast %31 : vector<8x1xf32> to vector<8x128xf32>
    %35 = arith.mulf %33, %34 : vector<8x128xf32>
    %36 = vector.broadcast %16 : vector<1x128xf32> to vector<8x128xf32>
    %37 = arith.addf %35, %36 : vector<8x128xf32>
    %c0_15 = arith.constant 0 : index
    %c0_16 = arith.constant 0 : index
    %38 = vector.load %arg12[%c0_15, %c0_16] : memref<8x128xbf16, #tpu.memory_space<vmem>>, vector<8x128xbf16>
    %c0_17 = arith.constant 0 : index
    %c0_18 = arith.constant 0 : index
    %39 = vector.load %arg13[%c0_17, %c0_18] : memref<8x128xbf16, #tpu.memory_space<vmem>>, vector<8x128xbf16>
    %c0_19 = arith.constant 0 : index
    %c0_20 = arith.constant 0 : index
    %c0_21 = arith.constant 0 : index
    %40 = vector.load %arg7[%c0_19, %c0_20, %c0_21] : memref<8x128x128xbf16, #tpu.memory_space<vmem>>, vector<1x128x128xbf16>
    %41 = vector.shape_cast %40 : vector<1x128x128xbf16> to vector<128x128xbf16>
    %c3 = arith.constant 3 : index
    %c0_22 = arith.constant 0 : index
    %c0_23 = arith.constant 0 : index
    %42 = vector.load %arg7[%c3, %c0_22, %c0_23] : memref<8x128x128xbf16, #tpu.memory_space<vmem>>, vector<1x128x128xbf16>
    %43 = vector.shape_cast %42 : vector<1x128x128xbf16> to vector<128x128xbf16>
    %c6 = arith.constant 6 : index
    %c0_24 = arith.constant 0 : index
    %44 = vector.load %arg6[%c6, %c0_24] : memref<16x128xf32, #tpu.memory_space<vmem>>, vector<1x128xf32>
    %c9 = arith.constant 9 : index
    %c0_25 = arith.constant 0 : index
    %45 = vector.load %arg6[%c9, %c0_25] : memref<16x128xf32, #tpu.memory_space<vmem>>, vector<1x128xf32>
    %46 = arith.truncf %37 : vector<8x128xf32> to vector<8x128xbf16>
    %cst_26 = arith.constant dense<0.000000e+00> : vector<8x128xf32>
    %47 = tpu.matmul %46, %41, %cst_26 {dimension_numbers = #tpu.dot_dimension_numbers<[1], [0], [0], [1], [0, 0, 1, 1], [], []>} : vector<8x128xbf16>, vector<128x128xbf16>, vector<8x128xf32> -> vector<8x128xf32>
    %48 = vector.broadcast %44 : vector<1x128xf32> to vector<8x128xf32>
    %49 = arith.addf %47, %48 : vector<8x128xf32>
    %50 = arith.truncf %49 : vector<8x128xf32> to vector<8x128xbf16>
    %51 = vector.extract_strided_slice %50 {offsets = [0, 0], sizes = [8, 32], strides = [1, 1]} : vector<8x128xbf16> to vector<8x32xbf16>
    %52 = vector.extract_strided_slice %50 {offsets = [0, 32], sizes = [8, 32], strides = [1, 1]} : vector<8x128xbf16> to vector<8x32xbf16>
    %53 = vector.extract_strided_slice %50 {offsets = [0, 64], sizes = [8, 32], strides = [1, 1]} : vector<8x128xbf16> to vector<8x32xbf16>
    %54 = vector.extract_strided_slice %50 {offsets = [0, 96], sizes = [8, 32], strides = [1, 1]} : vector<8x128xbf16> to vector<8x32xbf16>
    %55 = vector.shape_cast %51 : vector<8x32xbf16> to vector<1x8x32xbf16>
    %56 = vector.shape_cast %52 : vector<8x32xbf16> to vector<1x8x32xbf16>
    %57 = vector.shape_cast %53 : vector<8x32xbf16> to vector<1x8x32xbf16>
    %58 = vector.shape_cast %54 : vector<8x32xbf16> to vector<1x8x32xbf16>
    %59 = tpu.concatenate %55, %56, %57, %58 in 0 : vector<1x8x32xbf16>, vector<1x8x32xbf16>, vector<1x8x32xbf16>, vector<1x8x32xbf16> -> vector<4x8x32xbf16>
    %60 = vector.extract_strided_slice %38 {offsets = [0, 0], sizes = [8, 32], strides = [1, 1]} : vector<8x128xbf16> to vector<8x32xbf16>
    %61 = vector.extract_strided_slice %38 {offsets = [0, 32], sizes = [8, 32], strides = [1, 1]} : vector<8x128xbf16> to vector<8x32xbf16>
    %62 = vector.extract_strided_slice %38 {offsets = [0, 64], sizes = [8, 32], strides = [1, 1]} : vector<8x128xbf16> to vector<8x32xbf16>
    %63 = vector.extract_strided_slice %38 {offsets = [0, 96], sizes = [8, 32], strides = [1, 1]} : vector<8x128xbf16> to vector<8x32xbf16>
    %64 = vector.shape_cast %60 : vector<8x32xbf16> to vector<1x8x32xbf16>
    %65 = vector.shape_cast %61 : vector<8x32xbf16> to vector<1x8x32xbf16>
    %66 = vector.shape_cast %62 : vector<8x32xbf16> to vector<1x8x32xbf16>
    %67 = vector.shape_cast %63 : vector<8x32xbf16> to vector<1x8x32xbf16>
    %68 = tpu.concatenate %64, %65, %66, %67 in 0 : vector<1x8x32xbf16>, vector<1x8x32xbf16>, vector<1x8x32xbf16>, vector<1x8x32xbf16> -> vector<4x8x32xbf16>
    %69 = vector.extract_strided_slice %39 {offsets = [0, 0], sizes = [8, 32], strides = [1, 1]} : vector<8x128xbf16> to vector<8x32xbf16>
    %70 = vector.extract_strided_slice %39 {offsets = [0, 32], sizes = [8, 32], strides = [1, 1]} : vector<8x128xbf16> to vector<8x32xbf16>
    %71 = vector.extract_strided_slice %39 {offsets = [0, 64], sizes = [8, 32], strides = [1, 1]} : vector<8x128xbf16> to vector<8x32xbf16>
    %72 = vector.extract_strided_slice %39 {offsets = [0, 96], sizes = [8, 32], strides = [1, 1]} : vector<8x128xbf16> to vector<8x32xbf16>
    %73 = vector.shape_cast %69 : vector<8x32xbf16> to vector<1x8x32xbf16>
    %74 = vector.shape_cast %70 : vector<8x32xbf16> to vector<1x8x32xbf16>
    %75 = vector.shape_cast %71 : vector<8x32xbf16> to vector<1x8x32xbf16>
    %76 = vector.shape_cast %72 : vector<8x32xbf16> to vector<1x8x32xbf16>
    %77 = tpu.concatenate %73, %74, %75, %76 in 0 : vector<1x8x32xbf16>, vector<1x8x32xbf16>, vector<1x8x32xbf16>, vector<1x8x32xbf16> -> vector<4x8x32xbf16>
    %cst_27 = arith.constant 3.200000e+01 : f32
    %78 = math.sqrt %cst_27 : f32
    %cst_28 = arith.constant 1.000000e+00 : f32
    %79 = arith.divf %cst_28, %78 : f32
    %cst_29 = arith.constant dense<0.000000e+00> : vector<4x8x8xf32>
    %80 = tpu.matmul %59, %68, %cst_29 {dimension_numbers = #tpu.dot_dimension_numbers<[2], [2], [1], [1], [0, 0, 0, 1, 1, 1], [0], [0]>} : vector<4x8x32xbf16>, vector<4x8x32xbf16>, vector<4x8x8xf32> -> vector<4x8x8xf32>
    %81 = vector.broadcast %79 : f32 to vector<4x8x8xf32>
    %82 = arith.mulf %80, %81 : vector<4x8x8xf32>
    %83 = vector.shape_cast %11 : vector<8x8xf32> to vector<1x8x8xf32>
    %84 = vector.broadcast %83 : vector<1x8x8xf32> to vector<4x8x8xf32>
    %85 = arith.addf %82, %84 : vector<4x8x8xf32>
    %cst_30 = arith.constant dense<0xFF800000> : vector<4x8xf32>
    %86 = vector.multi_reduction <maximumf>, %85, %cst_30 [2] : vector<4x8x8xf32> to vector<4x8xf32>
    %87 = vector.shape_cast %86 : vector<4x8xf32> to vector<4x8x1xf32>
    %88 = vector.broadcast %87 : vector<4x8x1xf32> to vector<4x8x8xf32>
    %89 = arith.subf %85, %88 : vector<4x8x8xf32>
    %90 = math.exp %89 : vector<4x8x8xf32>
    %cst_31 = arith.constant dense<0.000000e+00> : vector<4x8xf32>
    %91 = vector.multi_reduction <add>, %90, %cst_31 [2] : vector<4x8x8xf32> to vector<4x8xf32>
    %92 = vector.shape_cast %91 : vector<4x8xf32> to vector<4x8x1xf32>
    %93 = tpu.reciprocal %92 {approx = true} : vector<4x8x1xf32> -> vector<4x8x1xf32>
    %94 = vector.broadcast %93 : vector<4x8x1xf32> to vector<4x8x8xf32>
    %95 = arith.mulf %90, %94 : vector<4x8x8xf32>
    %96 = arith.truncf %95 : vector<4x8x8xf32> to vector<4x8x8xbf16>
    %cst_32 = arith.constant dense<0.000000e+00> : vector<4x8x32xf32>
    %97 = tpu.matmul %96, %77, %cst_32 {dimension_numbers = #tpu.dot_dimension_numbers<[2], [1], [1], [2], [0, 0, 0, 1, 1, 2], [0], [0]>} : vector<4x8x8xbf16>, vector<4x8x32xbf16>, vector<4x8x32xf32> -> vector<4x8x32xf32>
    %98 = vector.extract_strided_slice %97 {offsets = [0, 0, 0], sizes = [1, 8, 32], strides = [1, 1, 1]} : vector<4x8x32xf32> to vector<1x8x32xf32>
    %99 = vector.shape_cast %98 : vector<1x8x32xf32> to vector<8x32xf32>
    %100 = vector.extract_strided_slice %97 {offsets = [1, 0, 0], sizes = [1, 8, 32], strides = [1, 1, 1]} : vector<4x8x32xf32> to vector<1x8x32xf32>
    %101 = vector.shape_cast %100 : vector<1x8x32xf32> to vector<8x32xf32>
    %102 = vector.extract_strided_slice %97 {offsets = [2, 0, 0], sizes = [1, 8, 32], strides = [1, 1, 1]} : vector<4x8x32xf32> to vector<1x8x32xf32>
    %103 = vector.shape_cast %102 : vector<1x8x32xf32> to vector<8x32xf32>
    %104 = vector.extract_strided_slice %97 {offsets = [3, 0, 0], sizes = [1, 8, 32], strides = [1, 1, 1]} : vector<4x8x32xf32> to vector<1x8x32xf32>
    %105 = vector.shape_cast %104 : vector<1x8x32xf32> to vector<8x32xf32>
    %106 = tpu.concatenate %99, %101, %103, %105 in 1 : vector<8x32xf32>, vector<8x32xf32>, vector<8x32xf32>, vector<8x32xf32> -> vector<8x128xf32>
    %107 = arith.truncf %106 : vector<8x128xf32> to vector<8x128xbf16>
    %cst_33 = arith.constant dense<0.000000e+00> : vector<8x128xf32>
    %108 = tpu.matmul %107, %43, %cst_33 {dimension_numbers = #tpu.dot_dimension_numbers<[1], [0], [0], [1], [0, 0, 1, 1], [], []>} : vector<8x128xbf16>, vector<128x128xbf16>, vector<8x128xf32> -> vector<8x128xf32>
    %109 = vector.broadcast %45 : vector<1x128xf32> to vector<8x128xf32>
    %110 = arith.addf %108, %109 : vector<8x128xf32>
    %111 = arith.addf %8, %110 : vector<8x128xf32>
    %c2 = arith.constant 2 : index
    %c0_34 = arith.constant 0 : index
    %112 = vector.load %arg6[%c2, %c0_34] : memref<16x128xf32, #tpu.memory_space<vmem>>, vector<1x128xf32>
    %c3_35 = arith.constant 3 : index
    %c0_36 = arith.constant 0 : index
    %113 = vector.load %arg6[%c3_35, %c0_36] : memref<16x128xf32, #tpu.memory_space<vmem>>, vector<1x128xf32>
    %cst_37 = arith.constant dense<0.000000e+00> : vector<8xf32>
    %114 = vector.multi_reduction <add>, %111, %cst_37 [1] : vector<8x128xf32> to vector<8xf32>
    %115 = vector.shape_cast %114 : vector<8xf32> to vector<8x1xf32>
    %cst_38 = arith.constant 1.280000e+02 : f32
    %116 = vector.broadcast %cst_38 : f32 to vector<8x1xf32>
    %117 = arith.divf %115, %116 : vector<8x1xf32>
    %118 = vector.broadcast %117 : vector<8x1xf32> to vector<8x128xf32>
    %119 = arith.subf %111, %118 : vector<8x128xf32>
    %120 = arith.mulf %119, %119 : vector<8x128xf32>
    %cst_39 = arith.constant dense<0.000000e+00> : vector<8xf32>
    %121 = vector.multi_reduction <add>, %120, %cst_39 [1] : vector<8x128xf32> to vector<8xf32>
    %122 = vector.shape_cast %121 : vector<8xf32> to vector<8x1xf32>
    %cst_40 = arith.constant 0.00787401571 : f32
    %123 = vector.broadcast %cst_40 : f32 to vector<8x1xf32>
    %124 = arith.mulf %122, %123 : vector<8x1xf32>
    %125 = math.sqrt %124 : vector<8x1xf32>
    %cst_41 = arith.constant 9.99999997E-7 : f32
    %126 = vector.broadcast %cst_41 : f32 to vector<8x1xf32>
    %127 = arith.addf %125, %126 : vector<8x1xf32>
    %128 = tpu.reciprocal %127 {approx = true} : vector<8x1xf32> -> vector<8x1xf32>
    %129 = vector.broadcast %112 : vector<1x128xf32> to vector<8x128xf32>
    %130 = arith.mulf %129, %119 : vector<8x128xf32>
    %131 = vector.broadcast %128 : vector<8x1xf32> to vector<8x128xf32>
    %132 = arith.mulf %130, %131 : vector<8x128xf32>
    %133 = vector.broadcast %113 : vector<1x128xf32> to vector<8x128xf32>
    %134 = arith.addf %132, %133 : vector<8x128xf32>
    %c0_42 = arith.constant 0 : index
    %c0_43 = arith.constant 0 : index
    %135 = vector.load %arg14[%c0_42, %c0_43] : memref<8x128xbf16, #tpu.memory_space<vmem>>, vector<8x128xbf16>
    %c0_44 = arith.constant 0 : index
    %c0_45 = arith.constant 0 : index
    %136 = vector.load %arg15[%c0_44, %c0_45] : memref<8x128xbf16, #tpu.memory_space<vmem>>, vector<8x128xbf16>
    %c4 = arith.constant 4 : index
    %c0_46 = arith.constant 0 : index
    %c0_47 = arith.constant 0 : index
    %137 = vector.load %arg7[%c4, %c0_46, %c0_47] : memref<8x128x128xbf16, #tpu.memory_space<vmem>>, vector<1x128x128xbf16>
    %138 = vector.shape_cast %137 : vector<1x128x128xbf16> to vector<128x128xbf16>
    %c7 = arith.constant 7 : index
    %c0_48 = arith.constant 0 : index
    %c0_49 = arith.constant 0 : index
    %139 = vector.load %arg7[%c7, %c0_48, %c0_49] : memref<8x128x128xbf16, #tpu.memory_space<vmem>>, vector<1x128x128xbf16>
    %140 = vector.shape_cast %139 : vector<1x128x128xbf16> to vector<128x128xbf16>
    %c10 = arith.constant 10 : index
    %c0_50 = arith.constant 0 : index
    %141 = vector.load %arg6[%c10, %c0_50] : memref<16x128xf32, #tpu.memory_space<vmem>>, vector<1x128xf32>
    %c13 = arith.constant 13 : index
    %c0_51 = arith.constant 0 : index
    %142 = vector.load %arg6[%c13, %c0_51] : memref<16x128xf32, #tpu.memory_space<vmem>>, vector<1x128xf32>
    %143 = arith.truncf %134 : vector<8x128xf32> to vector<8x128xbf16>
    %cst_52 = arith.constant dense<0.000000e+00> : vector<8x128xf32>
    %144 = tpu.matmul %143, %138, %cst_52 {dimension_numbers = #tpu.dot_dimension_numbers<[1], [0], [0], [1], [0, 0, 1, 1], [], []>} : vector<8x128xbf16>, vector<128x128xbf16>, vector<8x128xf32> -> vector<8x128xf32>
    %145 = vector.broadcast %141 : vector<1x128xf32> to vector<8x128xf32>
    %146 = arith.addf %144, %145 : vector<8x128xf32>
    %147 = arith.truncf %146 : vector<8x128xf32> to vector<8x128xbf16>
    %148 = vector.extract_strided_slice %147 {offsets = [0, 0], sizes = [8, 32], strides = [1, 1]} : vector<8x128xbf16> to vector<8x32xbf16>
    %149 = vector.extract_strided_slice %147 {offsets = [0, 32], sizes = [8, 32], strides = [1, 1]} : vector<8x128xbf16> to vector<8x32xbf16>
    %150 = vector.extract_strided_slice %147 {offsets = [0, 64], sizes = [8, 32], strides = [1, 1]} : vector<8x128xbf16> to vector<8x32xbf16>
    %151 = vector.extract_strided_slice %147 {offsets = [0, 96], sizes = [8, 32], strides = [1, 1]} : vector<8x128xbf16> to vector<8x32xbf16>
    %152 = vector.shape_cast %148 : vector<8x32xbf16> to vector<1x8x32xbf16>
    %153 = vector.shape_cast %149 : vector<8x32xbf16> to vector<1x8x32xbf16>
    %154 = vector.shape_cast %150 : vector<8x32xbf16> to vector<1x8x32xbf16>
    %155 = vector.shape_cast %151 : vector<8x32xbf16> to vector<1x8x32xbf16>
    %156 = tpu.concatenate %152, %153, %154, %155 in 0 : vector<1x8x32xbf16>, vector<1x8x32xbf16>, vector<1x8x32xbf16>, vector<1x8x32xbf16> -> vector<4x8x32xbf16>
    %157 = vector.extract_strided_slice %135 {offsets = [0, 0], sizes = [8, 32], strides = [1, 1]} : vector<8x128xbf16> to vector<8x32xbf16>
    %158 = vector.extract_strided_slice %135 {offsets = [0, 32], sizes = [8, 32], strides = [1, 1]} : vector<8x128xbf16> to vector<8x32xbf16>
    %159 = vector.extract_strided_slice %135 {offsets = [0, 64], sizes = [8, 32], strides = [1, 1]} : vector<8x128xbf16> to vector<8x32xbf16>
    %160 = vector.extract_strided_slice %135 {offsets = [0, 96], sizes = [8, 32], strides = [1, 1]} : vector<8x128xbf16> to vector<8x32xbf16>
    %161 = vector.shape_cast %157 : vector<8x32xbf16> to vector<1x8x32xbf16>
    %162 = vector.shape_cast %158 : vector<8x32xbf16> to vector<1x8x32xbf16>
    %163 = vector.shape_cast %159 : vector<8x32xbf16> to vector<1x8x32xbf16>
    %164 = vector.shape_cast %160 : vector<8x32xbf16> to vector<1x8x32xbf16>
    %165 = tpu.concatenate %161, %162, %163, %164 in 0 : vector<1x8x32xbf16>, vector<1x8x32xbf16>, vector<1x8x32xbf16>, vector<1x8x32xbf16> -> vector<4x8x32xbf16>
    %166 = vector.extract_strided_slice %136 {offsets = [0, 0], sizes = [8, 32], strides = [1, 1]} : vector<8x128xbf16> to vector<8x32xbf16>
    %167 = vector.extract_strided_slice %136 {offsets = [0, 32], sizes = [8, 32], strides = [1, 1]} : vector<8x128xbf16> to vector<8x32xbf16>
    %168 = vector.extract_strided_slice %136 {offsets = [0, 64], sizes = [8, 32], strides = [1, 1]} : vector<8x128xbf16> to vector<8x32xbf16>
    %169 = vector.extract_strided_slice %136 {offsets = [0, 96], sizes = [8, 32], strides = [1, 1]} : vector<8x128xbf16> to vector<8x32xbf16>
    %170 = vector.shape_cast %166 : vector<8x32xbf16> to vector<1x8x32xbf16>
    %171 = vector.shape_cast %167 : vector<8x32xbf16> to vector<1x8x32xbf16>
    %172 = vector.shape_cast %168 : vector<8x32xbf16> to vector<1x8x32xbf16>
    %173 = vector.shape_cast %169 : vector<8x32xbf16> to vector<1x8x32xbf16>
    %174 = tpu.concatenate %170, %171, %172, %173 in 0 : vector<1x8x32xbf16>, vector<1x8x32xbf16>, vector<1x8x32xbf16>, vector<1x8x32xbf16> -> vector<4x8x32xbf16>
    %cst_53 = arith.constant 3.200000e+01 : f32
    %175 = math.sqrt %cst_53 : f32
    %cst_54 = arith.constant 1.000000e+00 : f32
    %176 = arith.divf %cst_54, %175 : f32
    %cst_55 = arith.constant dense<0.000000e+00> : vector<4x8x8xf32>
    %177 = tpu.matmul %156, %165, %cst_55 {dimension_numbers = #tpu.dot_dimension_numbers<[2], [2], [1], [1], [0, 0, 0, 1, 1, 1], [0], [0]>} : vector<4x8x32xbf16>, vector<4x8x32xbf16>, vector<4x8x8xf32> -> vector<4x8x8xf32>
    %178 = vector.broadcast %176 : f32 to vector<4x8x8xf32>
    %179 = arith.mulf %177, %178 : vector<4x8x8xf32>
    %180 = vector.shape_cast %14 : vector<8x8xf32> to vector<1x8x8xf32>
    %181 = vector.broadcast %180 : vector<1x8x8xf32> to vector<4x8x8xf32>
    %182 = arith.addf %179, %181 : vector<4x8x8xf32>
    %cst_56 = arith.constant dense<0xFF800000> : vector<4x8xf32>
    %183 = vector.multi_reduction <maximumf>, %182, %cst_56 [2] : vector<4x8x8xf32> to vector<4x8xf32>
    %184 = vector.shape_cast %183 : vector<4x8xf32> to vector<4x8x1xf32>
    %185 = vector.broadcast %184 : vector<4x8x1xf32> to vector<4x8x8xf32>
    %186 = arith.subf %182, %185 : vector<4x8x8xf32>
    %187 = math.exp %186 : vector<4x8x8xf32>
    %cst_57 = arith.constant dense<0.000000e+00> : vector<4x8xf32>
    %188 = vector.multi_reduction <add>, %187, %cst_57 [2] : vector<4x8x8xf32> to vector<4x8xf32>
    %189 = vector.shape_cast %188 : vector<4x8xf32> to vector<4x8x1xf32>
    %190 = tpu.reciprocal %189 {approx = true} : vector<4x8x1xf32> -> vector<4x8x1xf32>
    %191 = vector.broadcast %190 : vector<4x8x1xf32> to vector<4x8x8xf32>
    %192 = arith.mulf %187, %191 : vector<4x8x8xf32>
    %193 = arith.truncf %192 : vector<4x8x8xf32> to vector<4x8x8xbf16>
    %cst_58 = arith.constant dense<0.000000e+00> : vector<4x8x32xf32>
    %194 = tpu.matmul %193, %174, %cst_58 {dimension_numbers = #tpu.dot_dimension_numbers<[2], [1], [1], [2], [0, 0, 0, 1, 1, 2], [0], [0]>} : vector<4x8x8xbf16>, vector<4x8x32xbf16>, vector<4x8x32xf32> -> vector<4x8x32xf32>
    %195 = vector.extract_strided_slice %194 {offsets = [0, 0, 0], sizes = [1, 8, 32], strides = [1, 1, 1]} : vector<4x8x32xf32> to vector<1x8x32xf32>
    %196 = vector.shape_cast %195 : vector<1x8x32xf32> to vector<8x32xf32>
    %197 = vector.extract_strided_slice %194 {offsets = [1, 0, 0], sizes = [1, 8, 32], strides = [1, 1, 1]} : vector<4x8x32xf32> to vector<1x8x32xf32>
    %198 = vector.shape_cast %197 : vector<1x8x32xf32> to vector<8x32xf32>
    %199 = vector.extract_strided_slice %194 {offsets = [2, 0, 0], sizes = [1, 8, 32], strides = [1, 1, 1]} : vector<4x8x32xf32> to vector<1x8x32xf32>
    %200 = vector.shape_cast %199 : vector<1x8x32xf32> to vector<8x32xf32>
    %201 = vector.extract_strided_slice %194 {offsets = [3, 0, 0], sizes = [1, 8, 32], strides = [1, 1, 1]} : vector<4x8x32xf32> to vector<1x8x32xf32>
    %202 = vector.shape_cast %201 : vector<1x8x32xf32> to vector<8x32xf32>
    %203 = tpu.concatenate %196, %198, %200, %202 in 1 : vector<8x32xf32>, vector<8x32xf32>, vector<8x32xf32>, vector<8x32xf32> -> vector<8x128xf32>
    %204 = arith.truncf %203 : vector<8x128xf32> to vector<8x128xbf16>
    %cst_59 = arith.constant dense<0.000000e+00> : vector<8x128xf32>
    %205 = tpu.matmul %204, %140, %cst_59 {dimension_numbers = #tpu.dot_dimension_numbers<[1], [0], [0], [1], [0, 0, 1, 1], [], []>} : vector<8x128xbf16>, vector<128x128xbf16>, vector<8x128xf32> -> vector<8x128xf32>
    %206 = vector.broadcast %142 : vector<1x128xf32> to vector<8x128xf32>
    %207 = arith.addf %205, %206 : vector<8x128xf32>
    %208 = arith.addf %111, %207 : vector<8x128xf32>
    %c4_60 = arith.constant 4 : index
    %c0_61 = arith.constant 0 : index
    %209 = vector.load %arg6[%c4_60, %c0_61] : memref<16x128xf32, #tpu.memory_space<vmem>>, vector<1x128xf32>
    %c5 = arith.constant 5 : index
    %c0_62 = arith.constant 0 : index
    %210 = vector.load %arg6[%c5, %c0_62] : memref<16x128xf32, #tpu.memory_space<vmem>>, vector<1x128xf32>
    %cst_63 = arith.constant dense<0.000000e+00> : vector<8xf32>
    %211 = vector.multi_reduction <add>, %208, %cst_63 [1] : vector<8x128xf32> to vector<8xf32>
    %212 = vector.shape_cast %211 : vector<8xf32> to vector<8x1xf32>
    %cst_64 = arith.constant 1.280000e+02 : f32
    %213 = vector.broadcast %cst_64 : f32 to vector<8x1xf32>
    %214 = arith.divf %212, %213 : vector<8x1xf32>
    %215 = vector.broadcast %214 : vector<8x1xf32> to vector<8x128xf32>
    %216 = arith.subf %208, %215 : vector<8x128xf32>
    %217 = arith.mulf %216, %216 : vector<8x128xf32>
    %cst_65 = arith.constant dense<0.000000e+00> : vector<8xf32>
    %218 = vector.multi_reduction <add>, %217, %cst_65 [1] : vector<8x128xf32> to vector<8xf32>
    %219 = vector.shape_cast %218 : vector<8xf32> to vector<8x1xf32>
    %cst_66 = arith.constant 0.00787401571 : f32
    %220 = vector.broadcast %cst_66 : f32 to vector<8x1xf32>
    %221 = arith.mulf %219, %220 : vector<8x1xf32>
    %222 = math.sqrt %221 : vector<8x1xf32>
    %cst_67 = arith.constant 9.99999997E-7 : f32
    %223 = vector.broadcast %cst_67 : f32 to vector<8x1xf32>
    %224 = arith.addf %222, %223 : vector<8x1xf32>
    %225 = tpu.reciprocal %224 {approx = true} : vector<8x1xf32> -> vector<8x1xf32>
    %226 = vector.broadcast %209 : vector<1x128xf32> to vector<8x128xf32>
    %227 = arith.mulf %226, %216 : vector<8x128xf32>
    %228 = vector.broadcast %225 : vector<8x1xf32> to vector<8x128xf32>
    %229 = arith.mulf %227, %228 : vector<8x128xf32>
    %230 = vector.broadcast %210 : vector<1x128xf32> to vector<8x128xf32>
    %231 = arith.addf %229, %230 : vector<8x128xf32>
    %232 = arith.truncf %231 : vector<8x128xf32> to vector<8x128xbf16>
    %c0_68 = arith.constant 0 : index
    %c0_69 = arith.constant 0 : index
    %233 = vector.load %arg8[%c0_68, %c0_69] : memref<128x256xbf16, #tpu.memory_space<vmem>>, vector<128x256xbf16>
    %cst_70 = arith.constant dense<0.000000e+00> : vector<8x256xf32>
    %234 = tpu.matmul %232, %233, %cst_70 {dimension_numbers = #tpu.dot_dimension_numbers<[1], [0], [0], [1], [0, 0, 1, 1], [], []>} : vector<8x128xbf16>, vector<128x256xbf16>, vector<8x256xf32> -> vector<8x256xf32>
    %c0_71 = arith.constant 0 : index
    %c0_72 = arith.constant 0 : index
    %235 = vector.load %arg9[%c0_71, %c0_72] : memref<1x256xf32, #tpu.memory_space<vmem>>, vector<1x256xf32>
    %236 = vector.broadcast %235 : vector<1x256xf32> to vector<8x256xf32>
    %237 = arith.addf %234, %236 : vector<8x256xf32>
    %cst_73 = arith.constant 0.000000e+00 : f32
    %238 = vector.broadcast %cst_73 : f32 to vector<8x256xf32>
    %239 = arith.maximumf %237, %238 : vector<8x256xf32>
    %240 = arith.truncf %239 : vector<8x256xf32> to vector<8x256xbf16>
    %c0_74 = arith.constant 0 : index
    %c0_75 = arith.constant 0 : index
    %241 = vector.load %arg10[%c0_74, %c0_75] : memref<256x128xbf16, #tpu.memory_space<vmem>>, vector<256x128xbf16>
    %cst_76 = arith.constant dense<0.000000e+00> : vector<8x128xf32>
    %242 = tpu.matmul %240, %241, %cst_76 {dimension_numbers = #tpu.dot_dimension_numbers<[1], [0], [0], [1], [0, 0, 1, 1], [], []>} : vector<8x256xbf16>, vector<256x128xbf16>, vector<8x128xf32> -> vector<8x128xf32>
    %243 = arith.addf %208, %242 : vector<8x128xf32>
    %c14 = arith.constant 14 : index
    %c0_77 = arith.constant 0 : index
    %244 = vector.load %arg6[%c14, %c0_77] : memref<16x128xf32, #tpu.memory_space<vmem>>, vector<1x128xf32>
    %245 = vector.broadcast %244 : vector<1x128xf32> to vector<8x128xf32>
    %246 = arith.addf %243, %245 : vector<8x128xf32>
    %c0_78 = arith.constant 0 : index
    %c0_79 = arith.constant 0 : index
    %c0_80 = arith.constant 0 : index
    %247 = vector.load %arg11[%c0_78, %c0_79, %c0_80] : memref<1x8x128xf32, #tpu.memory_space<vmem>>, vector<1x8x128xf32>
    %248 = vector.shape_cast %247 : vector<1x8x128xf32> to vector<8x128xf32>
    %249 = vector.shape_cast %246 : vector<8x128xf32> to vector<1x8x128xf32>
    tpu.vector_store %arg11[%c0_78, %c0_79, %c0_80], %249 {strides = array<i32>} : memref<1x8x128xf32, #tpu.memory_space<vmem>>, vector<1x8x128xf32>,
    return
  }
  func.func @transform_0(%arg0: i32, %arg1: i32) -> (i32, i32, i32) {
    %c0_i32 = arith.constant 0 : i32
    %c0_i32_0 = arith.constant 0 : i32
    %c0_i32_1 = arith.constant 0 : i32
    return %arg0, %c0_i32, %c0_i32_0 : i32, i32, i32
  }
  func.func @transform_1(%arg0: i32, %arg1: i32) -> (i32, i32, i32) {
    %c0_i32 = arith.constant 0 : i32
    %c0_i32_0 = arith.constant 0 : i32
    %c0_i32_1 = arith.constant 0 : i32
    return %arg0, %c0_i32, %c0_i32_0 : i32, i32, i32
  }
  func.func @transform_2(%arg0: i32, %arg1: i32) -> (i32, i32, i32) {
    %c0_i32 = arith.constant 0 : i32
    %c0_i32_0 = arith.constant 0 : i32
    return %arg0, %arg1, %c0_i32 : i32, i32, i32
  }
  func.func @transform_3(%arg0: i32, %arg1: i32) -> (i32, i32, i32) {
    %c0_i32 = arith.constant 0 : i32
    %c0_i32_0 = arith.constant 0 : i32
    return %arg0, %arg1, %c0_i32 : i32, i32, i32
  }
  func.func @transform_4(%arg0: i32, %arg1: i32) -> (i32, i32) {
    %c0_i32 = arith.constant 0 : i32
    %c0_i32_0 = arith.constant 0 : i32
    %c0_i32_1 = arith.constant 0 : i32
    return %c0_i32, %c0_i32_0 : i32, i32
  }
  func.func @transform_5(%arg0: i32, %arg1: i32) -> (i32, i32, i32) {
    %c0_i32 = arith.constant 0 : i32
    %c0_i32_0 = arith.constant 0 : i32
    %c0_i32_1 = arith.constant 0 : i32
    %c0_i32_2 = arith.constant 0 : i32
    return %c0_i32, %c0_i32_0, %c0_i32_1 : i32, i32, i32
  }
  func.func @transform_6(%arg0: i32, %arg1: i32) -> (i32, i32) {
    %c0_i32 = arith.constant 0 : i32
    %c0_i32_0 = arith.constant 0 : i32
    %c0_i32_1 = arith.constant 0 : i32
    return %c0_i32, %c0_i32_0 : i32, i32
  }
  func.func @transform_7(%arg0: i32, %arg1: i32) -> (i32, i32) {
    %c0_i32 = arith.constant 0 : i32
    %c0_i32_0 = arith.constant 0 : i32
    %c0_i32_1 = arith.constant 0 : i32
    return %c0_i32, %c0_i32_0 : i32, i32
  }
  func.func @transform_8(%arg0: i32, %arg1: i32) -> (i32, i32) {
    %c0_i32 = arith.constant 0 : i32
    %c0_i32_0 = arith.constant 0 : i32
    %c0_i32_1 = arith.constant 0 : i32
    return %c0_i32, %c0_i32_0 : i32, i32
  }
  func.func @transform_9(%arg0: i32, %arg1: i32) -> (i32, i32, i32) {
    %c0_i32 = arith.constant 0 : i32
    %c0_i32_0 = arith.constant 0 : i32
    return %arg0, %arg1, %c0_i32 : i32, i32, i32
  }
}

module attributes {stable_mosaic.version = 11 : i64} {
  func.func @decoder_layer_kernel(%arg0: i32, %arg1: i32, %arg2: memref<1x8x128xbf16, #tpu.memory_space<vmem>>, %arg3: memref<1x8x128xbf16, #tpu.memory_space<vmem>>, %arg4: memref<1x8x8xbf16, #tpu.memory_space<vmem>>, %arg5: memref<1x8x8xbf16, #tpu.memory_space<vmem>>, %arg6: memref<16x128xf32, #tpu.memory_space<vmem>>, %arg7: memref<8x128x128xbf16, #tpu.memory_space<vmem>>, %arg8: memref<128x256xbf16, #tpu.memory_space<vmem>>, %arg9: memref<1x256xf32, #tpu.memory_space<vmem>>, %arg10: memref<256x128xbf16, #tpu.memory_space<vmem>>, %arg11: memref<1x8x128xf32, #tpu.memory_space<vmem>>, %arg12: memref<8x128xbf16, #tpu.memory_space<vmem>>, %arg13: memref<8x128xbf16, #tpu.memory_space<vmem>>, %arg14: memref<8x128xbf16, #tpu.memory_space<vmem>>, %arg15: memref<8x128xbf16, #tpu.memory_space<vmem>>) attributes {dimension_semantics = [#tpu.dimension_semantics<parallel>, #tpu.dimension_semantics<arbitrary>], iteration_bounds = array<i64: 2, 1>, scalar_prefetch = 0 : i64, scratch_operands = 4 : i64, tpu.core_type = #tpu.core_type<tc>, window_params = [{transform_indices = @transform_0, window_bounds = array<i64: 1, 8, 128>}, {transform_indices = @transform_1, window_bounds = array<i64: 1, 8, 128>}, {transform_indices = @transform_2, window_bounds = array<i64: 1, 8, 8>}, {transform_indices = @transform_3, window_bounds = array<i64: 1, 8, 8>}, {pipeline_mode = #tpu.pipeline_mode<synchronous>, transform_indices = @transform_4, window_bounds = array<i64: 16, 128>}, {pipeline_mode = #tpu.pipeline_mode<synchronous>, transform_indices = @transform_5, window_bounds = array<i64: 8, 128, 128>}, {pipeline_mode = #tpu.pipeline_mode<synchronous>, transform_indices = @transform_6, window_bounds = array<i64: 128, 256>}, {pipeline_mode = #tpu.pipeline_mode<synchronous>, transform_indices = @transform_7, window_bounds = array<i64: 1, 256>}, {pipeline_mode = #tpu.pipeline_mode<synchronous>, transform_indices = @transform_8, window_bounds = array<i64: 256, 128>}, {transform_indices = @transform_9, window_bounds = array<i64: 1, 8, 128>}]} {
    %c0_i32 = arith.constant 0 : i32
    %0 = arith.cmpi eq, %arg1, %c0_i32 : i32
    %1 = arith.extui %0 : i1 to i32
    %c0_i32_0 = arith.constant 0 : i32
    %2 = arith.cmpi ne, %1, %c0_i32_0 : i32
    scf.if %2 {
      %c0_81 = arith.constant 0 : index
      %c0_82 = arith.constant 0 : index
      %c0_83 = arith.constant 0 : index
      %250 = vector.load %arg2[%c0_81, %c0_82, %c0_83] : memref<1x8x128xbf16, #tpu.memory_space<vmem>>, vector<1x8x128xbf16>
      %251 = vector.shape_cast %250 : vector<1x8x128xbf16> to vector<8x128xbf16>
      %252 = arith.extf %251 : vector<8x128xbf16> to vector<8x128xf32>
      %c0_84 = arith.constant 0 : index
      %c0_85 = arith.constant 0 : index
      %253 = vector.load %arg6[%c0_84, %c0_85] : memref<16x128xf32, #tpu.memory_space<vmem>>, vector<1x128xf32>
      %c1_86 = arith.constant 1 : index
      %c0_87 = arith.constant 0 : index
      %254 = vector.load %arg6[%c1_86, %c0_87] : memref<16x128xf32, #tpu.memory_space<vmem>>, vector<1x128xf32>
      %cst_88 = arith.constant dense<0.000000e+00> : vector<8xf32>
      %255 = vector.multi_reduction <add>, %252, %cst_88 [1] : vector<8x128xf32> to vector<8xf32>
      %256 = vector.shape_cast %255 : vector<8xf32> to vector<8x1xf32>
      %cst_89 = arith.constant 1.280000e+02 : f32
      %257 = vector.broadcast %cst_89 : f32 to vector<8x1xf32>
      %258 = arith.divf %256, %257 : vector<8x1xf32>
      %259 = vector.broadcast %258 : vector<8x1xf32> to vector<8x128xf32>
      %260 = arith.subf %252, %259 : vector<8x128xf32>
      %261 = arith.mulf %260, %260 : vector<8x128xf32>
      %cst_90 = arith.constant dense<0.000000e+00> : vector<8xf32>
      %262 = vector.multi_reduction <add>, %261, %cst_90 [1] : vector<8x128xf32> to vector<8xf32>
      %263 = vector.shape_cast %262 : vector<8xf32> to vector<8x1xf32>
      %cst_91 = arith.constant 0.00787401571 : f32
      %264 = vector.broadcast %cst_91 : f32 to vector<8x1xf32>
      %265 = arith.mulf %263, %264 : vector<8x1xf32>
      %266 = math.sqrt %265 : vector<8x1xf32>
      %cst_92 = arith.constant 9.99999997E-7 : f32
      %267 = vector.broadcast %cst_92 : f32 to vector<8x1xf32>
      %268 = arith.addf %266, %267 : vector<8x1xf32>
      %269 = tpu.reciprocal %268 {approx = true} : vector<8x1xf32> -> vector<8x1xf32>
      %270 = vector.broadcast %253 : vector<1x128xf32> to vector<8x128xf32>
      %271 = arith.mulf %270, %260 : vector<8x128xf32>
      %272 = vector.broadcast %269 : vector<8x1xf32> to vector<8x128xf32>
      %273 = arith.mulf %271, %272 : vector<8x128xf32>
      %274 = vector.broadcast %254 : vector<1x128xf32> to vector<8x128xf32>
      %275 = arith.addf %273, %274 : vector<8x128xf32>
      %276 = arith.truncf %275 : vector<8x128xf32> to vector<8x128xbf16>
      %c1_93 = arith.constant 1 : index
      %c0_94 = arith.constant 0 : index
      %c0_95 = arith.constant 0 : index
      %277 = vector.load %arg7[%c1_93, %c0_94, %c0_95] : memref<8x128x128xbf16, #tpu.memory_space<vmem>>, vector<1x128x128xbf16>
      %278 = vector.shape_cast %277 : vector<1x128x128xbf16> to vector<128x128xbf16>
      %cst_96 = arith.constant dense<0.000000e+00> : vector<8x128xf32>
      %279 = tpu.matmul %276, %278, %cst_96 {dimension_numbers = #tpu.dot_dimension_numbers<[1], [0], [0], [1], [0, 0, 1, 1], [], []>} : vector<8x128xbf16>, vector<128x128xbf16>, vector<8x128xf32> -> vector<8x128xf32>
      %c7_97 = arith.constant 7 : index
      %c0_98 = arith.constant 0 : index
      %280 = vector.load %arg6[%c7_97, %c0_98] : memref<16x128xf32, #tpu.memory_space<vmem>>, vector<1x128xf32>
      %281 = vector.broadcast %280 : vector<1x128xf32> to vector<8x128xf32>
      %282 = arith.addf %279, %281 : vector<8x128xf32>
      %283 = arith.truncf %282 : vector<8x128xf32> to vector<8x128xbf16>
      %c0_99 = arith.constant 0 : index
      %c0_100 = arith.constant 0 : index
      %284 = vector.load %arg12[%c0_99, %c0_100] : memref<8x128xbf16, #tpu.memory_space<vmem>>, vector<8x128xbf16>
      tpu.vector_store %arg12[%c0_99, %c0_100], %283 {strides = array<i32>} : memref<8x128xbf16, #tpu.memory_space<vmem>>, vector<8x128xbf16>,
      %c2_101 = arith.constant 2 : index
      %c0_102 = arith.constant 0 : index
      %c0_103 = arith.constant 0 : index
      %285 = vector.load %arg7[%c2_101, %c0_102, %c0_103] : memref<8x128x128xbf16, #tpu.memory_space<vmem>>, vector<1x128x128xbf16>
      %286 = vector.shape_cast %285 : vector<1x128x128xbf16> to vector<128x128xbf16>
      %cst_104 = arith.constant dense<0.000000e+00> : vector<8x128xf32>
      %287 = tpu.matmul %276, %286, %cst_104 {dimension_numbers = #tpu.dot_dimension_numbers<[1], [0], [0], [1], [0, 0, 1, 1], [], []>} : vector<8x128xbf16>, vector<128x128xbf16>, vector<8x128xf32> -> vector<8x128xf32>
      %c8 = arith.constant 8 : index
      %c0_105 = arith.constant 0 : index
      %288 = vector.load %arg6[%c8, %c0_105] : memref<16x128xf32, #tpu.memory_space<vmem>>, vector<1x128xf32>
      %289 = vector.broadcast %288 : vector<1x128xf32> to vector<8x128xf32>
      %290 = arith.addf %287, %289 : vector<8x128xf32>
      %291 = arith.truncf %290 : vector<8x128xf32> to vector<8x128xbf16>
      %c0_106 = arith.constant 0 : index
      %c0_107 = arith.constant 0 : index
      %292 = vector.load %arg13[%c0_106, %c0_107] : memref<8x128xbf16, #tpu.memory_space<vmem>>, vector<8x128xbf16>
      tpu.vector_store %arg13[%c0_106, %c0_107], %291 {strides = array<i32>} : memref<8x128xbf16, #tpu.memory_space<vmem>>, vector<8x128xbf16>,
      %c0_108 = arith.constant 0 : index
      %c0_109 = arith.constant 0 : index
      %c0_110 = arith.constant 0 : index
      %293 = vector.load %arg3[%c0_108, %c0_109, %c0_110] : memref<1x8x128xbf16, #tpu.memory_space<vmem>>, vector<1x8x128xbf16>
      %294 = vector.shape_cast %293 : vector<1x8x128xbf16> to vector<8x128xbf16>
      %c5_111 = arith.constant 5 : index
      %c0_112 = arith.constant 0 : index
      %c0_113 = arith.constant 0 : index
      %295 = vector.load %arg7[%c5_111, %c0_112, %c0_113] : memref<8x128x128xbf16, #tpu.memory_space<vmem>>, vector<1x128x128xbf16>
      %296 = vector.shape_cast %295 : vector<1x128x128xbf16> to vector<128x128xbf16>
      %cst_114 = arith.constant dense<0.000000e+00> : vector<8x128xf32>
      %297 = tpu.matmul %294, %296, %cst_114 {dimension_numbers = #tpu.dot_dimension_numbers<[1], [0], [0], [1], [0, 0, 1, 1], [], []>} : vector<8x128xbf16>, vector<128x128xbf16>, vector<8x128xf32> -> vector<8x128xf32>
      %c11 = arith.constant 11 : index
      %c0_115 = arith.constant 0 : index
      %298 = vector.load %arg6[%c11, %c0_115] : memref<16x128xf32, #tpu.memory_space<vmem>>, vector<1x128xf32>
      %299 = vector.broadcast %298 : vector<1x128xf32> to vector<8x128xf32>
      %300 = arith.addf %297, %299 : vector<8x128xf32>
      %301 = arith.truncf %300 : vector<8x128xf32> to vector<8x128xbf16>
      %c0_116 = arith.constant 0 : index
      %c0_117 = arith.constant 0 : index
      %302 = vector.load %arg14[%c0_116, %c0_117] : memref<8x128xbf16, #tpu.memory_space<vmem>>, vector<8x128xbf16>
      tpu.vector_store %arg14[%c0_116, %c0_117], %301 {strides = array<i32>} : memref<8x128xbf16, #tpu.memory_space<vmem>>, vector<8x128xbf16>,
      %c6_118 = arith.constant 6 : index
      %c0_119 = arith.constant 0 : index
      %c0_120 = arith.constant 0 : index
      %303 = vector.load %arg7[%c6_118, %c0_119, %c0_120] : memref<8x128x128xbf16, #tpu.memory_space<vmem>>, vector<1x128x128xbf16>
      %304 = vector.shape_cast %303 : vector<1x128x128xbf16> to vector<128x128xbf16>
      %cst_121 = arith.constant dense<0.000000e+00> : vector<8x128xf32>
      %305 = tpu.matmul %294, %304, %cst_121 {dimension_numbers = #tpu.dot_dimension_numbers<[1], [0], [0], [1], [0, 0, 1, 1], [], []>} : vector<8x128xbf16>, vector<128x128xbf16>, vector<8x128xf32> -> vector<8x128xf32>
      %c12 = arith.constant 12 : index
      %c0_122 = arith.constant 0 : index
      %306 = vector.load %arg6[%c12, %c0_122] : memref<16x128xf32, #tpu.memory_space<vmem>>, vector<1x128xf32>
      %307 = vector.broadcast %306 : vector<1x128xf32> to vector<8x128xf32>
      %308 = arith.addf %305, %307 : vector<8x128xf32>
      %309 = arith.truncf %308 : vector<8x128xf32> to vector<8x128xbf16>
      %c0_123 = arith.constant 0 : index
      %c0_124 = arith.constant 0 : index
      %310 = vector.load %arg15[%c0_123, %c0_124] : memref<8x128xbf16, #tpu.memory_space<vmem>>, vector<8x128xbf16>
      tpu.vector_store %arg15[%c0_123, %c0_124], %309 {strides = array<i32>} : memref<8x128xbf16, #tpu.memory_space<vmem>>, vector<8x128xbf16>,
    } else {
    }
    %c8_i32 = arith.constant 8 : i32
    %3 = arith.muli %arg1, %c8_i32 : i32
    %4 = tpu.assume_multiple %3, 8 : i32
    %c0 = arith.constant 0 : index
    %5 = arith.index_cast %4 : i32 to index
    %c0_1 = arith.constant 0 : index
    %6 = vector.load %arg2[%c0, %5, %c0_1] : memref<1x8x128xbf16, #tpu.memory_space<vmem>>, vector<1x8x128xbf16>
    %7 = vector.shape_cast %6 : vector<1x8x128xbf16> to vector<8x128xbf16>
    %8 = arith.extf %7 : vector<8x128xbf16> to vector<8x128xf32>
    %c0_2 = arith.constant 0 : index
    %c0_3 = arith.constant 0 : index
    %c0_4 = arith.constant 0 : index
    %9 = vector.load %arg4[%c0_2, %c0_3, %c0_4] : memref<1x8x8xbf16, #tpu.memory_space<vmem>>, vector<1x8x8xbf16>
    %10 = vector.shape_cast %9 : vector<1x8x8xbf16> to vector<8x8xbf16>
    %11 = arith.extf %10 : vector<8x8xbf16> to vector<8x8xf32>
    %c0_5 = arith.constant 0 : index
    %c0_6 = arith.constant 0 : index
    %c0_7 = arith.constant 0 : index
    %12 = vector.load %arg5[%c0_5, %c0_6, %c0_7] : memref<1x8x8xbf16, #tpu.memory_space<vmem>>, vector<1x8x8xbf16>
    %13 = vector.shape_cast %12 : vector<1x8x8xbf16> to vector<8x8xbf16>
    %14 = arith.extf %13 : vector<8x8xbf16> to vector<8x8xf32>
    %c0_8 = arith.constant 0 : index
    %c0_9 = arith.constant 0 : index
    %15 = vector.load %arg6[%c0_8, %c0_9] : memref<16x128xf32, #tpu.memory_space<vmem>>, vector<1x128xf32>
    %c1 = arith.constant 1 : index
    %c0_10 = arith.constant 0 : index
    %16 = vector.load %arg6[%c1, %c0_10] : memref<16x128xf32, #tpu.memory_space<vmem>>, vector<1x128xf32>
    %cst = arith.constant dense<0.000000e+00> : vector<8xf32>
    %17 = vector.multi_reduction <add>, %8, %cst [1] : vector<8x128xf32> to vector<8xf32>
    %18 = vector.shape_cast %17 : vector<8xf32> to vector<8x1xf32>
    %cst_11 = arith.constant 1.280000e+02 : f32
    %19 = vector.broadcast %cst_11 : f32 to vector<8x1xf32>
    %20 = arith.divf %18, %19 : vector<8x1xf32>
    %21 = vector.broadcast %20 : vector<8x1xf32> to vector<8x128xf32>
    %22 = arith.subf %8, %21 : vector<8x128xf32>
    %23 = arith.mulf %22, %22 : vector<8x128xf32>
    %cst_12 = arith.constant dense<0.000000e+00> : vector<8xf32>
    %24 = vector.multi_reduction <add>, %23, %cst_12 [1] : vector<8x128xf32> to vector<8xf32>
    %25 = vector.shape_cast %24 : vector<8xf32> to vector<8x1xf32>
    %cst_13 = arith.constant 0.00787401571 : f32
    %26 = vector.broadcast %cst_13 : f32 to vector<8x1xf32>
    %27 = arith.mulf %25, %26 : vector<8x1xf32>
    %28 = math.sqrt %27 : vector<8x1xf32>
    %cst_14 = arith.constant 9.99999997E-7 : f32
    %29 = vector.broadcast %cst_14 : f32 to vector<8x1xf32>
    %30 = arith.addf %28, %29 : vector<8x1xf32>
    %31 = tpu.reciprocal %30 {approx = true} : vector<8x1xf32> -> vector<8x1xf32>
    %32 = vector.broadcast %15 : vector<1x128xf32> to vector<8x128xf32>
    %33 = arith.mulf %32, %22 : vector<8x128xf32>
    %34 = vector.broadcast %31 : vector<8x1xf32> to vector<8x128xf32>
    %35 = arith.mulf %33, %34 : vector<8x128xf32>
    %36 = vector.broadcast %16 : vector<1x128xf32> to vector<8x128xf32>
    %37 = arith.addf %35, %36 : vector<8x128xf32>
    %c0_15 = arith.constant 0 : index
    %c0_16 = arith.constant 0 : index
    %38 = vector.load %arg12[%c0_15, %c0_16] : memref<8x128xbf16, #tpu.memory_space<vmem>>, vector<8x128xbf16>
    %c0_17 = arith.constant 0 : index
    %c0_18 = arith.constant 0 : index
    %39 = vector.load %arg13[%c0_17, %c0_18] : memref<8x128xbf16, #tpu.memory_space<vmem>>, vector<8x128xbf16>
    %c0_19 = arith.constant 0 : index
    %c0_20 = arith.constant 0 : index
    %c0_21 = arith.constant 0 : index
    %40 = vector.load %arg7[%c0_19, %c0_20, %c0_21] : memref<8x128x128xbf16, #tpu.memory_space<vmem>>, vector<1x128x128xbf16>
    %41 = vector.shape_cast %40 : vector<1x128x128xbf16> to vector<128x128xbf16>
    %c3 = arith.constant 3 : index
    %c0_22 = arith.constant 0 : index
    %c0_23 = arith.constant 0 : index
    %42 = vector.load %arg7[%c3, %c0_22, %c0_23] : memref<8x128x128xbf16, #tpu.memory_space<vmem>>, vector<1x128x128xbf16>
    %43 = vector.shape_cast %42 : vector<1x128x128xbf16> to vector<128x128xbf16>
    %c6 = arith.constant 6 : index
    %c0_24 = arith.constant 0 : index
    %44 = vector.load %arg6[%c6, %c0_24] : memref<16x128xf32, #tpu.memory_space<vmem>>, vector<1x128xf32>
    %c9 = arith.constant 9 : index
    %c0_25 = arith.constant 0 : index
    %45 = vector.load %arg6[%c9, %c0_25] : memref<16x128xf32, #tpu.memory_space<vmem>>, vector<1x128xf32>
    %46 = arith.truncf %37 : vector<8x128xf32> to vector<8x128xbf16>
    %cst_26 = arith.constant dense<0.000000e+00> : vector<8x128xf32>
    %47 = tpu.matmul %46, %41, %cst_26 {dimension_numbers = #tpu.dot_dimension_numbers<[1], [0], [0], [1], [0, 0, 1, 1], [], []>} : vector<8x128xbf16>, vector<128x128xbf16>, vector<8x128xf32> -> vector<8x128xf32>
    %48 = vector.broadcast %44 : vector<1x128xf32> to vector<8x128xf32>
    %49 = arith.addf %47, %48 : vector<8x128xf32>
    %50 = arith.truncf %49 : vector<8x128xf32> to vector<8x128xbf16>
    %51 = vector.extract_strided_slice %50 {offsets = [0, 0], sizes = [8, 32], strides = [1, 1]} : vector<8x128xbf16> to vector<8x32xbf16>
    %52 = vector.extract_strided_slice %50 {offsets = [0, 32], sizes = [8, 32], strides = [1, 1]} : vector<8x128xbf16> to vector<8x32xbf16>
    %53 = vector.extract_strided_slice %50 {offsets = [0, 64], sizes = [8, 32], strides = [1, 1]} : vector<8x128xbf16> to vector<8x32xbf16>
    %54 = vector.extract_strided_slice %50 {offsets = [0, 96], sizes = [8, 32], strides = [1, 1]} : vector<8x128xbf16> to vector<8x32xbf16>
    %55 = vector.shape_cast %51 : vector<8x32xbf16> to vector<1x8x32xbf16>
    %56 = vector.shape_cast %52 : vector<8x32xbf16> to vector<1x8x32xbf16>
    %57 = vector.shape_cast %53 : vector<8x32xbf16> to vector<1x8x32xbf16>
    %58 = vector.shape_cast %54 : vector<8x32xbf16> to vector<1x8x32xbf16>
    %59 = tpu.concatenate %55, %56, %57, %58 in 0 : vector<1x8x32xbf16>, vector<1x8x32xbf16>, vector<1x8x32xbf16>, vector<1x8x32xbf16> -> vector<4x8x32xbf16>
    %60 = vector.extract_strided_slice %38 {offsets = [0, 0], sizes = [8, 32], strides = [1, 1]} : vector<8x128xbf16> to vector<8x32xbf16>
    %61 = vector.extract_strided_slice %38 {offsets = [0, 32], sizes = [8, 32], strides = [1, 1]} : vector<8x128xbf16> to vector<8x32xbf16>
    %62 = vector.extract_strided_slice %38 {offsets = [0, 64], sizes = [8, 32], strides = [1, 1]} : vector<8x128xbf16> to vector<8x32xbf16>
    %63 = vector.extract_strided_slice %38 {offsets = [0, 96], sizes = [8, 32], strides = [1, 1]} : vector<8x128xbf16> to vector<8x32xbf16>
    %64 = vector.shape_cast %60 : vector<8x32xbf16> to vector<1x8x32xbf16>
    %65 = vector.shape_cast %61 : vector<8x32xbf16> to vector<1x8x32xbf16>
    %66 = vector.shape_cast %62 : vector<8x32xbf16> to vector<1x8x32xbf16>
    %67 = vector.shape_cast %63 : vector<8x32xbf16> to vector<1x8x32xbf16>
    %68 = tpu.concatenate %64, %65, %66, %67 in 0 : vector<1x8x32xbf16>, vector<1x8x32xbf16>, vector<1x8x32xbf16>, vector<1x8x32xbf16> -> vector<4x8x32xbf16>
    %69 = vector.extract_strided_slice %39 {offsets = [0, 0], sizes = [8, 32], strides = [1, 1]} : vector<8x128xbf16> to vector<8x32xbf16>
    %70 = vector.extract_strided_slice %39 {offsets = [0, 32], sizes = [8, 32], strides = [1, 1]} : vector<8x128xbf16> to vector<8x32xbf16>
    %71 = vector.extract_strided_slice %39 {offsets = [0, 64], sizes = [8, 32], strides = [1, 1]} : vector<8x128xbf16> to vector<8x32xbf16>
    %72 = vector.extract_strided_slice %39 {offsets = [0, 96], sizes = [8, 32], strides = [1, 1]} : vector<8x128xbf16> to vector<8x32xbf16>
    %73 = vector.shape_cast %69 : vector<8x32xbf16> to vector<1x8x32xbf16>
    %74 = vector.shape_cast %70 : vector<8x32xbf16> to vector<1x8x32xbf16>
    %75 = vector.shape_cast %71 : vector<8x32xbf16> to vector<1x8x32xbf16>
    %76 = vector.shape_cast %72 : vector<8x32xbf16> to vector<1x8x32xbf16>
    %77 = tpu.concatenate %73, %74, %75, %76 in 0 : vector<1x8x32xbf16>, vector<1x8x32xbf16>, vector<1x8x32xbf16>, vector<1x8x32xbf16> -> vector<4x8x32xbf16>
    %cst_27 = arith.constant 3.200000e+01 : f32
    %78 = math.sqrt %cst_27 : f32
    %cst_28 = arith.constant 1.000000e+00 : f32
    %79 = arith.divf %cst_28, %78 : f32
    %cst_29 = arith.constant dense<0.000000e+00> : vector<4x8x8xf32>
    %80 = tpu.matmul %59, %68, %cst_29 {dimension_numbers = #tpu.dot_dimension_numbers<[2], [2], [1], [1], [0, 0, 0, 1, 1, 1], [0], [0]>} : vector<4x8x32xbf16>, vector<4x8x32xbf16>, vector<4x8x8xf32> -> vector<4x8x8xf32>
    %81 = vector.broadcast %79 : f32 to vector<4x8x8xf32>
    %82 = arith.mulf %80, %81 : vector<4x8x8xf32>
    %83 = vector.shape_cast %11 : vector<8x8xf32> to vector<1x8x8xf32>
    %84 = vector.broadcast %83 : vector<1x8x8xf32> to vector<4x8x8xf32>
    %85 = arith.addf %82, %84 : vector<4x8x8xf32>
    %cst_30 = arith.constant dense<0xFF800000> : vector<4x8xf32>
    %86 = vector.multi_reduction <maximumf>, %85, %cst_30 [2] : vector<4x8x8xf32> to vector<4x8xf32>
    %87 = vector.shape_cast %86 : vector<4x8xf32> to vector<4x8x1xf32>
    %88 = vector.broadcast %87 : vector<4x8x1xf32> to vector<4x8x8xf32>
    %89 = arith.subf %85, %88 : vector<4x8x8xf32>
    %90 = math.exp %89 : vector<4x8x8xf32>
    %cst_31 = arith.constant dense<0.000000e+00> : vector<4x8xf32>
    %91 = vector.multi_reduction <add>, %90, %cst_31 [2] : vector<4x8x8xf32> to vector<4x8xf32>
    %92 = vector.shape_cast %91 : vector<4x8xf32> to vector<4x8x1xf32>
    %93 = tpu.reciprocal %92 {approx = true} : vector<4x8x1xf32> -> vector<4x8x1xf32>
    %94 = vector.broadcast %93 : vector<4x8x1xf32> to vector<4x8x8xf32>
    %95 = arith.mulf %90, %94 : vector<4x8x8xf32>
    %96 = arith.truncf %95 : vector<4x8x8xf32> to vector<4x8x8xbf16>
    %cst_32 = arith.constant dense<0.000000e+00> : vector<4x8x32xf32>
    %97 = tpu.matmul %96, %77, %cst_32 {dimension_numbers = #tpu.dot_dimension_numbers<[2], [1], [1], [2], [0, 0, 0, 1, 1, 2], [0], [0]>} : vector<4x8x8xbf16>, vector<4x8x32xbf16>, vector<4x8x32xf32> -> vector<4x8x32xf32>
    %98 = vector.extract_strided_slice %97 {offsets = [0, 0, 0], sizes = [1, 8, 32], strides = [1, 1, 1]} : vector<4x8x32xf32> to vector<1x8x32xf32>
    %99 = vector.shape_cast %98 : vector<1x8x32xf32> to vector<8x32xf32>
    %100 = vector.extract_strided_slice %97 {offsets = [1, 0, 0], sizes = [1, 8, 32], strides = [1, 1, 1]} : vector<4x8x32xf32> to vector<1x8x32xf32>
    %101 = vector.shape_cast %100 : vector<1x8x32xf32> to vector<8x32xf32>
    %102 = vector.extract_strided_slice %97 {offsets = [2, 0, 0], sizes = [1, 8, 32], strides = [1, 1, 1]} : vector<4x8x32xf32> to vector<1x8x32xf32>
    %103 = vector.shape_cast %102 : vector<1x8x32xf32> to vector<8x32xf32>
    %104 = vector.extract_strided_slice %97 {offsets = [3, 0, 0], sizes = [1, 8, 32], strides = [1, 1, 1]} : vector<4x8x32xf32> to vector<1x8x32xf32>
    %105 = vector.shape_cast %104 : vector<1x8x32xf32> to vector<8x32xf32>
    %106 = tpu.concatenate %99, %101, %103, %105 in 1 : vector<8x32xf32>, vector<8x32xf32>, vector<8x32xf32>, vector<8x32xf32> -> vector<8x128xf32>
    %107 = arith.truncf %106 : vector<8x128xf32> to vector<8x128xbf16>
    %cst_33 = arith.constant dense<0.000000e+00> : vector<8x128xf32>
    %108 = tpu.matmul %107, %43, %cst_33 {dimension_numbers = #tpu.dot_dimension_numbers<[1], [0], [0], [1], [0, 0, 1, 1], [], []>} : vector<8x128xbf16>, vector<128x128xbf16>, vector<8x128xf32> -> vector<8x128xf32>
    %109 = vector.broadcast %45 : vector<1x128xf32> to vector<8x128xf32>
    %110 = arith.addf %108, %109 : vector<8x128xf32>
    %111 = arith.addf %8, %110 : vector<8x128xf32>
    %c2 = arith.constant 2 : index
    %c0_34 = arith.constant 0 : index
    %112 = vector.load %arg6[%c2, %c0_34] : memref<16x128xf32, #tpu.memory_space<vmem>>, vector<1x128xf32>
    %c3_35 = arith.constant 3 : index
    %c0_36 = arith.constant 0 : index
    %113 = vector.load %arg6[%c3_35, %c0_36] : memref<16x128xf32, #tpu.memory_space<vmem>>, vector<1x128xf32>
    %cst_37 = arith.constant dense<0.000000e+00> : vector<8xf32>
    %114 = vector.multi_reduction <add>, %111, %cst_37 [1] : vector<8x128xf32> to vector<8xf32>
    %115 = vector.shape_cast %114 : vector<8xf32> to vector<8x1xf32>
    %cst_38 = arith.constant 1.280000e+02 : f32
    %116 = vector.broadcast %cst_38 : f32 to vector<8x1xf32>
    %117 = arith.divf %115, %116 : vector<8x1xf32>
    %118 = vector.broadcast %117 : vector<8x1xf32> to vector<8x128xf32>
    %119 = arith.subf %111, %118 : vector<8x128xf32>
    %120 = arith.mulf %119, %119 : vector<8x128xf32>
    %cst_39 = arith.constant dense<0.000000e+00> : vector<8xf32>
    %121 = vector.multi_reduction <add>, %120, %cst_39 [1] : vector<8x128xf32> to vector<8xf32>
    %122 = vector.shape_cast %121 : vector<8xf32> to vector<8x1xf32>
    %cst_40 = arith.constant 0.00787401571 : f32
    %123 = vector.broadcast %cst_40 : f32 to vector<8x1xf32>
    %124 = arith.mulf %122, %123 : vector<8x1xf32>
    %125 = math.sqrt %124 : vector<8x1xf32>
    %cst_41 = arith.constant 9.99999997E-7 : f32
    %126 = vector.broadcast %cst_41 : f32 to vector<8x1xf32>
    %127 = arith.addf %125, %126 : vector<8x1xf32>
    %128 = tpu.reciprocal %127 {approx = true} : vector<8x1xf32> -> vector<8x1xf32>
    %129 = vector.broadcast %112 : vector<1x128xf32> to vector<8x128xf32>
    %130 = arith.mulf %129, %119 : vector<8x128xf32>
    %131 = vector.broadcast %128 : vector<8x1xf32> to vector<8x128xf32>
    %132 = arith.mulf %130, %131 : vector<8x128xf32>
    %133 = vector.broadcast %113 : vector<1x128xf32> to vector<8x128xf32>
    %134 = arith.addf %132, %133 : vector<8x128xf32>
    %c0_42 = arith.constant 0 : index
    %c0_43 = arith.constant 0 : index
    %135 = vector.load %arg14[%c0_42, %c0_43] : memref<8x128xbf16, #tpu.memory_space<vmem>>, vector<8x128xbf16>
    %c0_44 = arith.constant 0 : index
    %c0_45 = arith.constant 0 : index
    %136 = vector.load %arg15[%c0_44, %c0_45] : memref<8x128xbf16, #tpu.memory_space<vmem>>, vector<8x128xbf16>
    %c4 = arith.constant 4 : index
    %c0_46 = arith.constant 0 : index
    %c0_47 = arith.constant 0 : index
    %137 = vector.load %arg7[%c4, %c0_46, %c0_47] : memref<8x128x128xbf16, #tpu.memory_space<vmem>>, vector<1x128x128xbf16>
    %138 = vector.shape_cast %137 : vector<1x128x128xbf16> to vector<128x128xbf16>
    %c7 = arith.constant 7 : index
    %c0_48 = arith.constant 0 : index
    %c0_49 = arith.constant 0 : index
    %139 = vector.load %arg7[%c7, %c0_48, %c0_49] : memref<8x128x128xbf16, #tpu.memory_space<vmem>>, vector<1x128x128xbf16>
    %140 = vector.shape_cast %139 : vector<1x128x128xbf16> to vector<128x128xbf16>
    %c10 = arith.constant 10 : index
    %c0_50 = arith.constant 0 : index
    %141 = vector.load %arg6[%c10, %c0_50] : memref<16x128xf32, #tpu.memory_space<vmem>>, vector<1x128xf32>
    %c13 = arith.constant 13 : index
    %c0_51 = arith.constant 0 : index
    %142 = vector.load %arg6[%c13, %c0_51] : memref<16x128xf32, #tpu.memory_space<vmem>>, vector<1x128xf32>
    %143 = arith.truncf %134 : vector<8x128xf32> to vector<8x128xbf16>
    %cst_52 = arith.constant dense<0.000000e+00> : vector<8x128xf32>
    %144 = tpu.matmul %143, %138, %cst_52 {dimension_numbers = #tpu.dot_dimension_numbers<[1], [0], [0], [1], [0, 0, 1, 1], [], []>} : vector<8x128xbf16>, vector<128x128xbf16>, vector<8x128xf32> -> vector<8x128xf32>
    %145 = vector.broadcast %141 : vector<1x128xf32> to vector<8x128xf32>
    %146 = arith.addf %144, %145 : vector<8x128xf32>
    %147 = arith.truncf %146 : vector<8x128xf32> to vector<8x128xbf16>
    %148 = vector.extract_strided_slice %147 {offsets = [0, 0], sizes = [8, 32], strides = [1, 1]} : vector<8x128xbf16> to vector<8x32xbf16>
    %149 = vector.extract_strided_slice %147 {offsets = [0, 32], sizes = [8, 32], strides = [1, 1]} : vector<8x128xbf16> to vector<8x32xbf16>
    %150 = vector.extract_strided_slice %147 {offsets = [0, 64], sizes = [8, 32], strides = [1, 1]} : vector<8x128xbf16> to vector<8x32xbf16>
    %151 = vector.extract_strided_slice %147 {offsets = [0, 96], sizes = [8, 32], strides = [1, 1]} : vector<8x128xbf16> to vector<8x32xbf16>
    %152 = vector.shape_cast %148 : vector<8x32xbf16> to vector<1x8x32xbf16>
    %153 = vector.shape_cast %149 : vector<8x32xbf16> to vector<1x8x32xbf16>
    %154 = vector.shape_cast %150 : vector<8x32xbf16> to vector<1x8x32xbf16>
    %155 = vector.shape_cast %151 : vector<8x32xbf16> to vector<1x8x32xbf16>
    %156 = tpu.concatenate %152, %153, %154, %155 in 0 : vector<1x8x32xbf16>, vector<1x8x32xbf16>, vector<1x8x32xbf16>, vector<1x8x32xbf16> -> vector<4x8x32xbf16>
    %157 = vector.extract_strided_slice %135 {offsets = [0, 0], sizes = [8, 32], strides = [1, 1]} : vector<8x128xbf16> to vector<8x32xbf16>
    %158 = vector.extract_strided_slice %135 {offsets = [0, 32], sizes = [8, 32], strides = [1, 1]} : vector<8x128xbf16> to vector<8x32xbf16>
    %159 = vector.extract_strided_slice %135 {offsets = [0, 64], sizes = [8, 32], strides = [1, 1]} : vector<8x128xbf16> to vector<8x32xbf16>
    %160 = vector.extract_strided_slice %135 {offsets = [0, 96], sizes = [8, 32], strides = [1, 1]} : vector<8x128xbf16> to vector<8x32xbf16>
    %161 = vector.shape_cast %157 : vector<8x32xbf16> to vector<1x8x32xbf16>
    %162 = vector.shape_cast %158 : vector<8x32xbf16> to vector<1x8x32xbf16>
    %163 = vector.shape_cast %159 : vector<8x32xbf16> to vector<1x8x32xbf16>
    %164 = vector.shape_cast %160 : vector<8x32xbf16> to vector<1x8x32xbf16>
    %165 = tpu.concatenate %161, %162, %163, %164 in 0 : vector<1x8x32xbf16>, vector<1x8x32xbf16>, vector<1x8x32xbf16>, vector<1x8x32xbf16> -> vector<4x8x32xbf16>
    %166 = vector.extract_strided_slice %136 {offsets = [0, 0], sizes = [8, 32], strides = [1, 1]} : vector<8x128xbf16> to vector<8x32xbf16>
    %167 = vector.extract_strided_slice %136 {offsets = [0, 32], sizes = [8, 32], strides = [1, 1]} : vector<8x128xbf16> to vector<8x32xbf16>
    %168 = vector.extract_strided_slice %136 {offsets = [0, 64], sizes = [8, 32], strides = [1, 1]} : vector<8x128xbf16> to vector<8x32xbf16>
    %169 = vector.extract_strided_slice %136 {offsets = [0, 96], sizes = [8, 32], strides = [1, 1]} : vector<8x128xbf16> to vector<8x32xbf16>
    %170 = vector.shape_cast %166 : vector<8x32xbf16> to vector<1x8x32xbf16>
    %171 = vector.shape_cast %167 : vector<8x32xbf16> to vector<1x8x32xbf16>
    %172 = vector.shape_cast %168 : vector<8x32xbf16> to vector<1x8x32xbf16>
    %173 = vector.shape_cast %169 : vector<8x32xbf16> to vector<1x8x32xbf16>
    %174 = tpu.concatenate %170, %171, %172, %173 in 0 : vector<1x8x32xbf16>, vector<1x8x32xbf16>, vector<1x8x32xbf16>, vector<1x8x32xbf16> -> vector<4x8x32xbf16>
    %cst_53 = arith.constant 3.200000e+01 : f32
    %175 = math.sqrt %cst_53 : f32
    %cst_54 = arith.constant 1.000000e+00 : f32
    %176 = arith.divf %cst_54, %175 : f32
    %cst_55 = arith.constant dense<0.000000e+00> : vector<4x8x8xf32>
    %177 = tpu.matmul %156, %165, %cst_55 {dimension_numbers = #tpu.dot_dimension_numbers<[2], [2], [1], [1], [0, 0, 0, 1, 1, 1], [0], [0]>} : vector<4x8x32xbf16>, vector<4x8x32xbf16>, vector<4x8x8xf32> -> vector<4x8x8xf32>
    %178 = vector.broadcast %176 : f32 to vector<4x8x8xf32>
    %179 = arith.mulf %177, %178 : vector<4x8x8xf32>
    %180 = vector.shape_cast %14 : vector<8x8xf32> to vector<1x8x8xf32>
    %181 = vector.broadcast %180 : vector<1x8x8xf32> to vector<4x8x8xf32>
    %182 = arith.addf %179, %181 : vector<4x8x8xf32>
    %cst_56 = arith.constant dense<0xFF800000> : vector<4x8xf32>
    %183 = vector.multi_reduction <maximumf>, %182, %cst_56 [2] : vector<4x8x8xf32> to vector<4x8xf32>
    %184 = vector.shape_cast %183 : vector<4x8xf32> to vector<4x8x1xf32>
    %185 = vector.broadcast %184 : vector<4x8x1xf32> to vector<4x8x8xf32>
    %186 = arith.subf %182, %185 : vector<4x8x8xf32>
    %187 = math.exp %186 : vector<4x8x8xf32>
    %cst_57 = arith.constant dense<0.000000e+00> : vector<4x8xf32>
    %188 = vector.multi_reduction <add>, %187, %cst_57 [2] : vector<4x8x8xf32> to vector<4x8xf32>
    %189 = vector.shape_cast %188 : vector<4x8xf32> to vector<4x8x1xf32>
    %190 = tpu.reciprocal %189 {approx = true} : vector<4x8x1xf32> -> vector<4x8x1xf32>
    %191 = vector.broadcast %190 : vector<4x8x1xf32> to vector<4x8x8xf32>
    %192 = arith.mulf %187, %191 : vector<4x8x8xf32>
    %193 = arith.truncf %192 : vector<4x8x8xf32> to vector<4x8x8xbf16>
    %cst_58 = arith.constant dense<0.000000e+00> : vector<4x8x32xf32>
    %194 = tpu.matmul %193, %174, %cst_58 {dimension_numbers = #tpu.dot_dimension_numbers<[2], [1], [1], [2], [0, 0, 0, 1, 1, 2], [0], [0]>} : vector<4x8x8xbf16>, vector<4x8x32xbf16>, vector<4x8x32xf32> -> vector<4x8x32xf32>
    %195 = vector.extract_strided_slice %194 {offsets = [0, 0, 0], sizes = [1, 8, 32], strides = [1, 1, 1]} : vector<4x8x32xf32> to vector<1x8x32xf32>
    %196 = vector.shape_cast %195 : vector<1x8x32xf32> to vector<8x32xf32>
    %197 = vector.extract_strided_slice %194 {offsets = [1, 0, 0], sizes = [1, 8, 32], strides = [1, 1, 1]} : vector<4x8x32xf32> to vector<1x8x32xf32>
    %198 = vector.shape_cast %197 : vector<1x8x32xf32> to vector<8x32xf32>
    %199 = vector.extract_strided_slice %194 {offsets = [2, 0, 0], sizes = [1, 8, 32], strides = [1, 1, 1]} : vector<4x8x32xf32> to vector<1x8x32xf32>
    %200 = vector.shape_cast %199 : vector<1x8x32xf32> to vector<8x32xf32>
    %201 = vector.extract_strided_slice %194 {offsets = [3, 0, 0], sizes = [1, 8, 32], strides = [1, 1, 1]} : vector<4x8x32xf32> to vector<1x8x32xf32>
    %202 = vector.shape_cast %201 : vector<1x8x32xf32> to vector<8x32xf32>
    %203 = tpu.concatenate %196, %198, %200, %202 in 1 : vector<8x32xf32>, vector<8x32xf32>, vector<8x32xf32>, vector<8x32xf32> -> vector<8x128xf32>
    %204 = arith.truncf %203 : vector<8x128xf32> to vector<8x128xbf16>
    %cst_59 = arith.constant dense<0.000000e+00> : vector<8x128xf32>
    %205 = tpu.matmul %204, %140, %cst_59 {dimension_numbers = #tpu.dot_dimension_numbers<[1], [0], [0], [1], [0, 0, 1, 1], [], []>} : vector<8x128xbf16>, vector<128x128xbf16>, vector<8x128xf32> -> vector<8x128xf32>
    %206 = vector.broadcast %142 : vector<1x128xf32> to vector<8x128xf32>
    %207 = arith.addf %205, %206 : vector<8x128xf32>
    %208 = arith.addf %111, %207 : vector<8x128xf32>
    %c4_60 = arith.constant 4 : index
    %c0_61 = arith.constant 0 : index
    %209 = vector.load %arg6[%c4_60, %c0_61] : memref<16x128xf32, #tpu.memory_space<vmem>>, vector<1x128xf32>
    %c5 = arith.constant 5 : index
    %c0_62 = arith.constant 0 : index
    %210 = vector.load %arg6[%c5, %c0_62] : memref<16x128xf32, #tpu.memory_space<vmem>>, vector<1x128xf32>
    %cst_63 = arith.constant dense<0.000000e+00> : vector<8xf32>
    %211 = vector.multi_reduction <add>, %208, %cst_63 [1] : vector<8x128xf32> to vector<8xf32>
    %212 = vector.shape_cast %211 : vector<8xf32> to vector<8x1xf32>
    %cst_64 = arith.constant 1.280000e+02 : f32
    %213 = vector.broadcast %cst_64 : f32 to vector<8x1xf32>
    %214 = arith.divf %212, %213 : vector<8x1xf32>
    %215 = vector.broadcast %214 : vector<8x1xf32> to vector<8x128xf32>
    %216 = arith.subf %208, %215 : vector<8x128xf32>
    %217 = arith.mulf %216, %216 : vector<8x128xf32>
    %cst_65 = arith.constant dense<0.000000e+00> : vector<8xf32>
    %218 = vector.multi_reduction <add>, %217, %cst_65 [1] : vector<8x128xf32> to vector<8xf32>
    %219 = vector.shape_cast %218 : vector<8xf32> to vector<8x1xf32>
    %cst_66 = arith.constant 0.00787401571 : f32
    %220 = vector.broadcast %cst_66 : f32 to vector<8x1xf32>
    %221 = arith.mulf %219, %220 : vector<8x1xf32>
    %222 = math.sqrt %221 : vector<8x1xf32>
    %cst_67 = arith.constant 9.99999997E-7 : f32
    %223 = vector.broadcast %cst_67 : f32 to vector<8x1xf32>
    %224 = arith.addf %222, %223 : vector<8x1xf32>
    %225 = tpu.reciprocal %224 {approx = true} : vector<8x1xf32> -> vector<8x1xf32>
    %226 = vector.broadcast %209 : vector<1x128xf32> to vector<8x128xf32>
    %227 = arith.mulf %226, %216 : vector<8x128xf32>
    %228 = vector.broadcast %225 : vector<8x1xf32> to vector<8x128xf32>
    %229 = arith.mulf %227, %228 : vector<8x128xf32>
    %230 = vector.broadcast %210 : vector<1x128xf32> to vector<8x128xf32>
    %231 = arith.addf %229, %230 : vector<8x128xf32>
    %232 = arith.truncf %231 : vector<8x128xf32> to vector<8x128xbf16>
    %c0_68 = arith.constant 0 : index
    %c0_69 = arith.constant 0 : index
    %233 = vector.load %arg8[%c0_68, %c0_69] : memref<128x256xbf16, #tpu.memory_space<vmem>>, vector<128x256xbf16>
    %cst_70 = arith.constant dense<0.000000e+00> : vector<8x256xf32>
    %234 = tpu.matmul %232, %233, %cst_70 {dimension_numbers = #tpu.dot_dimension_numbers<[1], [0], [0], [1], [0, 0, 1, 1], [], []>} : vector<8x128xbf16>, vector<128x256xbf16>, vector<8x256xf32> -> vector<8x256xf32>
    %c0_71 = arith.constant 0 : index
    %c0_72 = arith.constant 0 : index
    %235 = vector.load %arg9[%c0_71, %c0_72] : memref<1x256xf32, #tpu.memory_space<vmem>>, vector<1x256xf32>
    %236 = vector.broadcast %235 : vector<1x256xf32> to vector<8x256xf32>
    %237 = arith.addf %234, %236 : vector<8x256xf32>
    %cst_73 = arith.constant 0.000000e+00 : f32
    %238 = vector.broadcast %cst_73 : f32 to vector<8x256xf32>
    %239 = arith.maximumf %237, %238 : vector<8x256xf32>
    %240 = arith.truncf %239 : vector<8x256xf32> to vector<8x256xbf16>
    %c0_74 = arith.constant 0 : index
    %c0_75 = arith.constant 0 : index
    %241 = vector.load %arg10[%c0_74, %c0_75] : memref<256x128xbf16, #tpu.memory_space<vmem>>, vector<256x128xbf16>
    %cst_76 = arith.constant dense<0.000000e+00> : vector<8x128xf32>
    %242 = tpu.matmul %240, %241, %cst_76 {dimension_numbers = #tpu.dot_dimension_numbers<[1], [0], [0], [1], [0, 0, 1, 1], [], []>} : vector<8x256xbf16>, vector<256x128xbf16>, vector<8x128xf32> -> vector<8x128xf32>
    %243 = arith.addf %208, %242 : vector<8x128xf32>
    %c14 = arith.constant 14 : index
    %c0_77 = arith.constant 0 : index
    %244 = vector.load %arg6[%c14, %c0_77] : memref<16x128xf32, #tpu.memory_space<vmem>>, vector<1x128xf32>
    %245 = vector.broadcast %244 : vector<1x128xf32> to vector<8x128xf32>
    %246 = arith.addf %243, %245 : vector<8x128xf32>
    %c0_78 = arith.constant 0 : index
    %c0_79 = arith.constant 0 : index
    %c0_80 = arith.constant 0 : index
    %247 = vector.load %arg11[%c0_78, %c0_79, %c0_80] : memref<1x8x128xf32, #tpu.memory_space<vmem>>, vector<1x8x128xf32>
    %248 = vector.shape_cast %247 : vector<1x8x128xf32> to vector<8x128xf32>
    %249 = vector.shape_cast %246 : vector<8x128xf32> to vector<1x8x128xf32>
    tpu.vector_store %arg11[%c0_78, %c0_79, %c0_80], %249 {strides = array<i32>} : memref<1x8x128xf32, #tpu.memory_space<vmem>>, vector<1x8x128xf32>,
    return
  }
  func.func @transform_0(%arg0: i32, %arg1: i32) -> (i32, i32, i32) {
    %c0_i32 = arith.constant 0 : i32
    %c0_i32_0 = arith.constant 0 : i32
    %c0_i32_1 = arith.constant 0 : i32
    return %arg0, %c0_i32, %c0_i32_0 : i32, i32, i32
  }
  func.func @transform_1(%arg0: i32, %arg1: i32) -> (i32, i32, i32) {
    %c0_i32 = arith.constant 0 : i32
    %c0_i32_0 = arith.constant 0 : i32
    %c0_i32_1 = arith.constant 0 : i32
    return %arg0, %c0_i32, %c0_i32_0 : i32, i32, i32
  }
  func.func @transform_2(%arg0: i32, %arg1: i32) -> (i32, i32, i32) {
    %c0_i32 = arith.constant 0 : i32
    %c0_i32_0 = arith.constant 0 : i32
    return %arg0, %arg1, %c0_i32 : i32, i32, i32
  }
  func.func @transform_3(%arg0: i32, %arg1: i32) -> (i32, i32, i32) {
    %c0_i32 = arith.constant 0 : i32
    %c0_i32_0 = arith.constant 0 : i32
    return %arg0, %arg1, %c0_i32 : i32, i32, i32
  }
  func.func @transform_4(%arg0: i32, %arg1: i32) -> (i32, i32) {
    %c0_i32 = arith.constant 0 : i32
    %c0_i32_0 = arith.constant 0 : i32
    %c0_i32_1 = arith.constant 0 : i32
    return %c0_i32, %c0_i32_0 : i32, i32
  }
  func.func @transform_5(%arg0: i32, %arg1: i32) -> (i32, i32, i32) {
    %c0_i32 = arith.constant 0 : i32
    %c0_i32_0 = arith.constant 0 : i32
    %c0_i32_1 = arith.constant 0 : i32
    %c0_i32_2 = arith.constant 0 : i32
    return %c0_i32, %c0_i32_0, %c0_i32_1 : i32, i32, i32
  }
  func.func @transform_6(%arg0: i32, %arg1: i32) -> (i32, i32) {
    %c0_i32 = arith.constant 0 : i32
    %c0_i32_0 = arith.constant 0 : i32
    %c0_i32_1 = arith.constant 0 : i32
    return %c0_i32, %c0_i32_0 : i32, i32
  }
  func.func @transform_7(%arg0: i32, %arg1: i32) -> (i32, i32) {
    %c0_i32 = arith.constant 0 : i32
    %c0_i32_0 = arith.constant 0 : i32
    %c0_i32_1 = arith.constant 0 : i32
    return %c0_i32, %c0_i32_0 : i32, i32
  }
  func.func @transform_8(%arg0: i32, %arg1: i32) -> (i32, i32) {
    %c0_i32 = arith.constant 0 : i32
    %c0_i32_0 = arith.constant 0 : i32
    %c0_i32_1 = arith.constant 0 : i32
    return %c0_i32, %c0_i32_0 : i32, i32
  }
  func.func @transform_9(%arg0: i32, %arg1: i32) -> (i32, i32, i32) {
    %c0_i32 = arith.constant 0 : i32
    %c0_i32_0 = arith.constant 0 : i32
    return %arg0, %arg1, %c0_i32 : i32, i32, i32
  }
}

</mosaic_0001>

<llo_original>
// kernel: tpu_custom_call.1
$region0: #{tpu_custom_call.1}
  #allocation0 [shape = 'u32[]', space=smem, size = 0x4, offset = 0x4, fixed_abs, tag = 'smem constant byte address 0x4 - core index']
  #allocation1 [shape = 'u32[144,128]{1,0:T(1,128)}', space=vmem, size = 0x12000, scoped, tag = 'internal scratch']
  #allocation2 [shape = 'bf16[8,128]{1,0:T(8,128)(2,1)}', space=vmem, size = 0x800, scoped, tag = 'scratch operand']
  #allocation3 [shape = 'bf16[8,128]{1,0:T(8,128)(2,1)}', space=vmem, size = 0x800, scoped, tag = 'scratch operand']
  #allocation4 [shape = 'bf16[8,128]{1,0:T(8,128)(2,1)}', space=vmem, size = 0x800, scoped, tag = 'scratch operand']
  #allocation5 [shape = 'bf16[8,128]{1,0:T(8,128)(2,1)}', space=vmem, size = 0x800, scoped, tag = 'scratch operand']
  %s0 = inlined_call_operand.hbm [shape: bf16[2,8,128], index: 0, kind: input, shape index: {}]
  %s1 = inlined_call_operand.hbm [shape: bf16[2,8,128], index: 1, kind: input, shape index: {}]
  %s2 = inlined_call_operand.hbm [shape: bf16[2,8,8], index: 2, kind: input, shape index: {}]
  %s3 = inlined_call_operand.vmem [shape: bf16[2,8,8], index: 3, kind: input, shape index: {}]
  %s4 = inlined_call_operand.hbm [shape: f32[16,128], index: 4, kind: input, shape index: {}]
  %s5 = inlined_call_operand.hbm [shape: bf16[8,128,128], index: 5, kind: input, shape index: {}]
  %s6 = inlined_call_operand.hbm [shape: bf16[128,256], index: 6, kind: input, shape index: {}]
  %s7 = inlined_call_operand.vmem [shape: f32[1,256], index: 7, kind: input, shape index: {}]
  %s8 = inlined_call_operand.hbm [shape: bf16[256,128], index: 8, kind: input, shape index: {}]
  %s9 = inlined_call_operand.hbm [shape: f32[2,8,128], index: 9, kind: output, shape index: {}]
  %s10 = sld [smem:[#allocation0]]
  $region101: #{tpu_custom_call.1} parent=0
    _
  %s12 = ssub.s32 1, %s10
  %s13 = scalar_select 0, %s12, %s10
  $region1: #{tpu_custom_call.1} parent=0
    #allocation6 [shape = 'u8[2048]{0}', space=vmem, size = 0x800, scoped, tag = 'input window, operand 0, single buffered']
    #allocation7 [shape = 's32[2]{0}', space=sflag, size = 0x8, scoped, tag = 'scoped memory for tpu_custom_call.1']
    #allocation8 [shape = 's32[2]{0}', space=sflag, size = 0x8, scoped, tag = 'scoped memory for tpu_custom_call.1']
    #allocation9 [shape = 'u8[2048]{0}', space=vmem, size = 0x800, scoped, tag = 'input window, operand 1, single buffered']
    #allocation10 [shape = 's32[1]{0}', space=sflag, size = 0x4, scoped, tag = 'scoped memory for tpu_custom_call.1']
    #allocation11 [shape = 'u8[4096]{0}', space=vmem, size = 0x1000, scoped, tag = 'input window, operand 2']
    #allocation12 [shape = 'u8[8192]{0}', space=vmem, size = 0x2000, scoped, tag = 'input window, operand 4, single buffered']
    #allocation13 [shape = 'u8[262144]{0}', space=vmem, size = 0x40000, scoped, tag = 'input window, operand 5, single buffered']
    #allocation14 [shape = 's32[1]{0}', space=sflag, size = 0x4, scoped, tag = 'scoped memory for tpu_custom_call.1']
    #allocation15 [shape = 'u8[65536]{0}', space=vmem, size = 0x10000, scoped, tag = 'input window, operand 6, single buffered']
    #allocation16 [shape = 'u8[65536]{0}', space=vmem, size = 0x10000, scoped, tag = 'input window, operand 8, single buffered']
    #allocation17 [shape = 's32[1]{0}', space=sflag, size = 0x4, scoped, tag = 'scoped memory for tpu_custom_call.1']
    #allocation18 [shape = 'u8[8192]{0}', space=vmem, size = 0x2000, scoped, tag = 'output window, operand 0']
    %14 = vsyncpa [#allocation7], 0
    %15 = vsyncpa [#allocation10], 0
    %16 = vsyncpa [#allocation14], 0
    %17 = vsyncpa [#allocation17], 0
    %18 = vsyncpa [#allocation8], 0
    %s19 = scalar_lea.sflag [#allocation8], 1
    %20 = vsyncpa %s19, 0
    loop: start=0, step=1, limit=4
    $region2: #{tpu_custom_call.1} parent=1 // loop_pre_header
      _
    $region3: #{tpu_custom_call.1} parent=1 // loop_header
      %s22 = sphi 0, %s26
      %p23 = scmp.ge.s32.totalorder %s22, 4
      %s29 = sphi 0, %s41
      %s30 = sphi 0, %s37
      %s31 = sphi 0, %s29
      %s32 = sphi 0, %s30
      %s33 = sphi 0, %s31
      %s34 = sphi 0, %s32
      %s44 = sphi 0, %s46
      %s47 = sphi 0, %s44
      %s48 = sphi 0, %s47
      %s64 = sphi 0, %s48
      %s70 = sphi 0, %s72
      %s73 = sphi 0, %s70
      %s74 = sphi 0, %s73
      %s90 = sphi 0, %s74
      %s98 = sphi 0, %s100
      %s101 = sphi 0, %s98
      %s102 = sphi 0, %s101
      %s118 = sphi 0, %s102
      %s126 = sphi 0, %s128
      %s129 = sphi 0, %s126
      %s130 = sphi 0, %s129
      %s146 = sphi 0, %s130
      %s150 = sphi 0, %s150
      %s152 = sphi 0, %s150
      %s153 = sphi 0, %s152
      %s167 = sphi 0, %s153
      %s171 = sphi 0, %s171
      %s173 = sphi 0, %s171
      %s174 = sphi 0, %s173
      %s188 = sphi 0, %s174
      %s192 = sphi 0, %s192
      %s194 = sphi 0, %s192
      %s195 = sphi 0, %s194
      %s209 = sphi 0, %s195
      %s213 = sphi 0, %s213
      %s215 = sphi 0, %s213
      %s216 = sphi 0, %s215
      %s230 = sphi 0, %s216
      %s234 = sphi 0, %s234
      %s236 = sphi 0, %s234
      %s237 = sphi 0, %s236
      %s251 = sphi 0, %s237
      %s259 = sphi 0, %s261
      %s262 = sphi 0, %s259
      %s263 = sphi 0, %s262
      %s279 = sphi 0, %s263
    $region4: #{tpu_custom_call.1} parent=1 // loop_header_branch
      %25 = sbr.rel (%p23) target = $region8
    $region5: #{tpu_custom_call.1} parent=1 // loop_body
      %s27 = ssub.s32 %s22, 1
      %s28 = ssub.s32 %s22, 2
      %s35 = sadd.s32 1, %s30
      %p36 = scmp.ge.s32.totalorder %s35, 1
      %s37 = scalar_select %p36, 0, %s35
      %s38 = sadd.s32 1, %s29
      %s39 = scalar_select %p36, %s38, %s29
      %p40 = scmp.ge.s32.totalorder %s39, 2
      %s41 = scalar_select %p40, 0, %s39
      %s42 = ssub.s32 %s29, %s41
      %p43 = scmp.eq.s32.totalorder %s42, 0
      %s45 = sadd.s32 %s44, 1
      %s46 = scalar_select %p43, %s44, %s45
      %p49 = pneg %p43
      %p50 = scmp.eq.s32.totalorder %s22, 1
      %p51 = por %p49, %p50
      %p52 = scmp.ne.s32.totalorder %s44, %s47
      %p53 = scmp.eq.s32.totalorder %s22, 0
      %p54 = por %p52, %p53
      %p55 = scmp.ne.s32.totalorder %s44, %s47
      %p56 = scmp.eq.s32.totalorder %s27, 1
      %p57 = por %p55, %p56
      %p58 = scmp.ne.s32.totalorder %s47, %s48
      %p59 = scmp.eq.s32.totalorder %s27, 0
      %p60 = por %p58, %p59
      %p61 = scmp.ne.s32.totalorder %s47, %s48
      %p62 = scmp.eq.s32.totalorder %s28, 1
      %p63 = por %p61, %p62
      %p65 = scmp.ne.s32.totalorder %s48, %s64
      %p66 = scmp.eq.s32.totalorder %s28, 0
      %p67 = por %p65, %p66
      %s68 = ssub.s32 %s29, %s41
      %p69 = scmp.eq.s32.totalorder %s68, 0
      %s71 = sadd.s32 %s70, 1
      %s72 = scalar_select %p69, %s70, %s71
      %p75 = pneg %p69
      %p76 = scmp.eq.s32.totalorder %s22, 1
      %p77 = por %p75, %p76
      %p78 = scmp.ne.s32.totalorder %s70, %s73
      %p79 = scmp.eq.s32.totalorder %s22, 0
      %p80 = por %p78, %p79
      %p81 = scmp.ne.s32.totalorder %s70, %s73
      %p82 = scmp.eq.s32.totalorder %s27, 1
      %p83 = por %p81, %p82
      %p84 = scmp.ne.s32.totalorder %s73, %s74
      %p85 = scmp.eq.s32.totalorder %s27, 0
      %p86 = por %p84, %p85
      %p87 = scmp.ne.s32.totalorder %s73, %s74
      %p88 = scmp.eq.s32.totalorder %s28, 1
      %p89 = por %p87, %p88
      %p91 = scmp.ne.s32.totalorder %s74, %s90
      %p92 = scmp.eq.s32.totalorder %s28, 0
      %p93 = por %p91, %p92
      %s94 = ssub.s32 %s29, %s41
      %s95 = ssub.s32 %s30, %s37
      %s96 = sor.u32 %s94, %s95
      %p97 = scmp.eq.s32.totalorder %s96, 0
      %s99 = sadd.s32 %s98, 1
      %s100 = scalar_select %p97, %s98, %s99
      %p103 = pneg %p97
      %p104 = scmp.eq.s32.totalorder %s22, 1
      %p105 = por %p103, %p104
      %p106 = scmp.ne.s32.totalorder %s98, %s101
      %p107 = scmp.eq.s32.totalorder %s22, 0
      %p108 = por %p106, %p107
      %p109 = scmp.ne.s32.totalorder %s98, %s101
      %p110 = scmp.eq.s32.totalorder %s27, 1
      %p111 = por %p109, %p110
      %p112 = scmp.ne.s32.totalorder %s101, %s102
      %p113 = scmp.eq.s32.totalorder %s27, 0
      %p114 = por %p112, %p113
      %p115 = scmp.ne.s32.totalorder %s101, %s102
      %p116 = scmp.eq.s32.totalorder %s28, 1
      %p117 = por %p115, %p116
      %p119 = scmp.ne.s32.totalorder %s102, %s118
      %p120 = scmp.eq.s32.totalorder %s28, 0
      %p121 = por %p119, %p120
      %s122 = ssub.s32 %s29, %s41
      %s123 = ssub.s32 %s30, %s37
      %s124 = sor.u32 %s122, %s123
      %p125 = scmp.eq.s32.totalorder %s124, 0
      %s127 = sadd.s32 %s126, 1
      %s128 = scalar_select %p125, %s126, %s127
      %p131 = pneg %p125
      %p132 = scmp.eq.s32.totalorder %s22, 1
      %p133 = por %p131, %p132
      %p134 = scmp.ne.s32.totalorder %s126, %s129
      %p135 = scmp.eq.s32.totalorder %s22, 0
      %p136 = por %p134, %p135
      %p137 = scmp.ne.s32.totalorder %s126, %s129
      %p138 = scmp.eq.s32.totalorder %s27, 1
      %p139 = por %p137, %p138
      %p140 = scmp.ne.s32.totalorder %s129, %s130
      %p141 = scmp.eq.s32.totalorder %s27, 0
      %p142 = por %p140, %p141
      %p143 = scmp.ne.s32.totalorder %s129, %s130
      %p144 = scmp.eq.s32.totalorder %s28, 1
      %p145 = por %p143, %p144
      %p147 = scmp.ne.s32.totalorder %s130, %s146
      %p148 = scmp.eq.s32.totalorder %s28, 0
      %p149 = por %p147, %p148
      %s151 = sadd.s32 %s150, 1
      %p154 = scmp.eq.s32.totalorder %s22, 1
      %p155 = scmp.ne.s32.totalorder %s150, %s152
      %p156 = scmp.eq.s32.totalorder %s22, 0
      %p157 = por %p155, %p156
      %p158 = scmp.ne.s32.totalorder %s150, %s152
      %p159 = scmp.eq.s32.totalorder %s27, 1
      %p160 = por %p158, %p159
      %p161 = scmp.ne.s32.totalorder %s152, %s153
      %p162 = scmp.eq.s32.totalorder %s27, 0
      %p163 = por %p161, %p162
      %p164 = scmp.ne.s32.totalorder %s152, %s153
      %p165 = scmp.eq.s32.totalorder %s28, 1
      %p166 = por %p164, %p165
      %p168 = scmp.ne.s32.totalorder %s153, %s167
      %p169 = scmp.eq.s32.totalorder %s28, 0
      %p170 = por %p168, %p169
      %s172 = sadd.s32 %s171, 1
      %p175 = scmp.eq.s32.totalorder %s22, 1
      %p176 = scmp.ne.s32.totalorder %s171, %s173
      %p177 = scmp.eq.s32.totalorder %s22, 0
      %p178 = por %p176, %p177
      %p179 = scmp.ne.s32.totalorder %s171, %s173
      %p180 = scmp.eq.s32.totalorder %s27, 1
      %p181 = por %p179, %p180
      %p182 = scmp.ne.s32.totalorder %s173, %s174
      %p183 = scmp.eq.s32.totalorder %s27, 0
      %p184 = por %p182, %p183
      %p185 = scmp.ne.s32.totalorder %s173, %s174
      %p186 = scmp.eq.s32.totalorder %s28, 1
      %p187 = por %p185, %p186
      %p189 = scmp.ne.s32.totalorder %s174, %s188
      %p190 = scmp.eq.s32.totalorder %s28, 0
      %p191 = por %p189, %p190
      %s193 = sadd.s32 %s192, 1
      %p196 = scmp.eq.s32.totalorder %s22, 1
      %p197 = scmp.ne.s32.totalorder %s192, %s194
      %p198 = scmp.eq.s32.totalorder %s22, 0
      %p199 = por %p197, %p198
      %p200 = scmp.ne.s32.totalorder %s192, %s194
      %p201 = scmp.eq.s32.totalorder %s27, 1
      %p202 = por %p200, %p201
      %p203 = scmp.ne.s32.totalorder %s194, %s195
      %p204 = scmp.eq.s32.totalorder %s27, 0
      %p205 = por %p203, %p204
      %p206 = scmp.ne.s32.totalorder %s194, %s195
      %p207 = scmp.eq.s32.totalorder %s28, 1
      %p208 = por %p206, %p207
      %p210 = scmp.ne.s32.totalorder %s195, %s209
      %p211 = scmp.eq.s32.totalorder %s28, 0
      %p212 = por %p210, %p211
      %s214 = sadd.s32 %s213, 1
      %p217 = scmp.eq.s32.totalorder %s22, 1
      %p218 = scmp.ne.s32.totalorder %s213, %s215
      %p219 = scmp.eq.s32.totalorder %s22, 0
      %p220 = por %p218, %p219
      %p221 = scmp.ne.s32.totalorder %s213, %s215
      %p222 = scmp.eq.s32.totalorder %s27, 1
      %p223 = por %p221, %p222
      %p224 = scmp.ne.s32.totalorder %s215, %s216
      %p225 = scmp.eq.s32.totalorder %s27, 0
      %p226 = por %p224, %p225
      %p227 = scmp.ne.s32.totalorder %s215, %s216
      %p228 = scmp.eq.s32.totalorder %s28, 1
      %p229 = por %p227, %p228
      %p231 = scmp.ne.s32.totalorder %s216, %s230
      %p232 = scmp.eq.s32.totalorder %s28, 0
      %p233 = por %p231, %p232
      %s235 = sadd.s32 %s234, 1
      %p238 = scmp.eq.s32.totalorder %s22, 1
      %p239 = scmp.ne.s32.totalorder %s234, %s236
      %p240 = scmp.eq.s32.totalorder %s22, 0
      %p241 = por %p239, %p240
      %p242 = scmp.ne.s32.totalorder %s234, %s236
      %p243 = scmp.eq.s32.totalorder %s27, 1
      %p244 = por %p242, %p243
      %p245 = scmp.ne.s32.totalorder %s236, %s237
      %p246 = scmp.eq.s32.totalorder %s27, 0
      %p247 = por %p245, %p246
      %p248 = scmp.ne.s32.totalorder %s236, %s237
      %p249 = scmp.eq.s32.totalorder %s28, 1
      %p250 = por %p248, %p249
      %p252 = scmp.ne.s32.totalorder %s237, %s251
      %p253 = scmp.eq.s32.totalorder %s28, 0
      %p254 = por %p252, %p253
      %s255 = ssub.s32 %s29, %s41
      %s256 = ssub.s32 %s30, %s37
      %s257 = sor.u32 %s255, %s256
      %p258 = scmp.eq.s32.totalorder %s257, 0
      %s260 = sadd.s32 %s259, 1
      %s261 = scalar_select %p258, %s259, %s260
      %p264 = pneg %p258
      %p265 = scmp.eq.s32.totalorder %s22, 1
      %p266 = por %p264, %p265
      %p267 = scmp.ne.s32.totalorder %s259, %s262
      %p268 = scmp.eq.s32.totalorder %s22, 0
      %p269 = por %p267, %p268
      %p270 = scmp.ne.s32.totalorder %s259, %s262
      %p271 = scmp.eq.s32.totalorder %s27, 1
      %p272 = por %p270, %p271
      %p273 = scmp.ne.s32.totalorder %s262, %s263
      %p274 = scmp.eq.s32.totalorder %s27, 0
      %p275 = por %p273, %p274
      %p276 = scmp.ne.s32.totalorder %s262, %s263
      %p277 = scmp.eq.s32.totalorder %s28, 1
      %p278 = por %p276, %p277
      %p280 = scmp.ne.s32.totalorder %s263, %s279
      %p281 = scmp.eq.s32.totalorder %s28, 0
      %p282 = por %p280, %p281
      %p283 = scmp.le.s32.totalorder 1, %s22
      %p284 = scmp.lt.s32.totalorder %s22, 3
      %p285 = pnand %p283, %p284
      %p286 = pneg %p285
      // Predicated region
      $region9: #{tpu_custom_call.1} parent=5 // pred_check
        _
      $region10: #{tpu_custom_call.1} parent=5 // pred_check_branch
        %288 = sbr.rel (%p285) target = $region12
      $region11: #{tpu_custom_call.1} parent=5 // pred_region
        %s289 = ssub.s32 %s22, 1
        // Predicated region
        $region13: #{tpu_custom_call.1} parent=11 // pred_check
          %p290 = pneg %p60
        $region14: #{tpu_custom_call.1} parent=11 // pred_check_branch
          %292 = sbr.rel (%p290) target = $region16
        $region15: #{tpu_custom_call.1} parent=11 // pred_region
          %s294 = ssub.s32 64, 64
          %295 = vsyncadd [#allocation7], %s294
          %s296 = smul.addr %s31, 64
          %s297 = scalar_lea.hbm %s0, %s296
          %s299 = sshll.u32 [#allocation6], 4
          %s300 = int_to_ptr.vmem [resolvable:$true] %s299
          %302 = dma.hbm_to_vmem [thread:$0]  %s297, 64, %s300, [#allocation7]
        $region16: #{tpu_custom_call.1} parent=11 // pred_fallthru
          _
        // Predicated region
        $region17: #{tpu_custom_call.1} parent=11 // pred_check
          %p303 = pneg %p86
        $region18: #{tpu_custom_call.1} parent=11 // pred_check_branch
          %305 = sbr.rel (%p303) target = $region20
        $region19: #{tpu_custom_call.1} parent=11 // pred_region
          %s307 = ssub.s32 64, 64
          %308 = vsyncadd [#allocation10], %s307
          %s309 = smul.addr %s31, 64
          %s310 = scalar_lea.hbm %s1, %s309
          %s312 = sshll.u32 [#allocation9], 4
          %s313 = int_to_ptr.vmem [resolvable:$true] %s312
          %315 = dma.hbm_to_vmem [thread:$0]  %s310, 64, %s313, [#allocation10]
        $region20: #{tpu_custom_call.1} parent=11 // pred_fallthru
          _
        // Predicated region
        $region21: #{tpu_custom_call.1} parent=11 // pred_check
          %p316 = pneg %p163
        $region22: #{tpu_custom_call.1} parent=11 // pred_check_branch
          %318 = sbr.rel (%p316) target = $region24
        $region23: #{tpu_custom_call.1} parent=11 // pred_region
          %s320 = ssub.s32 256, 256
          %321 = vsyncadd [#allocation10], %s320
          %s322 = sshll.u32 [#allocation12], 4
          %s323 = int_to_ptr.vmem [resolvable:$true] %s322
          %328 = dma.hbm_to_vmem [thread:$0]  %s4, 256, %s323, [#allocation10], 128, 128, 8
        $region24: #{tpu_custom_call.1} parent=11 // pred_fallthru
          _
        // Predicated region
        $region25: #{tpu_custom_call.1} parent=11 // pred_check
          %p329 = pneg %p184
        $region26: #{tpu_custom_call.1} parent=11 // pred_check_branch
          %331 = sbr.rel (%p329) target = $region28
        $region27: #{tpu_custom_call.1} parent=11 // pred_region
          %s333 = ssub.s32 8192, 8192
          %334 = vsyncadd [#allocation14], %s333
          %s335 = sshll.u32 [#allocation13], 4
          %s336 = int_to_ptr.vmem [resolvable:$true] %s335
          %341 = dma.hbm_to_vmem [thread:$0]  %s5, 8192, %s336, [#allocation14], 64, 64, 4
        $region28: #{tpu_custom_call.1} parent=11 // pred_fallthru
          _
        // Predicated region
        $region29: #{tpu_custom_call.1} parent=11 // pred_check
          %p342 = pneg %p205
        $region30: #{tpu_custom_call.1} parent=11 // pred_check_branch
          %344 = sbr.rel (%p342) target = $region32
        $region31: #{tpu_custom_call.1} parent=11 // pred_region
          %s346 = ssub.s32 2048, 2048
          %347 = vsyncadd [#allocation14], %s346
          %s348 = sshll.u32 [#allocation15], 4
          %s349 = int_to_ptr.vmem [resolvable:$true] %s348
          %354 = dma.hbm_to_vmem [thread:$0]  %s6, 2048, %s349, [#allocation14], 128, 128, 8
        $region32: #{tpu_custom_call.1} parent=11 // pred_fallthru
          _
        // Predicated region
        $region33: #{tpu_custom_call.1} parent=11 // pred_check
          %p355 = pneg %p226
        $region34: #{tpu_custom_call.1} parent=11 // pred_check_branch
          %357 = sbr.rel (%p355) target = $region36
        $region35: #{tpu_custom_call.1} parent=11 // pred_region
          _
        $region36: #{tpu_custom_call.1} parent=11 // pred_fallthru
          _
        // Predicated region
        $region37: #{tpu_custom_call.1} parent=11 // pred_check
          %p358 = pneg %p247
        $region38: #{tpu_custom_call.1} parent=11 // pred_check_branch
          %360 = sbr.rel (%p358) target = $region40
        $region39: #{tpu_custom_call.1} parent=11 // pred_region
          %s362 = ssub.s32 2048, 2048
          %363 = vsyncadd [#allocation17], %s362
          %s364 = sshll.u32 [#allocation16], 4
          %s365 = int_to_ptr.vmem [resolvable:$true] %s364
          %370 = dma.hbm_to_vmem [thread:$0]  %s8, 2048, %s365, [#allocation17], 64, 64, 4
        $region40: #{tpu_custom_call.1} parent=11 // pred_fallthru
          _
      $region12: #{tpu_custom_call.1} parent=5 // pred_fallthru
        _
      %p371 = scmp.lt.s32.totalorder %s22, 2
      // Predicated region
      $region41: #{tpu_custom_call.1} parent=5 // pred_check
        %p372 = pneg %p371
      $region42: #{tpu_custom_call.1} parent=5 // pred_check_branch
        %374 = sbr.rel (%p372) target = $region44
      $region43: #{tpu_custom_call.1} parent=5 // pred_region
        // Predicated region
        $region45: #{tpu_custom_call.1} parent=43 // pred_check
          %p375 = pneg %p108
        $region46: #{tpu_custom_call.1} parent=43 // pred_check_branch
          %377 = sbr.rel (%p375) target = $region48
        $region47: #{tpu_custom_call.1} parent=43 // pred_region
          %s378 = sand.u32 %s22, 1
          %s379 = scalar_lea.sflag [#allocation7], %s378
          %s380 = sand.u32 %s98, 1
          %s381 = smul.addr %s380, 4
          %s382 = scalar_lea.vmem [#allocation11], %s381
          %s384 = ssub.s32 64, 64
          %385 = vsyncadd %s379, %s384
          %s386 = sadd.s32 %s30, %s29
          %s387 = smul.addr %s386, 64
          %s388 = scalar_lea.hbm %s2, %s387
          %s390 = sshll.u32 %s382, 4
          %s391 = int_to_ptr.vmem [resolvable:$true] %s390
          %393 = dma.hbm_to_vmem [thread:$0]  %s388, 64, %s391, %s379
        $region48: #{tpu_custom_call.1} parent=43 // pred_fallthru
          _
        // Predicated region
        $region49: #{tpu_custom_call.1} parent=43 // pred_check
          %p394 = pneg %p136
        $region50: #{tpu_custom_call.1} parent=43 // pred_check_branch
          %396 = sbr.rel (%p394) target = $region52
        $region51: #{tpu_custom_call.1} parent=43 // pred_region
          %p397 = scmp.lt.s32.totalorder %s29, 1
          %s398 = scalar_select %p397, %s29, 1
          %p399 = scmp.lt.s32.totalorder %s30, 0
          %s400 = scalar_select %p399, %s30, 0
          %s401 = sadd.s32 %s400, %s398
          %s402 = smul.addr %s401, 4
          %s403 = scalar_lea.vmem %s3, %s402
        $region52: #{tpu_custom_call.1} parent=43 // pred_fallthru
          _
      $region44: #{tpu_custom_call.1} parent=5 // pred_fallthru
        _
      %p404 = scmp.le.s32.totalorder 1, %s22
      %p405 = scmp.lt.s32.totalorder %s22, 3
      %p406 = pnand %p404, %p405
      %p407 = pneg %p406
      // Predicated region
      $region53: #{tpu_custom_call.1} parent=5 // pred_check
        _
      $region54: #{tpu_custom_call.1} parent=5 // pred_check_branch
        %409 = sbr.rel (%p406) target = $region56
      $region55: #{tpu_custom_call.1} parent=5 // pred_region
        %s410 = ssub.s32 %s22, 1
        // Predicated region
        $region57: #{tpu_custom_call.1} parent=55 // pred_check
          %p411 = pneg %p60
        $region58: #{tpu_custom_call.1} parent=55 // pred_check_branch
          %413 = sbr.rel (%p411) target = $region60
        $region59: #{tpu_custom_call.1} parent=55 // pred_region
          %414 = dma.done [#allocation7], 64
        $region60: #{tpu_custom_call.1} parent=55 // pred_fallthru
          _
        // Predicated region
        $region61: #{tpu_custom_call.1} parent=55 // pred_check
          %p415 = pneg %p86
        $region62: #{tpu_custom_call.1} parent=55 // pred_check_branch
          %417 = sbr.rel (%p415) target = $region64
        $region63: #{tpu_custom_call.1} parent=55 // pred_region
          %418 = dma.done [#allocation10], 64
        $region64: #{tpu_custom_call.1} parent=55 // pred_fallthru
          _
        %s419 = sand.u32 %s27, 1
        %s420 = scalar_lea.sflag [#allocation7], %s419
        %s421 = sand.u32 %s101, 1
        %s422 = smul.addr %s421, 4
        %s423 = scalar_lea.vmem [#allocation11], %s422
        // Predicated region
        $region65: #{tpu_custom_call.1} parent=55 // pred_check
          %p424 = pneg %p114
        $region66: #{tpu_custom_call.1} parent=55 // pred_check_branch
          %426 = sbr.rel (%p424) target = $region68
        $region67: #{tpu_custom_call.1} parent=55 // pred_region
          %427 = dma.done %s420, 64
        $region68: #{tpu_custom_call.1} parent=55 // pred_fallthru
          _
        // Predicated region
        $region69: #{tpu_custom_call.1} parent=55 // pred_check
          %p428 = pneg %p163
        $region70: #{tpu_custom_call.1} parent=55 // pred_check_branch
          %430 = sbr.rel (%p428) target = $region72
        $region71: #{tpu_custom_call.1} parent=55 // pred_region
          %431 = dma.done [#allocation10], 256
        $region72: #{tpu_custom_call.1} parent=55 // pred_fallthru
          _
        // Predicated region
        $region73: #{tpu_custom_call.1} parent=55 // pred_check
          %p432 = pneg %p184
        $region74: #{tpu_custom_call.1} parent=55 // pred_check_branch
          %434 = sbr.rel (%p432) target = $region76
        $region75: #{tpu_custom_call.1} parent=55 // pred_region
          %435 = dma.done [#allocation14], 8192
        $region76: #{tpu_custom_call.1} parent=55 // pred_fallthru
          _
        // Predicated region
        $region77: #{tpu_custom_call.1} parent=55 // pred_check
          %p436 = pneg %p205
        $region78: #{tpu_custom_call.1} parent=55 // pred_check_branch
          %438 = sbr.rel (%p436) target = $region80
        $region79: #{tpu_custom_call.1} parent=55 // pred_region
          %439 = dma.done [#allocation14], 2048
        $region80: #{tpu_custom_call.1} parent=55 // pred_fallthru
          _
        // Predicated region
        $region81: #{tpu_custom_call.1} parent=55 // pred_check
          %p440 = pneg %p247
        $region82: #{tpu_custom_call.1} parent=55 // pred_check_branch
          %442 = sbr.rel (%p440) target = $region84
        $region83: #{tpu_custom_call.1} parent=55 // pred_region
          %443 = dma.done [#allocation17], 2048
        $region84: #{tpu_custom_call.1} parent=55 // pred_fallthru
          _
        %p444 = pneg %p60
        %p445 = pneg %p57
        %p446 = pneg %p86
        %p447 = pneg %p83
        %s448 = sand.u32 %s27, 1
        %s449 = scalar_lea.sflag [#allocation7], %s448
        %s450 = sand.u32 %s101, 1
        %s451 = smul.addr %s450, 4
        %s452 = scalar_lea.vmem [#allocation11], %s451
        %p453 = pneg %p114
        %p454 = pneg %p111
        %p455 = scmp.lt.s32.totalorder %s31, 1
        %s456 = scalar_select %p455, %s31, 1
        %p457 = scmp.lt.s32.totalorder %s32, 0
        %s458 = scalar_select %p457, %s32, 0
        %s459 = sadd.s32 %s458, %s456
        %s460 = smul.addr %s459, 4
        %s461 = scalar_lea.vmem %s3, %s460
        %p462 = pneg %p142
        %p463 = pneg %p139
        %p464 = pneg %p163
        %p465 = pneg %p160
        %p466 = pneg %p184
        %p467 = pneg %p181
        %p468 = pneg %p205
        %p469 = pneg %p202
        %p470 = pneg %p226
        %p471 = pneg %p223
        %p472 = pneg %p247
        %p473 = pneg %p244
        %p474 = pneg %p275
        %p475 = pneg %p272
        %s476 = sand.u32 %s262, 1
        %s477 = scalar_lea.sflag [#allocation8], %s476
        %s478 = sand.u32 %s262, 1
        %s479 = smul.addr %s478, 8
        %s480 = scalar_lea.vmem [#allocation18], %s479
        %p481 = scmp.lt.s32.totalorder %s31, 1
        %s482 = scalar_select %p481, %s31, 1
        %p483 = scmp.lt.s32.totalorder %s32, 0
        %s484 = scalar_select %p483, %s32, 0
        %s485 = sadd.s32 %s484, %s482
        %s486 = smul.addr %s485, 4
        %s487 = scalar_lea.vmem %s3, %s486
        %p489 = scmp.eq.s32.totalorder %s32, 0
        // Predicated region
        $region85: #{tpu_custom_call.1} parent=55 // pred_check
          %p490 = pneg %p489
        $region86: #{tpu_custom_call.1} parent=55 // pred_check_branch
          %492 = sbr.rel (%p490) target = $region88
        $region87: #{tpu_custom_call.1} parent=55 // pred_region
          %v493 = vld [vmem:[#allocation6] sm:$0xf]
          %v494 = vunpack.c.l.bf16 %v493
          %v495 = vld [vmem:[#allocation12] sm:$0x1]
          %v496 = vld [vmem:[#allocation12 + $0x1] sm:$0x1]
          %497 = vadd.xlane.f32.xlu0 %v494
          %v498 = vpop.xlane.xlu0 %497
          %v499 = vrcp.pop 128.0
          %v500 = vmul.f32 %v498, %v499
          %v501 = vsub.f32 %v494, %v500
          %v502 = vmul.f32 %v501, %v501
          %503 = vadd.xlane.f32.xlu0 %v502
          %v504 = vpop.xlane.xlu0 %503
          %v505 = vmul.f32 %v504, 0.007874016
          %v506 = vrsqrt.pop %v505
          %v507 = vmul.f32 %v505, %v506
          %vm508 = vcmp.eq.f32.partialorder %v505, inf
          %v509 = vsel %vm508, %v505, %v507
          %vm510 = vcmp.eq.f32.partialorder %v505, 0.0
          %v511 = vand.u32 %v505, 2147483648
          %v512 = vsel %vm510, %v511, %v509
          %v513 = vadd.f32 %v512, 1e-06
          %v514 = vrcp.pop %v513
          %v515 = vlaneseq
          %v516 = vshrl.u32 %v515, 7
          %v517 = vsub.s32 0, %v516
          %v518 = vrot.slane %v495, %v517
          %v519 = vmul.f32 %v518, %v501
          %v520 = vmul.f32 %v519, %v514
          %v521 = vlaneseq
          %v522 = vshrl.u32 %v521, 7
          %v523 = vsub.s32 0, %v522
          %v524 = vrot.slane %v496, %v523
          %v525 = vadd.f32 %v520, %v524
          %v526 = vpack.c.bf16 %v525, %v525
          %s527 = scalar_lea.vmem [#allocation13], 64
          %v528 = vld [vmem:[%s527] sm:$0xf]
          %v529 = vld [vmem:[%s527 + $0x4] sm:$0xf]
          %v530 = vld [vmem:[%s527 + $0x8] sm:$0xf]
          %v531 = vld [vmem:[%s527 + $0xc] sm:$0xf]
          %v532 = vld [vmem:[%s527 + $0x10] sm:$0xf]
          %v533 = vld [vmem:[%s527 + $0x14] sm:$0xf]
          %v534 = vld [vmem:[%s527 + $0x18] sm:$0xf]
          %v535 = vld [vmem:[%s527 + $0x1c] sm:$0xf]
          %v536 = vld [vmem:[%s527 + $0x20] sm:$0xf]
          %v537 = vld [vmem:[%s527 + $0x24] sm:$0xf]
          %v538 = vld [vmem:[%s527 + $0x28] sm:$0xf]
          %v539 = vld [vmem:[%s527 + $0x2c] sm:$0xf]
          %v540 = vld [vmem:[%s527 + $0x30] sm:$0xf]
          %v541 = vld [vmem:[%s527 + $0x34] sm:$0xf]
          %v542 = vld [vmem:[%s527 + $0x38] sm:$0xf]
          %v543 = vld [vmem:[%s527 + $0x3c] sm:$0xf]
          %v544 = vld [vmem:[#allocation12 + $0x7] sm:$0x1]
          %v545 = vlaneseq
          %v546 = vshrl.u32 %v545, 7
          %v547 = vsub.s32 0, %v546
          %v548 = vrot.slane %v544, %v547
          %v565 = vunpack.c.l.b16 %v528
          %v566 = vunpack.c.l.b16 %v529
          %v567 = vunpack.c.l.b16 %v530
          %v568 = vunpack.c.l.b16 %v531
          %v569 = vunpack.c.l.b16 %v532
          %v570 = vunpack.c.l.b16 %v533
          %v571 = vunpack.c.l.b16 %v534
          %v572 = vunpack.c.l.b16 %v535
          %v573 = vunpack.c.l.b16 %v536
          %v574 = vunpack.c.l.b16 %v537
          %v575 = vunpack.c.l.b16 %v538
          %v576 = vunpack.c.l.b16 %v539
          %v577 = vunpack.c.l.b16 %v540
          %v578 = vunpack.c.l.b16 %v541
          %v579 = vunpack.c.l.b16 %v542
          %v580 = vunpack.c.l.b16 %v543
          %v581 = vpack.c.b16 %v566, %v565
          %v582 = vpack.c.b16 %v568, %v567
          %v583 = vpack.c.b16 %v570, %v569
          %v584 = vpack.c.b16 %v572, %v571
          %v585 = vpack.c.b16 %v574, %v573
          %v586 = vpack.c.b16 %v576, %v575
          %v587 = vpack.c.b16 %v578, %v577
          %v588 = vpack.c.b16 %v580, %v579
          %597 = vmatprep.subr.bf16.mxu0 0
          %598 = vmatpush1.bf16.msra.mxu0 %v581
          %599 = vmatprep.subr.bf16.mxu0 0
          %600 = vmatpush1.bf16.msra.mxu0 %v582
          %601 = vmatprep.subr.bf16.mxu0 0
          %602 = vmatpush1.bf16.msra.mxu0 %v583
          %603 = vmatprep.subr.bf16.mxu0 0
          %604 = vmatpush1.bf16.msra.mxu0 %v584
          %605 = vmatprep.subr.bf16.mxu0 0
          %606 = vmatpush1.bf16.msra.mxu0 %v585
          %607 = vmatprep.subr.bf16.mxu0 0
          %608 = vmatpush1.bf16.msra.mxu0 %v586
          %609 = vmatprep.subr.bf16.mxu0 0
          %610 = vmatpush1.bf16.msra.mxu0 %v587
          %611 = vmatprep.subr.bf16.mxu0 0
          %612 = vmatpush1.bf16.msra.mxu0 %v588
          %613 = vmatprep.subr.bf16.mxu0 0
          %614 = vmatpush1.bf16.msra.mxu0 0
          %615 = vmatprep.subr.bf16.mxu0 0
          %616 = vmatpush1.bf16.msra.mxu0 0
          %617 = vmatprep.subr.bf16.mxu0 0
          %618 = vmatpush1.bf16.msra.mxu0 0
          %619 = vmatprep.subr.bf16.mxu0 0
          %620 = vmatpush1.bf16.msra.mxu0 0
          %621 = vmatprep.subr.bf16.mxu0 0
          %622 = vmatpush1.bf16.msra.mxu0 0
          %623 = vmatprep.subr.bf16.mxu0 0
          %624 = vmatpush1.bf16.msra.mxu0 0
          %625 = vmatprep.subr.bf16.mxu0 0
          %626 = vmatpush1.bf16.msra.mxu0 0
          %627 = vmatprep.subr.bf16.mxu0 0
          %628 = vmatpush1.bf16.msra.mxu0 0
          %629 = vmatprep.mubr.bf16.mxu0 0
          %630 = vmatmul.mubr.bf16.gmra.mrb[0].mxu0 %v526
          %v631 = vpop.f32.mrb[0].mxu0
          %v632 = vadd.f32 %v548, %v631
          %v633 = vpop.f32.mrb[0].mxu0
          %v634 = vpop.f32.mrb[0].mxu0
          %v635 = vpop.f32.mrb[0].mxu0
          %636 = vdwg.mxu0
          %v637 = vpack.c.bf16 %v632, %v632
          %638 = vst [vmem:[#allocation2] sm:$0xf] %v637
          %s639 = scalar_lea.vmem [#allocation13], 128
          %v640 = vld [vmem:[%s639] sm:$0xf]
          %v641 = vld [vmem:[%s639 + $0x4] sm:$0xf]
          %v642 = vld [vmem:[%s639 + $0x8] sm:$0xf]
          %v643 = vld [vmem:[%s639 + $0xc] sm:$0xf]
          %v644 = vld [vmem:[%s639 + $0x10] sm:$0xf]
          %v645 = vld [vmem:[%s639 + $0x14] sm:$0xf]
          %v646 = vld [vmem:[%s639 + $0x18] sm:$0xf]
          %v647 = vld [vmem:[%s639 + $0x1c] sm:$0xf]
          %v648 = vld [vmem:[%s639 + $0x20] sm:$0xf]
          %v649 = vld [vmem:[%s639 + $0x24] sm:$0xf]
          %v650 = vld [vmem:[%s639 + $0x28] sm:$0xf]
          %v651 = vld [vmem:[%s639 + $0x2c] sm:$0xf]
          %v652 = vld [vmem:[%s639 + $0x30] sm:$0xf]
          %v653 = vld [vmem:[%s639 + $0x34] sm:$0xf]
          %v654 = vld [vmem:[%s639 + $0x38] sm:$0xf]
          %v655 = vld [vmem:[%s639 + $0x3c] sm:$0xf]
          %v656 = vld [vmem:[#allocation12 + $0x8] sm:$0x1]
          %v657 = vlaneseq
          %v658 = vshrl.u32 %v657, 7
          %v659 = vsub.s32 0, %v658
          %v660 = vrot.slane %v656, %v659
          %v677 = vunpack.c.l.b16 %v640
          %v678 = vunpack.c.l.b16 %v641
          %v679 = vunpack.c.l.b16 %v642
          %v680 = vunpack.c.l.b16 %v643
          %v681 = vunpack.c.l.b16 %v644
          %v682 = vunpack.c.l.b16 %v645
          %v683 = vunpack.c.l.b16 %v646
          %v684 = vunpack.c.l.b16 %v647
          %v685 = vunpack.c.l.b16 %v648
          %v686 = vunpack.c.l.b16 %v649
          %v687 = vunpack.c.l.b16 %v650
          %v688 = vunpack.c.l.b16 %v651
          %v689 = vunpack.c.l.b16 %v652
          %v690 = vunpack.c.l.b16 %v653
          %v691 = vunpack.c.l.b16 %v654
          %v692 = vunpack.c.l.b16 %v655
          %v693 = vpack.c.b16 %v678, %v677
          %v694 = vpack.c.b16 %v680, %v679
          %v695 = vpack.c.b16 %v682, %v681
          %v696 = vpack.c.b16 %v684, %v683
          %v697 = vpack.c.b16 %v686, %v685
          %v698 = vpack.c.b16 %v688, %v687
          %v699 = vpack.c.b16 %v690, %v689
          %v700 = vpack.c.b16 %v692, %v691
          %709 = vmatprep.subr.bf16.mxu0 0
          %710 = vmatpush1.bf16.msra.mxu0 %v693
          %711 = vmatprep.subr.bf16.mxu0 0
          %712 = vmatpush1.bf16.msra.mxu0 %v694
          %713 = vmatprep.subr.bf16.mxu0 0
          %714 = vmatpush1.bf16.msra.mxu0 %v695
          %715 = vmatprep.subr.bf16.mxu0 0
          %716 = vmatpush1.bf16.msra.mxu0 %v696
          %717 = vmatprep.subr.bf16.mxu0 0
          %718 = vmatpush1.bf16.msra.mxu0 %v697
          %719 = vmatprep.subr.bf16.mxu0 0
          %720 = vmatpush1.bf16.msra.mxu0 %v698
          %721 = vmatprep.subr.bf16.mxu0 0
          %722 = vmatpush1.bf16.msra.mxu0 %v699
          %723 = vmatprep.subr.bf16.mxu0 0
          %724 = vmatpush1.bf16.msra.mxu0 %v700
          %725 = vmatprep.subr.bf16.mxu0 0
          %726 = vmatpush1.bf16.msra.mxu0 0
          %727 = vmatprep.subr.bf16.mxu0 0
          %728 = vmatpush1.bf16.msra.mxu0 0
          %729 = vmatprep.subr.bf16.mxu0 0
          %730 = vmatpush1.bf16.msra.mxu0 0
          %731 = vmatprep.subr.bf16.mxu0 0
          %732 = vmatpush1.bf16.msra.mxu0 0
          %733 = vmatprep.subr.bf16.mxu0 0
          %734 = vmatpush1.bf16.msra.mxu0 0
          %735 = vmatprep.subr.bf16.mxu0 0
          %736 = vmatpush1.bf16.msra.mxu0 0
          %737 = vmatprep.subr.bf16.mxu0 0
          %738 = vmatpush1.bf16.msra.mxu0 0
          %739 = vmatprep.subr.bf16.mxu0 0
          %740 = vmatpush1.bf16.msra.mxu0 0
          %741 = vmatprep.mubr.bf16.mxu0 0
          %742 = vmatmul.mubr.bf16.gmra.mrb[0].mxu0 %v526
          %v743 = vpop.f32.mrb[0].mxu0
          %v744 = vadd.f32 %v660, %v743
          %v745 = vpop.f32.mrb[0].mxu0
          %v746 = vpop.f32.mrb[0].mxu0
          %v747 = vpop.f32.mrb[0].mxu0
          %748 = vdwg.mxu0
          %v749 = vpack.c.bf16 %v744, %v744
          %750 = vst [vmem:[#allocation3] sm:$0xf] %v749
          %v751 = vld [vmem:[#allocation9] sm:$0xf]
          %s752 = scalar_lea.vmem [#allocation13], 320
          %v753 = vld [vmem:[%s752] sm:$0xf]
          %v754 = vld [vmem:[%s752 + $0x4] sm:$0xf]
          %v755 = vld [vmem:[%s752 + $0x8] sm:$0xf]
          %v756 = vld [vmem:[%s752 + $0xc] sm:$0xf]
          %v757 = vld [vmem:[%s752 + $0x10] sm:$0xf]
          %v758 = vld [vmem:[%s752 + $0x14] sm:$0xf]
          %v759 = vld [vmem:[%s752 + $0x18] sm:$0xf]
          %v760 = vld [vmem:[%s752 + $0x1c] sm:$0xf]
          %v761 = vld [vmem:[%s752 + $0x20] sm:$0xf]
          %v762 = vld [vmem:[%s752 + $0x24] sm:$0xf]
          %v763 = vld [vmem:[%s752 + $0x28] sm:$0xf]
          %v764 = vld [vmem:[%s752 + $0x2c] sm:$0xf]
          %v765 = vld [vmem:[%s752 + $0x30] sm:$0xf]
          %v766 = vld [vmem:[%s752 + $0x34] sm:$0xf]
          %v767 = vld [vmem:[%s752 + $0x38] sm:$0xf]
          %v768 = vld [vmem:[%s752 + $0x3c] sm:$0xf]
          %v769 = vld [vmem:[#allocation12 + $0xb] sm:$0x1]
          %v770 = vlaneseq
          %v771 = vshrl.u32 %v770, 7
          %v772 = vsub.s32 0, %v771
          %v773 = vrot.slane %v769, %v772
          %v790 = vunpack.c.l.b16 %v753
          %v791 = vunpack.c.l.b16 %v754
          %v792 = vunpack.c.l.b16 %v755
          %v793 = vunpack.c.l.b16 %v756
          %v794 = vunpack.c.l.b16 %v757
          %v795 = vunpack.c.l.b16 %v758
          %v796 = vunpack.c.l.b16 %v759
          %v797 = vunpack.c.l.b16 %v760
          %v798 = vunpack.c.l.b16 %v761
          %v799 = vunpack.c.l.b16 %v762
          %v800 = vunpack.c.l.b16 %v763
          %v801 = vunpack.c.l.b16 %v764
          %v802 = vunpack.c.l.b16 %v765
          %v803 = vunpack.c.l.b16 %v766
          %v804 = vunpack.c.l.b16 %v767
          %v805 = vunpack.c.l.b16 %v768
          %v806 = vpack.c.b16 %v791, %v790
          %v807 = vpack.c.b16 %v793, %v792
          %v808 = vpack.c.b16 %v795, %v794
          %v809 = vpack.c.b16 %v797, %v796
          %v810 = vpack.c.b16 %v799, %v798
          %v811 = vpack.c.b16 %v801, %v800
          %v812 = vpack.c.b16 %v803, %v802
          %v813 = vpack.c.b16 %v805, %v804
          %822 = vmatprep.subr.bf16.mxu0 0
          %823 = vmatpush1.bf16.msra.mxu0 %v806
          %824 = vmatprep.subr.bf16.mxu0 0
          %825 = vmatpush1.bf16.msra.mxu0 %v807
          %826 = vmatprep.subr.bf16.mxu0 0
          %827 = vmatpush1.bf16.msra.mxu0 %v808
          %828 = vmatprep.subr.bf16.mxu0 0
          %829 = vmatpush1.bf16.msra.mxu0 %v809
          %830 = vmatprep.subr.bf16.mxu0 0
          %831 = vmatpush1.bf16.msra.mxu0 %v810
          %832 = vmatprep.subr.bf16.mxu0 0
          %833 = vmatpush1.bf16.msra.mxu0 %v811
          %834 = vmatprep.subr.bf16.mxu0 0
          %835 = vmatpush1.bf16.msra.mxu0 %v812
          %836 = vmatprep.subr.bf16.mxu0 0
          %837 = vmatpush1.bf16.msra.mxu0 %v813
          %838 = vmatprep.subr.bf16.mxu0 0
          %839 = vmatpush1.bf16.msra.mxu0 0
          %840 = vmatprep.subr.bf16.mxu0 0
          %841 = vmatpush1.bf16.msra.mxu0 0
          %842 = vmatprep.subr.bf16.mxu0 0
          %843 = vmatpush1.bf16.msra.mxu0 0
          %844 = vmatprep.subr.bf16.mxu0 0
          %845 = vmatpush1.bf16.msra.mxu0 0
          %846 = vmatprep.subr.bf16.mxu0 0
          %847 = vmatpush1.bf16.msra.mxu0 0
          %848 = vmatprep.subr.bf16.mxu0 0
          %849 = vmatpush1.bf16.msra.mxu0 0
          %850 = vmatprep.subr.bf16.mxu0 0
          %851 = vmatpush1.bf16.msra.mxu0 0
          %852 = vmatprep.subr.bf16.mxu0 0
          %853 = vmatpush1.bf16.msra.mxu0 0
          %854 = vmatprep.mubr.bf16.mxu0 0
          %855 = vmatmul.mubr.bf16.gmra.mrb[0].mxu0 %v751
          %v856 = vpop.f32.mrb[0].mxu0
          %v857 = vadd.f32 %v773, %v856
          %v858 = vpop.f32.mrb[0].mxu0
          %v859 = vpop.f32.mrb[0].mxu0
          %v860 = vpop.f32.mrb[0].mxu0
          %861 = vdwg.mxu0
          %v862 = vpack.c.bf16 %v857, %v857
          %863 = vst [vmem:[#allocation4] sm:$0xf] %v862
          %s864 = scalar_lea.vmem [#allocation13], 384
          %v865 = vld [vmem:[%s864] sm:$0xf]
          %v866 = vld [vmem:[%s864 + $0x4] sm:$0xf]
          %v867 = vld [vmem:[%s864 + $0x8] sm:$0xf]
          %v868 = vld [vmem:[%s864 + $0xc] sm:$0xf]
          %v869 = vld [vmem:[%s864 + $0x10] sm:$0xf]
          %v870 = vld [vmem:[%s864 + $0x14] sm:$0xf]
          %v871 = vld [vmem:[%s864 + $0x18] sm:$0xf]
          %v872 = vld [vmem:[%s864 + $0x1c] sm:$0xf]
          %v873 = vld [vmem:[%s864 + $0x20] sm:$0xf]
          %v874 = vld [vmem:[%s864 + $0x24] sm:$0xf]
          %v875 = vld [vmem:[%s864 + $0x28] sm:$0xf]
          %v876 = vld [vmem:[%s864 + $0x2c] sm:$0xf]
          %v877 = vld [vmem:[%s864 + $0x30] sm:$0xf]
          %v878 = vld [vmem:[%s864 + $0x34] sm:$0xf]
          %v879 = vld [vmem:[%s864 + $0x38] sm:$0xf]
          %v880 = vld [vmem:[%s864 + $0x3c] sm:$0xf]
          %v881 = vld [vmem:[#allocation12 + $0xc] sm:$0x1]
          %v882 = vlaneseq
          %v883 = vshrl.u32 %v882, 7
          %v884 = vsub.s32 0, %v883
          %v885 = vrot.slane %v881, %v884
          %v902 = vunpack.c.l.b16 %v865
          %v903 = vunpack.c.l.b16 %v866
          %v904 = vunpack.c.l.b16 %v867
          %v905 = vunpack.c.l.b16 %v868
          %v906 = vunpack.c.l.b16 %v869
          %v907 = vunpack.c.l.b16 %v870
          %v908 = vunpack.c.l.b16 %v871
          %v909 = vunpack.c.l.b16 %v872
          %v910 = vunpack.c.l.b16 %v873
          %v911 = vunpack.c.l.b16 %v874
          %v912 = vunpack.c.l.b16 %v875
          %v913 = vunpack.c.l.b16 %v876
          %v914 = vunpack.c.l.b16 %v877
          %v915 = vunpack.c.l.b16 %v878
          %v916 = vunpack.c.l.b16 %v879
          %v917 = vunpack.c.l.b16 %v880
          %v918 = vpack.c.b16 %v903, %v902
          %v919 = vpack.c.b16 %v905, %v904
          %v920 = vpack.c.b16 %v907, %v906
          %v921 = vpack.c.b16 %v909, %v908
          %v922 = vpack.c.b16 %v911, %v910
          %v923 = vpack.c.b16 %v913, %v912
          %v924 = vpack.c.b16 %v915, %v914
          %v925 = vpack.c.b16 %v917, %v916
          %934 = vmatprep.subr.bf16.mxu0 0
          %935 = vmatpush1.bf16.msra.mxu0 %v918
          %936 = vmatprep.subr.bf16.mxu0 0
          %937 = vmatpush1.bf16.msra.mxu0 %v919
          %938 = vmatprep.subr.bf16.mxu0 0
          %939 = vmatpush1.bf16.msra.mxu0 %v920
          %940 = vmatprep.subr.bf16.mxu0 0
          %941 = vmatpush1.bf16.msra.mxu0 %v921
          %942 = vmatprep.subr.bf16.mxu0 0
          %943 = vmatpush1.bf16.msra.mxu0 %v922
          %944 = vmatprep.subr.bf16.mxu0 0
          %945 = vmatpush1.bf16.msra.mxu0 %v923
          %946 = vmatprep.subr.bf16.mxu0 0
          %947 = vmatpush1.bf16.msra.mxu0 %v924
          %948 = vmatprep.subr.bf16.mxu0 0
          %949 = vmatpush1.bf16.msra.mxu0 %v925
          %950 = vmatprep.subr.bf16.mxu0 0
          %951 = vmatpush1.bf16.msra.mxu0 0
          %952 = vmatprep.subr.bf16.mxu0 0
          %953 = vmatpush1.bf16.msra.mxu0 0
          %954 = vmatprep.subr.bf16.mxu0 0
          %955 = vmatpush1.bf16.msra.mxu0 0
          %956 = vmatprep.subr.bf16.mxu0 0
          %957 = vmatpush1.bf16.msra.mxu0 0
          %958 = vmatprep.subr.bf16.mxu0 0
          %959 = vmatpush1.bf16.msra.mxu0 0
          %960 = vmatprep.subr.bf16.mxu0 0
          %961 = vmatpush1.bf16.msra.mxu0 0
          %962 = vmatprep.subr.bf16.mxu0 0
          %963 = vmatpush1.bf16.msra.mxu0 0
          %964 = vmatprep.subr.bf16.mxu0 0
          %965 = vmatpush1.bf16.msra.mxu0 0
          %966 = vmatprep.mubr.bf16.mxu0 0
          %967 = vmatmul.mubr.bf16.gmra.mrb[0].mxu0 %v751
          %v968 = vpop.f32.mrb[0].mxu0
          %v969 = vadd.f32 %v885, %v968
          %v970 = vpop.f32.mrb[0].mxu0
          %v971 = vpop.f32.mrb[0].mxu0
          %v972 = vpop.f32.mrb[0].mxu0
          %973 = vdwg.mxu0
          %v974 = vpack.c.bf16 %v969, %v969
          %975 = vst [vmem:[#allocation5] sm:$0xf] %v974
        $region88: #{tpu_custom_call.1} parent=55 // pred_fallthru
          _
        %s976 = smul.u32 %s32, 8
        %s977 = sshra.s32 %s976, 3
        %s978 = sand.u32 %s976, 7
        %s979 = smul.addr %s977, 4
        %s980 = scalar_lea.vmem [#allocation6], %s979
        %v981 = vld [vmem:[%s980] sm:$0xf]
        %v982 = vunpack.c.l.bf16 %v981
        %v983 = vld [vmem:[%s423] sm:$0xf]
        %v984 = vunpack.c.l.bf16 %v983
        %v985 = vld [vmem:[%s487] sm:$0xf]
        %v986 = vunpack.c.l.bf16 %v985
        %v987 = vld [vmem:[#allocation12] sm:$0x1]
        %v988 = vld [vmem:[#allocation12 + $0x1] sm:$0x1]
        %989 = vadd.xlane.f32.xlu0 %v982
        %v990 = vpop.xlane.xlu0 %989
        %v991 = vrcp.pop 128.0
        %v992 = vmul.f32 %v990, %v991
        %v993 = vsub.f32 %v982, %v992
        %v994 = vmul.f32 %v993, %v993
        %995 = vadd.xlane.f32.xlu0 %v994
        %v996 = vpop.xlane.xlu0 %995
        %v997 = vmul.f32 %v996, 0.007874016
        %v998 = vrsqrt.pop %v997
        %v999 = vmul.f32 %v997, %v998
        %vm1000 = vcmp.eq.f32.partialorder %v997, inf
        %v1001 = vsel %vm1000, %v997, %v999
        %vm1002 = vcmp.eq.f32.partialorder %v997, 0.0
        %v1003 = vand.u32 %v997, 2147483648
        %v1004 = vsel %vm1002, %v1003, %v1001
        %v1005 = vadd.f32 %v1004, 1e-06
        %v1006 = vrcp.pop %v1005
        %v1007 = vlaneseq
        %v1008 = vshrl.u32 %v1007, 7
        %v1009 = vsub.s32 0, %v1008
        %v1010 = vrot.slane %v987, %v1009
        %v1011 = vmul.f32 %v1010, %v993
        %v1012 = vmul.f32 %v1011, %v1006
        %v1013 = vlaneseq
        %v1014 = vshrl.u32 %v1013, 7
        %v1015 = vsub.s32 0, %v1014
        %v1016 = vrot.slane %v988, %v1015
        %v1017 = vadd.f32 %v1012, %v1016
        %v1018 = vld [vmem:[#allocation2] sm:$0xf]
        %v1019 = vld [vmem:[#allocation3] sm:$0xf]
        %v1020 = vld [vmem:[#allocation13] sm:$0xf]
        %v1021 = vld [vmem:[#allocation13 + $0x4] sm:$0xf]
        %v1022 = vld [vmem:[#allocation13 + $0x8] sm:$0xf]
        %v1023 = vld [vmem:[#allocation13 + $0xc] sm:$0xf]
        %v1024 = vld [vmem:[#allocation13 + $0x10] sm:$0xf]
        %v1025 = vld [vmem:[#allocation13 + $0x14] sm:$0xf]
        %v1026 = vld [vmem:[#allocation13 + $0x18] sm:$0xf]
        %v1027 = vld [vmem:[#allocation13 + $0x1c] sm:$0xf]
        %v1028 = vld [vmem:[#allocation13 + $0x20] sm:$0xf]
        %v1029 = vld [vmem:[#allocation13 + $0x24] sm:$0xf]
        %v1030 = vld [vmem:[#allocation13 + $0x28] sm:$0xf]
        %v1031 = vld [vmem:[#allocation13 + $0x2c] sm:$0xf]
        %v1032 = vld [vmem:[#allocation13 + $0x30] sm:$0xf]
        %v1033 = vld [vmem:[#allocation13 + $0x34] sm:$0xf]
        %v1034 = vld [vmem:[#allocation13 + $0x38] sm:$0xf]
        %v1035 = vld [vmem:[#allocation13 + $0x3c] sm:$0xf]
        %s1036 = scalar_lea.vmem [#allocation13], 192
        %v1037 = vld [vmem:[%s1036] sm:$0xf]
        %v1038 = vld [vmem:[%s1036 + $0x4] sm:$0xf]
        %v1039 = vld [vmem:[%s1036 + $0x8] sm:$0xf]
        %v1040 = vld [vmem:[%s1036 + $0xc] sm:$0xf]
        %v1041 = vld [vmem:[%s1036 + $0x10] sm:$0xf]
        %v1042 = vld [vmem:[%s1036 + $0x14] sm:$0xf]
        %v1043 = vld [vmem:[%s1036 + $0x18] sm:$0xf]
        %v1044 = vld [vmem:[%s1036 + $0x1c] sm:$0xf]
        %v1045 = vld [vmem:[%s1036 + $0x20] sm:$0xf]
        %v1046 = vld [vmem:[%s1036 + $0x24] sm:$0xf]
        %v1047 = vld [vmem:[%s1036 + $0x28] sm:$0xf]
        %v1048 = vld [vmem:[%s1036 + $0x2c] sm:$0xf]
        %v1049 = vld [vmem:[%s1036 + $0x30] sm:$0xf]
        %v1050 = vld [vmem:[%s1036 + $0x34] sm:$0xf]
        %v1051 = vld [vmem:[%s1036 + $0x38] sm:$0xf]
        %v1052 = vld [vmem:[%s1036 + $0x3c] sm:$0xf]
        %v1053 = vld [vmem:[#allocation12 + $0x6] sm:$0x1]
        %v1054 = vld [vmem:[#allocation12 + $0x9] sm:$0x1]
        %v1055 = vpack.c.bf16 %v1017, %v1017
        %v1056 = vlaneseq
        %v1057 = vshrl.u32 %v1056, 7
        %v1058 = vsub.s32 0, %v1057
        %v1059 = vrot.slane %v1053, %v1058
        %v1076 = vunpack.c.l.b16 %v1020
        %v1077 = vunpack.c.l.b16 %v1021
        %v1078 = vunpack.c.l.b16 %v1022
        %v1079 = vunpack.c.l.b16 %v1023
        %v1080 = vunpack.c.l.b16 %v1024
        %v1081 = vunpack.c.l.b16 %v1025
        %v1082 = vunpack.c.l.b16 %v1026
        %v1083 = vunpack.c.l.b16 %v1027
        %v1084 = vunpack.c.l.b16 %v1028
        %v1085 = vunpack.c.l.b16 %v1029
        %v1086 = vunpack.c.l.b16 %v1030
        %v1087 = vunpack.c.l.b16 %v1031
        %v1088 = vunpack.c.l.b16 %v1032
        %v1089 = vunpack.c.l.b16 %v1033
        %v1090 = vunpack.c.l.b16 %v1034
        %v1091 = vunpack.c.l.b16 %v1035
        %v1092 = vpack.c.b16 %v1077, %v1076
        %v1093 = vpack.c.b16 %v1079, %v1078
        %v1094 = vpack.c.b16 %v1081, %v1080
        %v1095 = vpack.c.b16 %v1083, %v1082
        %v1096 = vpack.c.b16 %v1085, %v1084
        %v1097 = vpack.c.b16 %v1087, %v1086
        %v1098 = vpack.c.b16 %v1089, %v1088
        %v1099 = vpack.c.b16 %v1091, %v1090
        %1108 = vmatprep.subr.bf16.mxu0 0
        %1109 = vmatpush1.bf16.msra.mxu0 %v1092
        %1110 = vmatprep.subr.bf16.mxu0 0
        %1111 = vmatpush1.bf16.msra.mxu0 %v1093
        %1112 = vmatprep.subr.bf16.mxu0 0
        %1113 = vmatpush1.bf16.msra.mxu0 %v1094
        %1114 = vmatprep.subr.bf16.mxu0 0
        %1115 = vmatpush1.bf16.msra.mxu0 %v1095
        %1116 = vmatprep.subr.bf16.mxu0 0
        %1117 = vmatpush1.bf16.msra.mxu0 %v1096
        %1118 = vmatprep.subr.bf16.mxu0 0
        %1119 = vmatpush1.bf16.msra.mxu0 %v1097
        %1120 = vmatprep.subr.bf16.mxu0 0
        %1121 = vmatpush1.bf16.msra.mxu0 %v1098
        %1122 = vmatprep.subr.bf16.mxu0 0
        %1123 = vmatpush1.bf16.msra.mxu0 %v1099
        %1124 = vmatprep.subr.bf16.mxu0 0
        %1125 = vmatpush1.bf16.msra.mxu0 0
        %1126 = vmatprep.subr.bf16.mxu0 0
        %1127 = vmatpush1.bf16.msra.mxu0 0
        %1128 = vmatprep.subr.bf16.mxu0 0
        %1129 = vmatpush1.bf16.msra.mxu0 0
        %1130 = vmatprep.subr.bf16.mxu0 0
        %1131 = vmatpush1.bf16.msra.mxu0 0
        %1132 = vmatprep.subr.bf16.mxu0 0
        %1133 = vmatpush1.bf16.msra.mxu0 0
        %1134 = vmatprep.subr.bf16.mxu0 0
        %1135 = vmatpush1.bf16.msra.mxu0 0
        %1136 = vmatprep.subr.bf16.mxu0 0
        %1137 = vmatpush1.bf16.msra.mxu0 0
        %1138 = vmatprep.subr.bf16.mxu0 0
        %1139 = vmatpush1.bf16.msra.mxu0 0
        %1140 = vmatprep.mubr.bf16.mxu0 0
        %1141 = vmatmul.mubr.bf16.gmra.mrb[0].mxu0 %v1055
        %v1142 = vpop.f32.mrb[0].mxu0
        %v1143 = vadd.f32 %v1059, %v1142
        %v1144 = vpop.f32.mrb[0].mxu0
        %v1145 = vpop.f32.mrb[0].mxu0
        %v1146 = vpop.f32.mrb[0].mxu0
        %1147 = vdwg.mxu0
        %v1148 = vpack.c.bf16 %v1143, %v1143
        %1150 = vrot.lane.b32.xlu0 %v1148, 96
        %v1151 = vpop.permute.xlu0 %1150
        %1152 = vrot.lane.b32.xlu0 %v1148, 64
        %v1153 = vpop.permute.xlu0 %1152
        %1154 = vrot.lane.b32.xlu0 %v1148, 32
        %v1155 = vpop.permute.xlu0 %1154
        %1157 = vrot.lane.b32.xlu0 %v1018, 96
        %v1158 = vpop.permute.xlu0 %1157
        %1159 = vrot.lane.b32.xlu0 %v1018, 64
        %v1160 = vpop.permute.xlu0 %1159
        %1161 = vrot.lane.b32.xlu0 %v1018, 32
        %v1162 = vpop.permute.xlu0 %1161
        %1164 = vrot.lane.b32.xlu0 %v1019, 96
        %v1165 = vpop.permute.xlu0 %1164
        %1166 = vrot.lane.b32.xlu0 %v1019, 64
        %v1167 = vpop.permute.xlu0 %1166
        %1168 = vrot.lane.b32.xlu0 %v1019, 32
        %v1169 = vpop.permute.xlu0 %1168
        %vm1170 = vcmask 261120
        %v1172 = vsel %vm1170, %v1148, 0
        %v1175 = vsel %vm1170, %v1018, 0
        %1177 = vmatprep.subr.bf16.mxu0 0
        %1178 = vmatpush1.bf16.xpose.msra.mxu0 %v1175
        %1179 = vmatprep.subr.bf16.mxu0 0
        %1180 = vmatpush1.bf16.xpose.msra.mxu0 0
        %1181 = vmatprep.subr.bf16.mxu0 0
        %1182 = vmatpush1.bf16.xpose.msra.mxu0 0
        %1183 = vmatprep.subr.bf16.mxu0 0
        %1184 = vmatpush1.bf16.xpose.msra.mxu0 0
        %1185 = vmatprep.subr.bf16.mxu0 0
        %1186 = vmatpush1.bf16.xpose.msra.mxu0 0
        %1187 = vmatprep.subr.bf16.mxu0 0
        %1188 = vmatpush1.bf16.xpose.msra.mxu0 0
        %1189 = vmatprep.subr.bf16.mxu0 0
        %1190 = vmatpush1.bf16.xpose.msra.mxu0 0
        %1191 = vmatprep.subr.bf16.mxu0 0
        %1192 = vmatpush1.bf16.xpose.msra.mxu0 0
        %1193 = vmatprep.subr.bf16.mxu0 0
        %1194 = vmatpush1.bf16.xpose.msra.mxu0 0
        %1195 = vmatprep.subr.bf16.mxu0 0
        %1196 = vmatpush1.bf16.xpose.msra.mxu0 0
        %1197 = vmatprep.subr.bf16.mxu0 0
        %1198 = vmatpush1.bf16.xpose.msra.mxu0 0
        %1199 = vmatprep.subr.bf16.mxu0 0
        %1200 = vmatpush1.bf16.xpose.msra.mxu0 0
        %1201 = vmatprep.subr.bf16.mxu0 0
        %1202 = vmatpush1.bf16.xpose.msra.mxu0 0
        %1203 = vmatprep.subr.bf16.mxu0 0
        %1204 = vmatpush1.bf16.xpose.msra.mxu0 0
        %1205 = vmatprep.subr.bf16.mxu0 0
        %1206 = vmatpush1.bf16.xpose.msra.mxu0 0
        %1207 = vmatprep.subr.bf16.mxu0 0
        %1208 = vmatpush1.bf16.xpose.msra.mxu0 0
        %1209 = vmatprep.mubr.bf16.mxu0 0
        %1210 = vmatmul.mubr.bf16.gmra.mrb[0].mxu0 %v1172
        %v1211 = vpop.f32.mrb[0].mxu0
        %v1212 = vadd.f32 0.0, %v1211
        %v1213 = vpop.f32.mrb[0].mxu0
        %v1214 = vpop.f32.mrb[0].mxu0
        %v1215 = vpop.f32.mrb[0].mxu0
        %1216 = vdwg.mxu0
        %v1218 = vsel %vm1170, %v1151, 0
        %v1221 = vsel %vm1170, %v1158, 0
        %1223 = vmatprep.subr.bf16.mxu0 0
        %1224 = vmatpush1.bf16.xpose.msra.mxu0 %v1221
        %1225 = vmatprep.subr.bf16.mxu0 0
        %1226 = vmatpush1.bf16.xpose.msra.mxu0 0
        %1227 = vmatprep.subr.bf16.mxu0 0
        %1228 = vmatpush1.bf16.xpose.msra.mxu0 0
        %1229 = vmatprep.subr.bf16.mxu0 0
        %1230 = vmatpush1.bf16.xpose.msra.mxu0 0
        %1231 = vmatprep.subr.bf16.mxu0 0
        %1232 = vmatpush1.bf16.xpose.msra.mxu0 0
        %1233 = vmatprep.subr.bf16.mxu0 0
        %1234 = vmatpush1.bf16.xpose.msra.mxu0 0
        %1235 = vmatprep.subr.bf16.mxu0 0
        %1236 = vmatpush1.bf16.xpose.msra.mxu0 0
        %1237 = vmatprep.subr.bf16.mxu0 0
        %1238 = vmatpush1.bf16.xpose.msra.mxu0 0
        %1239 = vmatprep.subr.bf16.mxu0 0
        %1240 = vmatpush1.bf16.xpose.msra.mxu0 0
        %1241 = vmatprep.subr.bf16.mxu0 0
        %1242 = vmatpush1.bf16.xpose.msra.mxu0 0
        %1243 = vmatprep.subr.bf16.mxu0 0
        %1244 = vmatpush1.bf16.xpose.msra.mxu0 0
        %1245 = vmatprep.subr.bf16.mxu0 0
        %1246 = vmatpush1.bf16.xpose.msra.mxu0 0
        %1247 = vmatprep.subr.bf16.mxu0 0
        %1248 = vmatpush1.bf16.xpose.msra.mxu0 0
        %1249 = vmatprep.subr.bf16.mxu0 0
        %1250 = vmatpush1.bf16.xpose.msra.mxu0 0
        %1251 = vmatprep.subr.bf16.mxu0 0
        %1252 = vmatpush1.bf16.xpose.msra.mxu0 0
        %1253 = vmatprep.subr.bf16.mxu0 0
        %1254 = vmatpush1.bf16.xpose.msra.mxu0 0
        %1255 = vmatprep.mubr.bf16.mxu0 0
        %1256 = vmatmul.mubr.bf16.gmra.mrb[0].mxu0 %v1218
        %v1257 = vpop.f32.mrb[0].mxu0
        %v1258 = vadd.f32 0.0, %v1257
        %v1259 = vpop.f32.mrb[0].mxu0
        %v1260 = vpop.f32.mrb[0].mxu0
        %v1261 = vpop.f32.mrb[0].mxu0
        %1262 = vdwg.mxu0
        %v1264 = vsel %vm1170, %v1153, 0
        %v1267 = vsel %vm1170, %v1160, 0
        %1269 = vmatprep.subr.bf16.mxu0 0
        %1270 = vmatpush1.bf16.xpose.msra.mxu0 %v1267
        %1271 = vmatprep.subr.bf16.mxu0 0
        %1272 = vmatpush1.bf16.xpose.msra.mxu0 0
        %1273 = vmatprep.subr.bf16.mxu0 0
        %1274 = vmatpush1.bf16.xpose.msra.mxu0 0
        %1275 = vmatprep.subr.bf16.mxu0 0
        %1276 = vmatpush1.bf16.xpose.msra.mxu0 0
        %1277 = vmatprep.subr.bf16.mxu0 0
        %1278 = vmatpush1.bf16.xpose.msra.mxu0 0
        %1279 = vmatprep.subr.bf16.mxu0 0
        %1280 = vmatpush1.bf16.xpose.msra.mxu0 0
        %1281 = vmatprep.subr.bf16.mxu0 0
        %1282 = vmatpush1.bf16.xpose.msra.mxu0 0
        %1283 = vmatprep.subr.bf16.mxu0 0
        %1284 = vmatpush1.bf16.xpose.msra.mxu0 0
        %1285 = vmatprep.subr.bf16.mxu0 0
        %1286 = vmatpush1.bf16.xpose.msra.mxu0 0
        %1287 = vmatprep.subr.bf16.mxu0 0
        %1288 = vmatpush1.bf16.xpose.msra.mxu0 0
        %1289 = vmatprep.subr.bf16.mxu0 0
        %1290 = vmatpush1.bf16.xpose.msra.mxu0 0
        %1291 = vmatprep.subr.bf16.mxu0 0
        %1292 = vmatpush1.bf16.xpose.msra.mxu0 0
        %1293 = vmatprep.subr.bf16.mxu0 0
        %1294 = vmatpush1.bf16.xpose.msra.mxu0 0
        %1295 = vmatprep.subr.bf16.mxu0 0
        %1296 = vmatpush1.bf16.xpose.msra.mxu0 0
        %1297 = vmatprep.subr.bf16.mxu0 0
        %1298 = vmatpush1.bf16.xpose.msra.mxu0 0
        %1299 = vmatprep.subr.bf16.mxu0 0
        %1300 = vmatpush1.bf16.xpose.msra.mxu0 0
        %1301 = vmatprep.mubr.bf16.mxu0 0
        %1302 = vmatmul.mubr.bf16.gmra.mrb[0].mxu0 %v1264
        %v1303 = vpop.f32.mrb[0].mxu0
        %v1304 = vadd.f32 0.0, %v1303
        %v1305 = vpop.f32.mrb[0].mxu0
        %v1306 = vpop.f32.mrb[0].mxu0
        %v1307 = vpop.f32.mrb[0].mxu0
        %1308 = vdwg.mxu0
        %v1310 = vsel %vm1170, %v1155, 0
        %v1313 = vsel %vm1170, %v1162, 0
        %1315 = vmatprep.subr.bf16.mxu0 0
        %1316 = vmatpush1.bf16.xpose.msra.mxu0 %v1313
        %1317 = vmatprep.subr.bf16.mxu0 0
        %1318 = vmatpush1.bf16.xpose.msra.mxu0 0
        %1319 = vmatprep.subr.bf16.mxu0 0
        %1320 = vmatpush1.bf16.xpose.msra.mxu0 0
        %1321 = vmatprep.subr.bf16.mxu0 0
        %1322 = vmatpush1.bf16.xpose.msra.mxu0 0
        %1323 = vmatprep.subr.bf16.mxu0 0
        %1324 = vmatpush1.bf16.xpose.msra.mxu0 0
        %1325 = vmatprep.subr.bf16.mxu0 0
        %1326 = vmatpush1.bf16.xpose.msra.mxu0 0
        %1327 = vmatprep.subr.bf16.mxu0 0
        %1328 = vmatpush1.bf16.xpose.msra.mxu0 0
        %1329 = vmatprep.subr.bf16.mxu0 0
        %1330 = vmatpush1.bf16.xpose.msra.mxu0 0
        %1331 = vmatprep.subr.bf16.mxu0 0
        %1332 = vmatpush1.bf16.xpose.msra.mxu0 0
        %1333 = vmatprep.subr.bf16.mxu0 0
        %1334 = vmatpush1.bf16.xpose.msra.mxu0 0
        %1335 = vmatprep.subr.bf16.mxu0 0
        %1336 = vmatpush1.bf16.xpose.msra.mxu0 0
        %1337 = vmatprep.subr.bf16.mxu0 0
        %1338 = vmatpush1.bf16.xpose.msra.mxu0 0
        %1339 = vmatprep.subr.bf16.mxu0 0
        %1340 = vmatpush1.bf16.xpose.msra.mxu0 0
        %1341 = vmatprep.subr.bf16.mxu0 0
        %1342 = vmatpush1.bf16.xpose.msra.mxu0 0
        %1343 = vmatprep.subr.bf16.mxu0 0
        %1344 = vmatpush1.bf16.xpose.msra.mxu0 0
        %1345 = vmatprep.subr.bf16.mxu0 0
        %1346 = vmatpush1.bf16.xpose.msra.mxu0 0
        %1347 = vmatprep.mubr.bf16.mxu0 0
        %1348 = vmatmul.mubr.bf16.gmra.mrb[0].mxu0 %v1310
        %v1349 = vpop.f32.mrb[0].mxu0
        %v1350 = vadd.f32 0.0, %v1349
        %v1351 = vpop.f32.mrb[0].mxu0
        %v1352 = vpop.f32.mrb[0].mxu0
        %v1353 = vpop.f32.mrb[0].mxu0
        %1354 = vdwg.mxu0
        %v1355 = vmul.f32 %v1212, 0.17677669
        %v1356 = vmul.f32 %v1258, 0.17677669
        %v1357 = vmul.f32 %v1304, 0.17677669
        %v1358 = vmul.f32 %v1350, 0.17677669
        %v1359 = vadd.f32 %v1355, %v984
        %v1360 = vadd.f32 %v1356, %v984
        %v1361 = vadd.f32 %v1357, %v984
        %v1362 = vadd.f32 %v1358, %v984
        %vm1363 = vcmask 64512
        %v1364 = vsel %vm1363, %v1359, -inf
        %1365 = vmax.xlane.f32.xlu0 %v1364
        %v1366 = vpop.xlane.xlu0 %1365
        %v1367 = vsel %vm1363, %v1360, -inf
        %1368 = vmax.xlane.f32.xlu0 %v1367
        %v1369 = vpop.xlane.xlu0 %1368
        %v1370 = vsel %vm1363, %v1361, -inf
        %1371 = vmax.xlane.f32.xlu0 %v1370
        %v1372 = vpop.xlane.xlu0 %1371
        %v1373 = vsel %vm1363, %v1362, -inf
        %1374 = vmax.xlane.f32.xlu0 %v1373
        %v1375 = vpop.xlane.xlu0 %1374
        %v1376 = vsub.f32 %v1359, %v1366
        %v1377 = vsub.f32 %v1360, %v1369
        %v1378 = vsub.f32 %v1361, %v1372
        %v1379 = vsub.f32 %v1362, %v1375
        %v1380 = vmul.f32 %v1376, 1.442695
        %v1381 = vpow.pop %v1380
        %v1382 = vmul.f32 %v1377, 1.442695
        %v1383 = vpow.pop %v1382
        %v1384 = vmul.f32 %v1378, 1.442695
        %v1385 = vpow.pop %v1384
        %v1386 = vmul.f32 %v1379, 1.442695
        %v1387 = vpow.pop %v1386
        %v1388 = vsel %vm1363, %v1381, 0.0
        %1389 = vadd.xlane.f32.xlu0 %v1388
        %v1390 = vpop.xlane.xlu0 %1389
        %v1391 = vsel %vm1363, %v1383, 0.0
        %1392 = vadd.xlane.f32.xlu0 %v1391
        %v1393 = vpop.xlane.xlu0 %1392
        %v1394 = vsel %vm1363, %v1385, 0.0
        %1395 = vadd.xlane.f32.xlu0 %v1394
        %v1396 = vpop.xlane.xlu0 %1395
        %v1397 = vsel %vm1363, %v1387, 0.0
        %1398 = vadd.xlane.f32.xlu0 %v1397
        %v1399 = vpop.xlane.xlu0 %1398
        %v1400 = vrcp.pop %v1390
        %v1401 = vrcp.pop %v1393
        %v1402 = vrcp.pop %v1396
        %v1403 = vrcp.pop %v1399
        %v1404 = vmul.f32 %v1381, %v1400
        %v1405 = vmul.f32 %v1383, %v1401
        %v1406 = vmul.f32 %v1385, %v1402
        %v1407 = vmul.f32 %v1387, %v1403
        %v1408 = vpack.c.bf16 %v1404, %v1404
        %v1409 = vpack.c.bf16 %v1405, %v1405
        %v1410 = vpack.c.bf16 %v1406, %v1406
        %v1411 = vpack.c.bf16 %v1407, %v1407
        %v1413 = vsel %vm1363, %v1408, 0
        %vm1415 = vcmask 1043456
        %v1417 = vsel %vm1415, %v1019, 0
        %1419 = vmatprep.subr.bf16.mxu0 0
        %1420 = vmatpush1.bf16.msra.mxu0 %v1417
        %1421 = vmatprep.subr.bf16.mxu0 0
        %1422 = vmatpush1.bf16.msra.mxu0 0
        %1423 = vmatprep.subr.bf16.mxu0 0
        %1424 = vmatpush1.bf16.msra.mxu0 0
        %1425 = vmatprep.subr.bf16.mxu0 0
        %1426 = vmatpush1.bf16.msra.mxu0 0
        %1427 = vmatprep.subr.bf16.mxu0 0
        %1428 = vmatpush1.bf16.msra.mxu0 0
        %1429 = vmatprep.subr.bf16.mxu0 0
        %1430 = vmatpush1.bf16.msra.mxu0 0
        %1431 = vmatprep.subr.bf16.mxu0 0
        %1432 = vmatpush1.bf16.msra.mxu0 0
        %1433 = vmatprep.subr.bf16.mxu0 0
        %1434 = vmatpush1.bf16.msra.mxu0 0
        %1435 = vmatprep.subr.bf16.mxu0 0
        %1436 = vmatpush1.bf16.msra.mxu0 0
        %1437 = vmatprep.subr.bf16.mxu0 0
        %1438 = vmatpush1.bf16.msra.mxu0 0
        %1439 = vmatprep.subr.bf16.mxu0 0
        %1440 = vmatpush1.bf16.msra.mxu0 0
        %1441 = vmatprep.subr.bf16.mxu0 0
        %1442 = vmatpush1.bf16.msra.mxu0 0
        %1443 = vmatprep.subr.bf16.mxu0 0
        %1444 = vmatpush1.bf16.msra.mxu0 0
        %1445 = vmatprep.subr.bf16.mxu0 0
        %1446 = vmatpush1.bf16.msra.mxu0 0
        %1447 = vmatprep.subr.bf16.mxu0 0
        %1448 = vmatpush1.bf16.msra.mxu0 0
        %1449 = vmatprep.subr.bf16.mxu0 0
        %1450 = vmatpush1.bf16.msra.mxu0 0
        %1451 = vmatprep.mubr.bf16.mxu0 0
        %1452 = vmatmul.mubr.bf16.gmra.mrb[0].mxu0 %v1413
        %v1453 = vpop.f32.mrb[0].mxu0
        %v1454 = vadd.f32 0.0, %v1453
        %v1455 = vpop.f32.mrb[0].mxu0
        %v1456 = vpop.f32.mrb[0].mxu0
        %v1457 = vpop.f32.mrb[0].mxu0
        %1458 = vdwg.mxu0
        %v1460 = vsel %vm1363, %v1409, 0
        %v1463 = vsel %vm1415, %v1165, 0
        %1465 = vmatprep.subr.bf16.mxu0 0
        %1466 = vmatpush1.bf16.msra.mxu0 %v1463
        %1467 = vmatprep.subr.bf16.mxu0 0
        %1468 = vmatpush1.bf16.msra.mxu0 0
        %1469 = vmatprep.subr.bf16.mxu0 0
        %1470 = vmatpush1.bf16.msra.mxu0 0
        %1471 = vmatprep.subr.bf16.mxu0 0
        %1472 = vmatpush1.bf16.msra.mxu0 0
        %1473 = vmatprep.subr.bf16.mxu0 0
        %1474 = vmatpush1.bf16.msra.mxu0 0
        %1475 = vmatprep.subr.bf16.mxu0 0
        %1476 = vmatpush1.bf16.msra.mxu0 0
        %1477 = vmatprep.subr.bf16.mxu0 0
        %1478 = vmatpush1.bf16.msra.mxu0 0
        %1479 = vmatprep.subr.bf16.mxu0 0
        %1480 = vmatpush1.bf16.msra.mxu0 0
        %1481 = vmatprep.subr.bf16.mxu0 0
        %1482 = vmatpush1.bf16.msra.mxu0 0
        %1483 = vmatprep.subr.bf16.mxu0 0
        %1484 = vmatpush1.bf16.msra.mxu0 0
        %1485 = vmatprep.subr.bf16.mxu0 0
        %1486 = vmatpush1.bf16.msra.mxu0 0
        %1487 = vmatprep.subr.bf16.mxu0 0
        %1488 = vmatpush1.bf16.msra.mxu0 0
        %1489 = vmatprep.subr.bf16.mxu0 0
        %1490 = vmatpush1.bf16.msra.mxu0 0
        %1491 = vmatprep.subr.bf16.mxu0 0
        %1492 = vmatpush1.bf16.msra.mxu0 0
        %1493 = vmatprep.subr.bf16.mxu0 0
        %1494 = vmatpush1.bf16.msra.mxu0 0
        %1495 = vmatprep.subr.bf16.mxu0 0
        %1496 = vmatpush1.bf16.msra.mxu0 0
        %1497 = vmatprep.mubr.bf16.mxu0 0
        %1498 = vmatmul.mubr.bf16.gmra.mrb[0].mxu0 %v1460
        %v1499 = vpop.f32.mrb[0].mxu0
        %v1500 = vadd.f32 0.0, %v1499
        %v1501 = vpop.f32.mrb[0].mxu0
        %v1502 = vpop.f32.mrb[0].mxu0
        %v1503 = vpop.f32.mrb[0].mxu0
        %1504 = vdwg.mxu0
        %v1506 = vsel %vm1363, %v1410, 0
        %v1509 = vsel %vm1415, %v1167, 0
        %1511 = vmatprep.subr.bf16.mxu0 0
        %1512 = vmatpush1.bf16.msra.mxu0 %v1509
        %1513 = vmatprep.subr.bf16.mxu0 0
        %1514 = vmatpush1.bf16.msra.mxu0 0
        %1515 = vmatprep.subr.bf16.mxu0 0
        %1516 = vmatpush1.bf16.msra.mxu0 0
        %1517 = vmatprep.subr.bf16.mxu0 0
        %1518 = vmatpush1.bf16.msra.mxu0 0
        %1519 = vmatprep.subr.bf16.mxu0 0
        %1520 = vmatpush1.bf16.msra.mxu0 0
        %1521 = vmatprep.subr.bf16.mxu0 0
        %1522 = vmatpush1.bf16.msra.mxu0 0
        %1523 = vmatprep.subr.bf16.mxu0 0
        %1524 = vmatpush1.bf16.msra.mxu0 0
        %1525 = vmatprep.subr.bf16.mxu0 0
        %1526 = vmatpush1.bf16.msra.mxu0 0
        %1527 = vmatprep.subr.bf16.mxu0 0
        %1528 = vmatpush1.bf16.msra.mxu0 0
        %1529 = vmatprep.subr.bf16.mxu0 0
        %1530 = vmatpush1.bf16.msra.mxu0 0
        %1531 = vmatprep.subr.bf16.mxu0 0
        %1532 = vmatpush1.bf16.msra.mxu0 0
        %1533 = vmatprep.subr.bf16.mxu0 0
        %1534 = vmatpush1.bf16.msra.mxu0 0
        %1535 = vmatprep.subr.bf16.mxu0 0
        %1536 = vmatpush1.bf16.msra.mxu0 0
        %1537 = vmatprep.subr.bf16.mxu0 0
        %1538 = vmatpush1.bf16.msra.mxu0 0
        %1539 = vmatprep.subr.bf16.mxu0 0
        %1540 = vmatpush1.bf16.msra.mxu0 0
        %1541 = vmatprep.subr.bf16.mxu0 0
        %1542 = vmatpush1.bf16.msra.mxu0 0
        %1543 = vmatprep.mubr.bf16.mxu0 0
        %1544 = vmatmul.mubr.bf16.gmra.mrb[0].mxu0 %v1506
        %v1545 = vpop.f32.mrb[0].mxu0
        %v1546 = vadd.f32 0.0, %v1545
        %v1547 = vpop.f32.mrb[0].mxu0
        %v1548 = vpop.f32.mrb[0].mxu0
        %v1549 = vpop.f32.mrb[0].mxu0
        %1550 = vdwg.mxu0
        %v1552 = vsel %vm1363, %v1411, 0
        %v1555 = vsel %vm1415, %v1169, 0
        %1557 = vmatprep.subr.bf16.mxu0 0
        %1558 = vmatpush1.bf16.msra.mxu0 %v1555
        %1559 = vmatprep.subr.bf16.mxu0 0
        %1560 = vmatpush1.bf16.msra.mxu0 0
        %1561 = vmatprep.subr.bf16.mxu0 0
        %1562 = vmatpush1.bf16.msra.mxu0 0
        %1563 = vmatprep.subr.bf16.mxu0 0
        %1564 = vmatpush1.bf16.msra.mxu0 0
        %1565 = vmatprep.subr.bf16.mxu0 0
        %1566 = vmatpush1.bf16.msra.mxu0 0
        %1567 = vmatprep.subr.bf16.mxu0 0
        %1568 = vmatpush1.bf16.msra.mxu0 0
        %1569 = vmatprep.subr.bf16.mxu0 0
        %1570 = vmatpush1.bf16.msra.mxu0 0
        %1571 = vmatprep.subr.bf16.mxu0 0
        %1572 = vmatpush1.bf16.msra.mxu0 0
        %1573 = vmatprep.subr.bf16.mxu0 0
        %1574 = vmatpush1.bf16.msra.mxu0 0
        %1575 = vmatprep.subr.bf16.mxu0 0
        %1576 = vmatpush1.bf16.msra.mxu0 0
        %1577 = vmatprep.subr.bf16.mxu0 0
        %1578 = vmatpush1.bf16.msra.mxu0 0
        %1579 = vmatprep.subr.bf16.mxu0 0
        %1580 = vmatpush1.bf16.msra.mxu0 0
        %1581 = vmatprep.subr.bf16.mxu0 0
        %1582 = vmatpush1.bf16.msra.mxu0 0
        %1583 = vmatprep.subr.bf16.mxu0 0
        %1584 = vmatpush1.bf16.msra.mxu0 0
        %1585 = vmatprep.subr.bf16.mxu0 0
        %1586 = vmatpush1.bf16.msra.mxu0 0
        %1587 = vmatprep.subr.bf16.mxu0 0
        %1588 = vmatpush1.bf16.msra.mxu0 0
        %1589 = vmatprep.mubr.bf16.mxu0 0
        %1590 = vmatmul.mubr.bf16.gmra.mrb[0].mxu0 %v1552
        %v1591 = vpop.f32.mrb[0].mxu0
        %v1592 = vadd.f32 0.0, %v1591
        %v1593 = vpop.f32.mrb[0].mxu0
        %v1594 = vpop.f32.mrb[0].mxu0
        %v1595 = vpop.f32.mrb[0].mxu0
        %1596 = vdwg.mxu0
        %1598 = vrot.lane.b32.xlu0 %v1500, 32
        %v1599 = vpop.permute.xlu0 %1598
        %1602 = vrot.lane.b32.xlu0 %v1546, 64
        %v1603 = vpop.permute.xlu0 %1602
        %1606 = vrot.lane.b32.xlu0 %v1592, 96
        %v1607 = vpop.permute.xlu0 %1606
        %v1609 = vsel %vm1170, %v1454, %v1599
        %vm1610 = vcmask 523264
        %v1611 = vsel %vm1610, %v1609, %v1603
        %vm1612 = vcmask 785408
        %v1613 = vsel %vm1612, %v1611, %v1607
        %v1614 = vpack.c.bf16 %v1613, %v1613
        %v1615 = vlaneseq
        %v1616 = vshrl.u32 %v1615, 7
        %v1617 = vsub.s32 0, %v1616
        %v1618 = vrot.slane %v1054, %v1617
        %v1635 = vunpack.c.l.b16 %v1037
        %v1636 = vunpack.c.l.b16 %v1038
        %v1637 = vunpack.c.l.b16 %v1039
        %v1638 = vunpack.c.l.b16 %v1040
        %v1639 = vunpack.c.l.b16 %v1041
        %v1640 = vunpack.c.l.b16 %v1042
        %v1641 = vunpack.c.l.b16 %v1043
        %v1642 = vunpack.c.l.b16 %v1044
        %v1643 = vunpack.c.l.b16 %v1045
        %v1644 = vunpack.c.l.b16 %v1046
        %v1645 = vunpack.c.l.b16 %v1047
        %v1646 = vunpack.c.l.b16 %v1048
        %v1647 = vunpack.c.l.b16 %v1049
        %v1648 = vunpack.c.l.b16 %v1050
        %v1649 = vunpack.c.l.b16 %v1051
        %v1650 = vunpack.c.l.b16 %v1052
        %v1651 = vpack.c.b16 %v1636, %v1635
        %v1652 = vpack.c.b16 %v1638, %v1637
        %v1653 = vpack.c.b16 %v1640, %v1639
        %v1654 = vpack.c.b16 %v1642, %v1641
        %v1655 = vpack.c.b16 %v1644, %v1643
        %v1656 = vpack.c.b16 %v1646, %v1645
        %v1657 = vpack.c.b16 %v1648, %v1647
        %v1658 = vpack.c.b16 %v1650, %v1649
        %1667 = vmatprep.subr.bf16.mxu0 0
        %1668 = vmatpush1.bf16.msra.mxu0 %v1651
        %1669 = vmatprep.subr.bf16.mxu0 0
        %1670 = vmatpush1.bf16.msra.mxu0 %v1652
        %1671 = vmatprep.subr.bf16.mxu0 0
        %1672 = vmatpush1.bf16.msra.mxu0 %v1653
        %1673 = vmatprep.subr.bf16.mxu0 0
        %1674 = vmatpush1.bf16.msra.mxu0 %v1654
        %1675 = vmatprep.subr.bf16.mxu0 0
        %1676 = vmatpush1.bf16.msra.mxu0 %v1655
        %1677 = vmatprep.subr.bf16.mxu0 0
        %1678 = vmatpush1.bf16.msra.mxu0 %v1656
        %1679 = vmatprep.subr.bf16.mxu0 0
        %1680 = vmatpush1.bf16.msra.mxu0 %v1657
        %1681 = vmatprep.subr.bf16.mxu0 0
        %1682 = vmatpush1.bf16.msra.mxu0 %v1658
        %1683 = vmatprep.subr.bf16.mxu0 0
        %1684 = vmatpush1.bf16.msra.mxu0 0
        %1685 = vmatprep.subr.bf16.mxu0 0
        %1686 = vmatpush1.bf16.msra.mxu0 0
        %1687 = vmatprep.subr.bf16.mxu0 0
        %1688 = vmatpush1.bf16.msra.mxu0 0
        %1689 = vmatprep.subr.bf16.mxu0 0
        %1690 = vmatpush1.bf16.msra.mxu0 0
        %1691 = vmatprep.subr.bf16.mxu0 0
        %1692 = vmatpush1.bf16.msra.mxu0 0
        %1693 = vmatprep.subr.bf16.mxu0 0
        %1694 = vmatpush1.bf16.msra.mxu0 0
        %1695 = vmatprep.subr.bf16.mxu0 0
        %1696 = vmatpush1.bf16.msra.mxu0 0
        %1697 = vmatprep.subr.bf16.mxu0 0
        %1698 = vmatpush1.bf16.msra.mxu0 0
        %1699 = vmatprep.mubr.bf16.mxu0 0
        %1700 = vmatmul.mubr.bf16.gmra.mrb[0].mxu0 %v1614
        %v1701 = vpop.f32.mrb[0].mxu0
        %v1702 = vadd.f32 %v1618, %v1701
        %v1703 = vpop.f32.mrb[0].mxu0
        %v1704 = vpop.f32.mrb[0].mxu0
        %v1705 = vpop.f32.mrb[0].mxu0
        %1706 = vdwg.mxu0
        %v1707 = vadd.f32 %v982, %v1702
        %v1708 = vld [vmem:[#allocation12 + $0x2] sm:$0x1]
        %v1709 = vld [vmem:[#allocation12 + $0x3] sm:$0x1]
        %1710 = vadd.xlane.f32.xlu0 %v1707
        %v1711 = vpop.xlane.xlu0 %1710
        %v1712 = vmul.f32 %v1711, %v991
        %v1713 = vsub.f32 %v1707, %v1712
        %v1714 = vmul.f32 %v1713, %v1713
        %1715 = vadd.xlane.f32.xlu0 %v1714
        %v1716 = vpop.xlane.xlu0 %1715
        %v1717 = vmul.f32 %v1716, 0.007874016
        %v1718 = vrsqrt.pop %v1717
        %v1719 = vmul.f32 %v1717, %v1718
        %vm1720 = vcmp.eq.f32.partialorder %v1717, inf
        %v1721 = vsel %vm1720, %v1717, %v1719
        %vm1722 = vcmp.eq.f32.partialorder %v1717, 0.0
        %v1723 = vand.u32 %v1717, 2147483648
        %v1724 = vsel %vm1722, %v1723, %v1721
        %v1725 = vadd.f32 %v1724, 1e-06
        %v1726 = vrcp.pop %v1725
        %v1727 = vlaneseq
        %v1728 = vshrl.u32 %v1727, 7
        %v1729 = vsub.s32 0, %v1728
        %v1730 = vrot.slane %v1708, %v1729
        %v1731 = vmul.f32 %v1730, %v1713
        %v1732 = vmul.f32 %v1731, %v1726
        %v1733 = vlaneseq
        %v1734 = vshrl.u32 %v1733, 7
        %v1735 = vsub.s32 0, %v1734
        %v1736 = vrot.slane %v1709, %v1735
        %v1737 = vadd.f32 %v1732, %v1736
        %v1738 = vld [vmem:[#allocation4] sm:$0xf]
        %v1739 = vld [vmem:[#allocation5] sm:$0xf]
        %s1740 = scalar_lea.vmem [#allocation13], 256
        %v1741 = vld [vmem:[%s1740] sm:$0xf]
        %v1742 = vld [vmem:[%s1740 + $0x4] sm:$0xf]
        %v1743 = vld [vmem:[%s1740 + $0x8] sm:$0xf]
        %v1744 = vld [vmem:[%s1740 + $0xc] sm:$0xf]
        %v1745 = vld [vmem:[%s1740 + $0x10] sm:$0xf]
        %v1746 = vld [vmem:[%s1740 + $0x14] sm:$0xf]
        %v1747 = vld [vmem:[%s1740 + $0x18] sm:$0xf]
        %v1748 = vld [vmem:[%s1740 + $0x1c] sm:$0xf]
        %v1749 = vld [vmem:[%s1740 + $0x20] sm:$0xf]
        %v1750 = vld [vmem:[%s1740 + $0x24] sm:$0xf]
        %v1751 = vld [vmem:[%s1740 + $0x28] sm:$0xf]
        %v1752 = vld [vmem:[%s1740 + $0x2c] sm:$0xf]
        %v1753 = vld [vmem:[%s1740 + $0x30] sm:$0xf]
        %v1754 = vld [vmem:[%s1740 + $0x34] sm:$0xf]
        %v1755 = vld [vmem:[%s1740 + $0x38] sm:$0xf]
        %v1756 = vld [vmem:[%s1740 + $0x3c] sm:$0xf]
        %s1757 = scalar_lea.vmem [#allocation13], 448
        %v1758 = vld [vmem:[%s1757] sm:$0xf]
        %v1759 = vld [vmem:[%s1757 + $0x4] sm:$0xf]
        %v1760 = vld [vmem:[%s1757 + $0x8] sm:$0xf]
        %v1761 = vld [vmem:[%s1757 + $0xc] sm:$0xf]
        %v1762 = vld [vmem:[%s1757 + $0x10] sm:$0xf]
        %v1763 = vld [vmem:[%s1757 + $0x14] sm:$0xf]
        %v1764 = vld [vmem:[%s1757 + $0x18] sm:$0xf]
        %v1765 = vld [vmem:[%s1757 + $0x1c] sm:$0xf]
        %v1766 = vld [vmem:[%s1757 + $0x20] sm:$0xf]
        %v1767 = vld [vmem:[%s1757 + $0x24] sm:$0xf]
        %v1768 = vld [vmem:[%s1757 + $0x28] sm:$0xf]
        %v1769 = vld [vmem:[%s1757 + $0x2c] sm:$0xf]
        %v1770 = vld [vmem:[%s1757 + $0x30] sm:$0xf]
        %v1771 = vld [vmem:[%s1757 + $0x34] sm:$0xf]
        %v1772 = vld [vmem:[%s1757 + $0x38] sm:$0xf]
        %v1773 = vld [vmem:[%s1757 + $0x3c] sm:$0xf]
        %v1774 = vld [vmem:[#allocation12 + $0xa] sm:$0x1]
        %v1775 = vld [vmem:[#allocation12 + $0xd] sm:$0x1]
        %v1776 = vpack.c.bf16 %v1737, %v1737
        %v1777 = vlaneseq
        %v1778 = vshrl.u32 %v1777, 7
        %v1779 = vsub.s32 0, %v1778
        %v1780 = vrot.slane %v1774, %v1779
        %v1797 = vunpack.c.l.b16 %v1741
        %v1798 = vunpack.c.l.b16 %v1742
        %v1799 = vunpack.c.l.b16 %v1743
        %v1800 = vunpack.c.l.b16 %v1744
        %v1801 = vunpack.c.l.b16 %v1745
        %v1802 = vunpack.c.l.b16 %v1746
        %v1803 = vunpack.c.l.b16 %v1747
        %v1804 = vunpack.c.l.b16 %v1748
        %v1805 = vunpack.c.l.b16 %v1749
        %v1806 = vunpack.c.l.b16 %v1750
        %v1807 = vunpack.c.l.b16 %v1751
        %v1808 = vunpack.c.l.b16 %v1752
        %v1809 = vunpack.c.l.b16 %v1753
        %v1810 = vunpack.c.l.b16 %v1754
        %v1811 = vunpack.c.l.b16 %v1755
        %v1812 = vunpack.c.l.b16 %v1756
        %v1813 = vpack.c.b16 %v1798, %v1797
        %v1814 = vpack.c.b16 %v1800, %v1799
        %v1815 = vpack.c.b16 %v1802, %v1801
        %v1816 = vpack.c.b16 %v1804, %v1803
        %v1817 = vpack.c.b16 %v1806, %v1805
        %v1818 = vpack.c.b16 %v1808, %v1807
        %v1819 = vpack.c.b16 %v1810, %v1809
        %v1820 = vpack.c.b16 %v1812, %v1811
        %1829 = vmatprep.subr.bf16.mxu0 0
        %1830 = vmatpush1.bf16.msra.mxu0 %v1813
        %1831 = vmatprep.subr.bf16.mxu0 0
        %1832 = vmatpush1.bf16.msra.mxu0 %v1814
        %1833 = vmatprep.subr.bf16.mxu0 0
        %1834 = vmatpush1.bf16.msra.mxu0 %v1815
        %1835 = vmatprep.subr.bf16.mxu0 0
        %1836 = vmatpush1.bf16.msra.mxu0 %v1816
        %1837 = vmatprep.subr.bf16.mxu0 0
        %1838 = vmatpush1.bf16.msra.mxu0 %v1817
        %1839 = vmatprep.subr.bf16.mxu0 0
        %1840 = vmatpush1.bf16.msra.mxu0 %v1818
        %1841 = vmatprep.subr.bf16.mxu0 0
        %1842 = vmatpush1.bf16.msra.mxu0 %v1819
        %1843 = vmatprep.subr.bf16.mxu0 0
        %1844 = vmatpush1.bf16.msra.mxu0 %v1820
        %1845 = vmatprep.subr.bf16.mxu0 0
        %1846 = vmatpush1.bf16.msra.mxu0 0
        %1847 = vmatprep.subr.bf16.mxu0 0
        %1848 = vmatpush1.bf16.msra.mxu0 0
        %1849 = vmatprep.subr.bf16.mxu0 0
        %1850 = vmatpush1.bf16.msra.mxu0 0
        %1851 = vmatprep.subr.bf16.mxu0 0
        %1852 = vmatpush1.bf16.msra.mxu0 0
        %1853 = vmatprep.subr.bf16.mxu0 0
        %1854 = vmatpush1.bf16.msra.mxu0 0
        %1855 = vmatprep.subr.bf16.mxu0 0
        %1856 = vmatpush1.bf16.msra.mxu0 0
        %1857 = vmatprep.subr.bf16.mxu0 0
        %1858 = vmatpush1.bf16.msra.mxu0 0
        %1859 = vmatprep.subr.bf16.mxu0 0
        %1860 = vmatpush1.bf16.msra.mxu0 0
        %1861 = vmatprep.mubr.bf16.mxu0 0
        %1862 = vmatmul.mubr.bf16.gmra.mrb[0].mxu0 %v1776
        %v1863 = vpop.f32.mrb[0].mxu0
        %v1864 = vadd.f32 %v1780, %v1863
        %v1865 = vpop.f32.mrb[0].mxu0
        %v1866 = vpop.f32.mrb[0].mxu0
        %v1867 = vpop.f32.mrb[0].mxu0
        %1868 = vdwg.mxu0
        %v1869 = vpack.c.bf16 %v1864, %v1864
        %1871 = vrot.lane.b32.xlu0 %v1869, 96
        %v1872 = vpop.permute.xlu0 %1871
        %1873 = vrot.lane.b32.xlu0 %v1869, 64
        %v1874 = vpop.permute.xlu0 %1873
        %1875 = vrot.lane.b32.xlu0 %v1869, 32
        %v1876 = vpop.permute.xlu0 %1875
        %1878 = vrot.lane.b32.xlu0 %v1738, 96
        %v1879 = vpop.permute.xlu0 %1878
        %1880 = vrot.lane.b32.xlu0 %v1738, 64
        %v1881 = vpop.permute.xlu0 %1880
        %1882 = vrot.lane.b32.xlu0 %v1738, 32
        %v1883 = vpop.permute.xlu0 %1882
        %1885 = vrot.lane.b32.xlu0 %v1739, 96
        %v1886 = vpop.permute.xlu0 %1885
        %1887 = vrot.lane.b32.xlu0 %v1739, 64
        %v1888 = vpop.permute.xlu0 %1887
        %1889 = vrot.lane.b32.xlu0 %v1739, 32
        %v1890 = vpop.permute.xlu0 %1889
        %v1892 = vsel %vm1170, %v1869, 0
        %v1895 = vsel %vm1170, %v1738, 0
        %1897 = vmatprep.subr.bf16.mxu0 0
        %1898 = vmatpush1.bf16.xpose.msra.mxu0 %v1895
        %1899 = vmatprep.subr.bf16.mxu0 0
        %1900 = vmatpush1.bf16.xpose.msra.mxu0 0
        %1901 = vmatprep.subr.bf16.mxu0 0
        %1902 = vmatpush1.bf16.xpose.msra.mxu0 0
        %1903 = vmatprep.subr.bf16.mxu0 0
        %1904 = vmatpush1.bf16.xpose.msra.mxu0 0
        %1905 = vmatprep.subr.bf16.mxu0 0
        %1906 = vmatpush1.bf16.xpose.msra.mxu0 0
        %1907 = vmatprep.subr.bf16.mxu0 0
        %1908 = vmatpush1.bf16.xpose.msra.mxu0 0
        %1909 = vmatprep.subr.bf16.mxu0 0
        %1910 = vmatpush1.bf16.xpose.msra.mxu0 0
        %1911 = vmatprep.subr.bf16.mxu0 0
        %1912 = vmatpush1.bf16.xpose.msra.mxu0 0
        %1913 = vmatprep.subr.bf16.mxu0 0
        %1914 = vmatpush1.bf16.xpose.msra.mxu0 0
        %1915 = vmatprep.subr.bf16.mxu0 0
        %1916 = vmatpush1.bf16.xpose.msra.mxu0 0
        %1917 = vmatprep.subr.bf16.mxu0 0
        %1918 = vmatpush1.bf16.xpose.msra.mxu0 0
        %1919 = vmatprep.subr.bf16.mxu0 0
        %1920 = vmatpush1.bf16.xpose.msra.mxu0 0
        %1921 = vmatprep.subr.bf16.mxu0 0
        %1922 = vmatpush1.bf16.xpose.msra.mxu0 0
        %1923 = vmatprep.subr.bf16.mxu0 0
        %1924 = vmatpush1.bf16.xpose.msra.mxu0 0
        %1925 = vmatprep.subr.bf16.mxu0 0
        %1926 = vmatpush1.bf16.xpose.msra.mxu0 0
        %1927 = vmatprep.subr.bf16.mxu0 0
        %1928 = vmatpush1.bf16.xpose.msra.mxu0 0
        %1929 = vmatprep.mubr.bf16.mxu0 0
        %1930 = vmatmul.mubr.bf16.gmra.mrb[0].mxu0 %v1892
        %v1931 = vpop.f32.mrb[0].mxu0
        %v1932 = vadd.f32 0.0, %v1931
        %v1933 = vpop.f32.mrb[0].mxu0
        %v1934 = vpop.f32.mrb[0].mxu0
        %v1935 = vpop.f32.mrb[0].mxu0
        %1936 = vdwg.mxu0
        %v1938 = vsel %vm1170, %v1872, 0
        %v1941 = vsel %vm1170, %v1879, 0
        %1943 = vmatprep.subr.bf16.mxu0 0
        %1944 = vmatpush1.bf16.xpose.msra.mxu0 %v1941
        %1945 = vmatprep.subr.bf16.mxu0 0
        %1946 = vmatpush1.bf16.xpose.msra.mxu0 0
        %1947 = vmatprep.subr.bf16.mxu0 0
        %1948 = vmatpush1.bf16.xpose.msra.mxu0 0
        %1949 = vmatprep.subr.bf16.mxu0 0
        %1950 = vmatpush1.bf16.xpose.msra.mxu0 0
        %1951 = vmatprep.subr.bf16.mxu0 0
        %1952 = vmatpush1.bf16.xpose.msra.mxu0 0
        %1953 = vmatprep.subr.bf16.mxu0 0
        %1954 = vmatpush1.bf16.xpose.msra.mxu0 0
        %1955 = vmatprep.subr.bf16.mxu0 0
        %1956 = vmatpush1.bf16.xpose.msra.mxu0 0
        %1957 = vmatprep.subr.bf16.mxu0 0
        %1958 = vmatpush1.bf16.xpose.msra.mxu0 0
        %1959 = vmatprep.subr.bf16.mxu0 0
        %1960 = vmatpush1.bf16.xpose.msra.mxu0 0
        %1961 = vmatprep.subr.bf16.mxu0 0
        %1962 = vmatpush1.bf16.xpose.msra.mxu0 0
        %1963 = vmatprep.subr.bf16.mxu0 0
        %1964 = vmatpush1.bf16.xpose.msra.mxu0 0
        %1965 = vmatprep.subr.bf16.mxu0 0
        %1966 = vmatpush1.bf16.xpose.msra.mxu0 0
        %1967 = vmatprep.subr.bf16.mxu0 0
        %1968 = vmatpush1.bf16.xpose.msra.mxu0 0
        %1969 = vmatprep.subr.bf16.mxu0 0
        %1970 = vmatpush1.bf16.xpose.msra.mxu0 0
        %1971 = vmatprep.subr.bf16.mxu0 0
        %1972 = vmatpush1.bf16.xpose.msra.mxu0 0
        %1973 = vmatprep.subr.bf16.mxu0 0
        %1974 = vmatpush1.bf16.xpose.msra.mxu0 0
        %1975 = vmatprep.mubr.bf16.mxu0 0
        %1976 = vmatmul.mubr.bf16.gmra.mrb[0].mxu0 %v1938
        %v1977 = vpop.f32.mrb[0].mxu0
        %v1978 = vadd.f32 0.0, %v1977
        %v1979 = vpop.f32.mrb[0].mxu0
        %v1980 = vpop.f32.mrb[0].mxu0
        %v1981 = vpop.f32.mrb[0].mxu0
        %1982 = vdwg.mxu0
        %v1984 = vsel %vm1170, %v1874, 0
        %v1987 = vsel %vm1170, %v1881, 0
        %1989 = vmatprep.subr.bf16.mxu0 0
        %1990 = vmatpush1.bf16.xpose.msra.mxu0 %v1987
        %1991 = vmatprep.subr.bf16.mxu0 0
        %1992 = vmatpush1.bf16.xpose.msra.mxu0 0
        %1993 = vmatprep.subr.bf16.mxu0 0
        %1994 = vmatpush1.bf16.xpose.msra.mxu0 0
        %1995 = vmatprep.subr.bf16.mxu0 0
        %1996 = vmatpush1.bf16.xpose.msra.mxu0 0
        %1997 = vmatprep.subr.bf16.mxu0 0
        %1998 = vmatpush1.bf16.xpose.msra.mxu0 0
        %1999 = vmatprep.subr.bf16.mxu0 0
        %2000 = vmatpush1.bf16.xpose.msra.mxu0 0
        %2001 = vmatprep.subr.bf16.mxu0 0
        %2002 = vmatpush1.bf16.xpose.msra.mxu0 0
        %2003 = vmatprep.subr.bf16.mxu0 0
        %2004 = vmatpush1.bf16.xpose.msra.mxu0 0
        %2005 = vmatprep.subr.bf16.mxu0 0
        %2006 = vmatpush1.bf16.xpose.msra.mxu0 0
        %2007 = vmatprep.subr.bf16.mxu0 0
        %2008 = vmatpush1.bf16.xpose.msra.mxu0 0
        %2009 = vmatprep.subr.bf16.mxu0 0
        %2010 = vmatpush1.bf16.xpose.msra.mxu0 0
        %2011 = vmatprep.subr.bf16.mxu0 0
        %2012 = vmatpush1.bf16.xpose.msra.mxu0 0
        %2013 = vmatprep.subr.bf16.mxu0 0
        %2014 = vmatpush1.bf16.xpose.msra.mxu0 0
        %2015 = vmatprep.subr.bf16.mxu0 0
        %2016 = vmatpush1.bf16.xpose.msra.mxu0 0
        %2017 = vmatprep.subr.bf16.mxu0 0
        %2018 = vmatpush1.bf16.xpose.msra.mxu0 0
        %2019 = vmatprep.subr.bf16.mxu0 0
        %2020 = vmatpush1.bf16.xpose.msra.mxu0 0
        %2021 = vmatprep.mubr.bf16.mxu0 0
        %2022 = vmatmul.mubr.bf16.gmra.mrb[0].mxu0 %v1984
        %v2023 = vpop.f32.mrb[0].mxu0
        %v2024 = vadd.f32 0.0, %v2023
        %v2025 = vpop.f32.mrb[0].mxu0
        %v2026 = vpop.f32.mrb[0].mxu0
        %v2027 = vpop.f32.mrb[0].mxu0
        %2028 = vdwg.mxu0
        %v2030 = vsel %vm1170, %v1876, 0
        %v2033 = vsel %vm1170, %v1883, 0
        %2035 = vmatprep.subr.bf16.mxu0 0
        %2036 = vmatpush1.bf16.xpose.msra.mxu0 %v2033
        %2037 = vmatprep.subr.bf16.mxu0 0
        %2038 = vmatpush1.bf16.xpose.msra.mxu0 0
        %2039 = vmatprep.subr.bf16.mxu0 0
        %2040 = vmatpush1.bf16.xpose.msra.mxu0 0
        %2041 = vmatprep.subr.bf16.mxu0 0
        %2042 = vmatpush1.bf16.xpose.msra.mxu0 0
        %2043 = vmatprep.subr.bf16.mxu0 0
        %2044 = vmatpush1.bf16.xpose.msra.mxu0 0
        %2045 = vmatprep.subr.bf16.mxu0 0
        %2046 = vmatpush1.bf16.xpose.msra.mxu0 0
        %2047 = vmatprep.subr.bf16.mxu0 0
        %2048 = vmatpush1.bf16.xpose.msra.mxu0 0
        %2049 = vmatprep.subr.bf16.mxu0 0
        %2050 = vmatpush1.bf16.xpose.msra.mxu0 0
        %2051 = vmatprep.subr.bf16.mxu0 0
        %2052 = vmatpush1.bf16.xpose.msra.mxu0 0
        %2053 = vmatprep.subr.bf16.mxu0 0
        %2054 = vmatpush1.bf16.xpose.msra.mxu0 0
        %2055 = vmatprep.subr.bf16.mxu0 0
        %2056 = vmatpush1.bf16.xpose.msra.mxu0 0
        %2057 = vmatprep.subr.bf16.mxu0 0
        %2058 = vmatpush1.bf16.xpose.msra.mxu0 0
        %2059 = vmatprep.subr.bf16.mxu0 0
        %2060 = vmatpush1.bf16.xpose.msra.mxu0 0
        %2061 = vmatprep.subr.bf16.mxu0 0
        %2062 = vmatpush1.bf16.xpose.msra.mxu0 0
        %2063 = vmatprep.subr.bf16.mxu0 0
        %2064 = vmatpush1.bf16.xpose.msra.mxu0 0
        %2065 = vmatprep.subr.bf16.mxu0 0
        %2066 = vmatpush1.bf16.xpose.msra.mxu0 0
        %2067 = vmatprep.mubr.bf16.mxu0 0
        %2068 = vmatmul.mubr.bf16.gmra.mrb[0].mxu0 %v2030
        %v2069 = vpop.f32.mrb[0].mxu0
        %v2070 = vadd.f32 0.0, %v2069
        %v2071 = vpop.f32.mrb[0].mxu0
        %v2072 = vpop.f32.mrb[0].mxu0
        %v2073 = vpop.f32.mrb[0].mxu0
        %2074 = vdwg.mxu0
        %v2075 = vmul.f32 %v1932, 0.17677669
        %v2076 = vmul.f32 %v1978, 0.17677669
        %v2077 = vmul.f32 %v2024, 0.17677669
        %v2078 = vmul.f32 %v2070, 0.17677669
        %v2079 = vadd.f32 %v2075, %v986
        %v2080 = vadd.f32 %v2076, %v986
        %v2081 = vadd.f32 %v2077, %v986
        %v2082 = vadd.f32 %v2078, %v986
        %v2083 = vsel %vm1363, %v2079, -inf
        %2084 = vmax.xlane.f32.xlu0 %v2083
        %v2085 = vpop.xlane.xlu0 %2084
        %v2086 = vsel %vm1363, %v2080, -inf
        %2087 = vmax.xlane.f32.xlu0 %v2086
        %v2088 = vpop.xlane.xlu0 %2087
        %v2089 = vsel %vm1363, %v2081, -inf
        %2090 = vmax.xlane.f32.xlu0 %v2089
        %v2091 = vpop.xlane.xlu0 %2090
        %v2092 = vsel %vm1363, %v2082, -inf
        %2093 = vmax.xlane.f32.xlu0 %v2092
        %v2094 = vpop.xlane.xlu0 %2093
        %v2095 = vsub.f32 %v2079, %v2085
        %v2096 = vsub.f32 %v2080, %v2088
        %v2097 = vsub.f32 %v2081, %v2091
        %v2098 = vsub.f32 %v2082, %v2094
        %v2099 = vmul.f32 %v2095, 1.442695
        %v2100 = vpow.pop %v2099
        %v2101 = vmul.f32 %v2096, 1.442695
        %v2102 = vpow.pop %v2101
        %v2103 = vmul.f32 %v2097, 1.442695
        %v2104 = vpow.pop %v2103
        %v2105 = vmul.f32 %v2098, 1.442695
        %v2106 = vpow.pop %v2105
        %v2107 = vsel %vm1363, %v2100, 0.0
        %2108 = vadd.xlane.f32.xlu0 %v2107
        %v2109 = vpop.xlane.xlu0 %2108
        %v2110 = vsel %vm1363, %v2102, 0.0
        %2111 = vadd.xlane.f32.xlu0 %v2110
        %v2112 = vpop.xlane.xlu0 %2111
        %v2113 = vsel %vm1363, %v2104, 0.0
        %2114 = vadd.xlane.f32.xlu0 %v2113
        %v2115 = vpop.xlane.xlu0 %2114
        %v2116 = vsel %vm1363, %v2106, 0.0
        %2117 = vadd.xlane.f32.xlu0 %v2116
        %v2118 = vpop.xlane.xlu0 %2117
        %v2119 = vrcp.pop %v2109
        %v2120 = vrcp.pop %v2112
        %v2121 = vrcp.pop %v2115
        %v2122 = vrcp.pop %v2118
        %v2123 = vmul.f32 %v2100, %v2119
        %v2124 = vmul.f32 %v2102, %v2120
        %v2125 = vmul.f32 %v2104, %v2121
        %v2126 = vmul.f32 %v2106, %v2122
        %v2127 = vpack.c.bf16 %v2123, %v2123
        %v2128 = vpack.c.bf16 %v2124, %v2124
        %v2129 = vpack.c.bf16 %v2125, %v2125
        %v2130 = vpack.c.bf16 %v2126, %v2126
        %v2132 = vsel %vm1363, %v2127, 0
        %v2135 = vsel %vm1415, %v1739, 0
        %2137 = vmatprep.subr.bf16.mxu0 0
        %2138 = vmatpush1.bf16.msra.mxu0 %v2135
        %2139 = vmatprep.subr.bf16.mxu0 0
        %2140 = vmatpush1.bf16.msra.mxu0 0
        %2141 = vmatprep.subr.bf16.mxu0 0
        %2142 = vmatpush1.bf16.msra.mxu0 0
        %2143 = vmatprep.subr.bf16.mxu0 0
        %2144 = vmatpush1.bf16.msra.mxu0 0
        %2145 = vmatprep.subr.bf16.mxu0 0
        %2146 = vmatpush1.bf16.msra.mxu0 0
        %2147 = vmatprep.subr.bf16.mxu0 0
        %2148 = vmatpush1.bf16.msra.mxu0 0
        %2149 = vmatprep.subr.bf16.mxu0 0
        %2150 = vmatpush1.bf16.msra.mxu0 0
        %2151 = vmatprep.subr.bf16.mxu0 0
        %2152 = vmatpush1.bf16.msra.mxu0 0
        %2153 = vmatprep.subr.bf16.mxu0 0
        %2154 = vmatpush1.bf16.msra.mxu0 0
        %2155 = vmatprep.subr.bf16.mxu0 0
        %2156 = vmatpush1.bf16.msra.mxu0 0
        %2157 = vmatprep.subr.bf16.mxu0 0
        %2158 = vmatpush1.bf16.msra.mxu0 0
        %2159 = vmatprep.subr.bf16.mxu0 0
        %2160 = vmatpush1.bf16.msra.mxu0 0
        %2161 = vmatprep.subr.bf16.mxu0 0
        %2162 = vmatpush1.bf16.msra.mxu0 0
        %2163 = vmatprep.subr.bf16.mxu0 0
        %2164 = vmatpush1.bf16.msra.mxu0 0
        %2165 = vmatprep.subr.bf16.mxu0 0
        %2166 = vmatpush1.bf16.msra.mxu0 0
        %2167 = vmatprep.subr.bf16.mxu0 0
        %2168 = vmatpush1.bf16.msra.mxu0 0
        %2169 = vmatprep.mubr.bf16.mxu0 0
        %2170 = vmatmul.mubr.bf16.gmra.mrb[0].mxu0 %v2132
        %v2171 = vpop.f32.mrb[0].mxu0
        %v2172 = vadd.f32 0.0, %v2171
        %v2173 = vpop.f32.mrb[0].mxu0
        %v2174 = vpop.f32.mrb[0].mxu0
        %v2175 = vpop.f32.mrb[0].mxu0
        %2176 = vdwg.mxu0
        %v2178 = vsel %vm1363, %v2128, 0
        %v2181 = vsel %vm1415, %v1886, 0
        %2183 = vmatprep.subr.bf16.mxu0 0
        %2184 = vmatpush1.bf16.msra.mxu0 %v2181
        %2185 = vmatprep.subr.bf16.mxu0 0
        %2186 = vmatpush1.bf16.msra.mxu0 0
        %2187 = vmatprep.subr.bf16.mxu0 0
        %2188 = vmatpush1.bf16.msra.mxu0 0
        %2189 = vmatprep.subr.bf16.mxu0 0
        %2190 = vmatpush1.bf16.msra.mxu0 0
        %2191 = vmatprep.subr.bf16.mxu0 0
        %2192 = vmatpush1.bf16.msra.mxu0 0
        %2193 = vmatprep.subr.bf16.mxu0 0
        %2194 = vmatpush1.bf16.msra.mxu0 0
        %2195 = vmatprep.subr.bf16.mxu0 0
        %2196 = vmatpush1.bf16.msra.mxu0 0
        %2197 = vmatprep.subr.bf16.mxu0 0
        %2198 = vmatpush1.bf16.msra.mxu0 0
        %2199 = vmatprep.subr.bf16.mxu0 0
        %2200 = vmatpush1.bf16.msra.mxu0 0
        %2201 = vmatprep.subr.bf16.mxu0 0
        %2202 = vmatpush1.bf16.msra.mxu0 0
        %2203 = vmatprep.subr.bf16.mxu0 0
        %2204 = vmatpush1.bf16.msra.mxu0 0
        %2205 = vmatprep.subr.bf16.mxu0 0
        %2206 = vmatpush1.bf16.msra.mxu0 0
        %2207 = vmatprep.subr.bf16.mxu0 0
        %2208 = vmatpush1.bf16.msra.mxu0 0
        %2209 = vmatprep.subr.bf16.mxu0 0
        %2210 = vmatpush1.bf16.msra.mxu0 0
        %2211 = vmatprep.subr.bf16.mxu0 0
        %2212 = vmatpush1.bf16.msra.mxu0 0
        %2213 = vmatprep.subr.bf16.mxu0 0
        %2214 = vmatpush1.bf16.msra.mxu0 0
        %2215 = vmatprep.mubr.bf16.mxu0 0
        %2216 = vmatmul.mubr.bf16.gmra.mrb[0].mxu0 %v2178
        %v2217 = vpop.f32.mrb[0].mxu0
        %v2218 = vadd.f32 0.0, %v2217
        %v2219 = vpop.f32.mrb[0].mxu0
        %v2220 = vpop.f32.mrb[0].mxu0
        %v2221 = vpop.f32.mrb[0].mxu0
        %2222 = vdwg.mxu0
        %v2224 = vsel %vm1363, %v2129, 0
        %v2227 = vsel %vm1415, %v1888, 0
        %2229 = vmatprep.subr.bf16.mxu0 0
        %2230 = vmatpush1.bf16.msra.mxu0 %v2227
        %2231 = vmatprep.subr.bf16.mxu0 0
        %2232 = vmatpush1.bf16.msra.mxu0 0
        %2233 = vmatprep.subr.bf16.mxu0 0
        %2234 = vmatpush1.bf16.msra.mxu0 0
        %2235 = vmatprep.subr.bf16.mxu0 0
        %2236 = vmatpush1.bf16.msra.mxu0 0
        %2237 = vmatprep.subr.bf16.mxu0 0
        %2238 = vmatpush1.bf16.msra.mxu0 0
        %2239 = vmatprep.subr.bf16.mxu0 0
        %2240 = vmatpush1.bf16.msra.mxu0 0
        %2241 = vmatprep.subr.bf16.mxu0 0
        %2242 = vmatpush1.bf16.msra.mxu0 0
        %2243 = vmatprep.subr.bf16.mxu0 0
        %2244 = vmatpush1.bf16.msra.mxu0 0
        %2245 = vmatprep.subr.bf16.mxu0 0
        %2246 = vmatpush1.bf16.msra.mxu0 0
        %2247 = vmatprep.subr.bf16.mxu0 0
        %2248 = vmatpush1.bf16.msra.mxu0 0
        %2249 = vmatprep.subr.bf16.mxu0 0
        %2250 = vmatpush1.bf16.msra.mxu0 0
        %2251 = vmatprep.subr.bf16.mxu0 0
        %2252 = vmatpush1.bf16.msra.mxu0 0
        %2253 = vmatprep.subr.bf16.mxu0 0
        %2254 = vmatpush1.bf16.msra.mxu0 0
        %2255 = vmatprep.subr.bf16.mxu0 0
        %2256 = vmatpush1.bf16.msra.mxu0 0
        %2257 = vmatprep.subr.bf16.mxu0 0
        %2258 = vmatpush1.bf16.msra.mxu0 0
        %2259 = vmatprep.subr.bf16.mxu0 0
        %2260 = vmatpush1.bf16.msra.mxu0 0
        %2261 = vmatprep.mubr.bf16.mxu0 0
        %2262 = vmatmul.mubr.bf16.gmra.mrb[0].mxu0 %v2224
        %v2263 = vpop.f32.mrb[0].mxu0
        %v2264 = vadd.f32 0.0, %v2263
        %v2265 = vpop.f32.mrb[0].mxu0
        %v2266 = vpop.f32.mrb[0].mxu0
        %v2267 = vpop.f32.mrb[0].mxu0
        %2268 = vdwg.mxu0
        %v2270 = vsel %vm1363, %v2130, 0
        %v2273 = vsel %vm1415, %v1890, 0
        %2275 = vmatprep.subr.bf16.mxu0 0
        %2276 = vmatpush1.bf16.msra.mxu0 %v2273
        %2277 = vmatprep.subr.bf16.mxu0 0
        %2278 = vmatpush1.bf16.msra.mxu0 0
        %2279 = vmatprep.subr.bf16.mxu0 0
        %2280 = vmatpush1.bf16.msra.mxu0 0
        %2281 = vmatprep.subr.bf16.mxu0 0
        %2282 = vmatpush1.bf16.msra.mxu0 0
        %2283 = vmatprep.subr.bf16.mxu0 0
        %2284 = vmatpush1.bf16.msra.mxu0 0
        %2285 = vmatprep.subr.bf16.mxu0 0
        %2286 = vmatpush1.bf16.msra.mxu0 0
        %2287 = vmatprep.subr.bf16.mxu0 0
        %2288 = vmatpush1.bf16.msra.mxu0 0
        %2289 = vmatprep.subr.bf16.mxu0 0
        %2290 = vmatpush1.bf16.msra.mxu0 0
        %2291 = vmatprep.subr.bf16.mxu0 0
        %2292 = vmatpush1.bf16.msra.mxu0 0
        %2293 = vmatprep.subr.bf16.mxu0 0
        %2294 = vmatpush1.bf16.msra.mxu0 0
        %2295 = vmatprep.subr.bf16.mxu0 0
        %2296 = vmatpush1.bf16.msra.mxu0 0
        %2297 = vmatprep.subr.bf16.mxu0 0
        %2298 = vmatpush1.bf16.msra.mxu0 0
        %2299 = vmatprep.subr.bf16.mxu0 0
        %2300 = vmatpush1.bf16.msra.mxu0 0
        %2301 = vmatprep.subr.bf16.mxu0 0
        %2302 = vmatpush1.bf16.msra.mxu0 0
        %2303 = vmatprep.subr.bf16.mxu0 0
        %2304 = vmatpush1.bf16.msra.mxu0 0
        %2305 = vmatprep.subr.bf16.mxu0 0
        %2306 = vmatpush1.bf16.msra.mxu0 0
        %2307 = vmatprep.mubr.bf16.mxu0 0
        %2308 = vmatmul.mubr.bf16.gmra.mrb[0].mxu0 %v2270
        %v2309 = vpop.f32.mrb[0].mxu0
        %v2310 = vadd.f32 0.0, %v2309
        %v2311 = vpop.f32.mrb[0].mxu0
        %v2312 = vpop.f32.mrb[0].mxu0
        %v2313 = vpop.f32.mrb[0].mxu0
        %2314 = vdwg.mxu0
        %2316 = vrot.lane.b32.xlu0 %v2218, 32
        %v2317 = vpop.permute.xlu0 %2316
        %2320 = vrot.lane.b32.xlu0 %v2264, 64
        %v2321 = vpop.permute.xlu0 %2320
        %2324 = vrot.lane.b32.xlu0 %v2310, 96
        %v2325 = vpop.permute.xlu0 %2324
        %v2327 = vsel %vm1170, %v2172, %v2317
        %v2328 = vsel %vm1610, %v2327, %v2321
        %v2329 = vsel %vm1612, %v2328, %v2325
        %v2330 = vpack.c.bf16 %v2329, %v2329
        %v2331 = vlaneseq
        %v2332 = vshrl.u32 %v2331, 7
        %v2333 = vsub.s32 0, %v2332
        %v2334 = vrot.slane %v1775, %v2333
        %v2351 = vunpack.c.l.b16 %v1758
        %v2352 = vunpack.c.l.b16 %v1759
        %v2353 = vunpack.c.l.b16 %v1760
        %v2354 = vunpack.c.l.b16 %v1761
        %v2355 = vunpack.c.l.b16 %v1762
        %v2356 = vunpack.c.l.b16 %v1763
        %v2357 = vunpack.c.l.b16 %v1764
        %v2358 = vunpack.c.l.b16 %v1765
        %v2359 = vunpack.c.l.b16 %v1766
        %v2360 = vunpack.c.l.b16 %v1767
        %v2361 = vunpack.c.l.b16 %v1768
        %v2362 = vunpack.c.l.b16 %v1769
        %v2363 = vunpack.c.l.b16 %v1770
        %v2364 = vunpack.c.l.b16 %v1771
        %v2365 = vunpack.c.l.b16 %v1772
        %v2366 = vunpack.c.l.b16 %v1773
        %v2367 = vpack.c.b16 %v2352, %v2351
        %v2368 = vpack.c.b16 %v2354, %v2353
        %v2369 = vpack.c.b16 %v2356, %v2355
        %v2370 = vpack.c.b16 %v2358, %v2357
        %v2371 = vpack.c.b16 %v2360, %v2359
        %v2372 = vpack.c.b16 %v2362, %v2361
        %v2373 = vpack.c.b16 %v2364, %v2363
        %v2374 = vpack.c.b16 %v2366, %v2365
        %2383 = vmatprep.subr.bf16.mxu0 0
        %2384 = vmatpush1.bf16.msra.mxu0 %v2367
        %2385 = vmatprep.subr.bf16.mxu0 0
        %2386 = vmatpush1.bf16.msra.mxu0 %v2368
        %2387 = vmatprep.subr.bf16.mxu0 0
        %2388 = vmatpush1.bf16.msra.mxu0 %v2369
        %2389 = vmatprep.subr.bf16.mxu0 0
        %2390 = vmatpush1.bf16.msra.mxu0 %v2370
        %2391 = vmatprep.subr.bf16.mxu0 0
        %2392 = vmatpush1.bf16.msra.mxu0 %v2371
        %2393 = vmatprep.subr.bf16.mxu0 0
        %2394 = vmatpush1.bf16.msra.mxu0 %v2372
        %2395 = vmatprep.subr.bf16.mxu0 0
        %2396 = vmatpush1.bf16.msra.mxu0 %v2373
        %2397 = vmatprep.subr.bf16.mxu0 0
        %2398 = vmatpush1.bf16.msra.mxu0 %v2374
        %2399 = vmatprep.subr.bf16.mxu0 0
        %2400 = vmatpush1.bf16.msra.mxu0 0
        %2401 = vmatprep.subr.bf16.mxu0 0
        %2402 = vmatpush1.bf16.msra.mxu0 0
        %2403 = vmatprep.subr.bf16.mxu0 0
        %2404 = vmatpush1.bf16.msra.mxu0 0
        %2405 = vmatprep.subr.bf16.mxu0 0
        %2406 = vmatpush1.bf16.msra.mxu0 0
        %2407 = vmatprep.subr.bf16.mxu0 0
        %2408 = vmatpush1.bf16.msra.mxu0 0
        %2409 = vmatprep.subr.bf16.mxu0 0
        %2410 = vmatpush1.bf16.msra.mxu0 0
        %2411 = vmatprep.subr.bf16.mxu0 0
        %2412 = vmatpush1.bf16.msra.mxu0 0
        %2413 = vmatprep.subr.bf16.mxu0 0
        %2414 = vmatpush1.bf16.msra.mxu0 0
        %2415 = vmatprep.mubr.bf16.mxu0 0
        %2416 = vmatmul.mubr.bf16.gmra.mrb[0].mxu0 %v2330
        %v2417 = vpop.f32.mrb[0].mxu0
        %v2418 = vadd.f32 %v2334, %v2417
        %v2419 = vpop.f32.mrb[0].mxu0
        %v2420 = vpop.f32.mrb[0].mxu0
        %v2421 = vpop.f32.mrb[0].mxu0
        %2422 = vdwg.mxu0
        %v2423 = vadd.f32 %v1707, %v2418
        %v2424 = vld [vmem:[#allocation12 + $0x4] sm:$0x1]
        %v2425 = vld [vmem:[#allocation12 + $0x5] sm:$0x1]
        %2426 = vadd.xlane.f32.xlu0 %v2423
        %v2427 = vpop.xlane.xlu0 %2426
        %v2428 = vmul.f32 %v2427, %v991
        %v2429 = vsub.f32 %v2423, %v2428
        %v2430 = vmul.f32 %v2429, %v2429
        %2431 = vadd.xlane.f32.xlu0 %v2430
        %v2432 = vpop.xlane.xlu0 %2431
        %v2433 = vmul.f32 %v2432, 0.007874016
        %v2434 = vrsqrt.pop %v2433
        %v2435 = vmul.f32 %v2433, %v2434
        %vm2436 = vcmp.eq.f32.partialorder %v2433, inf
        %v2437 = vsel %vm2436, %v2433, %v2435
        %vm2438 = vcmp.eq.f32.partialorder %v2433, 0.0
        %v2439 = vand.u32 %v2433, 2147483648
        %v2440 = vsel %vm2438, %v2439, %v2437
        %v2441 = vadd.f32 %v2440, 1e-06
        %v2442 = vrcp.pop %v2441
        %v2443 = vlaneseq
        %v2444 = vshrl.u32 %v2443, 7
        %v2445 = vsub.s32 0, %v2444
        %v2446 = vrot.slane %v2424, %v2445
        %v2447 = vmul.f32 %v2446, %v2429
        %v2448 = vmul.f32 %v2447, %v2442
        %v2449 = vlaneseq
        %v2450 = vshrl.u32 %v2449, 7
        %v2451 = vsub.s32 0, %v2450
        %v2452 = vrot.slane %v2425, %v2451
        %v2453 = vadd.f32 %v2448, %v2452
        %v2454 = vpack.c.bf16 %v2453, %v2453
        %v2455 = vld [vmem:[#allocation15] sm:$0xff]
        %v2456 = vld [vmem:[#allocation15 + $0x8] sm:$0xff]
        %v2457 = vld [vmem:[#allocation15 + $0x10] sm:$0xff]
        %v2458 = vld [vmem:[#allocation15 + $0x18] sm:$0xff]
        %v2459 = vld [vmem:[#allocation15 + $0x20] sm:$0xff]
        %v2460 = vld [vmem:[#allocation15 + $0x28] sm:$0xff]
        %v2461 = vld [vmem:[#allocation15 + $0x30] sm:$0xff]
        %v2462 = vld [vmem:[#allocation15 + $0x38] sm:$0xff]
        %v2463 = vld [vmem:[#allocation15 + $0x40] sm:$0xff]
        %v2464 = vld [vmem:[#allocation15 + $0x48] sm:$0xff]
        %v2465 = vld [vmem:[#allocation15 + $0x50] sm:$0xff]
        %v2466 = vld [vmem:[#allocation15 + $0x58] sm:$0xff]
        %v2467 = vld [vmem:[#allocation15 + $0x60] sm:$0xff]
        %v2468 = vld [vmem:[#allocation15 + $0x68] sm:$0xff]
        %v2469 = vld [vmem:[#allocation15 + $0x70] sm:$0xff]
        %v2470 = vld [vmem:[#allocation15 + $0x78] sm:$0xff]
        %v2471 = vld [vmem:[%s7] sm:$0x3]
        %v2473 = vlaneseq
        %v2474 = vshrl.u32 %v2473, 7
        %v2475 = vsub.s32 0, %v2474
        %v2476 = vrot.slane %v2471, %v2475
        %v2477 = vlaneseq
        %v2478 = vshrl.u32 %v2477, 7
        %v2479 = vsub.s32 1, %v2478
        %v2480 = vrot.slane %v2471, %v2479
        %v2499 = vunpack.c.l.b16 %v2455
        %v2500 = vunpack.c.h.b16 %v2455
        %v2501 = vunpack.c.l.b16 %v2456
        %v2502 = vunpack.c.h.b16 %v2456
        %v2503 = vunpack.c.l.b16 %v2457
        %v2504 = vunpack.c.h.b16 %v2457
        %v2505 = vunpack.c.l.b16 %v2458
        %v2506 = vunpack.c.h.b16 %v2458
        %v2507 = vunpack.c.l.b16 %v2459
        %v2508 = vunpack.c.h.b16 %v2459
        %v2509 = vunpack.c.l.b16 %v2460
        %v2510 = vunpack.c.h.b16 %v2460
        %v2511 = vunpack.c.l.b16 %v2461
        %v2512 = vunpack.c.h.b16 %v2461
        %v2513 = vunpack.c.l.b16 %v2462
        %v2514 = vunpack.c.h.b16 %v2462
        %v2515 = vunpack.c.l.b16 %v2463
        %v2516 = vunpack.c.h.b16 %v2463
        %v2517 = vunpack.c.l.b16 %v2464
        %v2518 = vunpack.c.h.b16 %v2464
        %v2519 = vunpack.c.l.b16 %v2465
        %v2520 = vunpack.c.h.b16 %v2465
        %v2521 = vunpack.c.l.b16 %v2466
        %v2522 = vunpack.c.h.b16 %v2466
        %v2523 = vunpack.c.l.b16 %v2467
        %v2524 = vunpack.c.h.b16 %v2467
        %v2525 = vunpack.c.l.b16 %v2468
        %v2526 = vunpack.c.h.b16 %v2468
        %v2527 = vunpack.c.l.b16 %v2469
        %v2528 = vunpack.c.h.b16 %v2469
        %v2529 = vunpack.c.l.b16 %v2470
        %v2530 = vunpack.c.h.b16 %v2470
        %v2531 = vpack.c.b16 %v2501, %v2499
        %v2532 = vpack.c.b16 %v2502, %v2500
        %v2533 = vpack.c.b16 %v2505, %v2503
        %v2534 = vpack.c.b16 %v2506, %v2504
        %v2535 = vpack.c.b16 %v2509, %v2507
        %v2536 = vpack.c.b16 %v2510, %v2508
        %v2537 = vpack.c.b16 %v2513, %v2511
        %v2538 = vpack.c.b16 %v2514, %v2512
        %v2539 = vpack.c.b16 %v2517, %v2515
        %v2540 = vpack.c.b16 %v2518, %v2516
        %v2541 = vpack.c.b16 %v2521, %v2519
        %v2542 = vpack.c.b16 %v2522, %v2520
        %v2543 = vpack.c.b16 %v2525, %v2523
        %v2544 = vpack.c.b16 %v2526, %v2524
        %v2545 = vpack.c.b16 %v2529, %v2527
        %v2546 = vpack.c.b16 %v2530, %v2528
        %2563 = vmatprep.subr.bf16.mxu0 %v2532
        %2564 = vmatpush1.bf16.msra.mxu0 %v2531
        %2565 = vmatprep.subr.bf16.mxu0 %v2534
        %2566 = vmatpush1.bf16.msra.mxu0 %v2533
        %2567 = vmatprep.subr.bf16.mxu0 %v2536
        %2568 = vmatpush1.bf16.msra.mxu0 %v2535
        %2569 = vmatprep.subr.bf16.mxu0 %v2538
        %2570 = vmatpush1.bf16.msra.mxu0 %v2537
        %2571 = vmatprep.subr.bf16.mxu0 %v2540
        %2572 = vmatpush1.bf16.msra.mxu0 %v2539
        %2573 = vmatprep.subr.bf16.mxu0 %v2542
        %2574 = vmatpush1.bf16.msra.mxu0 %v2541
        %2575 = vmatprep.subr.bf16.mxu0 %v2544
        %2576 = vmatpush1.bf16.msra.mxu0 %v2543
        %2577 = vmatprep.subr.bf16.mxu0 %v2546
        %2578 = vmatpush1.bf16.msra.mxu0 %v2545
        %2579 = vmatprep.subr.bf16.mxu0 0
        %2580 = vmatpush1.bf16.msra.mxu0 0
        %2581 = vmatprep.subr.bf16.mxu0 0
        %2582 = vmatpush1.bf16.msra.mxu0 0
        %2583 = vmatprep.subr.bf16.mxu0 0
        %2584 = vmatpush1.bf16.msra.mxu0 0
        %2585 = vmatprep.subr.bf16.mxu0 0
        %2586 = vmatpush1.bf16.msra.mxu0 0
        %2587 = vmatprep.subr.bf16.mxu0 0
        %2588 = vmatpush1.bf16.msra.mxu0 0
        %2589 = vmatprep.subr.bf16.mxu0 0
        %2590 = vmatpush1.bf16.msra.mxu0 0
        %2591 = vmatprep.subr.bf16.mxu0 0
        %2592 = vmatpush1.bf16.msra.mxu0 0
        %2593 = vmatprep.subr.bf16.mxu0 0
        %2594 = vmatpush1.bf16.msra.mxu0 0
        %2595 = vmatprep.mubr.bf16.mxu0 0
        %2596 = vmatmul.mubr.bf16.gmra.mrb[0].mxu0 %v2454
        %v2597 = vpop.f32.mrb[0].mxu0
        %v2598 = vadd.f32 %v2476, %v2597
        %v2599 = vpop.f32.mrb[0].mxu0
        %v2600 = vadd.f32 %v2480, %v2599
        %v2601 = vpop.f32.mrb[0].mxu0
        %v2602 = vpop.f32.mrb[0].mxu0
        %2603 = vdwg.mxu0
        %v2604 = vmax.f32 %v2598, 0.0
        %v2605 = vmax.f32 %v2600, 0.0
        %v2606 = vpack.c.bf16 %v2604, %v2604
        %v2607 = vpack.c.bf16 %v2605, %v2605
        %v2608 = vld [vmem:[#allocation16] sm:$0xf]
        %v2609 = vld [vmem:[#allocation16 + $0x4] sm:$0xf]
        %v2610 = vld [vmem:[#allocation16 + $0x8] sm:$0xf]
        %v2611 = vld [vmem:[#allocation16 + $0xc] sm:$0xf]
        %v2612 = vld [vmem:[#allocation16 + $0x10] sm:$0xf]
        %v2613 = vld [vmem:[#allocation16 + $0x14] sm:$0xf]
        %v2614 = vld [vmem:[#allocation16 + $0x18] sm:$0xf]
        %v2615 = vld [vmem:[#allocation16 + $0x1c] sm:$0xf]
        %v2616 = vld [vmem:[#allocation16 + $0x20] sm:$0xf]
        %v2617 = vld [vmem:[#allocation16 + $0x24] sm:$0xf]
        %v2618 = vld [vmem:[#allocation16 + $0x28] sm:$0xf]
        %v2619 = vld [vmem:[#allocation16 + $0x2c] sm:$0xf]
        %v2620 = vld [vmem:[#allocation16 + $0x30] sm:$0xf]
        %v2621 = vld [vmem:[#allocation16 + $0x34] sm:$0xf]
        %v2622 = vld [vmem:[#allocation16 + $0x38] sm:$0xf]
        %v2623 = vld [vmem:[#allocation16 + $0x3c] sm:$0xf]
        %v2624 = vld [vmem:[#allocation16 + $0x40] sm:$0xf]
        %v2625 = vld [vmem:[#allocation16 + $0x44] sm:$0xf]
        %v2626 = vld [vmem:[#allocation16 + $0x48] sm:$0xf]
        %v2627 = vld [vmem:[#allocation16 + $0x4c] sm:$0xf]
        %v2628 = vld [vmem:[#allocation16 + $0x50] sm:$0xf]
        %v2629 = vld [vmem:[#allocation16 + $0x54] sm:$0xf]
        %v2630 = vld [vmem:[#allocation16 + $0x58] sm:$0xf]
        %v2631 = vld [vmem:[#allocation16 + $0x5c] sm:$0xf]
        %v2632 = vld [vmem:[#allocation16 + $0x60] sm:$0xf]
        %v2633 = vld [vmem:[#allocation16 + $0x64] sm:$0xf]
        %v2634 = vld [vmem:[#allocation16 + $0x68] sm:$0xf]
        %v2635 = vld [vmem:[#allocation16 + $0x6c] sm:$0xf]
        %v2636 = vld [vmem:[#allocation16 + $0x70] sm:$0xf]
        %v2637 = vld [vmem:[#allocation16 + $0x74] sm:$0xf]
        %v2638 = vld [vmem:[#allocation16 + $0x78] sm:$0xf]
        %v2639 = vld [vmem:[#allocation16 + $0x7c] sm:$0xf]
        %v2672 = vunpack.c.l.b16 %v2608
        %v2673 = vunpack.c.l.b16 %v2609
        %v2674 = vunpack.c.l.b16 %v2610
        %v2675 = vunpack.c.l.b16 %v2611
        %v2676 = vunpack.c.l.b16 %v2612
        %v2677 = vunpack.c.l.b16 %v2613
        %v2678 = vunpack.c.l.b16 %v2614
        %v2679 = vunpack.c.l.b16 %v2615
        %v2680 = vunpack.c.l.b16 %v2616
        %v2681 = vunpack.c.l.b16 %v2617
        %v2682 = vunpack.c.l.b16 %v2618
        %v2683 = vunpack.c.l.b16 %v2619
        %v2684 = vunpack.c.l.b16 %v2620
        %v2685 = vunpack.c.l.b16 %v2621
        %v2686 = vunpack.c.l.b16 %v2622
        %v2687 = vunpack.c.l.b16 %v2623
        %v2688 = vunpack.c.l.b16 %v2624
        %v2689 = vunpack.c.l.b16 %v2625
        %v2690 = vunpack.c.l.b16 %v2626
        %v2691 = vunpack.c.l.b16 %v2627
        %v2692 = vunpack.c.l.b16 %v2628
        %v2693 = vunpack.c.l.b16 %v2629
        %v2694 = vunpack.c.l.b16 %v2630
        %v2695 = vunpack.c.l.b16 %v2631
        %v2696 = vunpack.c.l.b16 %v2632
        %v2697 = vunpack.c.l.b16 %v2633
        %v2698 = vunpack.c.l.b16 %v2634
        %v2699 = vunpack.c.l.b16 %v2635
        %v2700 = vunpack.c.l.b16 %v2636
        %v2701 = vunpack.c.l.b16 %v2637
        %v2702 = vunpack.c.l.b16 %v2638
        %v2703 = vunpack.c.l.b16 %v2639
        %v2704 = vpack.c.b16 %v2673, %v2672
        %v2705 = vpack.c.b16 %v2675, %v2674
        %v2706 = vpack.c.b16 %v2677, %v2676
        %v2707 = vpack.c.b16 %v2679, %v2678
        %v2708 = vpack.c.b16 %v2681, %v2680
        %v2709 = vpack.c.b16 %v2683, %v2682
        %v2710 = vpack.c.b16 %v2685, %v2684
        %v2711 = vpack.c.b16 %v2687, %v2686
        %v2712 = vpack.c.b16 %v2689, %v2688
        %v2713 = vpack.c.b16 %v2691, %v2690
        %v2714 = vpack.c.b16 %v2693, %v2692
        %v2715 = vpack.c.b16 %v2695, %v2694
        %v2716 = vpack.c.b16 %v2697, %v2696
        %v2717 = vpack.c.b16 %v2699, %v2698
        %v2718 = vpack.c.b16 %v2701, %v2700
        %v2719 = vpack.c.b16 %v2703, %v2702
        %2736 = vmatprep.subr.bf16.mxu0 0
        %2737 = vmatpush1.bf16.msra.mxu0 %v2704
        %2738 = vmatprep.subr.bf16.mxu0 0
        %2739 = vmatpush1.bf16.msra.mxu0 %v2705
        %2740 = vmatprep.subr.bf16.mxu0 0
        %2741 = vmatpush1.bf16.msra.mxu0 %v2706
        %2742 = vmatprep.subr.bf16.mxu0 0
        %2743 = vmatpush1.bf16.msra.mxu0 %v2707
        %2744 = vmatprep.subr.bf16.mxu0 0
        %2745 = vmatpush1.bf16.msra.mxu0 %v2708
        %2746 = vmatprep.subr.bf16.mxu0 0
        %2747 = vmatpush1.bf16.msra.mxu0 %v2709
        %2748 = vmatprep.subr.bf16.mxu0 0
        %2749 = vmatpush1.bf16.msra.mxu0 %v2710
        %2750 = vmatprep.subr.bf16.mxu0 0
        %2751 = vmatpush1.bf16.msra.mxu0 %v2711
        %2752 = vmatprep.subr.bf16.mxu0 0
        %2753 = vmatpush1.bf16.msra.mxu0 %v2712
        %2754 = vmatprep.subr.bf16.mxu0 0
        %2755 = vmatpush1.bf16.msra.mxu0 %v2713
        %2756 = vmatprep.subr.bf16.mxu0 0
        %2757 = vmatpush1.bf16.msra.mxu0 %v2714
        %2758 = vmatprep.subr.bf16.mxu0 0
        %2759 = vmatpush1.bf16.msra.mxu0 %v2715
        %2760 = vmatprep.subr.bf16.mxu0 0
        %2761 = vmatpush1.bf16.msra.mxu0 %v2716
        %2762 = vmatprep.subr.bf16.mxu0 0
        %2763 = vmatpush1.bf16.msra.mxu0 %v2717
        %2764 = vmatprep.subr.bf16.mxu0 0
        %2765 = vmatpush1.bf16.msra.mxu0 %v2718
        %2766 = vmatprep.subr.bf16.mxu0 0
        %2767 = vmatpush1.bf16.msra.mxu0 %v2719
        %2768 = vmatprep.mubr.bf16.mxu0 %v2607
        %2769 = vmatmul.mubr.bf16.gmra.mrb[0].mxu0 %v2606
        %v2770 = vpop.f32.mrb[0].mxu0
        %v2771 = vadd.f32 0.0, %v2770
        %v2772 = vpop.f32.mrb[0].mxu0
        %v2773 = vpop.f32.mrb[0].mxu0
        %v2774 = vpop.f32.mrb[0].mxu0
        %2775 = vdwg.mxu0
        %v2776 = vadd.f32 %v2423, %v2771
        %v2777 = vld [vmem:[#allocation12 + $0xe] sm:$0x1]
        %v2778 = vlaneseq
        %v2779 = vshrl.u32 %v2778, 7
        %v2780 = vsub.s32 0, %v2779
        %v2781 = vrot.slane %v2777, %v2780
        %v2782 = vadd.f32 %v2776, %v2781
        %2783 = vst [vmem:[%s480] sm:$0xff] %v2782
        %s2784 = sand.u32 %s262, 1
        %s2785 = scalar_lea.sflag [#allocation8], %s2784
        %s2786 = sand.u32 %s262, 1
        %s2787 = smul.addr %s2786, 8
        %s2788 = scalar_lea.vmem [#allocation18], %s2787
        // Predicated region
        $region89: #{tpu_custom_call.1} parent=55 // pred_check
          %p2789 = pneg %p272
        $region90: #{tpu_custom_call.1} parent=55 // pred_check_branch
          %2791 = sbr.rel (%p2789) target = $region92
        $region91: #{tpu_custom_call.1} parent=55 // pred_region
          %s2793 = ssub.s32 128, 128
          %2794 = vsyncadd %s2785, %s2793
          %s2795 = sadd.s32 %s32, %s31
          %s2796 = smul.addr %s2795, 128
          %s2797 = scalar_lea.hbm %s9, %s2796
          %s2799 = sshll.u32 %s2788, 4
          %s2800 = int_to_ptr.vmem [resolvable:$true] %s2799
          %2802 = dma.vmem_to_hbm [thread:$0]  %s2800, 128, %s2797, %s2785
        $region92: #{tpu_custom_call.1} parent=55 // pred_fallthru
          _
      $region56: #{tpu_custom_call.1} parent=5 // pred_fallthru
        _
      %p2803 = scmp.le.s32.totalorder 2, %s22
      // Predicated region
      $region93: #{tpu_custom_call.1} parent=5 // pred_check
        %p2804 = pneg %p2803
      $region94: #{tpu_custom_call.1} parent=5 // pred_check_branch
        %2806 = sbr.rel (%p2804) target = $region96
      $region95: #{tpu_custom_call.1} parent=5 // pred_region
        %s2807 = ssub.s32 %s22, 2
        // Predicated region
        $region97: #{tpu_custom_call.1} parent=95 // pred_check
          %p2808 = pneg %p278
        $region98: #{tpu_custom_call.1} parent=95 // pred_check_branch
          %2810 = sbr.rel (%p2808) target = $region100
        $region99: #{tpu_custom_call.1} parent=95 // pred_region
          %s2811 = sand.u32 %s263, 1
          %s2812 = scalar_lea.sflag [#allocation8], %s2811
          %s2813 = sand.u32 %s263, 1
          %s2814 = smul.addr %s2813, 8
          %s2815 = scalar_lea.vmem [#allocation18], %s2814
          %2816 = dma.done %s2812, 128
        $region100: #{tpu_custom_call.1} parent=95 // pred_fallthru
          _
      $region96: #{tpu_custom_call.1} parent=5 // pred_fallthru
        _
    $region6: #{tpu_custom_call.1} parent=1 // loop_footer
      %s26 = sadd.s32 1, %s22
    $region7: #{tpu_custom_call.1} parent=1 // loop_footer_branch
      %21 = sbr.rel target = $region3
    $region8: #{tpu_custom_call.1} parent=1 // loop_exit
      _
    %2817 = vsyncpa [#allocation7], 1
    %s2818 = scalar_lea.sflag [#allocation7], 1
    %2819 = vsyncpa %s2818, 1
    %2820 = vsyncpa [#allocation10], 1
    %2821 = vsyncpa [#allocation14], 1
    %2822 = vsyncpa [#allocation17], 1
    %2823 = vsyncpa [#allocation8], 1
    %s2824 = scalar_lea.sflag [#allocation8], 1
    %2825 = vsyncpa %s2824, 1

// kernel: tpu_custom_call.1
$region0: #{tpu_custom_call.1}
  #allocation0 [shape = 'u32[]', space=smem, size = 0x4, offset = 0x4, fixed_abs, tag = 'smem constant byte address 0x4 - core index']
  #allocation1 [shape = 'u32[144,128]{1,0:T(1,128)}', space=vmem, size = 0x12000, scoped, tag = 'internal scratch']
  #allocation2 [shape = 'bf16[8,128]{1,0:T(8,128)(2,1)}', space=vmem, size = 0x800, scoped, tag = 'scratch operand']
  #allocation3 [shape = 'bf16[8,128]{1,0:T(8,128)(2,1)}', space=vmem, size = 0x800, scoped, tag = 'scratch operand']
  #allocation4 [shape = 'bf16[8,128]{1,0:T(8,128)(2,1)}', space=vmem, size = 0x800, scoped, tag = 'scratch operand']
  #allocation5 [shape = 'bf16[8,128]{1,0:T(8,128)(2,1)}', space=vmem, size = 0x800, scoped, tag = 'scratch operand']
  %s0 = inlined_call_operand.hbm [shape: bf16[2,8,128], index: 0, kind: input, shape index: {}]
  %s1 = inlined_call_operand.hbm [shape: bf16[2,8,128], index: 1, kind: input, shape index: {}]
  %s2 = inlined_call_operand.hbm [shape: bf16[2,8,8], index: 2, kind: input, shape index: {}]
  %s3 = inlined_call_operand.vmem [shape: bf16[2,8,8], index: 3, kind: input, shape index: {}]
  %s4 = inlined_call_operand.hbm [shape: f32[16,128], index: 4, kind: input, shape index: {}]
  %s5 = inlined_call_operand.hbm [shape: bf16[8,128,128], index: 5, kind: input, shape index: {}]
  %s6 = inlined_call_operand.hbm [shape: bf16[128,256], index: 6, kind: input, shape index: {}]
  %s7 = inlined_call_operand.vmem [shape: f32[1,256], index: 7, kind: input, shape index: {}]
  %s8 = inlined_call_operand.hbm [shape: bf16[256,128], index: 8, kind: input, shape index: {}]
  %s9 = inlined_call_operand.hbm [shape: f32[2,8,128], index: 9, kind: output, shape index: {}]
  %s10 = sld [smem:[#allocation0]]
  $region101: #{tpu_custom_call.1} parent=0
    _
  %s12 = ssub.s32 1, %s10
  %s13 = scalar_select 0, %s12, %s10
  $region1: #{tpu_custom_call.1} parent=0
    #allocation6 [shape = 'u8[4096]{0}', space=vmem, size = 0x1000, scoped, tag = 'input window, operand 0']
    #allocation7 [shape = 's32[2]{0}', space=sflag, size = 0x8, scoped, tag = 'scoped memory for tpu_custom_call.1']
    #allocation8 [shape = 's32[2]{0}', space=sflag, size = 0x8, scoped, tag = 'scoped memory for tpu_custom_call.1']
    #allocation9 [shape = 'u8[4096]{0}', space=vmem, size = 0x1000, scoped, tag = 'input window, operand 1']
    #allocation10 [shape = 's32[2]{0}', space=sflag, size = 0x8, scoped, tag = 'scoped memory for tpu_custom_call.1']
    #allocation11 [shape = 'u8[4096]{0}', space=vmem, size = 0x1000, scoped, tag = 'input window, operand 2']
    #allocation12 [shape = 'u8[8192]{0}', space=vmem, size = 0x2000, scoped, tag = 'input window, operand 4, single buffered']
    #allocation13 [shape = 's32[1]{0}', space=sflag, size = 0x4, scoped, tag = 'scoped memory for tpu_custom_call.1']
    #allocation14 [shape = 'u8[262144]{0}', space=vmem, size = 0x40000, scoped, tag = 'input window, operand 5, single buffered']
    #allocation15 [shape = 'u8[65536]{0}', space=vmem, size = 0x10000, scoped, tag = 'input window, operand 6, single buffered']
    #allocation16 [shape = 's32[1]{0}', space=sflag, size = 0x4, scoped, tag = 'scoped memory for tpu_custom_call.1']
    #allocation17 [shape = 'u8[65536]{0}', space=vmem, size = 0x10000, scoped, tag = 'input window, operand 8, single buffered']
    #allocation18 [shape = 'u8[8192]{0}', space=vmem, size = 0x2000, scoped, tag = 'output window, operand 0']
    %14 = vsyncpa [#allocation7], 0
    %s15 = scalar_lea.sflag [#allocation7], 1
    %16 = vsyncpa %s15, 0
    %17 = vsyncpa [#allocation10], 0
    %s18 = scalar_lea.sflag [#allocation10], 1
    %19 = vsyncpa %s18, 0
    %20 = vsyncpa [#allocation13], 0
    %21 = vsyncpa [#allocation16], 0
    %22 = vsyncpa [#allocation8], 0
    %s23 = scalar_lea.sflag [#allocation8], 1
    %24 = vsyncpa %s23, 0
    loop: start=0, step=1, limit=4
    $region2: #{tpu_custom_call.1} parent=1 // loop_pre_header
      _
    $region3: #{tpu_custom_call.1} parent=1 // loop_header
      %s26 = sphi 0, %s30
      %p27 = scmp.ge.s32.totalorder %s26, 4
      %s33 = sphi 0, %s45
      %s34 = sphi 0, %s41
      %s35 = sphi 0, %s33
      %s36 = sphi 0, %s34
      %s37 = sphi 0, %s35
      %s38 = sphi 0, %s36
      %s48 = sphi 0, %s50
      %s51 = sphi 0, %s48
      %s52 = sphi 0, %s51
      %s68 = sphi 0, %s52
      %s74 = sphi 0, %s76
      %s77 = sphi 0, %s74
      %s78 = sphi 0, %s77
      %s94 = sphi 0, %s78
      %s102 = sphi 0, %s104
      %s105 = sphi 0, %s102
      %s106 = sphi 0, %s105
      %s122 = sphi 0, %s106
      %s130 = sphi 0, %s132
      %s133 = sphi 0, %s130
      %s134 = sphi 0, %s133
      %s150 = sphi 0, %s134
      %s154 = sphi 0, %s154
      %s156 = sphi 0, %s154
      %s157 = sphi 0, %s156
      %s171 = sphi 0, %s157
      %s175 = sphi 0, %s175
      %s177 = sphi 0, %s175
      %s178 = sphi 0, %s177
      %s192 = sphi 0, %s178
      %s196 = sphi 0, %s196
      %s198 = sphi 0, %s196
      %s199 = sphi 0, %s198
      %s213 = sphi 0, %s199
      %s217 = sphi 0, %s217
      %s219 = sphi 0, %s217
      %s220 = sphi 0, %s219
      %s234 = sphi 0, %s220
      %s238 = sphi 0, %s238
      %s240 = sphi 0, %s238
      %s241 = sphi 0, %s240
      %s255 = sphi 0, %s241
      %s263 = sphi 0, %s265
      %s266 = sphi 0, %s263
      %s267 = sphi 0, %s266
      %s283 = sphi 0, %s267
    $region4: #{tpu_custom_call.1} parent=1 // loop_header_branch
      %29 = sbr.rel (%p27) target = $region8
    $region5: #{tpu_custom_call.1} parent=1 // loop_body
      %s31 = ssub.s32 %s26, 1
      %s32 = ssub.s32 %s26, 2
      %s39 = sadd.s32 1, %s34
      %p40 = scmp.ge.s32.totalorder %s39, 1
      %s41 = scalar_select %p40, 0, %s39
      %s42 = sadd.s32 1, %s33
      %s43 = scalar_select %p40, %s42, %s33
      %p44 = scmp.ge.s32.totalorder %s43, 2
      %s45 = scalar_select %p44, 0, %s43
      %s46 = ssub.s32 %s33, %s45
      %p47 = scmp.eq.s32.totalorder %s46, 0
      %s49 = sadd.s32 %s48, 1
      %s50 = scalar_select %p47, %s48, %s49
      %p53 = pneg %p47
      %p54 = scmp.eq.s32.totalorder %s26, 1
      %p55 = por %p53, %p54
      %p56 = scmp.ne.s32.totalorder %s48, %s51
      %p57 = scmp.eq.s32.totalorder %s26, 0
      %p58 = por %p56, %p57
      %p59 = scmp.ne.s32.totalorder %s48, %s51
      %p60 = scmp.eq.s32.totalorder %s31, 1
      %p61 = por %p59, %p60
      %p62 = scmp.ne.s32.totalorder %s51, %s52
      %p63 = scmp.eq.s32.totalorder %s31, 0
      %p64 = por %p62, %p63
      %p65 = scmp.ne.s32.totalorder %s51, %s52
      %p66 = scmp.eq.s32.totalorder %s32, 1
      %p67 = por %p65, %p66
      %p69 = scmp.ne.s32.totalorder %s52, %s68
      %p70 = scmp.eq.s32.totalorder %s32, 0
      %p71 = por %p69, %p70
      %s72 = ssub.s32 %s33, %s45
      %p73 = scmp.eq.s32.totalorder %s72, 0
      %s75 = sadd.s32 %s74, 1
      %s76 = scalar_select %p73, %s74, %s75
      %p79 = pneg %p73
      %p80 = scmp.eq.s32.totalorder %s26, 1
      %p81 = por %p79, %p80
      %p82 = scmp.ne.s32.totalorder %s74, %s77
      %p83 = scmp.eq.s32.totalorder %s26, 0
      %p84 = por %p82, %p83
      %p85 = scmp.ne.s32.totalorder %s74, %s77
      %p86 = scmp.eq.s32.totalorder %s31, 1
      %p87 = por %p85, %p86
      %p88 = scmp.ne.s32.totalorder %s77, %s78
      %p89 = scmp.eq.s32.totalorder %s31, 0
      %p90 = por %p88, %p89
      %p91 = scmp.ne.s32.totalorder %s77, %s78
      %p92 = scmp.eq.s32.totalorder %s32, 1
      %p93 = por %p91, %p92
      %p95 = scmp.ne.s32.totalorder %s78, %s94
      %p96 = scmp.eq.s32.totalorder %s32, 0
      %p97 = por %p95, %p96
      %s98 = ssub.s32 %s33, %s45
      %s99 = ssub.s32 %s34, %s41
      %s100 = sor.u32 %s98, %s99
      %p101 = scmp.eq.s32.totalorder %s100, 0
      %s103 = sadd.s32 %s102, 1
      %s104 = scalar_select %p101, %s102, %s103
      %p107 = pneg %p101
      %p108 = scmp.eq.s32.totalorder %s26, 1
      %p109 = por %p107, %p108
      %p110 = scmp.ne.s32.totalorder %s102, %s105
      %p111 = scmp.eq.s32.totalorder %s26, 0
      %p112 = por %p110, %p111
      %p113 = scmp.ne.s32.totalorder %s102, %s105
      %p114 = scmp.eq.s32.totalorder %s31, 1
      %p115 = por %p113, %p114
      %p116 = scmp.ne.s32.totalorder %s105, %s106
      %p117 = scmp.eq.s32.totalorder %s31, 0
      %p118 = por %p116, %p117
      %p119 = scmp.ne.s32.totalorder %s105, %s106
      %p120 = scmp.eq.s32.totalorder %s32, 1
      %p121 = por %p119, %p120
      %p123 = scmp.ne.s32.totalorder %s106, %s122
      %p124 = scmp.eq.s32.totalorder %s32, 0
      %p125 = por %p123, %p124
      %s126 = ssub.s32 %s33, %s45
      %s127 = ssub.s32 %s34, %s41
      %s128 = sor.u32 %s126, %s127
      %p129 = scmp.eq.s32.totalorder %s128, 0
      %s131 = sadd.s32 %s130, 1
      %s132 = scalar_select %p129, %s130, %s131
      %p135 = pneg %p129
      %p136 = scmp.eq.s32.totalorder %s26, 1
      %p137 = por %p135, %p136
      %p138 = scmp.ne.s32.totalorder %s130, %s133
      %p139 = scmp.eq.s32.totalorder %s26, 0
      %p140 = por %p138, %p139
      %p141 = scmp.ne.s32.totalorder %s130, %s133
      %p142 = scmp.eq.s32.totalorder %s31, 1
      %p143 = por %p141, %p142
      %p144 = scmp.ne.s32.totalorder %s133, %s134
      %p145 = scmp.eq.s32.totalorder %s31, 0
      %p146 = por %p144, %p145
      %p147 = scmp.ne.s32.totalorder %s133, %s134
      %p148 = scmp.eq.s32.totalorder %s32, 1
      %p149 = por %p147, %p148
      %p151 = scmp.ne.s32.totalorder %s134, %s150
      %p152 = scmp.eq.s32.totalorder %s32, 0
      %p153 = por %p151, %p152
      %s155 = sadd.s32 %s154, 1
      %p158 = scmp.eq.s32.totalorder %s26, 1
      %p159 = scmp.ne.s32.totalorder %s154, %s156
      %p160 = scmp.eq.s32.totalorder %s26, 0
      %p161 = por %p159, %p160
      %p162 = scmp.ne.s32.totalorder %s154, %s156
      %p163 = scmp.eq.s32.totalorder %s31, 1
      %p164 = por %p162, %p163
      %p165 = scmp.ne.s32.totalorder %s156, %s157
      %p166 = scmp.eq.s32.totalorder %s31, 0
      %p167 = por %p165, %p166
      %p168 = scmp.ne.s32.totalorder %s156, %s157
      %p169 = scmp.eq.s32.totalorder %s32, 1
      %p170 = por %p168, %p169
      %p172 = scmp.ne.s32.totalorder %s157, %s171
      %p173 = scmp.eq.s32.totalorder %s32, 0
      %p174 = por %p172, %p173
      %s176 = sadd.s32 %s175, 1
      %p179 = scmp.eq.s32.totalorder %s26, 1
      %p180 = scmp.ne.s32.totalorder %s175, %s177
      %p181 = scmp.eq.s32.totalorder %s26, 0
      %p182 = por %p180, %p181
      %p183 = scmp.ne.s32.totalorder %s175, %s177
      %p184 = scmp.eq.s32.totalorder %s31, 1
      %p185 = por %p183, %p184
      %p186 = scmp.ne.s32.totalorder %s177, %s178
      %p187 = scmp.eq.s32.totalorder %s31, 0
      %p188 = por %p186, %p187
      %p189 = scmp.ne.s32.totalorder %s177, %s178
      %p190 = scmp.eq.s32.totalorder %s32, 1
      %p191 = por %p189, %p190
      %p193 = scmp.ne.s32.totalorder %s178, %s192
      %p194 = scmp.eq.s32.totalorder %s32, 0
      %p195 = por %p193, %p194
      %s197 = sadd.s32 %s196, 1
      %p200 = scmp.eq.s32.totalorder %s26, 1
      %p201 = scmp.ne.s32.totalorder %s196, %s198
      %p202 = scmp.eq.s32.totalorder %s26, 0
      %p203 = por %p201, %p202
      %p204 = scmp.ne.s32.totalorder %s196, %s198
      %p205 = scmp.eq.s32.totalorder %s31, 1
      %p206 = por %p204, %p205
      %p207 = scmp.ne.s32.totalorder %s198, %s199
      %p208 = scmp.eq.s32.totalorder %s31, 0
      %p209 = por %p207, %p208
      %p210 = scmp.ne.s32.totalorder %s198, %s199
      %p211 = scmp.eq.s32.totalorder %s32, 1
      %p212 = por %p210, %p211
      %p214 = scmp.ne.s32.totalorder %s199, %s213
      %p215 = scmp.eq.s32.totalorder %s32, 0
      %p216 = por %p214, %p215
      %s218 = sadd.s32 %s217, 1
      %p221 = scmp.eq.s32.totalorder %s26, 1
      %p222 = scmp.ne.s32.totalorder %s217, %s219
      %p223 = scmp.eq.s32.totalorder %s26, 0
      %p224 = por %p222, %p223
      %p225 = scmp.ne.s32.totalorder %s217, %s219
      %p226 = scmp.eq.s32.totalorder %s31, 1
      %p227 = por %p225, %p226
      %p228 = scmp.ne.s32.totalorder %s219, %s220
      %p229 = scmp.eq.s32.totalorder %s31, 0
      %p230 = por %p228, %p229
      %p231 = scmp.ne.s32.totalorder %s219, %s220
      %p232 = scmp.eq.s32.totalorder %s32, 1
      %p233 = por %p231, %p232
      %p235 = scmp.ne.s32.totalorder %s220, %s234
      %p236 = scmp.eq.s32.totalorder %s32, 0
      %p237 = por %p235, %p236
      %s239 = sadd.s32 %s238, 1
      %p242 = scmp.eq.s32.totalorder %s26, 1
      %p243 = scmp.ne.s32.totalorder %s238, %s240
      %p244 = scmp.eq.s32.totalorder %s26, 0
      %p245 = por %p243, %p244
      %p246 = scmp.ne.s32.totalorder %s238, %s240
      %p247 = scmp.eq.s32.totalorder %s31, 1
      %p248 = por %p246, %p247
      %p249 = scmp.ne.s32.totalorder %s240, %s241
      %p250 = scmp.eq.s32.totalorder %s31, 0
      %p251 = por %p249, %p250
      %p252 = scmp.ne.s32.totalorder %s240, %s241
      %p253 = scmp.eq.s32.totalorder %s32, 1
      %p254 = por %p252, %p253
      %p256 = scmp.ne.s32.totalorder %s241, %s255
      %p257 = scmp.eq.s32.totalorder %s32, 0
      %p258 = por %p256, %p257
      %s259 = ssub.s32 %s33, %s45
      %s260 = ssub.s32 %s34, %s41
      %s261 = sor.u32 %s259, %s260
      %p262 = scmp.eq.s32.totalorder %s261, 0
      %s264 = sadd.s32 %s263, 1
      %s265 = scalar_select %p262, %s263, %s264
      %p268 = pneg %p262
      %p269 = scmp.eq.s32.totalorder %s26, 1
      %p270 = por %p268, %p269
      %p271 = scmp.ne.s32.totalorder %s263, %s266
      %p272 = scmp.eq.s32.totalorder %s26, 0
      %p273 = por %p271, %p272
      %p274 = scmp.ne.s32.totalorder %s263, %s266
      %p275 = scmp.eq.s32.totalorder %s31, 1
      %p276 = por %p274, %p275
      %p277 = scmp.ne.s32.totalorder %s266, %s267
      %p278 = scmp.eq.s32.totalorder %s31, 0
      %p279 = por %p277, %p278
      %p280 = scmp.ne.s32.totalorder %s266, %s267
      %p281 = scmp.eq.s32.totalorder %s32, 1
      %p282 = por %p280, %p281
      %p284 = scmp.ne.s32.totalorder %s267, %s283
      %p285 = scmp.eq.s32.totalorder %s32, 0
      %p286 = por %p284, %p285
      %p287 = scmp.le.s32.totalorder 1, %s26
      %p288 = scmp.lt.s32.totalorder %s26, 3
      %p289 = pnand %p287, %p288
      %p290 = pneg %p289
      // Predicated region
      $region9: #{tpu_custom_call.1} parent=5 // pred_check
        _
      $region10: #{tpu_custom_call.1} parent=5 // pred_check_branch
        %292 = sbr.rel (%p289) target = $region12
      $region11: #{tpu_custom_call.1} parent=5 // pred_region
        %s293 = ssub.s32 %s26, 1
        // Predicated region
        $region13: #{tpu_custom_call.1} parent=11 // pred_check
          %p294 = pneg %p167
        $region14: #{tpu_custom_call.1} parent=11 // pred_check_branch
          %296 = sbr.rel (%p294) target = $region16
        $region15: #{tpu_custom_call.1} parent=11 // pred_region
          %s298 = ssub.s32 256, 256
          %299 = vsyncadd [#allocation13], %s298
          %s300 = sshll.u32 [#allocation12], 4
          %s301 = int_to_ptr.vmem [resolvable:$true] %s300
          %306 = dma.hbm_to_vmem [thread:$0]  %s4, 256, %s301, [#allocation13], 128, 128, 8
        $region16: #{tpu_custom_call.1} parent=11 // pred_fallthru
          _
        // Predicated region
        $region17: #{tpu_custom_call.1} parent=11 // pred_check
          %p307 = pneg %p188
        $region18: #{tpu_custom_call.1} parent=11 // pred_check_branch
          %309 = sbr.rel (%p307) target = $region20
        $region19: #{tpu_custom_call.1} parent=11 // pred_region
          %s311 = ssub.s32 8192, 8192
          %312 = vsyncadd [#allocation13], %s311
          %s313 = sshll.u32 [#allocation14], 4
          %s314 = int_to_ptr.vmem [resolvable:$true] %s313
          %319 = dma.hbm_to_vmem [thread:$0]  %s5, 8192, %s314, [#allocation13], 64, 64, 4
        $region20: #{tpu_custom_call.1} parent=11 // pred_fallthru
          _
        // Predicated region
        $region21: #{tpu_custom_call.1} parent=11 // pred_check
          %p320 = pneg %p209
        $region22: #{tpu_custom_call.1} parent=11 // pred_check_branch
          %322 = sbr.rel (%p320) target = $region24
        $region23: #{tpu_custom_call.1} parent=11 // pred_region
          %s324 = ssub.s32 2048, 2048
          %325 = vsyncadd [#allocation16], %s324
          %s326 = sshll.u32 [#allocation15], 4
          %s327 = int_to_ptr.vmem [resolvable:$true] %s326
          %332 = dma.hbm_to_vmem [thread:$0]  %s6, 2048, %s327, [#allocation16], 128, 128, 8
        $region24: #{tpu_custom_call.1} parent=11 // pred_fallthru
          _
        // Predicated region
        $region25: #{tpu_custom_call.1} parent=11 // pred_check
          %p333 = pneg %p230
        $region26: #{tpu_custom_call.1} parent=11 // pred_check_branch
          %335 = sbr.rel (%p333) target = $region28
        $region27: #{tpu_custom_call.1} parent=11 // pred_region
          _
        $region28: #{tpu_custom_call.1} parent=11 // pred_fallthru
          _
        // Predicated region
        $region29: #{tpu_custom_call.1} parent=11 // pred_check
          %p336 = pneg %p251
        $region30: #{tpu_custom_call.1} parent=11 // pred_check_branch
          %338 = sbr.rel (%p336) target = $region32
        $region31: #{tpu_custom_call.1} parent=11 // pred_region
          %s340 = ssub.s32 2048, 2048
          %341 = vsyncadd [#allocation16], %s340
          %s342 = sshll.u32 [#allocation17], 4
          %s343 = int_to_ptr.vmem [resolvable:$true] %s342
          %348 = dma.hbm_to_vmem [thread:$0]  %s8, 2048, %s343, [#allocation16], 64, 64, 4
        $region32: #{tpu_custom_call.1} parent=11 // pred_fallthru
          _
      $region12: #{tpu_custom_call.1} parent=5 // pred_fallthru
        _
      %p349 = scmp.lt.s32.totalorder %s26, 2
      // Predicated region
      $region33: #{tpu_custom_call.1} parent=5 // pred_check
        %p350 = pneg %p349
      $region34: #{tpu_custom_call.1} parent=5 // pred_check_branch
        %352 = sbr.rel (%p350) target = $region36
      $region35: #{tpu_custom_call.1} parent=5 // pred_region
        // Predicated region
        $region37: #{tpu_custom_call.1} parent=35 // pred_check
          %p353 = pneg %p58
        $region38: #{tpu_custom_call.1} parent=35 // pred_check_branch
          %355 = sbr.rel (%p353) target = $region40
        $region39: #{tpu_custom_call.1} parent=35 // pred_region
          %s356 = sand.u32 %s48, 1
          %s357 = scalar_lea.sflag [#allocation7], %s356
          %s358 = sand.u32 %s48, 1
          %s359 = smul.addr %s358, 4
          %s360 = scalar_lea.vmem [#allocation6], %s359
          %s362 = ssub.s32 64, 64
          %363 = vsyncadd %s357, %s362
          %s364 = smul.addr %s33, 64
          %s365 = scalar_lea.hbm %s0, %s364
          %s367 = sshll.u32 %s360, 4
          %s368 = int_to_ptr.vmem [resolvable:$true] %s367
          %370 = dma.hbm_to_vmem [thread:$0]  %s365, 64, %s368, %s357
        $region40: #{tpu_custom_call.1} parent=35 // pred_fallthru
          _
        // Predicated region
        $region41: #{tpu_custom_call.1} parent=35 // pred_check
          %p371 = pneg %p84
        $region42: #{tpu_custom_call.1} parent=35 // pred_check_branch
          %373 = sbr.rel (%p371) target = $region44
        $region43: #{tpu_custom_call.1} parent=35 // pred_region
          %s374 = sand.u32 %s26, 1
          %s375 = scalar_lea.sflag [#allocation10], %s374
          %s376 = sand.u32 %s74, 1
          %s377 = smul.addr %s376, 4
          %s378 = scalar_lea.vmem [#allocation9], %s377
          %s380 = ssub.s32 64, 64
          %381 = vsyncadd %s375, %s380
          %s382 = smul.addr %s33, 64
          %s383 = scalar_lea.hbm %s1, %s382
          %s385 = sshll.u32 %s378, 4
          %s386 = int_to_ptr.vmem [resolvable:$true] %s385
          %388 = dma.hbm_to_vmem [thread:$0]  %s383, 64, %s386, %s375
        $region44: #{tpu_custom_call.1} parent=35 // pred_fallthru
          _
        // Predicated region
        $region45: #{tpu_custom_call.1} parent=35 // pred_check
          %p389 = pneg %p112
        $region46: #{tpu_custom_call.1} parent=35 // pred_check_branch
          %391 = sbr.rel (%p389) target = $region48
        $region47: #{tpu_custom_call.1} parent=35 // pred_region
          %s392 = sand.u32 %s26, 1
          %s393 = scalar_lea.sflag [#allocation10], %s392
          %s394 = sand.u32 %s102, 1
          %s395 = smul.addr %s394, 4
          %s396 = scalar_lea.vmem [#allocation11], %s395
          %s398 = ssub.s32 64, 64
          %399 = vsyncadd %s393, %s398
          %s400 = sadd.s32 %s34, %s33
          %s401 = smul.addr %s400, 64
          %s402 = scalar_lea.hbm %s2, %s401
          %s404 = sshll.u32 %s396, 4
          %s405 = int_to_ptr.vmem [resolvable:$true] %s404
          %407 = dma.hbm_to_vmem [thread:$0]  %s402, 64, %s405, %s393
        $region48: #{tpu_custom_call.1} parent=35 // pred_fallthru
          _
        // Predicated region
        $region49: #{tpu_custom_call.1} parent=35 // pred_check
          %p408 = pneg %p140
        $region50: #{tpu_custom_call.1} parent=35 // pred_check_branch
          %410 = sbr.rel (%p408) target = $region52
        $region51: #{tpu_custom_call.1} parent=35 // pred_region
          %p411 = scmp.lt.s32.totalorder %s33, 1
          %s412 = scalar_select %p411, %s33, 1
          %p413 = scmp.lt.s32.totalorder %s34, 0
          %s414 = scalar_select %p413, %s34, 0
          %s415 = sadd.s32 %s414, %s412
          %s416 = smul.addr %s415, 4
          %s417 = scalar_lea.vmem %s3, %s416
        $region52: #{tpu_custom_call.1} parent=35 // pred_fallthru
          _
      $region36: #{tpu_custom_call.1} parent=5 // pred_fallthru
        _
      %p418 = scmp.le.s32.totalorder 1, %s26
      %p419 = scmp.lt.s32.totalorder %s26, 3
      %p420 = pnand %p418, %p419
      %p421 = pneg %p420
      // Predicated region
      $region53: #{tpu_custom_call.1} parent=5 // pred_check
        _
      $region54: #{tpu_custom_call.1} parent=5 // pred_check_branch
        %423 = sbr.rel (%p420) target = $region56
      $region55: #{tpu_custom_call.1} parent=5 // pred_region
        %s424 = ssub.s32 %s26, 1
        %s425 = sand.u32 %s51, 1
        %s426 = scalar_lea.sflag [#allocation7], %s425
        %s427 = sand.u32 %s51, 1
        %s428 = smul.addr %s427, 4
        %s429 = scalar_lea.vmem [#allocation6], %s428
        // Predicated region
        $region57: #{tpu_custom_call.1} parent=55 // pred_check
          %p430 = pneg %p64
        $region58: #{tpu_custom_call.1} parent=55 // pred_check_branch
          %432 = sbr.rel (%p430) target = $region60
        $region59: #{tpu_custom_call.1} parent=55 // pred_region
          %433 = dma.done %s426, 64
        $region60: #{tpu_custom_call.1} parent=55 // pred_fallthru
          _
        %s434 = sand.u32 %s31, 1
        %s435 = scalar_lea.sflag [#allocation10], %s434
        %s436 = sand.u32 %s77, 1
        %s437 = smul.addr %s436, 4
        %s438 = scalar_lea.vmem [#allocation9], %s437
        // Predicated region
        $region61: #{tpu_custom_call.1} parent=55 // pred_check
          %p439 = pneg %p90
        $region62: #{tpu_custom_call.1} parent=55 // pred_check_branch
          %441 = sbr.rel (%p439) target = $region64
        $region63: #{tpu_custom_call.1} parent=55 // pred_region
          %442 = dma.done %s435, 64
        $region64: #{tpu_custom_call.1} parent=55 // pred_fallthru
          _
        %s443 = sand.u32 %s31, 1
        %s444 = scalar_lea.sflag [#allocation10], %s443
        %s445 = sand.u32 %s105, 1
        %s446 = smul.addr %s445, 4
        %s447 = scalar_lea.vmem [#allocation11], %s446
        // Predicated region
        $region65: #{tpu_custom_call.1} parent=55 // pred_check
          %p448 = pneg %p118
        $region66: #{tpu_custom_call.1} parent=55 // pred_check_branch
          %450 = sbr.rel (%p448) target = $region68
        $region67: #{tpu_custom_call.1} parent=55 // pred_region
          %451 = dma.done %s444, 64
        $region68: #{tpu_custom_call.1} parent=55 // pred_fallthru
          _
        // Predicated region
        $region69: #{tpu_custom_call.1} parent=55 // pred_check
          %p452 = pneg %p167
        $region70: #{tpu_custom_call.1} parent=55 // pred_check_branch
          %454 = sbr.rel (%p452) target = $region72
        $region71: #{tpu_custom_call.1} parent=55 // pred_region
          %455 = dma.done [#allocation13], 256
        $region72: #{tpu_custom_call.1} parent=55 // pred_fallthru
          _
        // Predicated region
        $region73: #{tpu_custom_call.1} parent=55 // pred_check
          %p456 = pneg %p188
        $region74: #{tpu_custom_call.1} parent=55 // pred_check_branch
          %458 = sbr.rel (%p456) target = $region76
        $region75: #{tpu_custom_call.1} parent=55 // pred_region
          %459 = dma.done [#allocation13], 8192
        $region76: #{tpu_custom_call.1} parent=55 // pred_fallthru
          _
        // Predicated region
        $region77: #{tpu_custom_call.1} parent=55 // pred_check
          %p460 = pneg %p209
        $region78: #{tpu_custom_call.1} parent=55 // pred_check_branch
          %462 = sbr.rel (%p460) target = $region80
        $region79: #{tpu_custom_call.1} parent=55 // pred_region
          %463 = dma.done [#allocation16], 2048
        $region80: #{tpu_custom_call.1} parent=55 // pred_fallthru
          _
        // Predicated region
        $region81: #{tpu_custom_call.1} parent=55 // pred_check
          %p464 = pneg %p251
        $region82: #{tpu_custom_call.1} parent=55 // pred_check_branch
          %466 = sbr.rel (%p464) target = $region84
        $region83: #{tpu_custom_call.1} parent=55 // pred_region
          %467 = dma.done [#allocation16], 2048
        $region84: #{tpu_custom_call.1} parent=55 // pred_fallthru
          _
        %s468 = sand.u32 %s51, 1
        %s469 = scalar_lea.sflag [#allocation7], %s468
        %s470 = sand.u32 %s51, 1
        %s471 = smul.addr %s470, 4
        %s472 = scalar_lea.vmem [#allocation6], %s471
        %p473 = pneg %p64
        %p474 = pneg %p61
        %s475 = sand.u32 %s31, 1
        %s476 = scalar_lea.sflag [#allocation10], %s475
        %s477 = sand.u32 %s77, 1
        %s478 = smul.addr %s477, 4
        %s479 = scalar_lea.vmem [#allocation9], %s478
        %p480 = pneg %p90
        %p481 = pneg %p87
        %s482 = sand.u32 %s31, 1
        %s483 = scalar_lea.sflag [#allocation10], %s482
        %s484 = sand.u32 %s105, 1
        %s485 = smul.addr %s484, 4
        %s486 = scalar_lea.vmem [#allocation11], %s485
        %p487 = pneg %p118
        %p488 = pneg %p115
        %p489 = scmp.lt.s32.totalorder %s35, 1
        %s490 = scalar_select %p489, %s35, 1
        %p491 = scmp.lt.s32.totalorder %s36, 0
        %s492 = scalar_select %p491, %s36, 0
        %s493 = sadd.s32 %s492, %s490
        %s494 = smul.addr %s493, 4
        %s495 = scalar_lea.vmem %s3, %s494
        %p496 = pneg %p146
        %p497 = pneg %p143
        %p498 = pneg %p167
        %p499 = pneg %p164
        %p500 = pneg %p188
        %p501 = pneg %p185
        %p502 = pneg %p209
        %p503 = pneg %p206
        %p504 = pneg %p230
        %p505 = pneg %p227
        %p506 = pneg %p251
        %p507 = pneg %p248
        %p508 = pneg %p279
        %p509 = pneg %p276
        %s510 = sand.u32 %s266, 1
        %s511 = scalar_lea.sflag [#allocation8], %s510
        %s512 = sand.u32 %s266, 1
        %s513 = smul.addr %s512, 8
        %s514 = scalar_lea.vmem [#allocation18], %s513
        %p515 = scmp.lt.s32.totalorder %s35, 1
        %s516 = scalar_select %p515, %s35, 1
        %p517 = scmp.lt.s32.totalorder %s36, 0
        %s518 = scalar_select %p517, %s36, 0
        %s519 = sadd.s32 %s518, %s516
        %s520 = smul.addr %s519, 4
        %s521 = scalar_lea.vmem %s3, %s520
        %p523 = scmp.eq.s32.totalorder %s36, 0
        // Predicated region
        $region85: #{tpu_custom_call.1} parent=55 // pred_check
          %p524 = pneg %p523
        $region86: #{tpu_custom_call.1} parent=55 // pred_check_branch
          %526 = sbr.rel (%p524) target = $region88
        $region87: #{tpu_custom_call.1} parent=55 // pred_region
          %v527 = vld [vmem:[%s429] sm:$0xf]
          %v528 = vunpack.c.l.bf16 %v527
          %v529 = vld [vmem:[#allocation12] sm:$0x1]
          %v530 = vld [vmem:[#allocation12 + $0x1] sm:$0x1]
          %531 = vadd.xlane.f32.xlu0 %v528
          %v532 = vpop.xlane.xlu0 %531
          %v533 = vrcp.pop 128.0
          %v534 = vmul.f32 %v532, %v533
          %v535 = vsub.f32 %v528, %v534
          %v536 = vmul.f32 %v535, %v535
          %537 = vadd.xlane.f32.xlu0 %v536
          %v538 = vpop.xlane.xlu0 %537
          %v539 = vmul.f32 %v538, 0.007874016
          %v540 = vrsqrt.pop %v539
          %v541 = vmul.f32 %v539, %v540
          %vm542 = vcmp.eq.f32.partialorder %v539, inf
          %v543 = vsel %vm542, %v539, %v541
          %vm544 = vcmp.eq.f32.partialorder %v539, 0.0
          %v545 = vand.u32 %v539, 2147483648
          %v546 = vsel %vm544, %v545, %v543
          %v547 = vadd.f32 %v546, 1e-06
          %v548 = vrcp.pop %v547
          %v549 = vlaneseq
          %v550 = vshrl.u32 %v549, 7
          %v551 = vsub.s32 0, %v550
          %v552 = vrot.slane %v529, %v551
          %v553 = vmul.f32 %v552, %v535
          %v554 = vmul.f32 %v553, %v548
          %v555 = vlaneseq
          %v556 = vshrl.u32 %v555, 7
          %v557 = vsub.s32 0, %v556
          %v558 = vrot.slane %v530, %v557
          %v559 = vadd.f32 %v554, %v558
          %v560 = vpack.c.bf16 %v559, %v559
          %s561 = scalar_lea.vmem [#allocation14], 64
          %v562 = vld [vmem:[%s561] sm:$0xf]
          %v563 = vld [vmem:[%s561 + $0x4] sm:$0xf]
          %v564 = vld [vmem:[%s561 + $0x8] sm:$0xf]
          %v565 = vld [vmem:[%s561 + $0xc] sm:$0xf]
          %v566 = vld [vmem:[%s561 + $0x10] sm:$0xf]
          %v567 = vld [vmem:[%s561 + $0x14] sm:$0xf]
          %v568 = vld [vmem:[%s561 + $0x18] sm:$0xf]
          %v569 = vld [vmem:[%s561 + $0x1c] sm:$0xf]
          %v570 = vld [vmem:[%s561 + $0x20] sm:$0xf]
          %v571 = vld [vmem:[%s561 + $0x24] sm:$0xf]
          %v572 = vld [vmem:[%s561 + $0x28] sm:$0xf]
          %v573 = vld [vmem:[%s561 + $0x2c] sm:$0xf]
          %v574 = vld [vmem:[%s561 + $0x30] sm:$0xf]
          %v575 = vld [vmem:[%s561 + $0x34] sm:$0xf]
          %v576 = vld [vmem:[%s561 + $0x38] sm:$0xf]
          %v577 = vld [vmem:[%s561 + $0x3c] sm:$0xf]
          %v578 = vld [vmem:[#allocation12 + $0x7] sm:$0x1]
          %v579 = vlaneseq
          %v580 = vshrl.u32 %v579, 7
          %v581 = vsub.s32 0, %v580
          %v582 = vrot.slane %v578, %v581
          %v599 = vunpack.c.l.b16 %v562
          %v600 = vunpack.c.l.b16 %v563
          %v601 = vunpack.c.l.b16 %v564
          %v602 = vunpack.c.l.b16 %v565
          %v603 = vunpack.c.l.b16 %v566
          %v604 = vunpack.c.l.b16 %v567
          %v605 = vunpack.c.l.b16 %v568
          %v606 = vunpack.c.l.b16 %v569
          %v607 = vunpack.c.l.b16 %v570
          %v608 = vunpack.c.l.b16 %v571
          %v609 = vunpack.c.l.b16 %v572
          %v610 = vunpack.c.l.b16 %v573
          %v611 = vunpack.c.l.b16 %v574
          %v612 = vunpack.c.l.b16 %v575
          %v613 = vunpack.c.l.b16 %v576
          %v614 = vunpack.c.l.b16 %v577
          %v615 = vpack.c.b16 %v600, %v599
          %v616 = vpack.c.b16 %v602, %v601
          %v617 = vpack.c.b16 %v604, %v603
          %v618 = vpack.c.b16 %v606, %v605
          %v619 = vpack.c.b16 %v608, %v607
          %v620 = vpack.c.b16 %v610, %v609
          %v621 = vpack.c.b16 %v612, %v611
          %v622 = vpack.c.b16 %v614, %v613
          %631 = vmatprep.subr.bf16.mxu0 0
          %632 = vmatpush1.bf16.msra.mxu0 %v615
          %633 = vmatprep.subr.bf16.mxu0 0
          %634 = vmatpush1.bf16.msra.mxu0 %v616
          %635 = vmatprep.subr.bf16.mxu0 0
          %636 = vmatpush1.bf16.msra.mxu0 %v617
          %637 = vmatprep.subr.bf16.mxu0 0
          %638 = vmatpush1.bf16.msra.mxu0 %v618
          %639 = vmatprep.subr.bf16.mxu0 0
          %640 = vmatpush1.bf16.msra.mxu0 %v619
          %641 = vmatprep.subr.bf16.mxu0 0
          %642 = vmatpush1.bf16.msra.mxu0 %v620
          %643 = vmatprep.subr.bf16.mxu0 0
          %644 = vmatpush1.bf16.msra.mxu0 %v621
          %645 = vmatprep.subr.bf16.mxu0 0
          %646 = vmatpush1.bf16.msra.mxu0 %v622
          %647 = vmatprep.subr.bf16.mxu0 0
          %648 = vmatpush1.bf16.msra.mxu0 0
          %649 = vmatprep.subr.bf16.mxu0 0
          %650 = vmatpush1.bf16.msra.mxu0 0
          %651 = vmatprep.subr.bf16.mxu0 0
          %652 = vmatpush1.bf16.msra.mxu0 0
          %653 = vmatprep.subr.bf16.mxu0 0
          %654 = vmatpush1.bf16.msra.mxu0 0
          %655 = vmatprep.subr.bf16.mxu0 0
          %656 = vmatpush1.bf16.msra.mxu0 0
          %657 = vmatprep.subr.bf16.mxu0 0
          %658 = vmatpush1.bf16.msra.mxu0 0
          %659 = vmatprep.subr.bf16.mxu0 0
          %660 = vmatpush1.bf16.msra.mxu0 0
          %661 = vmatprep.subr.bf16.mxu0 0
          %662 = vmatpush1.bf16.msra.mxu0 0
          %663 = vmatprep.mubr.bf16.mxu0 0
          %664 = vmatmul.mubr.bf16.gmra.mrb[0].mxu0 %v560
          %v665 = vpop.f32.mrb[0].mxu0
          %v666 = vadd.f32 %v582, %v665
          %v667 = vpop.f32.mrb[0].mxu0
          %v668 = vpop.f32.mrb[0].mxu0
          %v669 = vpop.f32.mrb[0].mxu0
          %670 = vdwg.mxu0
          %v671 = vpack.c.bf16 %v666, %v666
          %672 = vst [vmem:[#allocation2] sm:$0xf] %v671
          %s673 = scalar_lea.vmem [#allocation14], 128
          %v674 = vld [vmem:[%s673] sm:$0xf]
          %v675 = vld [vmem:[%s673 + $0x4] sm:$0xf]
          %v676 = vld [vmem:[%s673 + $0x8] sm:$0xf]
          %v677 = vld [vmem:[%s673 + $0xc] sm:$0xf]
          %v678 = vld [vmem:[%s673 + $0x10] sm:$0xf]
          %v679 = vld [vmem:[%s673 + $0x14] sm:$0xf]
          %v680 = vld [vmem:[%s673 + $0x18] sm:$0xf]
          %v681 = vld [vmem:[%s673 + $0x1c] sm:$0xf]
          %v682 = vld [vmem:[%s673 + $0x20] sm:$0xf]
          %v683 = vld [vmem:[%s673 + $0x24] sm:$0xf]
          %v684 = vld [vmem:[%s673 + $0x28] sm:$0xf]
          %v685 = vld [vmem:[%s673 + $0x2c] sm:$0xf]
          %v686 = vld [vmem:[%s673 + $0x30] sm:$0xf]
          %v687 = vld [vmem:[%s673 + $0x34] sm:$0xf]
          %v688 = vld [vmem:[%s673 + $0x38] sm:$0xf]
          %v689 = vld [vmem:[%s673 + $0x3c] sm:$0xf]
          %v690 = vld [vmem:[#allocation12 + $0x8] sm:$0x1]
          %v691 = vlaneseq
          %v692 = vshrl.u32 %v691, 7
          %v693 = vsub.s32 0, %v692
          %v694 = vrot.slane %v690, %v693
          %v711 = vunpack.c.l.b16 %v674
          %v712 = vunpack.c.l.b16 %v675
          %v713 = vunpack.c.l.b16 %v676
          %v714 = vunpack.c.l.b16 %v677
          %v715 = vunpack.c.l.b16 %v678
          %v716 = vunpack.c.l.b16 %v679
          %v717 = vunpack.c.l.b16 %v680
          %v718 = vunpack.c.l.b16 %v681
          %v719 = vunpack.c.l.b16 %v682
          %v720 = vunpack.c.l.b16 %v683
          %v721 = vunpack.c.l.b16 %v684
          %v722 = vunpack.c.l.b16 %v685
          %v723 = vunpack.c.l.b16 %v686
          %v724 = vunpack.c.l.b16 %v687
          %v725 = vunpack.c.l.b16 %v688
          %v726 = vunpack.c.l.b16 %v689
          %v727 = vpack.c.b16 %v712, %v711
          %v728 = vpack.c.b16 %v714, %v713
          %v729 = vpack.c.b16 %v716, %v715
          %v730 = vpack.c.b16 %v718, %v717
          %v731 = vpack.c.b16 %v720, %v719
          %v732 = vpack.c.b16 %v722, %v721
          %v733 = vpack.c.b16 %v724, %v723
          %v734 = vpack.c.b16 %v726, %v725
          %743 = vmatprep.subr.bf16.mxu0 0
          %744 = vmatpush1.bf16.msra.mxu0 %v727
          %745 = vmatprep.subr.bf16.mxu0 0
          %746 = vmatpush1.bf16.msra.mxu0 %v728
          %747 = vmatprep.subr.bf16.mxu0 0
          %748 = vmatpush1.bf16.msra.mxu0 %v729
          %749 = vmatprep.subr.bf16.mxu0 0
          %750 = vmatpush1.bf16.msra.mxu0 %v730
          %751 = vmatprep.subr.bf16.mxu0 0
          %752 = vmatpush1.bf16.msra.mxu0 %v731
          %753 = vmatprep.subr.bf16.mxu0 0
          %754 = vmatpush1.bf16.msra.mxu0 %v732
          %755 = vmatprep.subr.bf16.mxu0 0
          %756 = vmatpush1.bf16.msra.mxu0 %v733
          %757 = vmatprep.subr.bf16.mxu0 0
          %758 = vmatpush1.bf16.msra.mxu0 %v734
          %759 = vmatprep.subr.bf16.mxu0 0
          %760 = vmatpush1.bf16.msra.mxu0 0
          %761 = vmatprep.subr.bf16.mxu0 0
          %762 = vmatpush1.bf16.msra.mxu0 0
          %763 = vmatprep.subr.bf16.mxu0 0
          %764 = vmatpush1.bf16.msra.mxu0 0
          %765 = vmatprep.subr.bf16.mxu0 0
          %766 = vmatpush1.bf16.msra.mxu0 0
          %767 = vmatprep.subr.bf16.mxu0 0
          %768 = vmatpush1.bf16.msra.mxu0 0
          %769 = vmatprep.subr.bf16.mxu0 0
          %770 = vmatpush1.bf16.msra.mxu0 0
          %771 = vmatprep.subr.bf16.mxu0 0
          %772 = vmatpush1.bf16.msra.mxu0 0
          %773 = vmatprep.subr.bf16.mxu0 0
          %774 = vmatpush1.bf16.msra.mxu0 0
          %775 = vmatprep.mubr.bf16.mxu0 0
          %776 = vmatmul.mubr.bf16.gmra.mrb[0].mxu0 %v560
          %v777 = vpop.f32.mrb[0].mxu0
          %v778 = vadd.f32 %v694, %v777
          %v779 = vpop.f32.mrb[0].mxu0
          %v780 = vpop.f32.mrb[0].mxu0
          %v781 = vpop.f32.mrb[0].mxu0
          %782 = vdwg.mxu0
          %v783 = vpack.c.bf16 %v778, %v778
          %784 = vst [vmem:[#allocation3] sm:$0xf] %v783
          %v785 = vld [vmem:[%s438] sm:$0xf]
          %s786 = scalar_lea.vmem [#allocation14], 320
          %v787 = vld [vmem:[%s786] sm:$0xf]
          %v788 = vld [vmem:[%s786 + $0x4] sm:$0xf]
          %v789 = vld [vmem:[%s786 + $0x8] sm:$0xf]
          %v790 = vld [vmem:[%s786 + $0xc] sm:$0xf]
          %v791 = vld [vmem:[%s786 + $0x10] sm:$0xf]
          %v792 = vld [vmem:[%s786 + $0x14] sm:$0xf]
          %v793 = vld [vmem:[%s786 + $0x18] sm:$0xf]
          %v794 = vld [vmem:[%s786 + $0x1c] sm:$0xf]
          %v795 = vld [vmem:[%s786 + $0x20] sm:$0xf]
          %v796 = vld [vmem:[%s786 + $0x24] sm:$0xf]
          %v797 = vld [vmem:[%s786 + $0x28] sm:$0xf]
          %v798 = vld [vmem:[%s786 + $0x2c] sm:$0xf]
          %v799 = vld [vmem:[%s786 + $0x30] sm:$0xf]
          %v800 = vld [vmem:[%s786 + $0x34] sm:$0xf]
          %v801 = vld [vmem:[%s786 + $0x38] sm:$0xf]
          %v802 = vld [vmem:[%s786 + $0x3c] sm:$0xf]
          %v803 = vld [vmem:[#allocation12 + $0xb] sm:$0x1]
          %v804 = vlaneseq
          %v805 = vshrl.u32 %v804, 7
          %v806 = vsub.s32 0, %v805
          %v807 = vrot.slane %v803, %v806
          %v824 = vunpack.c.l.b16 %v787
          %v825 = vunpack.c.l.b16 %v788
          %v826 = vunpack.c.l.b16 %v789
          %v827 = vunpack.c.l.b16 %v790
          %v828 = vunpack.c.l.b16 %v791
          %v829 = vunpack.c.l.b16 %v792
          %v830 = vunpack.c.l.b16 %v793
          %v831 = vunpack.c.l.b16 %v794
          %v832 = vunpack.c.l.b16 %v795
          %v833 = vunpack.c.l.b16 %v796
          %v834 = vunpack.c.l.b16 %v797
          %v835 = vunpack.c.l.b16 %v798
          %v836 = vunpack.c.l.b16 %v799
          %v837 = vunpack.c.l.b16 %v800
          %v838 = vunpack.c.l.b16 %v801
          %v839 = vunpack.c.l.b16 %v802
          %v840 = vpack.c.b16 %v825, %v824
          %v841 = vpack.c.b16 %v827, %v826
          %v842 = vpack.c.b16 %v829, %v828
          %v843 = vpack.c.b16 %v831, %v830
          %v844 = vpack.c.b16 %v833, %v832
          %v845 = vpack.c.b16 %v835, %v834
          %v846 = vpack.c.b16 %v837, %v836
          %v847 = vpack.c.b16 %v839, %v838
          %856 = vmatprep.subr.bf16.mxu0 0
          %857 = vmatpush1.bf16.msra.mxu0 %v840
          %858 = vmatprep.subr.bf16.mxu0 0
          %859 = vmatpush1.bf16.msra.mxu0 %v841
          %860 = vmatprep.subr.bf16.mxu0 0
          %861 = vmatpush1.bf16.msra.mxu0 %v842
          %862 = vmatprep.subr.bf16.mxu0 0
          %863 = vmatpush1.bf16.msra.mxu0 %v843
          %864 = vmatprep.subr.bf16.mxu0 0
          %865 = vmatpush1.bf16.msra.mxu0 %v844
          %866 = vmatprep.subr.bf16.mxu0 0
          %867 = vmatpush1.bf16.msra.mxu0 %v845
          %868 = vmatprep.subr.bf16.mxu0 0
          %869 = vmatpush1.bf16.msra.mxu0 %v846
          %870 = vmatprep.subr.bf16.mxu0 0
          %871 = vmatpush1.bf16.msra.mxu0 %v847
          %872 = vmatprep.subr.bf16.mxu0 0
          %873 = vmatpush1.bf16.msra.mxu0 0
          %874 = vmatprep.subr.bf16.mxu0 0
          %875 = vmatpush1.bf16.msra.mxu0 0
          %876 = vmatprep.subr.bf16.mxu0 0
          %877 = vmatpush1.bf16.msra.mxu0 0
          %878 = vmatprep.subr.bf16.mxu0 0
          %879 = vmatpush1.bf16.msra.mxu0 0
          %880 = vmatprep.subr.bf16.mxu0 0
          %881 = vmatpush1.bf16.msra.mxu0 0
          %882 = vmatprep.subr.bf16.mxu0 0
          %883 = vmatpush1.bf16.msra.mxu0 0
          %884 = vmatprep.subr.bf16.mxu0 0
          %885 = vmatpush1.bf16.msra.mxu0 0
          %886 = vmatprep.subr.bf16.mxu0 0
          %887 = vmatpush1.bf16.msra.mxu0 0
          %888 = vmatprep.mubr.bf16.mxu0 0
          %889 = vmatmul.mubr.bf16.gmra.mrb[0].mxu0 %v785
          %v890 = vpop.f32.mrb[0].mxu0
          %v891 = vadd.f32 %v807, %v890
          %v892 = vpop.f32.mrb[0].mxu0
          %v893 = vpop.f32.mrb[0].mxu0
          %v894 = vpop.f32.mrb[0].mxu0
          %895 = vdwg.mxu0
          %v896 = vpack.c.bf16 %v891, %v891
          %897 = vst [vmem:[#allocation4] sm:$0xf] %v896
          %s898 = scalar_lea.vmem [#allocation14], 384
          %v899 = vld [vmem:[%s898] sm:$0xf]
          %v900 = vld [vmem:[%s898 + $0x4] sm:$0xf]
          %v901 = vld [vmem:[%s898 + $0x8] sm:$0xf]
          %v902 = vld [vmem:[%s898 + $0xc] sm:$0xf]
          %v903 = vld [vmem:[%s898 + $0x10] sm:$0xf]
          %v904 = vld [vmem:[%s898 + $0x14] sm:$0xf]
          %v905 = vld [vmem:[%s898 + $0x18] sm:$0xf]
          %v906 = vld [vmem:[%s898 + $0x1c] sm:$0xf]
          %v907 = vld [vmem:[%s898 + $0x20] sm:$0xf]
          %v908 = vld [vmem:[%s898 + $0x24] sm:$0xf]
          %v909 = vld [vmem:[%s898 + $0x28] sm:$0xf]
          %v910 = vld [vmem:[%s898 + $0x2c] sm:$0xf]
          %v911 = vld [vmem:[%s898 + $0x30] sm:$0xf]
          %v912 = vld [vmem:[%s898 + $0x34] sm:$0xf]
          %v913 = vld [vmem:[%s898 + $0x38] sm:$0xf]
          %v914 = vld [vmem:[%s898 + $0x3c] sm:$0xf]
          %v915 = vld [vmem:[#allocation12 + $0xc] sm:$0x1]
          %v916 = vlaneseq
          %v917 = vshrl.u32 %v916, 7
          %v918 = vsub.s32 0, %v917
          %v919 = vrot.slane %v915, %v918
          %v936 = vunpack.c.l.b16 %v899
          %v937 = vunpack.c.l.b16 %v900
          %v938 = vunpack.c.l.b16 %v901
          %v939 = vunpack.c.l.b16 %v902
          %v940 = vunpack.c.l.b16 %v903
          %v941 = vunpack.c.l.b16 %v904
          %v942 = vunpack.c.l.b16 %v905
          %v943 = vunpack.c.l.b16 %v906
          %v944 = vunpack.c.l.b16 %v907
          %v945 = vunpack.c.l.b16 %v908
          %v946 = vunpack.c.l.b16 %v909
          %v947 = vunpack.c.l.b16 %v910
          %v948 = vunpack.c.l.b16 %v911
          %v949 = vunpack.c.l.b16 %v912
          %v950 = vunpack.c.l.b16 %v913
          %v951 = vunpack.c.l.b16 %v914
          %v952 = vpack.c.b16 %v937, %v936
          %v953 = vpack.c.b16 %v939, %v938
          %v954 = vpack.c.b16 %v941, %v940
          %v955 = vpack.c.b16 %v943, %v942
          %v956 = vpack.c.b16 %v945, %v944
          %v957 = vpack.c.b16 %v947, %v946
          %v958 = vpack.c.b16 %v949, %v948
          %v959 = vpack.c.b16 %v951, %v950
          %968 = vmatprep.subr.bf16.mxu0 0
          %969 = vmatpush1.bf16.msra.mxu0 %v952
          %970 = vmatprep.subr.bf16.mxu0 0
          %971 = vmatpush1.bf16.msra.mxu0 %v953
          %972 = vmatprep.subr.bf16.mxu0 0
          %973 = vmatpush1.bf16.msra.mxu0 %v954
          %974 = vmatprep.subr.bf16.mxu0 0
          %975 = vmatpush1.bf16.msra.mxu0 %v955
          %976 = vmatprep.subr.bf16.mxu0 0
          %977 = vmatpush1.bf16.msra.mxu0 %v956
          %978 = vmatprep.subr.bf16.mxu0 0
          %979 = vmatpush1.bf16.msra.mxu0 %v957
          %980 = vmatprep.subr.bf16.mxu0 0
          %981 = vmatpush1.bf16.msra.mxu0 %v958
          %982 = vmatprep.subr.bf16.mxu0 0
          %983 = vmatpush1.bf16.msra.mxu0 %v959
          %984 = vmatprep.subr.bf16.mxu0 0
          %985 = vmatpush1.bf16.msra.mxu0 0
          %986 = vmatprep.subr.bf16.mxu0 0
          %987 = vmatpush1.bf16.msra.mxu0 0
          %988 = vmatprep.subr.bf16.mxu0 0
          %989 = vmatpush1.bf16.msra.mxu0 0
          %990 = vmatprep.subr.bf16.mxu0 0
          %991 = vmatpush1.bf16.msra.mxu0 0
          %992 = vmatprep.subr.bf16.mxu0 0
          %993 = vmatpush1.bf16.msra.mxu0 0
          %994 = vmatprep.subr.bf16.mxu0 0
          %995 = vmatpush1.bf16.msra.mxu0 0
          %996 = vmatprep.subr.bf16.mxu0 0
          %997 = vmatpush1.bf16.msra.mxu0 0
          %998 = vmatprep.subr.bf16.mxu0 0
          %999 = vmatpush1.bf16.msra.mxu0 0
          %1000 = vmatprep.mubr.bf16.mxu0 0
          %1001 = vmatmul.mubr.bf16.gmra.mrb[0].mxu0 %v785
          %v1002 = vpop.f32.mrb[0].mxu0
          %v1003 = vadd.f32 %v919, %v1002
          %v1004 = vpop.f32.mrb[0].mxu0
          %v1005 = vpop.f32.mrb[0].mxu0
          %v1006 = vpop.f32.mrb[0].mxu0
          %1007 = vdwg.mxu0
          %v1008 = vpack.c.bf16 %v1003, %v1003
          %1009 = vst [vmem:[#allocation5] sm:$0xf] %v1008
        $region88: #{tpu_custom_call.1} parent=55 // pred_fallthru
          _
        %s1010 = smul.u32 %s36, 8
        %s1011 = sshra.s32 %s1010, 3
        %s1012 = sand.u32 %s1010, 7
        %s1013 = smul.addr %s1011, 4
        %s1014 = scalar_lea.vmem %s429, %s1013 [#allocation6]
        %v1015 = vld [vmem:[%s1014] sm:$0xf]
        %v1016 = vunpack.c.l.bf16 %v1015
        %v1017 = vld [vmem:[%s447] sm:$0xf]
        %v1018 = vunpack.c.l.bf16 %v1017
        %v1019 = vld [vmem:[%s521] sm:$0xf]
        %v1020 = vunpack.c.l.bf16 %v1019
        %v1021 = vld [vmem:[#allocation12] sm:$0x1]
        %v1022 = vld [vmem:[#allocation12 + $0x1] sm:$0x1]
        %1023 = vadd.xlane.f32.xlu0 %v1016
        %v1024 = vpop.xlane.xlu0 %1023
        %v1025 = vrcp.pop 128.0
        %v1026 = vmul.f32 %v1024, %v1025
        %v1027 = vsub.f32 %v1016, %v1026
        %v1028 = vmul.f32 %v1027, %v1027
        %1029 = vadd.xlane.f32.xlu0 %v1028
        %v1030 = vpop.xlane.xlu0 %1029
        %v1031 = vmul.f32 %v1030, 0.007874016
        %v1032 = vrsqrt.pop %v1031
        %v1033 = vmul.f32 %v1031, %v1032
        %vm1034 = vcmp.eq.f32.partialorder %v1031, inf
        %v1035 = vsel %vm1034, %v1031, %v1033
        %vm1036 = vcmp.eq.f32.partialorder %v1031, 0.0
        %v1037 = vand.u32 %v1031, 2147483648
        %v1038 = vsel %vm1036, %v1037, %v1035
        %v1039 = vadd.f32 %v1038, 1e-06
        %v1040 = vrcp.pop %v1039
        %v1041 = vlaneseq
        %v1042 = vshrl.u32 %v1041, 7
        %v1043 = vsub.s32 0, %v1042
        %v1044 = vrot.slane %v1021, %v1043
        %v1045 = vmul.f32 %v1044, %v1027
        %v1046 = vmul.f32 %v1045, %v1040
        %v1047 = vlaneseq
        %v1048 = vshrl.u32 %v1047, 7
        %v1049 = vsub.s32 0, %v1048
        %v1050 = vrot.slane %v1022, %v1049
        %v1051 = vadd.f32 %v1046, %v1050
        %v1052 = vld [vmem:[#allocation2] sm:$0xf]
        %v1053 = vld [vmem:[#allocation3] sm:$0xf]
        %v1054 = vld [vmem:[#allocation14] sm:$0xf]
        %v1055 = vld [vmem:[#allocation14 + $0x4] sm:$0xf]
        %v1056 = vld [vmem:[#allocation14 + $0x8] sm:$0xf]
        %v1057 = vld [vmem:[#allocation14 + $0xc] sm:$0xf]
        %v1058 = vld [vmem:[#allocation14 + $0x10] sm:$0xf]
        %v1059 = vld [vmem:[#allocation14 + $0x14] sm:$0xf]
        %v1060 = vld [vmem:[#allocation14 + $0x18] sm:$0xf]
        %v1061 = vld [vmem:[#allocation14 + $0x1c] sm:$0xf]
        %v1062 = vld [vmem:[#allocation14 + $0x20] sm:$0xf]
        %v1063 = vld [vmem:[#allocation14 + $0x24] sm:$0xf]
        %v1064 = vld [vmem:[#allocation14 + $0x28] sm:$0xf]
        %v1065 = vld [vmem:[#allocation14 + $0x2c] sm:$0xf]
        %v1066 = vld [vmem:[#allocation14 + $0x30] sm:$0xf]
        %v1067 = vld [vmem:[#allocation14 + $0x34] sm:$0xf]
        %v1068 = vld [vmem:[#allocation14 + $0x38] sm:$0xf]
        %v1069 = vld [vmem:[#allocation14 + $0x3c] sm:$0xf]
        %s1070 = scalar_lea.vmem [#allocation14], 192
        %v1071 = vld [vmem:[%s1070] sm:$0xf]
        %v1072 = vld [vmem:[%s1070 + $0x4] sm:$0xf]
        %v1073 = vld [vmem:[%s1070 + $0x8] sm:$0xf]
        %v1074 = vld [vmem:[%s1070 + $0xc] sm:$0xf]
        %v1075 = vld [vmem:[%s1070 + $0x10] sm:$0xf]
        %v1076 = vld [vmem:[%s1070 + $0x14] sm:$0xf]
        %v1077 = vld [vmem:[%s1070 + $0x18] sm:$0xf]
        %v1078 = vld [vmem:[%s1070 + $0x1c] sm:$0xf]
        %v1079 = vld [vmem:[%s1070 + $0x20] sm:$0xf]
        %v1080 = vld [vmem:[%s1070 + $0x24] sm:$0xf]
        %v1081 = vld [vmem:[%s1070 + $0x28] sm:$0xf]
        %v1082 = vld [vmem:[%s1070 + $0x2c] sm:$0xf]
        %v1083 = vld [vmem:[%s1070 + $0x30] sm:$0xf]
        %v1084 = vld [vmem:[%s1070 + $0x34] sm:$0xf]
        %v1085 = vld [vmem:[%s1070 + $0x38] sm:$0xf]
        %v1086 = vld [vmem:[%s1070 + $0x3c] sm:$0xf]
        %v1087 = vld [vmem:[#allocation12 + $0x6] sm:$0x1]
        %v1088 = vld [vmem:[#allocation12 + $0x9] sm:$0x1]
        %v1089 = vpack.c.bf16 %v1051, %v1051
        %v1090 = vlaneseq
        %v1091 = vshrl.u32 %v1090, 7
        %v1092 = vsub.s32 0, %v1091
        %v1093 = vrot.slane %v1087, %v1092
        %v1110 = vunpack.c.l.b16 %v1054
        %v1111 = vunpack.c.l.b16 %v1055
        %v1112 = vunpack.c.l.b16 %v1056
        %v1113 = vunpack.c.l.b16 %v1057
        %v1114 = vunpack.c.l.b16 %v1058
        %v1115 = vunpack.c.l.b16 %v1059
        %v1116 = vunpack.c.l.b16 %v1060
        %v1117 = vunpack.c.l.b16 %v1061
        %v1118 = vunpack.c.l.b16 %v1062
        %v1119 = vunpack.c.l.b16 %v1063
        %v1120 = vunpack.c.l.b16 %v1064
        %v1121 = vunpack.c.l.b16 %v1065
        %v1122 = vunpack.c.l.b16 %v1066
        %v1123 = vunpack.c.l.b16 %v1067
        %v1124 = vunpack.c.l.b16 %v1068
        %v1125 = vunpack.c.l.b16 %v1069
        %v1126 = vpack.c.b16 %v1111, %v1110
        %v1127 = vpack.c.b16 %v1113, %v1112
        %v1128 = vpack.c.b16 %v1115, %v1114
        %v1129 = vpack.c.b16 %v1117, %v1116
        %v1130 = vpack.c.b16 %v1119, %v1118
        %v1131 = vpack.c.b16 %v1121, %v1120
        %v1132 = vpack.c.b16 %v1123, %v1122
        %v1133 = vpack.c.b16 %v1125, %v1124
        %1142 = vmatprep.subr.bf16.mxu0 0
        %1143 = vmatpush1.bf16.msra.mxu0 %v1126
        %1144 = vmatprep.subr.bf16.mxu0 0
        %1145 = vmatpush1.bf16.msra.mxu0 %v1127
        %1146 = vmatprep.subr.bf16.mxu0 0
        %1147 = vmatpush1.bf16.msra.mxu0 %v1128
        %1148 = vmatprep.subr.bf16.mxu0 0
        %1149 = vmatpush1.bf16.msra.mxu0 %v1129
        %1150 = vmatprep.subr.bf16.mxu0 0
        %1151 = vmatpush1.bf16.msra.mxu0 %v1130
        %1152 = vmatprep.subr.bf16.mxu0 0
        %1153 = vmatpush1.bf16.msra.mxu0 %v1131
        %1154 = vmatprep.subr.bf16.mxu0 0
        %1155 = vmatpush1.bf16.msra.mxu0 %v1132
        %1156 = vmatprep.subr.bf16.mxu0 0
        %1157 = vmatpush1.bf16.msra.mxu0 %v1133
        %1158 = vmatprep.subr.bf16.mxu0 0
        %1159 = vmatpush1.bf16.msra.mxu0 0
        %1160 = vmatprep.subr.bf16.mxu0 0
        %1161 = vmatpush1.bf16.msra.mxu0 0
        %1162 = vmatprep.subr.bf16.mxu0 0
        %1163 = vmatpush1.bf16.msra.mxu0 0
        %1164 = vmatprep.subr.bf16.mxu0 0
        %1165 = vmatpush1.bf16.msra.mxu0 0
        %1166 = vmatprep.subr.bf16.mxu0 0
        %1167 = vmatpush1.bf16.msra.mxu0 0
        %1168 = vmatprep.subr.bf16.mxu0 0
        %1169 = vmatpush1.bf16.msra.mxu0 0
        %1170 = vmatprep.subr.bf16.mxu0 0
        %1171 = vmatpush1.bf16.msra.mxu0 0
        %1172 = vmatprep.subr.bf16.mxu0 0
        %1173 = vmatpush1.bf16.msra.mxu0 0
        %1174 = vmatprep.mubr.bf16.mxu0 0
        %1175 = vmatmul.mubr.bf16.gmra.mrb[0].mxu0 %v1089
        %v1176 = vpop.f32.mrb[0].mxu0
        %v1177 = vadd.f32 %v1093, %v1176
        %v1178 = vpop.f32.mrb[0].mxu0
        %v1179 = vpop.f32.mrb[0].mxu0
        %v1180 = vpop.f32.mrb[0].mxu0
        %1181 = vdwg.mxu0
        %v1182 = vpack.c.bf16 %v1177, %v1177
        %1184 = vrot.lane.b32.xlu0 %v1182, 96
        %v1185 = vpop.permute.xlu0 %1184
        %1186 = vrot.lane.b32.xlu0 %v1182, 64
        %v1187 = vpop.permute.xlu0 %1186
        %1188 = vrot.lane.b32.xlu0 %v1182, 32
        %v1189 = vpop.permute.xlu0 %1188
        %1191 = vrot.lane.b32.xlu0 %v1052, 96
        %v1192 = vpop.permute.xlu0 %1191
        %1193 = vrot.lane.b32.xlu0 %v1052, 64
        %v1194 = vpop.permute.xlu0 %1193
        %1195 = vrot.lane.b32.xlu0 %v1052, 32
        %v1196 = vpop.permute.xlu0 %1195
        %1198 = vrot.lane.b32.xlu0 %v1053, 96
        %v1199 = vpop.permute.xlu0 %1198
        %1200 = vrot.lane.b32.xlu0 %v1053, 64
        %v1201 = vpop.permute.xlu0 %1200
        %1202 = vrot.lane.b32.xlu0 %v1053, 32
        %v1203 = vpop.permute.xlu0 %1202
        %vm1204 = vcmask 261120
        %v1206 = vsel %vm1204, %v1182, 0
        %v1209 = vsel %vm1204, %v1052, 0
        %1211 = vmatprep.subr.bf16.mxu0 0
        %1212 = vmatpush1.bf16.xpose.msra.mxu0 %v1209
        %1213 = vmatprep.subr.bf16.mxu0 0
        %1214 = vmatpush1.bf16.xpose.msra.mxu0 0
        %1215 = vmatprep.subr.bf16.mxu0 0
        %1216 = vmatpush1.bf16.xpose.msra.mxu0 0
        %1217 = vmatprep.subr.bf16.mxu0 0
        %1218 = vmatpush1.bf16.xpose.msra.mxu0 0
        %1219 = vmatprep.subr.bf16.mxu0 0
        %1220 = vmatpush1.bf16.xpose.msra.mxu0 0
        %1221 = vmatprep.subr.bf16.mxu0 0
        %1222 = vmatpush1.bf16.xpose.msra.mxu0 0
        %1223 = vmatprep.subr.bf16.mxu0 0
        %1224 = vmatpush1.bf16.xpose.msra.mxu0 0
        %1225 = vmatprep.subr.bf16.mxu0 0
        %1226 = vmatpush1.bf16.xpose.msra.mxu0 0
        %1227 = vmatprep.subr.bf16.mxu0 0
        %1228 = vmatpush1.bf16.xpose.msra.mxu0 0
        %1229 = vmatprep.subr.bf16.mxu0 0
        %1230 = vmatpush1.bf16.xpose.msra.mxu0 0
        %1231 = vmatprep.subr.bf16.mxu0 0
        %1232 = vmatpush1.bf16.xpose.msra.mxu0 0
        %1233 = vmatprep.subr.bf16.mxu0 0
        %1234 = vmatpush1.bf16.xpose.msra.mxu0 0
        %1235 = vmatprep.subr.bf16.mxu0 0
        %1236 = vmatpush1.bf16.xpose.msra.mxu0 0
        %1237 = vmatprep.subr.bf16.mxu0 0
        %1238 = vmatpush1.bf16.xpose.msra.mxu0 0
        %1239 = vmatprep.subr.bf16.mxu0 0
        %1240 = vmatpush1.bf16.xpose.msra.mxu0 0
        %1241 = vmatprep.subr.bf16.mxu0 0
        %1242 = vmatpush1.bf16.xpose.msra.mxu0 0
        %1243 = vmatprep.mubr.bf16.mxu0 0
        %1244 = vmatmul.mubr.bf16.gmra.mrb[0].mxu0 %v1206
        %v1245 = vpop.f32.mrb[0].mxu0
        %v1246 = vadd.f32 0.0, %v1245
        %v1247 = vpop.f32.mrb[0].mxu0
        %v1248 = vpop.f32.mrb[0].mxu0
        %v1249 = vpop.f32.mrb[0].mxu0
        %1250 = vdwg.mxu0
        %v1252 = vsel %vm1204, %v1185, 0
        %v1255 = vsel %vm1204, %v1192, 0
        %1257 = vmatprep.subr.bf16.mxu0 0
        %1258 = vmatpush1.bf16.xpose.msra.mxu0 %v1255
        %1259 = vmatprep.subr.bf16.mxu0 0
        %1260 = vmatpush1.bf16.xpose.msra.mxu0 0
        %1261 = vmatprep.subr.bf16.mxu0 0
        %1262 = vmatpush1.bf16.xpose.msra.mxu0 0
        %1263 = vmatprep.subr.bf16.mxu0 0
        %1264 = vmatpush1.bf16.xpose.msra.mxu0 0
        %1265 = vmatprep.subr.bf16.mxu0 0
        %1266 = vmatpush1.bf16.xpose.msra.mxu0 0
        %1267 = vmatprep.subr.bf16.mxu0 0
        %1268 = vmatpush1.bf16.xpose.msra.mxu0 0
        %1269 = vmatprep.subr.bf16.mxu0 0
        %1270 = vmatpush1.bf16.xpose.msra.mxu0 0
        %1271 = vmatprep.subr.bf16.mxu0 0
        %1272 = vmatpush1.bf16.xpose.msra.mxu0 0
        %1273 = vmatprep.subr.bf16.mxu0 0
        %1274 = vmatpush1.bf16.xpose.msra.mxu0 0
        %1275 = vmatprep.subr.bf16.mxu0 0
        %1276 = vmatpush1.bf16.xpose.msra.mxu0 0
        %1277 = vmatprep.subr.bf16.mxu0 0
        %1278 = vmatpush1.bf16.xpose.msra.mxu0 0
        %1279 = vmatprep.subr.bf16.mxu0 0
        %1280 = vmatpush1.bf16.xpose.msra.mxu0 0
        %1281 = vmatprep.subr.bf16.mxu0 0
        %1282 = vmatpush1.bf16.xpose.msra.mxu0 0
        %1283 = vmatprep.subr.bf16.mxu0 0
        %1284 = vmatpush1.bf16.xpose.msra.mxu0 0
        %1285 = vmatprep.subr.bf16.mxu0 0
        %1286 = vmatpush1.bf16.xpose.msra.mxu0 0
        %1287 = vmatprep.subr.bf16.mxu0 0
        %1288 = vmatpush1.bf16.xpose.msra.mxu0 0
        %1289 = vmatprep.mubr.bf16.mxu0 0
        %1290 = vmatmul.mubr.bf16.gmra.mrb[0].mxu0 %v1252
        %v1291 = vpop.f32.mrb[0].mxu0
        %v1292 = vadd.f32 0.0, %v1291
        %v1293 = vpop.f32.mrb[0].mxu0
        %v1294 = vpop.f32.mrb[0].mxu0
        %v1295 = vpop.f32.mrb[0].mxu0
        %1296 = vdwg.mxu0
        %v1298 = vsel %vm1204, %v1187, 0
        %v1301 = vsel %vm1204, %v1194, 0
        %1303 = vmatprep.subr.bf16.mxu0 0
        %1304 = vmatpush1.bf16.xpose.msra.mxu0 %v1301
        %1305 = vmatprep.subr.bf16.mxu0 0
        %1306 = vmatpush1.bf16.xpose.msra.mxu0 0
        %1307 = vmatprep.subr.bf16.mxu0 0
        %1308 = vmatpush1.bf16.xpose.msra.mxu0 0
        %1309 = vmatprep.subr.bf16.mxu0 0
        %1310 = vmatpush1.bf16.xpose.msra.mxu0 0
        %1311 = vmatprep.subr.bf16.mxu0 0
        %1312 = vmatpush1.bf16.xpose.msra.mxu0 0
        %1313 = vmatprep.subr.bf16.mxu0 0
        %1314 = vmatpush1.bf16.xpose.msra.mxu0 0
        %1315 = vmatprep.subr.bf16.mxu0 0
        %1316 = vmatpush1.bf16.xpose.msra.mxu0 0
        %1317 = vmatprep.subr.bf16.mxu0 0
        %1318 = vmatpush1.bf16.xpose.msra.mxu0 0
        %1319 = vmatprep.subr.bf16.mxu0 0
        %1320 = vmatpush1.bf16.xpose.msra.mxu0 0
        %1321 = vmatprep.subr.bf16.mxu0 0
        %1322 = vmatpush1.bf16.xpose.msra.mxu0 0
        %1323 = vmatprep.subr.bf16.mxu0 0
        %1324 = vmatpush1.bf16.xpose.msra.mxu0 0
        %1325 = vmatprep.subr.bf16.mxu0 0
        %1326 = vmatpush1.bf16.xpose.msra.mxu0 0
        %1327 = vmatprep.subr.bf16.mxu0 0
        %1328 = vmatpush1.bf16.xpose.msra.mxu0 0
        %1329 = vmatprep.subr.bf16.mxu0 0
        %1330 = vmatpush1.bf16.xpose.msra.mxu0 0
        %1331 = vmatprep.subr.bf16.mxu0 0
        %1332 = vmatpush1.bf16.xpose.msra.mxu0 0
        %1333 = vmatprep.subr.bf16.mxu0 0
        %1334 = vmatpush1.bf16.xpose.msra.mxu0 0
        %1335 = vmatprep.mubr.bf16.mxu0 0
        %1336 = vmatmul.mubr.bf16.gmra.mrb[0].mxu0 %v1298
        %v1337 = vpop.f32.mrb[0].mxu0
        %v1338 = vadd.f32 0.0, %v1337
        %v1339 = vpop.f32.mrb[0].mxu0
        %v1340 = vpop.f32.mrb[0].mxu0
        %v1341 = vpop.f32.mrb[0].mxu0
        %1342 = vdwg.mxu0
        %v1344 = vsel %vm1204, %v1189, 0
        %v1347 = vsel %vm1204, %v1196, 0
        %1349 = vmatprep.subr.bf16.mxu0 0
        %1350 = vmatpush1.bf16.xpose.msra.mxu0 %v1347
        %1351 = vmatprep.subr.bf16.mxu0 0
        %1352 = vmatpush1.bf16.xpose.msra.mxu0 0
        %1353 = vmatprep.subr.bf16.mxu0 0
        %1354 = vmatpush1.bf16.xpose.msra.mxu0 0
        %1355 = vmatprep.subr.bf16.mxu0 0
        %1356 = vmatpush1.bf16.xpose.msra.mxu0 0
        %1357 = vmatprep.subr.bf16.mxu0 0
        %1358 = vmatpush1.bf16.xpose.msra.mxu0 0
        %1359 = vmatprep.subr.bf16.mxu0 0
        %1360 = vmatpush1.bf16.xpose.msra.mxu0 0
        %1361 = vmatprep.subr.bf16.mxu0 0
        %1362 = vmatpush1.bf16.xpose.msra.mxu0 0
        %1363 = vmatprep.subr.bf16.mxu0 0
        %1364 = vmatpush1.bf16.xpose.msra.mxu0 0
        %1365 = vmatprep.subr.bf16.mxu0 0
        %1366 = vmatpush1.bf16.xpose.msra.mxu0 0
        %1367 = vmatprep.subr.bf16.mxu0 0
        %1368 = vmatpush1.bf16.xpose.msra.mxu0 0
        %1369 = vmatprep.subr.bf16.mxu0 0
        %1370 = vmatpush1.bf16.xpose.msra.mxu0 0
        %1371 = vmatprep.subr.bf16.mxu0 0
        %1372 = vmatpush1.bf16.xpose.msra.mxu0 0
        %1373 = vmatprep.subr.bf16.mxu0 0
        %1374 = vmatpush1.bf16.xpose.msra.mxu0 0
        %1375 = vmatprep.subr.bf16.mxu0 0
        %1376 = vmatpush1.bf16.xpose.msra.mxu0 0
        %1377 = vmatprep.subr.bf16.mxu0 0
        %1378 = vmatpush1.bf16.xpose.msra.mxu0 0
        %1379 = vmatprep.subr.bf16.mxu0 0
        %1380 = vmatpush1.bf16.xpose.msra.mxu0 0
        %1381 = vmatprep.mubr.bf16.mxu0 0
        %1382 = vmatmul.mubr.bf16.gmra.mrb[0].mxu0 %v1344
        %v1383 = vpop.f32.mrb[0].mxu0
        %v1384 = vadd.f32 0.0, %v1383
        %v1385 = vpop.f32.mrb[0].mxu0
        %v1386 = vpop.f32.mrb[0].mxu0
        %v1387 = vpop.f32.mrb[0].mxu0
        %1388 = vdwg.mxu0
        %v1389 = vmul.f32 %v1246, 0.17677669
        %v1390 = vmul.f32 %v1292, 0.17677669
        %v1391 = vmul.f32 %v1338, 0.17677669
        %v1392 = vmul.f32 %v1384, 0.17677669
        %v1393 = vadd.f32 %v1389, %v1018
        %v1394 = vadd.f32 %v1390, %v1018
        %v1395 = vadd.f32 %v1391, %v1018
        %v1396 = vadd.f32 %v1392, %v1018
        %vm1397 = vcmask 64512
        %v1398 = vsel %vm1397, %v1393, -inf
        %1399 = vmax.xlane.f32.xlu0 %v1398
        %v1400 = vpop.xlane.xlu0 %1399
        %v1401 = vsel %vm1397, %v1394, -inf
        %1402 = vmax.xlane.f32.xlu0 %v1401
        %v1403 = vpop.xlane.xlu0 %1402
        %v1404 = vsel %vm1397, %v1395, -inf
        %1405 = vmax.xlane.f32.xlu0 %v1404
        %v1406 = vpop.xlane.xlu0 %1405
        %v1407 = vsel %vm1397, %v1396, -inf
        %1408 = vmax.xlane.f32.xlu0 %v1407
        %v1409 = vpop.xlane.xlu0 %1408
        %v1410 = vsub.f32 %v1393, %v1400
        %v1411 = vsub.f32 %v1394, %v1403
        %v1412 = vsub.f32 %v1395, %v1406
        %v1413 = vsub.f32 %v1396, %v1409
        %v1414 = vmul.f32 %v1410, 1.442695
        %v1415 = vpow.pop %v1414
        %v1416 = vmul.f32 %v1411, 1.442695
        %v1417 = vpow.pop %v1416
        %v1418 = vmul.f32 %v1412, 1.442695
        %v1419 = vpow.pop %v1418
        %v1420 = vmul.f32 %v1413, 1.442695
        %v1421 = vpow.pop %v1420
        %v1422 = vsel %vm1397, %v1415, 0.0
        %1423 = vadd.xlane.f32.xlu0 %v1422
        %v1424 = vpop.xlane.xlu0 %1423
        %v1425 = vsel %vm1397, %v1417, 0.0
        %1426 = vadd.xlane.f32.xlu0 %v1425
        %v1427 = vpop.xlane.xlu0 %1426
        %v1428 = vsel %vm1397, %v1419, 0.0
        %1429 = vadd.xlane.f32.xlu0 %v1428
        %v1430 = vpop.xlane.xlu0 %1429
        %v1431 = vsel %vm1397, %v1421, 0.0
        %1432 = vadd.xlane.f32.xlu0 %v1431
        %v1433 = vpop.xlane.xlu0 %1432
        %v1434 = vrcp.pop %v1424
        %v1435 = vrcp.pop %v1427
        %v1436 = vrcp.pop %v1430
        %v1437 = vrcp.pop %v1433
        %v1438 = vmul.f32 %v1415, %v1434
        %v1439 = vmul.f32 %v1417, %v1435
        %v1440 = vmul.f32 %v1419, %v1436
        %v1441 = vmul.f32 %v1421, %v1437
        %v1442 = vpack.c.bf16 %v1438, %v1438
        %v1443 = vpack.c.bf16 %v1439, %v1439
        %v1444 = vpack.c.bf16 %v1440, %v1440
        %v1445 = vpack.c.bf16 %v1441, %v1441
        %v1447 = vsel %vm1397, %v1442, 0
        %vm1449 = vcmask 1043456
        %v1451 = vsel %vm1449, %v1053, 0
        %1453 = vmatprep.subr.bf16.mxu0 0
        %1454 = vmatpush1.bf16.msra.mxu0 %v1451
        %1455 = vmatprep.subr.bf16.mxu0 0
        %1456 = vmatpush1.bf16.msra.mxu0 0
        %1457 = vmatprep.subr.bf16.mxu0 0
        %1458 = vmatpush1.bf16.msra.mxu0 0
        %1459 = vmatprep.subr.bf16.mxu0 0
        %1460 = vmatpush1.bf16.msra.mxu0 0
        %1461 = vmatprep.subr.bf16.mxu0 0
        %1462 = vmatpush1.bf16.msra.mxu0 0
        %1463 = vmatprep.subr.bf16.mxu0 0
        %1464 = vmatpush1.bf16.msra.mxu0 0
        %1465 = vmatprep.subr.bf16.mxu0 0
        %1466 = vmatpush1.bf16.msra.mxu0 0
        %1467 = vmatprep.subr.bf16.mxu0 0
        %1468 = vmatpush1.bf16.msra.mxu0 0
        %1469 = vmatprep.subr.bf16.mxu0 0
        %1470 = vmatpush1.bf16.msra.mxu0 0
        %1471 = vmatprep.subr.bf16.mxu0 0
        %1472 = vmatpush1.bf16.msra.mxu0 0
        %1473 = vmatprep.subr.bf16.mxu0 0
        %1474 = vmatpush1.bf16.msra.mxu0 0
        %1475 = vmatprep.subr.bf16.mxu0 0
        %1476 = vmatpush1.bf16.msra.mxu0 0
        %1477 = vmatprep.subr.bf16.mxu0 0
        %1478 = vmatpush1.bf16.msra.mxu0 0
        %1479 = vmatprep.subr.bf16.mxu0 0
        %1480 = vmatpush1.bf16.msra.mxu0 0
        %1481 = vmatprep.subr.bf16.mxu0 0
        %1482 = vmatpush1.bf16.msra.mxu0 0
        %1483 = vmatprep.subr.bf16.mxu0 0
        %1484 = vmatpush1.bf16.msra.mxu0 0
        %1485 = vmatprep.mubr.bf16.mxu0 0
        %1486 = vmatmul.mubr.bf16.gmra.mrb[0].mxu0 %v1447
        %v1487 = vpop.f32.mrb[0].mxu0
        %v1488 = vadd.f32 0.0, %v1487
        %v1489 = vpop.f32.mrb[0].mxu0
        %v1490 = vpop.f32.mrb[0].mxu0
        %v1491 = vpop.f32.mrb[0].mxu0
        %1492 = vdwg.mxu0
        %v1494 = vsel %vm1397, %v1443, 0
        %v1497 = vsel %vm1449, %v1199, 0
        %1499 = vmatprep.subr.bf16.mxu0 0
        %1500 = vmatpush1.bf16.msra.mxu0 %v1497
        %1501 = vmatprep.subr.bf16.mxu0 0
        %1502 = vmatpush1.bf16.msra.mxu0 0
        %1503 = vmatprep.subr.bf16.mxu0 0
        %1504 = vmatpush1.bf16.msra.mxu0 0
        %1505 = vmatprep.subr.bf16.mxu0 0
        %1506 = vmatpush1.bf16.msra.mxu0 0
        %1507 = vmatprep.subr.bf16.mxu0 0
        %1508 = vmatpush1.bf16.msra.mxu0 0
        %1509 = vmatprep.subr.bf16.mxu0 0
        %1510 = vmatpush1.bf16.msra.mxu0 0
        %1511 = vmatprep.subr.bf16.mxu0 0
        %1512 = vmatpush1.bf16.msra.mxu0 0
        %1513 = vmatprep.subr.bf16.mxu0 0
        %1514 = vmatpush1.bf16.msra.mxu0 0
        %1515 = vmatprep.subr.bf16.mxu0 0
        %1516 = vmatpush1.bf16.msra.mxu0 0
        %1517 = vmatprep.subr.bf16.mxu0 0
        %1518 = vmatpush1.bf16.msra.mxu0 0
        %1519 = vmatprep.subr.bf16.mxu0 0
        %1520 = vmatpush1.bf16.msra.mxu0 0
        %1521 = vmatprep.subr.bf16.mxu0 0
        %1522 = vmatpush1.bf16.msra.mxu0 0
        %1523 = vmatprep.subr.bf16.mxu0 0
        %1524 = vmatpush1.bf16.msra.mxu0 0
        %1525 = vmatprep.subr.bf16.mxu0 0
        %1526 = vmatpush1.bf16.msra.mxu0 0
        %1527 = vmatprep.subr.bf16.mxu0 0
        %1528 = vmatpush1.bf16.msra.mxu0 0
        %1529 = vmatprep.subr.bf16.mxu0 0
        %1530 = vmatpush1.bf16.msra.mxu0 0
        %1531 = vmatprep.mubr.bf16.mxu0 0
        %1532 = vmatmul.mubr.bf16.gmra.mrb[0].mxu0 %v1494
        %v1533 = vpop.f32.mrb[0].mxu0
        %v1534 = vadd.f32 0.0, %v1533
        %v1535 = vpop.f32.mrb[0].mxu0
        %v1536 = vpop.f32.mrb[0].mxu0
        %v1537 = vpop.f32.mrb[0].mxu0
        %1538 = vdwg.mxu0
        %v1540 = vsel %vm1397, %v1444, 0
        %v1543 = vsel %vm1449, %v1201, 0
        %1545 = vmatprep.subr.bf16.mxu0 0
        %1546 = vmatpush1.bf16.msra.mxu0 %v1543
        %1547 = vmatprep.subr.bf16.mxu0 0
        %1548 = vmatpush1.bf16.msra.mxu0 0
        %1549 = vmatprep.subr.bf16.mxu0 0
        %1550 = vmatpush1.bf16.msra.mxu0 0
        %1551 = vmatprep.subr.bf16.mxu0 0
        %1552 = vmatpush1.bf16.msra.mxu0 0
        %1553 = vmatprep.subr.bf16.mxu0 0
        %1554 = vmatpush1.bf16.msra.mxu0 0
        %1555 = vmatprep.subr.bf16.mxu0 0
        %1556 = vmatpush1.bf16.msra.mxu0 0
        %1557 = vmatprep.subr.bf16.mxu0 0
        %1558 = vmatpush1.bf16.msra.mxu0 0
        %1559 = vmatprep.subr.bf16.mxu0 0
        %1560 = vmatpush1.bf16.msra.mxu0 0
        %1561 = vmatprep.subr.bf16.mxu0 0
        %1562 = vmatpush1.bf16.msra.mxu0 0
        %1563 = vmatprep.subr.bf16.mxu0 0
        %1564 = vmatpush1.bf16.msra.mxu0 0
        %1565 = vmatprep.subr.bf16.mxu0 0
        %1566 = vmatpush1.bf16.msra.mxu0 0
        %1567 = vmatprep.subr.bf16.mxu0 0
        %1568 = vmatpush1.bf16.msra.mxu0 0
        %1569 = vmatprep.subr.bf16.mxu0 0
        %1570 = vmatpush1.bf16.msra.mxu0 0
        %1571 = vmatprep.subr.bf16.mxu0 0
        %1572 = vmatpush1.bf16.msra.mxu0 0
        %1573 = vmatprep.subr.bf16.mxu0 0
        %1574 = vmatpush1.bf16.msra.mxu0 0
        %1575 = vmatprep.subr.bf16.mxu0 0
        %1576 = vmatpush1.bf16.msra.mxu0 0
        %1577 = vmatprep.mubr.bf16.mxu0 0
        %1578 = vmatmul.mubr.bf16.gmra.mrb[0].mxu0 %v1540
        %v1579 = vpop.f32.mrb[0].mxu0
        %v1580 = vadd.f32 0.0, %v1579
        %v1581 = vpop.f32.mrb[0].mxu0
        %v1582 = vpop.f32.mrb[0].mxu0
        %v1583 = vpop.f32.mrb[0].mxu0
        %1584 = vdwg.mxu0
        %v1586 = vsel %vm1397, %v1445, 0
        %v1589 = vsel %vm1449, %v1203, 0
        %1591 = vmatprep.subr.bf16.mxu0 0
        %1592 = vmatpush1.bf16.msra.mxu0 %v1589
        %1593 = vmatprep.subr.bf16.mxu0 0
        %1594 = vmatpush1.bf16.msra.mxu0 0
        %1595 = vmatprep.subr.bf16.mxu0 0
        %1596 = vmatpush1.bf16.msra.mxu0 0
        %1597 = vmatprep.subr.bf16.mxu0 0
        %1598 = vmatpush1.bf16.msra.mxu0 0
        %1599 = vmatprep.subr.bf16.mxu0 0
        %1600 = vmatpush1.bf16.msra.mxu0 0
        %1601 = vmatprep.subr.bf16.mxu0 0
        %1602 = vmatpush1.bf16.msra.mxu0 0
        %1603 = vmatprep.subr.bf16.mxu0 0
        %1604 = vmatpush1.bf16.msra.mxu0 0
        %1605 = vmatprep.subr.bf16.mxu0 0
        %1606 = vmatpush1.bf16.msra.mxu0 0
        %1607 = vmatprep.subr.bf16.mxu0 0
        %1608 = vmatpush1.bf16.msra.mxu0 0
        %1609 = vmatprep.subr.bf16.mxu0 0
        %1610 = vmatpush1.bf16.msra.mxu0 0
        %1611 = vmatprep.subr.bf16.mxu0 0
        %1612 = vmatpush1.bf16.msra.mxu0 0
        %1613 = vmatprep.subr.bf16.mxu0 0
        %1614 = vmatpush1.bf16.msra.mxu0 0
        %1615 = vmatprep.subr.bf16.mxu0 0
        %1616 = vmatpush1.bf16.msra.mxu0 0
        %1617 = vmatprep.subr.bf16.mxu0 0
        %1618 = vmatpush1.bf16.msra.mxu0 0
        %1619 = vmatprep.subr.bf16.mxu0 0
        %1620 = vmatpush1.bf16.msra.mxu0 0
        %1621 = vmatprep.subr.bf16.mxu0 0
        %1622 = vmatpush1.bf16.msra.mxu0 0
        %1623 = vmatprep.mubr.bf16.mxu0 0
        %1624 = vmatmul.mubr.bf16.gmra.mrb[0].mxu0 %v1586
        %v1625 = vpop.f32.mrb[0].mxu0
        %v1626 = vadd.f32 0.0, %v1625
        %v1627 = vpop.f32.mrb[0].mxu0
        %v1628 = vpop.f32.mrb[0].mxu0
        %v1629 = vpop.f32.mrb[0].mxu0
        %1630 = vdwg.mxu0
        %1632 = vrot.lane.b32.xlu0 %v1534, 32
        %v1633 = vpop.permute.xlu0 %1632
        %1636 = vrot.lane.b32.xlu0 %v1580, 64
        %v1637 = vpop.permute.xlu0 %1636
        %1640 = vrot.lane.b32.xlu0 %v1626, 96
        %v1641 = vpop.permute.xlu0 %1640
        %v1643 = vsel %vm1204, %v1488, %v1633
        %vm1644 = vcmask 523264
        %v1645 = vsel %vm1644, %v1643, %v1637
        %vm1646 = vcmask 785408
        %v1647 = vsel %vm1646, %v1645, %v1641
        %v1648 = vpack.c.bf16 %v1647, %v1647
        %v1649 = vlaneseq
        %v1650 = vshrl.u32 %v1649, 7
        %v1651 = vsub.s32 0, %v1650
        %v1652 = vrot.slane %v1088, %v1651
        %v1669 = vunpack.c.l.b16 %v1071
        %v1670 = vunpack.c.l.b16 %v1072
        %v1671 = vunpack.c.l.b16 %v1073
        %v1672 = vunpack.c.l.b16 %v1074
        %v1673 = vunpack.c.l.b16 %v1075
        %v1674 = vunpack.c.l.b16 %v1076
        %v1675 = vunpack.c.l.b16 %v1077
        %v1676 = vunpack.c.l.b16 %v1078
        %v1677 = vunpack.c.l.b16 %v1079
        %v1678 = vunpack.c.l.b16 %v1080
        %v1679 = vunpack.c.l.b16 %v1081
        %v1680 = vunpack.c.l.b16 %v1082
        %v1681 = vunpack.c.l.b16 %v1083
        %v1682 = vunpack.c.l.b16 %v1084
        %v1683 = vunpack.c.l.b16 %v1085
        %v1684 = vunpack.c.l.b16 %v1086
        %v1685 = vpack.c.b16 %v1670, %v1669
        %v1686 = vpack.c.b16 %v1672, %v1671
        %v1687 = vpack.c.b16 %v1674, %v1673
        %v1688 = vpack.c.b16 %v1676, %v1675
        %v1689 = vpack.c.b16 %v1678, %v1677
        %v1690 = vpack.c.b16 %v1680, %v1679
        %v1691 = vpack.c.b16 %v1682, %v1681
        %v1692 = vpack.c.b16 %v1684, %v1683
        %1701 = vmatprep.subr.bf16.mxu0 0
        %1702 = vmatpush1.bf16.msra.mxu0 %v1685
        %1703 = vmatprep.subr.bf16.mxu0 0
        %1704 = vmatpush1.bf16.msra.mxu0 %v1686
        %1705 = vmatprep.subr.bf16.mxu0 0
        %1706 = vmatpush1.bf16.msra.mxu0 %v1687
        %1707 = vmatprep.subr.bf16.mxu0 0
        %1708 = vmatpush1.bf16.msra.mxu0 %v1688
        %1709 = vmatprep.subr.bf16.mxu0 0
        %1710 = vmatpush1.bf16.msra.mxu0 %v1689
        %1711 = vmatprep.subr.bf16.mxu0 0
        %1712 = vmatpush1.bf16.msra.mxu0 %v1690
        %1713 = vmatprep.subr.bf16.mxu0 0
        %1714 = vmatpush1.bf16.msra.mxu0 %v1691
        %1715 = vmatprep.subr.bf16.mxu0 0
        %1716 = vmatpush1.bf16.msra.mxu0 %v1692
        %1717 = vmatprep.subr.bf16.mxu0 0
        %1718 = vmatpush1.bf16.msra.mxu0 0
        %1719 = vmatprep.subr.bf16.mxu0 0
        %1720 = vmatpush1.bf16.msra.mxu0 0
        %1721 = vmatprep.subr.bf16.mxu0 0
        %1722 = vmatpush1.bf16.msra.mxu0 0
        %1723 = vmatprep.subr.bf16.mxu0 0
        %1724 = vmatpush1.bf16.msra.mxu0 0
        %1725 = vmatprep.subr.bf16.mxu0 0
        %1726 = vmatpush1.bf16.msra.mxu0 0
        %1727 = vmatprep.subr.bf16.mxu0 0
        %1728 = vmatpush1.bf16.msra.mxu0 0
        %1729 = vmatprep.subr.bf16.mxu0 0
        %1730 = vmatpush1.bf16.msra.mxu0 0
        %1731 = vmatprep.subr.bf16.mxu0 0
        %1732 = vmatpush1.bf16.msra.mxu0 0
        %1733 = vmatprep.mubr.bf16.mxu0 0
        %1734 = vmatmul.mubr.bf16.gmra.mrb[0].mxu0 %v1648
        %v1735 = vpop.f32.mrb[0].mxu0
        %v1736 = vadd.f32 %v1652, %v1735
        %v1737 = vpop.f32.mrb[0].mxu0
        %v1738 = vpop.f32.mrb[0].mxu0
        %v1739 = vpop.f32.mrb[0].mxu0
        %1740 = vdwg.mxu0
        %v1741 = vadd.f32 %v1016, %v1736
        %v1742 = vld [vmem:[#allocation12 + $0x2] sm:$0x1]
        %v1743 = vld [vmem:[#allocation12 + $0x3] sm:$0x1]
        %1744 = vadd.xlane.f32.xlu0 %v1741
        %v1745 = vpop.xlane.xlu0 %1744
        %v1746 = vmul.f32 %v1745, %v1025
        %v1747 = vsub.f32 %v1741, %v1746
        %v1748 = vmul.f32 %v1747, %v1747
        %1749 = vadd.xlane.f32.xlu0 %v1748
        %v1750 = vpop.xlane.xlu0 %1749
        %v1751 = vmul.f32 %v1750, 0.007874016
        %v1752 = vrsqrt.pop %v1751
        %v1753 = vmul.f32 %v1751, %v1752
        %vm1754 = vcmp.eq.f32.partialorder %v1751, inf
        %v1755 = vsel %vm1754, %v1751, %v1753
        %vm1756 = vcmp.eq.f32.partialorder %v1751, 0.0
        %v1757 = vand.u32 %v1751, 2147483648
        %v1758 = vsel %vm1756, %v1757, %v1755
        %v1759 = vadd.f32 %v1758, 1e-06
        %v1760 = vrcp.pop %v1759
        %v1761 = vlaneseq
        %v1762 = vshrl.u32 %v1761, 7
        %v1763 = vsub.s32 0, %v1762
        %v1764 = vrot.slane %v1742, %v1763
        %v1765 = vmul.f32 %v1764, %v1747
        %v1766 = vmul.f32 %v1765, %v1760
        %v1767 = vlaneseq
        %v1768 = vshrl.u32 %v1767, 7
        %v1769 = vsub.s32 0, %v1768
        %v1770 = vrot.slane %v1743, %v1769
        %v1771 = vadd.f32 %v1766, %v1770
        %v1772 = vld [vmem:[#allocation4] sm:$0xf]
        %v1773 = vld [vmem:[#allocation5] sm:$0xf]
        %s1774 = scalar_lea.vmem [#allocation14], 256
        %v1775 = vld [vmem:[%s1774] sm:$0xf]
        %v1776 = vld [vmem:[%s1774 + $0x4] sm:$0xf]
        %v1777 = vld [vmem:[%s1774 + $0x8] sm:$0xf]
        %v1778 = vld [vmem:[%s1774 + $0xc] sm:$0xf]
        %v1779 = vld [vmem:[%s1774 + $0x10] sm:$0xf]
        %v1780 = vld [vmem:[%s1774 + $0x14] sm:$0xf]
        %v1781 = vld [vmem:[%s1774 + $0x18] sm:$0xf]
        %v1782 = vld [vmem:[%s1774 + $0x1c] sm:$0xf]
        %v1783 = vld [vmem:[%s1774 + $0x20] sm:$0xf]
        %v1784 = vld [vmem:[%s1774 + $0x24] sm:$0xf]
        %v1785 = vld [vmem:[%s1774 + $0x28] sm:$0xf]
        %v1786 = vld [vmem:[%s1774 + $0x2c] sm:$0xf]
        %v1787 = vld [vmem:[%s1774 + $0x30] sm:$0xf]
        %v1788 = vld [vmem:[%s1774 + $0x34] sm:$0xf]
        %v1789 = vld [vmem:[%s1774 + $0x38] sm:$0xf]
        %v1790 = vld [vmem:[%s1774 + $0x3c] sm:$0xf]
        %s1791 = scalar_lea.vmem [#allocation14], 448
        %v1792 = vld [vmem:[%s1791] sm:$0xf]
        %v1793 = vld [vmem:[%s1791 + $0x4] sm:$0xf]
        %v1794 = vld [vmem:[%s1791 + $0x8] sm:$0xf]
        %v1795 = vld [vmem:[%s1791 + $0xc] sm:$0xf]
        %v1796 = vld [vmem:[%s1791 + $0x10] sm:$0xf]
        %v1797 = vld [vmem:[%s1791 + $0x14] sm:$0xf]
        %v1798 = vld [vmem:[%s1791 + $0x18] sm:$0xf]
        %v1799 = vld [vmem:[%s1791 + $0x1c] sm:$0xf]
        %v1800 = vld [vmem:[%s1791 + $0x20] sm:$0xf]
        %v1801 = vld [vmem:[%s1791 + $0x24] sm:$0xf]
        %v1802 = vld [vmem:[%s1791 + $0x28] sm:$0xf]
        %v1803 = vld [vmem:[%s1791 + $0x2c] sm:$0xf]
        %v1804 = vld [vmem:[%s1791 + $0x30] sm:$0xf]
        %v1805 = vld [vmem:[%s1791 + $0x34] sm:$0xf]
        %v1806 = vld [vmem:[%s1791 + $0x38] sm:$0xf]
        %v1807 = vld [vmem:[%s1791 + $0x3c] sm:$0xf]
        %v1808 = vld [vmem:[#allocation12 + $0xa] sm:$0x1]
        %v1809 = vld [vmem:[#allocation12 + $0xd] sm:$0x1]
        %v1810 = vpack.c.bf16 %v1771, %v1771
        %v1811 = vlaneseq
        %v1812 = vshrl.u32 %v1811, 7
        %v1813 = vsub.s32 0, %v1812
        %v1814 = vrot.slane %v1808, %v1813
        %v1831 = vunpack.c.l.b16 %v1775
        %v1832 = vunpack.c.l.b16 %v1776
        %v1833 = vunpack.c.l.b16 %v1777
        %v1834 = vunpack.c.l.b16 %v1778
        %v1835 = vunpack.c.l.b16 %v1779
        %v1836 = vunpack.c.l.b16 %v1780
        %v1837 = vunpack.c.l.b16 %v1781
        %v1838 = vunpack.c.l.b16 %v1782
        %v1839 = vunpack.c.l.b16 %v1783
        %v1840 = vunpack.c.l.b16 %v1784
        %v1841 = vunpack.c.l.b16 %v1785
        %v1842 = vunpack.c.l.b16 %v1786
        %v1843 = vunpack.c.l.b16 %v1787
        %v1844 = vunpack.c.l.b16 %v1788
        %v1845 = vunpack.c.l.b16 %v1789
        %v1846 = vunpack.c.l.b16 %v1790
        %v1847 = vpack.c.b16 %v1832, %v1831
        %v1848 = vpack.c.b16 %v1834, %v1833
        %v1849 = vpack.c.b16 %v1836, %v1835
        %v1850 = vpack.c.b16 %v1838, %v1837
        %v1851 = vpack.c.b16 %v1840, %v1839
        %v1852 = vpack.c.b16 %v1842, %v1841
        %v1853 = vpack.c.b16 %v1844, %v1843
        %v1854 = vpack.c.b16 %v1846, %v1845
        %1863 = vmatprep.subr.bf16.mxu0 0
        %1864 = vmatpush1.bf16.msra.mxu0 %v1847
        %1865 = vmatprep.subr.bf16.mxu0 0
        %1866 = vmatpush1.bf16.msra.mxu0 %v1848
        %1867 = vmatprep.subr.bf16.mxu0 0
        %1868 = vmatpush1.bf16.msra.mxu0 %v1849
        %1869 = vmatprep.subr.bf16.mxu0 0
        %1870 = vmatpush1.bf16.msra.mxu0 %v1850
        %1871 = vmatprep.subr.bf16.mxu0 0
        %1872 = vmatpush1.bf16.msra.mxu0 %v1851
        %1873 = vmatprep.subr.bf16.mxu0 0
        %1874 = vmatpush1.bf16.msra.mxu0 %v1852
        %1875 = vmatprep.subr.bf16.mxu0 0
        %1876 = vmatpush1.bf16.msra.mxu0 %v1853
        %1877 = vmatprep.subr.bf16.mxu0 0
        %1878 = vmatpush1.bf16.msra.mxu0 %v1854
        %1879 = vmatprep.subr.bf16.mxu0 0
        %1880 = vmatpush1.bf16.msra.mxu0 0
        %1881 = vmatprep.subr.bf16.mxu0 0
        %1882 = vmatpush1.bf16.msra.mxu0 0
        %1883 = vmatprep.subr.bf16.mxu0 0
        %1884 = vmatpush1.bf16.msra.mxu0 0
        %1885 = vmatprep.subr.bf16.mxu0 0
        %1886 = vmatpush1.bf16.msra.mxu0 0
        %1887 = vmatprep.subr.bf16.mxu0 0
        %1888 = vmatpush1.bf16.msra.mxu0 0
        %1889 = vmatprep.subr.bf16.mxu0 0
        %1890 = vmatpush1.bf16.msra.mxu0 0
        %1891 = vmatprep.subr.bf16.mxu0 0
        %1892 = vmatpush1.bf16.msra.mxu0 0
        %1893 = vmatprep.subr.bf16.mxu0 0
        %1894 = vmatpush1.bf16.msra.mxu0 0
        %1895 = vmatprep.mubr.bf16.mxu0 0
        %1896 = vmatmul.mubr.bf16.gmra.mrb[0].mxu0 %v1810
        %v1897 = vpop.f32.mrb[0].mxu0
        %v1898 = vadd.f32 %v1814, %v1897
        %v1899 = vpop.f32.mrb[0].mxu0
        %v1900 = vpop.f32.mrb[0].mxu0
        %v1901 = vpop.f32.mrb[0].mxu0
        %1902 = vdwg.mxu0
        %v1903 = vpack.c.bf16 %v1898, %v1898
        %1905 = vrot.lane.b32.xlu0 %v1903, 96
        %v1906 = vpop.permute.xlu0 %1905
        %1907 = vrot.lane.b32.xlu0 %v1903, 64
        %v1908 = vpop.permute.xlu0 %1907
        %1909 = vrot.lane.b32.xlu0 %v1903, 32
        %v1910 = vpop.permute.xlu0 %1909
        %1912 = vrot.lane.b32.xlu0 %v1772, 96
        %v1913 = vpop.permute.xlu0 %1912
        %1914 = vrot.lane.b32.xlu0 %v1772, 64
        %v1915 = vpop.permute.xlu0 %1914
        %1916 = vrot.lane.b32.xlu0 %v1772, 32
        %v1917 = vpop.permute.xlu0 %1916
        %1919 = vrot.lane.b32.xlu0 %v1773, 96
        %v1920 = vpop.permute.xlu0 %1919
        %1921 = vrot.lane.b32.xlu0 %v1773, 64
        %v1922 = vpop.permute.xlu0 %1921
        %1923 = vrot.lane.b32.xlu0 %v1773, 32
        %v1924 = vpop.permute.xlu0 %1923
        %v1926 = vsel %vm1204, %v1903, 0
        %v1929 = vsel %vm1204, %v1772, 0
        %1931 = vmatprep.subr.bf16.mxu0 0
        %1932 = vmatpush1.bf16.xpose.msra.mxu0 %v1929
        %1933 = vmatprep.subr.bf16.mxu0 0
        %1934 = vmatpush1.bf16.xpose.msra.mxu0 0
        %1935 = vmatprep.subr.bf16.mxu0 0
        %1936 = vmatpush1.bf16.xpose.msra.mxu0 0
        %1937 = vmatprep.subr.bf16.mxu0 0
        %1938 = vmatpush1.bf16.xpose.msra.mxu0 0
        %1939 = vmatprep.subr.bf16.mxu0 0
        %1940 = vmatpush1.bf16.xpose.msra.mxu0 0
        %1941 = vmatprep.subr.bf16.mxu0 0
        %1942 = vmatpush1.bf16.xpose.msra.mxu0 0
        %1943 = vmatprep.subr.bf16.mxu0 0
        %1944 = vmatpush1.bf16.xpose.msra.mxu0 0
        %1945 = vmatprep.subr.bf16.mxu0 0
        %1946 = vmatpush1.bf16.xpose.msra.mxu0 0
        %1947 = vmatprep.subr.bf16.mxu0 0
        %1948 = vmatpush1.bf16.xpose.msra.mxu0 0
        %1949 = vmatprep.subr.bf16.mxu0 0
        %1950 = vmatpush1.bf16.xpose.msra.mxu0 0
        %1951 = vmatprep.subr.bf16.mxu0 0
        %1952 = vmatpush1.bf16.xpose.msra.mxu0 0
        %1953 = vmatprep.subr.bf16.mxu0 0
        %1954 = vmatpush1.bf16.xpose.msra.mxu0 0
        %1955 = vmatprep.subr.bf16.mxu0 0
        %1956 = vmatpush1.bf16.xpose.msra.mxu0 0
        %1957 = vmatprep.subr.bf16.mxu0 0
        %1958 = vmatpush1.bf16.xpose.msra.mxu0 0
        %1959 = vmatprep.subr.bf16.mxu0 0
        %1960 = vmatpush1.bf16.xpose.msra.mxu0 0
        %1961 = vmatprep.subr.bf16.mxu0 0
        %1962 = vmatpush1.bf16.xpose.msra.mxu0 0
        %1963 = vmatprep.mubr.bf16.mxu0 0
        %1964 = vmatmul.mubr.bf16.gmra.mrb[0].mxu0 %v1926
        %v1965 = vpop.f32.mrb[0].mxu0
        %v1966 = vadd.f32 0.0, %v1965
        %v1967 = vpop.f32.mrb[0].mxu0
        %v1968 = vpop.f32.mrb[0].mxu0
        %v1969 = vpop.f32.mrb[0].mxu0
        %1970 = vdwg.mxu0
        %v1972 = vsel %vm1204, %v1906, 0
        %v1975 = vsel %vm1204, %v1913, 0
        %1977 = vmatprep.subr.bf16.mxu0 0
        %1978 = vmatpush1.bf16.xpose.msra.mxu0 %v1975
        %1979 = vmatprep.subr.bf16.mxu0 0
        %1980 = vmatpush1.bf16.xpose.msra.mxu0 0
        %1981 = vmatprep.subr.bf16.mxu0 0
        %1982 = vmatpush1.bf16.xpose.msra.mxu0 0
        %1983 = vmatprep.subr.bf16.mxu0 0
        %1984 = vmatpush1.bf16.xpose.msra.mxu0 0
        %1985 = vmatprep.subr.bf16.mxu0 0
        %1986 = vmatpush1.bf16.xpose.msra.mxu0 0
        %1987 = vmatprep.subr.bf16.mxu0 0
        %1988 = vmatpush1.bf16.xpose.msra.mxu0 0
        %1989 = vmatprep.subr.bf16.mxu0 0
        %1990 = vmatpush1.bf16.xpose.msra.mxu0 0
        %1991 = vmatprep.subr.bf16.mxu0 0
        %1992 = vmatpush1.bf16.xpose.msra.mxu0 0
        %1993 = vmatprep.subr.bf16.mxu0 0
        %1994 = vmatpush1.bf16.xpose.msra.mxu0 0
        %1995 = vmatprep.subr.bf16.mxu0 0
        %1996 = vmatpush1.bf16.xpose.msra.mxu0 0
        %1997 = vmatprep.subr.bf16.mxu0 0
        %1998 = vmatpush1.bf16.xpose.msra.mxu0 0
        %1999 = vmatprep.subr.bf16.mxu0 0
        %2000 = vmatpush1.bf16.xpose.msra.mxu0 0
        %2001 = vmatprep.subr.bf16.mxu0 0
        %2002 = vmatpush1.bf16.xpose.msra.mxu0 0
        %2003 = vmatprep.subr.bf16.mxu0 0
        %2004 = vmatpush1.bf16.xpose.msra.mxu0 0
        %2005 = vmatprep.subr.bf16.mxu0 0
        %2006 = vmatpush1.bf16.xpose.msra.mxu0 0
        %2007 = vmatprep.subr.bf16.mxu0 0
        %2008 = vmatpush1.bf16.xpose.msra.mxu0 0
        %2009 = vmatprep.mubr.bf16.mxu0 0
        %2010 = vmatmul.mubr.bf16.gmra.mrb[0].mxu0 %v1972
        %v2011 = vpop.f32.mrb[0].mxu0
        %v2012 = vadd.f32 0.0, %v2011
        %v2013 = vpop.f32.mrb[0].mxu0
        %v2014 = vpop.f32.mrb[0].mxu0
        %v2015 = vpop.f32.mrb[0].mxu0
        %2016 = vdwg.mxu0
        %v2018 = vsel %vm1204, %v1908, 0
        %v2021 = vsel %vm1204, %v1915, 0
        %2023 = vmatprep.subr.bf16.mxu0 0
        %2024 = vmatpush1.bf16.xpose.msra.mxu0 %v2021
        %2025 = vmatprep.subr.bf16.mxu0 0
        %2026 = vmatpush1.bf16.xpose.msra.mxu0 0
        %2027 = vmatprep.subr.bf16.mxu0 0
        %2028 = vmatpush1.bf16.xpose.msra.mxu0 0
        %2029 = vmatprep.subr.bf16.mxu0 0
        %2030 = vmatpush1.bf16.xpose.msra.mxu0 0
        %2031 = vmatprep.subr.bf16.mxu0 0
        %2032 = vmatpush1.bf16.xpose.msra.mxu0 0
        %2033 = vmatprep.subr.bf16.mxu0 0
        %2034 = vmatpush1.bf16.xpose.msra.mxu0 0
        %2035 = vmatprep.subr.bf16.mxu0 0
        %2036 = vmatpush1.bf16.xpose.msra.mxu0 0
        %2037 = vmatprep.subr.bf16.mxu0 0
        %2038 = vmatpush1.bf16.xpose.msra.mxu0 0
        %2039 = vmatprep.subr.bf16.mxu0 0
        %2040 = vmatpush1.bf16.xpose.msra.mxu0 0
        %2041 = vmatprep.subr.bf16.mxu0 0
        %2042 = vmatpush1.bf16.xpose.msra.mxu0 0
        %2043 = vmatprep.subr.bf16.mxu0 0
        %2044 = vmatpush1.bf16.xpose.msra.mxu0 0
        %2045 = vmatprep.subr.bf16.mxu0 0
        %2046 = vmatpush1.bf16.xpose.msra.mxu0 0
        %2047 = vmatprep.subr.bf16.mxu0 0
        %2048 = vmatpush1.bf16.xpose.msra.mxu0 0
        %2049 = vmatprep.subr.bf16.mxu0 0
        %2050 = vmatpush1.bf16.xpose.msra.mxu0 0
        %2051 = vmatprep.subr.bf16.mxu0 0
        %2052 = vmatpush1.bf16.xpose.msra.mxu0 0
        %2053 = vmatprep.subr.bf16.mxu0 0
        %2054 = vmatpush1.bf16.xpose.msra.mxu0 0
        %2055 = vmatprep.mubr.bf16.mxu0 0
        %2056 = vmatmul.mubr.bf16.gmra.mrb[0].mxu0 %v2018
        %v2057 = vpop.f32.mrb[0].mxu0
        %v2058 = vadd.f32 0.0, %v2057
        %v2059 = vpop.f32.mrb[0].mxu0
        %v2060 = vpop.f32.mrb[0].mxu0
        %v2061 = vpop.f32.mrb[0].mxu0
        %2062 = vdwg.mxu0
        %v2064 = vsel %vm1204, %v1910, 0
        %v2067 = vsel %vm1204, %v1917, 0
        %2069 = vmatprep.subr.bf16.mxu0 0
        %2070 = vmatpush1.bf16.xpose.msra.mxu0 %v2067
        %2071 = vmatprep.subr.bf16.mxu0 0
        %2072 = vmatpush1.bf16.xpose.msra.mxu0 0
        %2073 = vmatprep.subr.bf16.mxu0 0
        %2074 = vmatpush1.bf16.xpose.msra.mxu0 0
        %2075 = vmatprep.subr.bf16.mxu0 0
        %2076 = vmatpush1.bf16.xpose.msra.mxu0 0
        %2077 = vmatprep.subr.bf16.mxu0 0
        %2078 = vmatpush1.bf16.xpose.msra.mxu0 0
        %2079 = vmatprep.subr.bf16.mxu0 0
        %2080 = vmatpush1.bf16.xpose.msra.mxu0 0
        %2081 = vmatprep.subr.bf16.mxu0 0
        %2082 = vmatpush1.bf16.xpose.msra.mxu0 0
        %2083 = vmatprep.subr.bf16.mxu0 0
        %2084 = vmatpush1.bf16.xpose.msra.mxu0 0
        %2085 = vmatprep.subr.bf16.mxu0 0
        %2086 = vmatpush1.bf16.xpose.msra.mxu0 0
        %2087 = vmatprep.subr.bf16.mxu0 0
        %2088 = vmatpush1.bf16.xpose.msra.mxu0 0
        %2089 = vmatprep.subr.bf16.mxu0 0
        %2090 = vmatpush1.bf16.xpose.msra.mxu0 0
        %2091 = vmatprep.subr.bf16.mxu0 0
        %2092 = vmatpush1.bf16.xpose.msra.mxu0 0
        %2093 = vmatprep.subr.bf16.mxu0 0
        %2094 = vmatpush1.bf16.xpose.msra.mxu0 0
        %2095 = vmatprep.subr.bf16.mxu0 0
        %2096 = vmatpush1.bf16.xpose.msra.mxu0 0
        %2097 = vmatprep.subr.bf16.mxu0 0
        %2098 = vmatpush1.bf16.xpose.msra.mxu0 0
        %2099 = vmatprep.subr.bf16.mxu0 0
        %2100 = vmatpush1.bf16.xpose.msra.mxu0 0
        %2101 = vmatprep.mubr.bf16.mxu0 0
        %2102 = vmatmul.mubr.bf16.gmra.mrb[0].mxu0 %v2064
        %v2103 = vpop.f32.mrb[0].mxu0
        %v2104 = vadd.f32 0.0, %v2103
        %v2105 = vpop.f32.mrb[0].mxu0
        %v2106 = vpop.f32.mrb[0].mxu0
        %v2107 = vpop.f32.mrb[0].mxu0
        %2108 = vdwg.mxu0
        %v2109 = vmul.f32 %v1966, 0.17677669
        %v2110 = vmul.f32 %v2012, 0.17677669
        %v2111 = vmul.f32 %v2058, 0.17677669
        %v2112 = vmul.f32 %v2104, 0.17677669
        %v2113 = vadd.f32 %v2109, %v1020
        %v2114 = vadd.f32 %v2110, %v1020
        %v2115 = vadd.f32 %v2111, %v1020
        %v2116 = vadd.f32 %v2112, %v1020
        %v2117 = vsel %vm1397, %v2113, -inf
        %2118 = vmax.xlane.f32.xlu0 %v2117
        %v2119 = vpop.xlane.xlu0 %2118
        %v2120 = vsel %vm1397, %v2114, -inf
        %2121 = vmax.xlane.f32.xlu0 %v2120
        %v2122 = vpop.xlane.xlu0 %2121
        %v2123 = vsel %vm1397, %v2115, -inf
        %2124 = vmax.xlane.f32.xlu0 %v2123
        %v2125 = vpop.xlane.xlu0 %2124
        %v2126 = vsel %vm1397, %v2116, -inf
        %2127 = vmax.xlane.f32.xlu0 %v2126
        %v2128 = vpop.xlane.xlu0 %2127
        %v2129 = vsub.f32 %v2113, %v2119
        %v2130 = vsub.f32 %v2114, %v2122
        %v2131 = vsub.f32 %v2115, %v2125
        %v2132 = vsub.f32 %v2116, %v2128
        %v2133 = vmul.f32 %v2129, 1.442695
        %v2134 = vpow.pop %v2133
        %v2135 = vmul.f32 %v2130, 1.442695
        %v2136 = vpow.pop %v2135
        %v2137 = vmul.f32 %v2131, 1.442695
        %v2138 = vpow.pop %v2137
        %v2139 = vmul.f32 %v2132, 1.442695
        %v2140 = vpow.pop %v2139
        %v2141 = vsel %vm1397, %v2134, 0.0
        %2142 = vadd.xlane.f32.xlu0 %v2141
        %v2143 = vpop.xlane.xlu0 %2142
        %v2144 = vsel %vm1397, %v2136, 0.0
        %2145 = vadd.xlane.f32.xlu0 %v2144
        %v2146 = vpop.xlane.xlu0 %2145
        %v2147 = vsel %vm1397, %v2138, 0.0
        %2148 = vadd.xlane.f32.xlu0 %v2147
        %v2149 = vpop.xlane.xlu0 %2148
        %v2150 = vsel %vm1397, %v2140, 0.0
        %2151 = vadd.xlane.f32.xlu0 %v2150
        %v2152 = vpop.xlane.xlu0 %2151
        %v2153 = vrcp.pop %v2143
        %v2154 = vrcp.pop %v2146
        %v2155 = vrcp.pop %v2149
        %v2156 = vrcp.pop %v2152
        %v2157 = vmul.f32 %v2134, %v2153
        %v2158 = vmul.f32 %v2136, %v2154
        %v2159 = vmul.f32 %v2138, %v2155
        %v2160 = vmul.f32 %v2140, %v2156
        %v2161 = vpack.c.bf16 %v2157, %v2157
        %v2162 = vpack.c.bf16 %v2158, %v2158
        %v2163 = vpack.c.bf16 %v2159, %v2159
        %v2164 = vpack.c.bf16 %v2160, %v2160
        %v2166 = vsel %vm1397, %v2161, 0
        %v2169 = vsel %vm1449, %v1773, 0
        %2171 = vmatprep.subr.bf16.mxu0 0
        %2172 = vmatpush1.bf16.msra.mxu0 %v2169
        %2173 = vmatprep.subr.bf16.mxu0 0
        %2174 = vmatpush1.bf16.msra.mxu0 0
        %2175 = vmatprep.subr.bf16.mxu0 0
        %2176 = vmatpush1.bf16.msra.mxu0 0
        %2177 = vmatprep.subr.bf16.mxu0 0
        %2178 = vmatpush1.bf16.msra.mxu0 0
        %2179 = vmatprep.subr.bf16.mxu0 0
        %2180 = vmatpush1.bf16.msra.mxu0 0
        %2181 = vmatprep.subr.bf16.mxu0 0
        %2182 = vmatpush1.bf16.msra.mxu0 0
        %2183 = vmatprep.subr.bf16.mxu0 0
        %2184 = vmatpush1.bf16.msra.mxu0 0
        %2185 = vmatprep.subr.bf16.mxu0 0
        %2186 = vmatpush1.bf16.msra.mxu0 0
        %2187 = vmatprep.subr.bf16.mxu0 0
        %2188 = vmatpush1.bf16.msra.mxu0 0
        %2189 = vmatprep.subr.bf16.mxu0 0
        %2190 = vmatpush1.bf16.msra.mxu0 0
        %2191 = vmatprep.subr.bf16.mxu0 0
        %2192 = vmatpush1.bf16.msra.mxu0 0
        %2193 = vmatprep.subr.bf16.mxu0 0
        %2194 = vmatpush1.bf16.msra.mxu0 0
        %2195 = vmatprep.subr.bf16.mxu0 0
        %2196 = vmatpush1.bf16.msra.mxu0 0
        %2197 = vmatprep.subr.bf16.mxu0 0
        %2198 = vmatpush1.bf16.msra.mxu0 0
        %2199 = vmatprep.subr.bf16.mxu0 0
        %2200 = vmatpush1.bf16.msra.mxu0 0
        %2201 = vmatprep.subr.bf16.mxu0 0
        %2202 = vmatpush1.bf16.msra.mxu0 0
        %2203 = vmatprep.mubr.bf16.mxu0 0
        %2204 = vmatmul.mubr.bf16.gmra.mrb[0].mxu0 %v2166
        %v2205 = vpop.f32.mrb[0].mxu0
        %v2206 = vadd.f32 0.0, %v2205
        %v2207 = vpop.f32.mrb[0].mxu0
        %v2208 = vpop.f32.mrb[0].mxu0
        %v2209 = vpop.f32.mrb[0].mxu0
        %2210 = vdwg.mxu0
        %v2212 = vsel %vm1397, %v2162, 0
        %v2215 = vsel %vm1449, %v1920, 0
        %2217 = vmatprep.subr.bf16.mxu0 0
        %2218 = vmatpush1.bf16.msra.mxu0 %v2215
        %2219 = vmatprep.subr.bf16.mxu0 0
        %2220 = vmatpush1.bf16.msra.mxu0 0
        %2221 = vmatprep.subr.bf16.mxu0 0
        %2222 = vmatpush1.bf16.msra.mxu0 0
        %2223 = vmatprep.subr.bf16.mxu0 0
        %2224 = vmatpush1.bf16.msra.mxu0 0
        %2225 = vmatprep.subr.bf16.mxu0 0
        %2226 = vmatpush1.bf16.msra.mxu0 0
        %2227 = vmatprep.subr.bf16.mxu0 0
        %2228 = vmatpush1.bf16.msra.mxu0 0
        %2229 = vmatprep.subr.bf16.mxu0 0
        %2230 = vmatpush1.bf16.msra.mxu0 0
        %2231 = vmatprep.subr.bf16.mxu0 0
        %2232 = vmatpush1.bf16.msra.mxu0 0
        %2233 = vmatprep.subr.bf16.mxu0 0
        %2234 = vmatpush1.bf16.msra.mxu0 0
        %2235 = vmatprep.subr.bf16.mxu0 0
        %2236 = vmatpush1.bf16.msra.mxu0 0
        %2237 = vmatprep.subr.bf16.mxu0 0
        %2238 = vmatpush1.bf16.msra.mxu0 0
        %2239 = vmatprep.subr.bf16.mxu0 0
        %2240 = vmatpush1.bf16.msra.mxu0 0
        %2241 = vmatprep.subr.bf16.mxu0 0
        %2242 = vmatpush1.bf16.msra.mxu0 0
        %2243 = vmatprep.subr.bf16.mxu0 0
        %2244 = vmatpush1.bf16.msra.mxu0 0
        %2245 = vmatprep.subr.bf16.mxu0 0
        %2246 = vmatpush1.bf16.msra.mxu0 0
        %2247 = vmatprep.subr.bf16.mxu0 0
        %2248 = vmatpush1.bf16.msra.mxu0 0
        %2249 = vmatprep.mubr.bf16.mxu0 0
        %2250 = vmatmul.mubr.bf16.gmra.mrb[0].mxu0 %v2212
        %v2251 = vpop.f32.mrb[0].mxu0
        %v2252 = vadd.f32 0.0, %v2251
        %v2253 = vpop.f32.mrb[0].mxu0
        %v2254 = vpop.f32.mrb[0].mxu0
        %v2255 = vpop.f32.mrb[0].mxu0
        %2256 = vdwg.mxu0
        %v2258 = vsel %vm1397, %v2163, 0
        %v2261 = vsel %vm1449, %v1922, 0
        %2263 = vmatprep.subr.bf16.mxu0 0
        %2264 = vmatpush1.bf16.msra.mxu0 %v2261
        %2265 = vmatprep.subr.bf16.mxu0 0
        %2266 = vmatpush1.bf16.msra.mxu0 0
        %2267 = vmatprep.subr.bf16.mxu0 0
        %2268 = vmatpush1.bf16.msra.mxu0 0
        %2269 = vmatprep.subr.bf16.mxu0 0
        %2270 = vmatpush1.bf16.msra.mxu0 0
        %2271 = vmatprep.subr.bf16.mxu0 0
        %2272 = vmatpush1.bf16.msra.mxu0 0
        %2273 = vmatprep.subr.bf16.mxu0 0
        %2274 = vmatpush1.bf16.msra.mxu0 0
        %2275 = vmatprep.subr.bf16.mxu0 0
        %2276 = vmatpush1.bf16.msra.mxu0 0
        %2277 = vmatprep.subr.bf16.mxu0 0
        %2278 = vmatpush1.bf16.msra.mxu0 0
        %2279 = vmatprep.subr.bf16.mxu0 0
        %2280 = vmatpush1.bf16.msra.mxu0 0
        %2281 = vmatprep.subr.bf16.mxu0 0
        %2282 = vmatpush1.bf16.msra.mxu0 0
        %2283 = vmatprep.subr.bf16.mxu0 0
        %2284 = vmatpush1.bf16.msra.mxu0 0
        %2285 = vmatprep.subr.bf16.mxu0 0
        %2286 = vmatpush1.bf16.msra.mxu0 0
        %2287 = vmatprep.subr.bf16.mxu0 0
        %2288 = vmatpush1.bf16.msra.mxu0 0
        %2289 = vmatprep.subr.bf16.mxu0 0
        %2290 = vmatpush1.bf16.msra.mxu0 0
        %2291 = vmatprep.subr.bf16.mxu0 0
        %2292 = vmatpush1.bf16.msra.mxu0 0
        %2293 = vmatprep.subr.bf16.mxu0 0
        %2294 = vmatpush1.bf16.msra.mxu0 0
        %2295 = vmatprep.mubr.bf16.mxu0 0
        %2296 = vmatmul.mubr.bf16.gmra.mrb[0].mxu0 %v2258
        %v2297 = vpop.f32.mrb[0].mxu0
        %v2298 = vadd.f32 0.0, %v2297
        %v2299 = vpop.f32.mrb[0].mxu0
        %v2300 = vpop.f32.mrb[0].mxu0
        %v2301 = vpop.f32.mrb[0].mxu0
        %2302 = vdwg.mxu0
        %v2304 = vsel %vm1397, %v2164, 0
        %v2307 = vsel %vm1449, %v1924, 0
        %2309 = vmatprep.subr.bf16.mxu0 0
        %2310 = vmatpush1.bf16.msra.mxu0 %v2307
        %2311 = vmatprep.subr.bf16.mxu0 0
        %2312 = vmatpush1.bf16.msra.mxu0 0
        %2313 = vmatprep.subr.bf16.mxu0 0
        %2314 = vmatpush1.bf16.msra.mxu0 0
        %2315 = vmatprep.subr.bf16.mxu0 0
        %2316 = vmatpush1.bf16.msra.mxu0 0
        %2317 = vmatprep.subr.bf16.mxu0 0
        %2318 = vmatpush1.bf16.msra.mxu0 0
        %2319 = vmatprep.subr.bf16.mxu0 0
        %2320 = vmatpush1.bf16.msra.mxu0 0
        %2321 = vmatprep.subr.bf16.mxu0 0
        %2322 = vmatpush1.bf16.msra.mxu0 0
        %2323 = vmatprep.subr.bf16.mxu0 0
        %2324 = vmatpush1.bf16.msra.mxu0 0
        %2325 = vmatprep.subr.bf16.mxu0 0
        %2326 = vmatpush1.bf16.msra.mxu0 0
        %2327 = vmatprep.subr.bf16.mxu0 0
        %2328 = vmatpush1.bf16.msra.mxu0 0
        %2329 = vmatprep.subr.bf16.mxu0 0
        %2330 = vmatpush1.bf16.msra.mxu0 0
        %2331 = vmatprep.subr.bf16.mxu0 0
        %2332 = vmatpush1.bf16.msra.mxu0 0
        %2333 = vmatprep.subr.bf16.mxu0 0
        %2334 = vmatpush1.bf16.msra.mxu0 0
        %2335 = vmatprep.subr.bf16.mxu0 0
        %2336 = vmatpush1.bf16.msra.mxu0 0
        %2337 = vmatprep.subr.bf16.mxu0 0
        %2338 = vmatpush1.bf16.msra.mxu0 0
        %2339 = vmatprep.subr.bf16.mxu0 0
        %2340 = vmatpush1.bf16.msra.mxu0 0
        %2341 = vmatprep.mubr.bf16.mxu0 0
        %2342 = vmatmul.mubr.bf16.gmra.mrb[0].mxu0 %v2304
        %v2343 = vpop.f32.mrb[0].mxu0
        %v2344 = vadd.f32 0.0, %v2343
        %v2345 = vpop.f32.mrb[0].mxu0
        %v2346 = vpop.f32.mrb[0].mxu0
        %v2347 = vpop.f32.mrb[0].mxu0
        %2348 = vdwg.mxu0
        %2350 = vrot.lane.b32.xlu0 %v2252, 32
        %v2351 = vpop.permute.xlu0 %2350
        %2354 = vrot.lane.b32.xlu0 %v2298, 64
        %v2355 = vpop.permute.xlu0 %2354
        %2358 = vrot.lane.b32.xlu0 %v2344, 96
        %v2359 = vpop.permute.xlu0 %2358
        %v2361 = vsel %vm1204, %v2206, %v2351
        %v2362 = vsel %vm1644, %v2361, %v2355
        %v2363 = vsel %vm1646, %v2362, %v2359
        %v2364 = vpack.c.bf16 %v2363, %v2363
        %v2365 = vlaneseq
        %v2366 = vshrl.u32 %v2365, 7
        %v2367 = vsub.s32 0, %v2366
        %v2368 = vrot.slane %v1809, %v2367
        %v2385 = vunpack.c.l.b16 %v1792
        %v2386 = vunpack.c.l.b16 %v1793
        %v2387 = vunpack.c.l.b16 %v1794
        %v2388 = vunpack.c.l.b16 %v1795
        %v2389 = vunpack.c.l.b16 %v1796
        %v2390 = vunpack.c.l.b16 %v1797
        %v2391 = vunpack.c.l.b16 %v1798
        %v2392 = vunpack.c.l.b16 %v1799
        %v2393 = vunpack.c.l.b16 %v1800
        %v2394 = vunpack.c.l.b16 %v1801
        %v2395 = vunpack.c.l.b16 %v1802
        %v2396 = vunpack.c.l.b16 %v1803
        %v2397 = vunpack.c.l.b16 %v1804
        %v2398 = vunpack.c.l.b16 %v1805
        %v2399 = vunpack.c.l.b16 %v1806
        %v2400 = vunpack.c.l.b16 %v1807
        %v2401 = vpack.c.b16 %v2386, %v2385
        %v2402 = vpack.c.b16 %v2388, %v2387
        %v2403 = vpack.c.b16 %v2390, %v2389
        %v2404 = vpack.c.b16 %v2392, %v2391
        %v2405 = vpack.c.b16 %v2394, %v2393
        %v2406 = vpack.c.b16 %v2396, %v2395
        %v2407 = vpack.c.b16 %v2398, %v2397
        %v2408 = vpack.c.b16 %v2400, %v2399
        %2417 = vmatprep.subr.bf16.mxu0 0
        %2418 = vmatpush1.bf16.msra.mxu0 %v2401
        %2419 = vmatprep.subr.bf16.mxu0 0
        %2420 = vmatpush1.bf16.msra.mxu0 %v2402
        %2421 = vmatprep.subr.bf16.mxu0 0
        %2422 = vmatpush1.bf16.msra.mxu0 %v2403
        %2423 = vmatprep.subr.bf16.mxu0 0
        %2424 = vmatpush1.bf16.msra.mxu0 %v2404
        %2425 = vmatprep.subr.bf16.mxu0 0
        %2426 = vmatpush1.bf16.msra.mxu0 %v2405
        %2427 = vmatprep.subr.bf16.mxu0 0
        %2428 = vmatpush1.bf16.msra.mxu0 %v2406
        %2429 = vmatprep.subr.bf16.mxu0 0
        %2430 = vmatpush1.bf16.msra.mxu0 %v2407
        %2431 = vmatprep.subr.bf16.mxu0 0
        %2432 = vmatpush1.bf16.msra.mxu0 %v2408
        %2433 = vmatprep.subr.bf16.mxu0 0
        %2434 = vmatpush1.bf16.msra.mxu0 0
        %2435 = vmatprep.subr.bf16.mxu0 0
        %2436 = vmatpush1.bf16.msra.mxu0 0
        %2437 = vmatprep.subr.bf16.mxu0 0
        %2438 = vmatpush1.bf16.msra.mxu0 0
        %2439 = vmatprep.subr.bf16.mxu0 0
        %2440 = vmatpush1.bf16.msra.mxu0 0
        %2441 = vmatprep.subr.bf16.mxu0 0
        %2442 = vmatpush1.bf16.msra.mxu0 0
        %2443 = vmatprep.subr.bf16.mxu0 0
        %2444 = vmatpush1.bf16.msra.mxu0 0
        %2445 = vmatprep.subr.bf16.mxu0 0
        %2446 = vmatpush1.bf16.msra.mxu0 0
        %2447 = vmatprep.subr.bf16.mxu0 0
        %2448 = vmatpush1.bf16.msra.mxu0 0
        %2449 = vmatprep.mubr.bf16.mxu0 0
        %2450 = vmatmul.mubr.bf16.gmra.mrb[0].mxu0 %v2364
        %v2451 = vpop.f32.mrb[0].mxu0
        %v2452 = vadd.f32 %v2368, %v2451
        %v2453 = vpop.f32.mrb[0].mxu0
        %v2454 = vpop.f32.mrb[0].mxu0
        %v2455 = vpop.f32.mrb[0].mxu0
        %2456 = vdwg.mxu0
        %v2457 = vadd.f32 %v1741, %v2452
        %v2458 = vld [vmem:[#allocation12 + $0x4] sm:$0x1]
        %v2459 = vld [vmem:[#allocation12 + $0x5] sm:$0x1]
        %2460 = vadd.xlane.f32.xlu0 %v2457
        %v2461 = vpop.xlane.xlu0 %2460
        %v2462 = vmul.f32 %v2461, %v1025
        %v2463 = vsub.f32 %v2457, %v2462
        %v2464 = vmul.f32 %v2463, %v2463
        %2465 = vadd.xlane.f32.xlu0 %v2464
        %v2466 = vpop.xlane.xlu0 %2465
        %v2467 = vmul.f32 %v2466, 0.007874016
        %v2468 = vrsqrt.pop %v2467
        %v2469 = vmul.f32 %v2467, %v2468
        %vm2470 = vcmp.eq.f32.partialorder %v2467, inf
        %v2471 = vsel %vm2470, %v2467, %v2469
        %vm2472 = vcmp.eq.f32.partialorder %v2467, 0.0
        %v2473 = vand.u32 %v2467, 2147483648
        %v2474 = vsel %vm2472, %v2473, %v2471
        %v2475 = vadd.f32 %v2474, 1e-06
        %v2476 = vrcp.pop %v2475
        %v2477 = vlaneseq
        %v2478 = vshrl.u32 %v2477, 7
        %v2479 = vsub.s32 0, %v2478
        %v2480 = vrot.slane %v2458, %v2479
        %v2481 = vmul.f32 %v2480, %v2463
        %v2482 = vmul.f32 %v2481, %v2476
        %v2483 = vlaneseq
        %v2484 = vshrl.u32 %v2483, 7
        %v2485 = vsub.s32 0, %v2484
        %v2486 = vrot.slane %v2459, %v2485
        %v2487 = vadd.f32 %v2482, %v2486
        %v2488 = vpack.c.bf16 %v2487, %v2487
        %v2489 = vld [vmem:[#allocation15] sm:$0xff]
        %v2490 = vld [vmem:[#allocation15 + $0x8] sm:$0xff]
        %v2491 = vld [vmem:[#allocation15 + $0x10] sm:$0xff]
        %v2492 = vld [vmem:[#allocation15 + $0x18] sm:$0xff]
        %v2493 = vld [vmem:[#allocation15 + $0x20] sm:$0xff]
        %v2494 = vld [vmem:[#allocation15 + $0x28] sm:$0xff]
        %v2495 = vld [vmem:[#allocation15 + $0x30] sm:$0xff]
        %v2496 = vld [vmem:[#allocation15 + $0x38] sm:$0xff]
        %v2497 = vld [vmem:[#allocation15 + $0x40] sm:$0xff]
        %v2498 = vld [vmem:[#allocation15 + $0x48] sm:$0xff]
        %v2499 = vld [vmem:[#allocation15 + $0x50] sm:$0xff]
        %v2500 = vld [vmem:[#allocation15 + $0x58] sm:$0xff]
        %v2501 = vld [vmem:[#allocation15 + $0x60] sm:$0xff]
        %v2502 = vld [vmem:[#allocation15 + $0x68] sm:$0xff]
        %v2503 = vld [vmem:[#allocation15 + $0x70] sm:$0xff]
        %v2504 = vld [vmem:[#allocation15 + $0x78] sm:$0xff]
        %v2505 = vld [vmem:[%s7] sm:$0x3]
        %v2507 = vlaneseq
        %v2508 = vshrl.u32 %v2507, 7
        %v2509 = vsub.s32 0, %v2508
        %v2510 = vrot.slane %v2505, %v2509
        %v2511 = vlaneseq
        %v2512 = vshrl.u32 %v2511, 7
        %v2513 = vsub.s32 1, %v2512
        %v2514 = vrot.slane %v2505, %v2513
        %v2533 = vunpack.c.l.b16 %v2489
        %v2534 = vunpack.c.h.b16 %v2489
        %v2535 = vunpack.c.l.b16 %v2490
        %v2536 = vunpack.c.h.b16 %v2490
        %v2537 = vunpack.c.l.b16 %v2491
        %v2538 = vunpack.c.h.b16 %v2491
        %v2539 = vunpack.c.l.b16 %v2492
        %v2540 = vunpack.c.h.b16 %v2492
        %v2541 = vunpack.c.l.b16 %v2493
        %v2542 = vunpack.c.h.b16 %v2493
        %v2543 = vunpack.c.l.b16 %v2494
        %v2544 = vunpack.c.h.b16 %v2494
        %v2545 = vunpack.c.l.b16 %v2495
        %v2546 = vunpack.c.h.b16 %v2495
        %v2547 = vunpack.c.l.b16 %v2496
        %v2548 = vunpack.c.h.b16 %v2496
        %v2549 = vunpack.c.l.b16 %v2497
        %v2550 = vunpack.c.h.b16 %v2497
        %v2551 = vunpack.c.l.b16 %v2498
        %v2552 = vunpack.c.h.b16 %v2498
        %v2553 = vunpack.c.l.b16 %v2499
        %v2554 = vunpack.c.h.b16 %v2499
        %v2555 = vunpack.c.l.b16 %v2500
        %v2556 = vunpack.c.h.b16 %v2500
        %v2557 = vunpack.c.l.b16 %v2501
        %v2558 = vunpack.c.h.b16 %v2501
        %v2559 = vunpack.c.l.b16 %v2502
        %v2560 = vunpack.c.h.b16 %v2502
        %v2561 = vunpack.c.l.b16 %v2503
        %v2562 = vunpack.c.h.b16 %v2503
        %v2563 = vunpack.c.l.b16 %v2504
        %v2564 = vunpack.c.h.b16 %v2504
        %v2565 = vpack.c.b16 %v2535, %v2533
        %v2566 = vpack.c.b16 %v2536, %v2534
        %v2567 = vpack.c.b16 %v2539, %v2537
        %v2568 = vpack.c.b16 %v2540, %v2538
        %v2569 = vpack.c.b16 %v2543, %v2541
        %v2570 = vpack.c.b16 %v2544, %v2542
        %v2571 = vpack.c.b16 %v2547, %v2545
        %v2572 = vpack.c.b16 %v2548, %v2546
        %v2573 = vpack.c.b16 %v2551, %v2549
        %v2574 = vpack.c.b16 %v2552, %v2550
        %v2575 = vpack.c.b16 %v2555, %v2553
        %v2576 = vpack.c.b16 %v2556, %v2554
        %v2577 = vpack.c.b16 %v2559, %v2557
        %v2578 = vpack.c.b16 %v2560, %v2558
        %v2579 = vpack.c.b16 %v2563, %v2561
        %v2580 = vpack.c.b16 %v2564, %v2562
        %2597 = vmatprep.subr.bf16.mxu0 %v2566
        %2598 = vmatpush1.bf16.msra.mxu0 %v2565
        %2599 = vmatprep.subr.bf16.mxu0 %v2568
        %2600 = vmatpush1.bf16.msra.mxu0 %v2567
        %2601 = vmatprep.subr.bf16.mxu0 %v2570
        %2602 = vmatpush1.bf16.msra.mxu0 %v2569
        %2603 = vmatprep.subr.bf16.mxu0 %v2572
        %2604 = vmatpush1.bf16.msra.mxu0 %v2571
        %2605 = vmatprep.subr.bf16.mxu0 %v2574
        %2606 = vmatpush1.bf16.msra.mxu0 %v2573
        %2607 = vmatprep.subr.bf16.mxu0 %v2576
        %2608 = vmatpush1.bf16.msra.mxu0 %v2575
        %2609 = vmatprep.subr.bf16.mxu0 %v2578
        %2610 = vmatpush1.bf16.msra.mxu0 %v2577
        %2611 = vmatprep.subr.bf16.mxu0 %v2580
        %2612 = vmatpush1.bf16.msra.mxu0 %v2579
        %2613 = vmatprep.subr.bf16.mxu0 0
        %2614 = vmatpush1.bf16.msra.mxu0 0
        %2615 = vmatprep.subr.bf16.mxu0 0
        %2616 = vmatpush1.bf16.msra.mxu0 0
        %2617 = vmatprep.subr.bf16.mxu0 0
        %2618 = vmatpush1.bf16.msra.mxu0 0
        %2619 = vmatprep.subr.bf16.mxu0 0
        %2620 = vmatpush1.bf16.msra.mxu0 0
        %2621 = vmatprep.subr.bf16.mxu0 0
        %2622 = vmatpush1.bf16.msra.mxu0 0
        %2623 = vmatprep.subr.bf16.mxu0 0
        %2624 = vmatpush1.bf16.msra.mxu0 0
        %2625 = vmatprep.subr.bf16.mxu0 0
        %2626 = vmatpush1.bf16.msra.mxu0 0
        %2627 = vmatprep.subr.bf16.mxu0 0
        %2628 = vmatpush1.bf16.msra.mxu0 0
        %2629 = vmatprep.mubr.bf16.mxu0 0
        %2630 = vmatmul.mubr.bf16.gmra.mrb[0].mxu0 %v2488
        %v2631 = vpop.f32.mrb[0].mxu0
        %v2632 = vadd.f32 %v2510, %v2631
        %v2633 = vpop.f32.mrb[0].mxu0
        %v2634 = vadd.f32 %v2514, %v2633
        %v2635 = vpop.f32.mrb[0].mxu0
        %v2636 = vpop.f32.mrb[0].mxu0
        %2637 = vdwg.mxu0
        %v2638 = vmax.f32 %v2632, 0.0
        %v2639 = vmax.f32 %v2634, 0.0
        %v2640 = vpack.c.bf16 %v2638, %v2638
        %v2641 = vpack.c.bf16 %v2639, %v2639
        %v2642 = vld [vmem:[#allocation17] sm:$0xf]
        %v2643 = vld [vmem:[#allocation17 + $0x4] sm:$0xf]
        %v2644 = vld [vmem:[#allocation17 + $0x8] sm:$0xf]
        %v2645 = vld [vmem:[#allocation17 + $0xc] sm:$0xf]
        %v2646 = vld [vmem:[#allocation17 + $0x10] sm:$0xf]
        %v2647 = vld [vmem:[#allocation17 + $0x14] sm:$0xf]
        %v2648 = vld [vmem:[#allocation17 + $0x18] sm:$0xf]
        %v2649 = vld [vmem:[#allocation17 + $0x1c] sm:$0xf]
        %v2650 = vld [vmem:[#allocation17 + $0x20] sm:$0xf]
        %v2651 = vld [vmem:[#allocation17 + $0x24] sm:$0xf]
        %v2652 = vld [vmem:[#allocation17 + $0x28] sm:$0xf]
        %v2653 = vld [vmem:[#allocation17 + $0x2c] sm:$0xf]
        %v2654 = vld [vmem:[#allocation17 + $0x30] sm:$0xf]
        %v2655 = vld [vmem:[#allocation17 + $0x34] sm:$0xf]
        %v2656 = vld [vmem:[#allocation17 + $0x38] sm:$0xf]
        %v2657 = vld [vmem:[#allocation17 + $0x3c] sm:$0xf]
        %v2658 = vld [vmem:[#allocation17 + $0x40] sm:$0xf]
        %v2659 = vld [vmem:[#allocation17 + $0x44] sm:$0xf]
        %v2660 = vld [vmem:[#allocation17 + $0x48] sm:$0xf]
        %v2661 = vld [vmem:[#allocation17 + $0x4c] sm:$0xf]
        %v2662 = vld [vmem:[#allocation17 + $0x50] sm:$0xf]
        %v2663 = vld [vmem:[#allocation17 + $0x54] sm:$0xf]
        %v2664 = vld [vmem:[#allocation17 + $0x58] sm:$0xf]
        %v2665 = vld [vmem:[#allocation17 + $0x5c] sm:$0xf]
        %v2666 = vld [vmem:[#allocation17 + $0x60] sm:$0xf]
        %v2667 = vld [vmem:[#allocation17 + $0x64] sm:$0xf]
        %v2668 = vld [vmem:[#allocation17 + $0x68] sm:$0xf]
        %v2669 = vld [vmem:[#allocation17 + $0x6c] sm:$0xf]
        %v2670 = vld [vmem:[#allocation17 + $0x70] sm:$0xf]
        %v2671 = vld [vmem:[#allocation17 + $0x74] sm:$0xf]
        %v2672 = vld [vmem:[#allocation17 + $0x78] sm:$0xf]
        %v2673 = vld [vmem:[#allocation17 + $0x7c] sm:$0xf]
        %v2706 = vunpack.c.l.b16 %v2642
        %v2707 = vunpack.c.l.b16 %v2643
        %v2708 = vunpack.c.l.b16 %v2644
        %v2709 = vunpack.c.l.b16 %v2645
        %v2710 = vunpack.c.l.b16 %v2646
        %v2711 = vunpack.c.l.b16 %v2647
        %v2712 = vunpack.c.l.b16 %v2648
        %v2713 = vunpack.c.l.b16 %v2649
        %v2714 = vunpack.c.l.b16 %v2650
        %v2715 = vunpack.c.l.b16 %v2651
        %v2716 = vunpack.c.l.b16 %v2652
        %v2717 = vunpack.c.l.b16 %v2653
        %v2718 = vunpack.c.l.b16 %v2654
        %v2719 = vunpack.c.l.b16 %v2655
        %v2720 = vunpack.c.l.b16 %v2656
        %v2721 = vunpack.c.l.b16 %v2657
        %v2722 = vunpack.c.l.b16 %v2658
        %v2723 = vunpack.c.l.b16 %v2659
        %v2724 = vunpack.c.l.b16 %v2660
        %v2725 = vunpack.c.l.b16 %v2661
        %v2726 = vunpack.c.l.b16 %v2662
        %v2727 = vunpack.c.l.b16 %v2663
        %v2728 = vunpack.c.l.b16 %v2664
        %v2729 = vunpack.c.l.b16 %v2665
        %v2730 = vunpack.c.l.b16 %v2666
        %v2731 = vunpack.c.l.b16 %v2667
        %v2732 = vunpack.c.l.b16 %v2668
        %v2733 = vunpack.c.l.b16 %v2669
        %v2734 = vunpack.c.l.b16 %v2670
        %v2735 = vunpack.c.l.b16 %v2671
        %v2736 = vunpack.c.l.b16 %v2672
        %v2737 = vunpack.c.l.b16 %v2673
        %v2738 = vpack.c.b16 %v2707, %v2706
        %v2739 = vpack.c.b16 %v2709, %v2708
        %v2740 = vpack.c.b16 %v2711, %v2710
        %v2741 = vpack.c.b16 %v2713, %v2712
        %v2742 = vpack.c.b16 %v2715, %v2714
        %v2743 = vpack.c.b16 %v2717, %v2716
        %v2744 = vpack.c.b16 %v2719, %v2718
        %v2745 = vpack.c.b16 %v2721, %v2720
        %v2746 = vpack.c.b16 %v2723, %v2722
        %v2747 = vpack.c.b16 %v2725, %v2724
        %v2748 = vpack.c.b16 %v2727, %v2726
        %v2749 = vpack.c.b16 %v2729, %v2728
        %v2750 = vpack.c.b16 %v2731, %v2730
        %v2751 = vpack.c.b16 %v2733, %v2732
        %v2752 = vpack.c.b16 %v2735, %v2734
        %v2753 = vpack.c.b16 %v2737, %v2736
        %2770 = vmatprep.subr.bf16.mxu0 0
        %2771 = vmatpush1.bf16.msra.mxu0 %v2738
        %2772 = vmatprep.subr.bf16.mxu0 0
        %2773 = vmatpush1.bf16.msra.mxu0 %v2739
        %2774 = vmatprep.subr.bf16.mxu0 0
        %2775 = vmatpush1.bf16.msra.mxu0 %v2740
        %2776 = vmatprep.subr.bf16.mxu0 0
        %2777 = vmatpush1.bf16.msra.mxu0 %v2741
        %2778 = vmatprep.subr.bf16.mxu0 0
        %2779 = vmatpush1.bf16.msra.mxu0 %v2742
        %2780 = vmatprep.subr.bf16.mxu0 0
        %2781 = vmatpush1.bf16.msra.mxu0 %v2743
        %2782 = vmatprep.subr.bf16.mxu0 0
        %2783 = vmatpush1.bf16.msra.mxu0 %v2744
        %2784 = vmatprep.subr.bf16.mxu0 0
        %2785 = vmatpush1.bf16.msra.mxu0 %v2745
        %2786 = vmatprep.subr.bf16.mxu0 0
        %2787 = vmatpush1.bf16.msra.mxu0 %v2746
        %2788 = vmatprep.subr.bf16.mxu0 0
        %2789 = vmatpush1.bf16.msra.mxu0 %v2747
        %2790 = vmatprep.subr.bf16.mxu0 0
        %2791 = vmatpush1.bf16.msra.mxu0 %v2748
        %2792 = vmatprep.subr.bf16.mxu0 0
        %2793 = vmatpush1.bf16.msra.mxu0 %v2749
        %2794 = vmatprep.subr.bf16.mxu0 0
        %2795 = vmatpush1.bf16.msra.mxu0 %v2750
        %2796 = vmatprep.subr.bf16.mxu0 0
        %2797 = vmatpush1.bf16.msra.mxu0 %v2751
        %2798 = vmatprep.subr.bf16.mxu0 0
        %2799 = vmatpush1.bf16.msra.mxu0 %v2752
        %2800 = vmatprep.subr.bf16.mxu0 0
        %2801 = vmatpush1.bf16.msra.mxu0 %v2753
        %2802 = vmatprep.mubr.bf16.mxu0 %v2641
        %2803 = vmatmul.mubr.bf16.gmra.mrb[0].mxu0 %v2640
        %v2804 = vpop.f32.mrb[0].mxu0
        %v2805 = vadd.f32 0.0, %v2804
        %v2806 = vpop.f32.mrb[0].mxu0
        %v2807 = vpop.f32.mrb[0].mxu0
        %v2808 = vpop.f32.mrb[0].mxu0
        %2809 = vdwg.mxu0
        %v2810 = vadd.f32 %v2457, %v2805
        %v2811 = vld [vmem:[#allocation12 + $0xe] sm:$0x1]
        %v2812 = vlaneseq
        %v2813 = vshrl.u32 %v2812, 7
        %v2814 = vsub.s32 0, %v2813
        %v2815 = vrot.slane %v2811, %v2814
        %v2816 = vadd.f32 %v2810, %v2815
        %2817 = vst [vmem:[%s514] sm:$0xff] %v2816
        %s2818 = sand.u32 %s266, 1
        %s2819 = scalar_lea.sflag [#allocation8], %s2818
        %s2820 = sand.u32 %s266, 1
        %s2821 = smul.addr %s2820, 8
        %s2822 = scalar_lea.vmem [#allocation18], %s2821
        // Predicated region
        $region89: #{tpu_custom_call.1} parent=55 // pred_check
          %p2823 = pneg %p276
        $region90: #{tpu_custom_call.1} parent=55 // pred_check_branch
          %2825 = sbr.rel (%p2823) target = $region92
        $region91: #{tpu_custom_call.1} parent=55 // pred_region
          %s2827 = ssub.s32 128, 128
          %2828 = vsyncadd %s2819, %s2827
          %s2829 = sadd.s32 %s36, %s35
          %s2830 = smul.addr %s2829, 128
          %s2831 = scalar_lea.hbm %s9, %s2830
          %s2833 = sshll.u32 %s2822, 4
          %s2834 = int_to_ptr.vmem [resolvable:$true] %s2833
          %2836 = dma.vmem_to_hbm [thread:$0]  %s2834, 128, %s2831, %s2819
        $region92: #{tpu_custom_call.1} parent=55 // pred_fallthru
          _
      $region56: #{tpu_custom_call.1} parent=5 // pred_fallthru
        _
      %p2837 = scmp.le.s32.totalorder 2, %s26
      // Predicated region
      $region93: #{tpu_custom_call.1} parent=5 // pred_check
        %p2838 = pneg %p2837
      $region94: #{tpu_custom_call.1} parent=5 // pred_check_branch
        %2840 = sbr.rel (%p2838) target = $region96
      $region95: #{tpu_custom_call.1} parent=5 // pred_region
        %s2841 = ssub.s32 %s26, 2
        // Predicated region
        $region97: #{tpu_custom_call.1} parent=95 // pred_check
          %p2842 = pneg %p282
        $region98: #{tpu_custom_call.1} parent=95 // pred_check_branch
          %2844 = sbr.rel (%p2842) target = $region100
        $region99: #{tpu_custom_call.1} parent=95 // pred_region
          %s2845 = sand.u32 %s267, 1
          %s2846 = scalar_lea.sflag [#allocation8], %s2845
          %s2847 = sand.u32 %s267, 1
          %s2848 = smul.addr %s2847, 8
          %s2849 = scalar_lea.vmem [#allocation18], %s2848
          %2850 = dma.done %s2846, 128
        $region100: #{tpu_custom_call.1} parent=95 // pred_fallthru
          _
      $region96: #{tpu_custom_call.1} parent=5 // pred_fallthru
        _
    $region6: #{tpu_custom_call.1} parent=1 // loop_footer
      %s30 = sadd.s32 1, %s26
    $region7: #{tpu_custom_call.1} parent=1 // loop_footer_branch
      %25 = sbr.rel target = $region3
    $region8: #{tpu_custom_call.1} parent=1 // loop_exit
      _
    %2851 = vsyncpa [#allocation7], 1
    %s2852 = scalar_lea.sflag [#allocation7], 1
    %2853 = vsyncpa %s2852, 1
    %2854 = vsyncpa [#allocation10], 1
    %s2855 = scalar_lea.sflag [#allocation10], 1
    %2856 = vsyncpa %s2855, 1
    %2857 = vsyncpa [#allocation13], 1
    %2858 = vsyncpa [#allocation16], 1
    %2859 = vsyncpa [#allocation8], 1
    %s2860 = scalar_lea.sflag [#allocation8], 1
    %2861 = vsyncpa %s2860, 1

</llo_original>
